<compile_context>
chip_gen: v7x
topology: tpu7x:2x2x1
jax: 0.10.0
libtpu: 0.0.40
codegen_flags: <defaults>
</compile_context>

<pallas_src>
import functools

import jax
import jax.numpy as jnp
from jax.experimental import pallas as pl
from jax.experimental.pallas import tpu as pltpu


_CPARAMS = pltpu.CompilerParams(
    dimension_semantics=("parallel",),
    vmem_limit_bytes=32 * 1024 * 1024,
)


def _row_tile(n):
    """Largest row tile <= 512 that divides n (rows are a multiple of 8)."""
    for t in (512, 256, 128, 64, 32, 16, 8):
        if n >= t and n % t == 0:
            return t
    return n


# ------------------------------ in-kernel math ------------------------------ #

def _layernorm(x, g, b):
    mean = jnp.mean(x, axis=-1, keepdims=True)
    var = jnp.mean(jnp.square(x - mean), axis=-1, keepdims=True)
    return (x - mean) * jax.lax.rsqrt(var + 1e-5) * g + b


def _heads_attention(pq, pkv, mask2d, num_heads, dk):
    """Per-head softmax attention. pq/pkv are bf16 (S, D); returns f32 (Sq, D)."""
    scale = 1.0 / (dk ** 0.5)
    ctx_heads = []
    for h in range(num_heads):
        qh = pq[:, h * dk:(h + 1) * dk]      # (Sq, dk) bf16
        kh = pkv[:, h * dk:(h + 1) * dk]     # (Sk, dk) bf16
        vh = kh                              # K == V (shared projection)
        s = jax.lax.dot_general(             # q @ k.T, f32 accumulation
            qh, kh, (((1,), (1,)), ((), ())),
            preferred_element_type=jnp.float32) * scale
        s = jnp.where(mask2d, -jnp.inf, s)
        s = s - jnp.max(s, axis=-1, keepdims=True)
        e = jnp.exp(s)
        inv = pl.reciprocal(jnp.sum(e, axis=-1, keepdims=True), approx=True)
        a = (e * inv).astype(jnp.bfloat16)
        ctx_heads.append(jnp.dot(a, vh, preferred_element_type=jnp.float32))
    return jnp.concatenate(ctx_heads, axis=-1)  # (Sq, D) f32, head-column order


# ------------------------------ Pallas kernels ------------------------------ #

def _self_attn_kernel(len_ref, x_ref, g_ref, b_ref, wq_ref, wo_ref, o_ref, *,
                      num_heads, causal):
    """Fused: LN -> shared QKV projection -> MHA -> out-proj -> +residual."""
    x = x_ref[0]                                       # (S, D) f32
    S, D = x.shape
    dk = D // num_heads

    ln = _layernorm(x, g_ref[...], b_ref[...])
    # Single projection (Q_Linear) reused for Q, K and V.
    p = jnp.dot(ln.astype(jnp.bfloat16), wq_ref[...],
                preferred_element_type=jnp.float32)
    pb = p.astype(jnp.bfloat16)

    if causal:                                         # look-ahead mask
        qpos = jax.lax.broadcasted_iota(jnp.int32, (S, S), 0)
        kpos = jax.lax.broadcasted_iota(jnp.int32, (S, S), 1)
        mask2d = kpos > qpos
    else:                                              # pad mask from lengths
        kpos = jax.lax.broadcasted_iota(jnp.int32, (S, S), 1)
        mask2d = kpos >= len_ref[pl.program_id(0)]

    ctx = _heads_attention(pb, pb, mask2d, num_heads, dk)
    out = x + jnp.dot(ctx.astype(jnp.bfloat16), wo_ref[...],
                      preferred_element_type=jnp.float32)
    o_ref[0] = out


def _cross_attn_kernel(len_ref, xq_ref, xkv_ref, g_ref, b_ref, wq_ref, wo_ref,
                       o_ref, *, num_heads):
    """Fused cross-attention: LN(q), LN(kv) -> shared projection (kv projected
    once, reused for K and V) -> MHA with pad mask -> out-proj -> +residual."""
    xq = xq_ref[0]                                     # (Sq, D) f32
    xkv = xkv_ref[0]                                   # (Sk, D) f32
    Sq, D = xq.shape
    Sk = xkv.shape[0]
    dk = D // num_heads

    g = g_ref[...]
    b = b_ref[...]
    wq = wq_ref[...]
    pq = jnp.dot(_layernorm(xq, g, b).astype(jnp.bfloat16), wq,
                 preferred_element_type=jnp.float32).astype(jnp.bfloat16)
    pkv = jnp.dot(_layernorm(xkv, g, b).astype(jnp.bfloat16), wq,
                  preferred_element_type=jnp.float32).astype(jnp.bfloat16)

    kpos = jax.lax.broadcasted_iota(jnp.int32, (Sq, Sk), 1)
    mask2d = kpos >= len_ref[pl.program_id(0)]

    ctx = _heads_attention(pq, pkv, mask2d, num_heads, dk)
    out = xq + jnp.dot(ctx.astype(jnp.bfloat16), wo_ref[...],
                       preferred_element_type=jnp.float32)
    o_ref[0] = out


def _ffn_kernel(x_ref, g_ref, b_ref, w1_ref, b1_ref, w2_ref, b2_ref, o_ref):
    """Fused: LN -> Linear(D,4D) -> ReLU -> Linear(4D,D) -> +residual."""
    x = x_ref[...]
    ln = _layernorm(x, g_ref[...], b_ref[...])
    h = jnp.dot(ln.astype(jnp.bfloat16), w1_ref[...],
                preferred_element_type=jnp.float32) + b1_ref[...]
    h = jnp.maximum(h, 0.0)                            # ReLU (use_leaky_relu=False)
    y = jnp.dot(h.astype(jnp.bfloat16), w2_ref[...],
                preferred_element_type=jnp.float32) + b2_ref[...]
    o_ref[...] = x + y


def _generator_kernel(x_ref, g_ref, b_ref, w_ref, wb_ref, o_ref):
    """Fused: LN -> Linear -> LogSoftmax (f32 statistics)."""
    x = x_ref[...]
    z = _layernorm(x, g_ref[...], b_ref[...])
    logits = jnp.dot(z.astype(jnp.bfloat16), w_ref[...],
                     preferred_element_type=jnp.float32) + wb_ref[...]
    s = logits - jnp.max(logits, axis=-1, keepdims=True)
    lse = jnp.log(jnp.sum(jnp.exp(s), axis=-1, keepdims=True))
    o_ref[...] = s - lse


# ------------------------------- wrappers ----------------------------------- #

def attn_self(x, lengths, ln_g, ln_b, wq, wo, num_heads, causal):
    B, S, D = x.shape
    kern = functools.partial(_self_attn_kernel, num_heads=num_heads,
                             causal=causal)
    return pl.pallas_call(
        kern,
        out_shape=jax.ShapeDtypeStruct((B, S, D), jnp.float32),
        grid_spec=pltpu.PrefetchScalarGridSpec(
            num_scalar_prefetch=1,
            grid=(B,),
            in_specs=[
                pl.BlockSpec((1, S, D), lambda b, L: (b, 0, 0)),
                pl.BlockSpec((1, D), lambda b, L: (0, 0)),
                pl.BlockSpec((1, D), lambda b, L: (0, 0)),
                pl.BlockSpec((D, D), lambda b, L: (0, 0)),
                pl.BlockSpec((D, D), lambda b, L: (0, 0)),
            ],
            out_specs=pl.BlockSpec((1, S, D), lambda b, L: (b, 0, 0)),
        ),
        compiler_params=_CPARAMS,
    )(lengths, x, ln_g.reshape(1, D), ln_b.reshape(1, D), wq, wo)


def attn_cross(xq, xkv, lengths, ln_g, ln_b, wq, wo, num_heads):
    B, Sq, D = xq.shape
    Sk = xkv.shape[1]
    kern = functools.partial(_cross_attn_kernel, num_heads=num_heads)
    return pl.pallas_call(
        kern,
        out_shape=jax.ShapeDtypeStruct((B, Sq, D), jnp.float32),
        grid_spec=pltpu.PrefetchScalarGridSpec(
            num_scalar_prefetch=1,
            grid=(B,),
            in_specs=[
                pl.BlockSpec((1, Sq, D), lambda b, L: (b, 0, 0)),
                pl.BlockSpec((1, Sk, D), lambda b, L: (b, 0, 0)),
                pl.BlockSpec((1, D), lambda b, L: (0, 0)),
                pl.BlockSpec((1, D), lambda b, L: (0, 0)),
                pl.BlockSpec((D, D), lambda b, L: (0, 0)),
                pl.BlockSpec((D, D), lambda b, L: (0, 0)),
            ],
            out_specs=pl.BlockSpec((1, Sq, D), lambda b, L: (b, 0, 0)),
        ),
        compiler_params=_CPARAMS,
    )(lengths, xq, xkv, ln_g.reshape(1, D), ln_b.reshape(1, D), wq, wo)


def ffn_block(x, ln_g, ln_b, w1, b1, w2, b2):
    B, S, D = x.shape
    Dff = w1.shape[1]
    BS = B * S
    TM = _row_tile(BS)
    out = pl.pallas_call(
        _ffn_kernel,
        out_shape=jax.ShapeDtypeStruct((BS, D), jnp.float32),
        grid=(BS // TM,),
        in_specs=[
            pl.BlockSpec((TM, D), lambda i: (i, 0)),
            pl.BlockSpec((1, D), lambda i: (0, 0)),
            pl.BlockSpec((1, D), lambda i: (0, 0)),
            pl.BlockSpec((D, Dff), lambda i: (0, 0)),
            pl.BlockSpec((1, Dff), lambda i: (0, 0)),
            pl.BlockSpec((Dff, D), lambda i: (0, 0)),
            pl.BlockSpec((1, D), lambda i: (0, 0)),
        ],
        out_specs=pl.BlockSpec((TM, D), lambda i: (i, 0)),
        compiler_params=_CPARAMS,
    )(x.reshape(BS, D), ln_g.reshape(1, D), ln_b.reshape(1, D),
      w1, b1.reshape(1, Dff), w2, b2.reshape(1, D))
    return out.reshape(B, S, D)


def generator(x, ln_g, ln_b, w, wb):
    # TODO(synk): for production vocab sizes, tile the vocab axis with an
    # online 2-pass log-softmax; at this V the full (D, V) weight fits VMEM.
    B, S, D = x.shape
    V = w.shape[1]
    BS = B * S
    TM = _row_tile(BS)
    out = pl.pallas_call(
        _generator_kernel,
        out_shape=jax.ShapeDtypeStruct((BS, V), jnp.float32),
        grid=(BS // TM,),
        in_specs=[
            pl.BlockSpec((TM, D), lambda i: (i, 0)),
            pl.BlockSpec((1, D), lambda i: (0, 0)),
            pl.BlockSpec((1, D), lambda i: (0, 0)),
            pl.BlockSpec((D, V), lambda i: (0, 0)),
            pl.BlockSpec((1, V), lambda i: (0, 0)),
        ],
        out_specs=pl.BlockSpec((TM, V), lambda i: (i, 0)),
        compiler_params=_CPARAMS,
    )(x.reshape(BS, D), ln_g.reshape(1, D), ln_b.reshape(1, D),
      w, wb.reshape(1, V))
    return out.reshape(B, S, V)


# ------------------------------- model glue --------------------------------- #

def make_pos_enc(d_model, max_length):
    # Matches the reference: exponent is dim / d_model with dim = arange(d//2).
    pos = jnp.arange(max_length, dtype=jnp.float32)[:, None]
    dim = jnp.arange(d_model // 2, dtype=jnp.float32)
    angle = pos / jnp.power(10000.0, dim / float(d_model))
    pe = jnp.zeros((max_length, d_model), jnp.float32)
    pe = pe.at[:, 0::2].set(jnp.sin(angle))
    pe = pe.at[:, 1::2].set(jnp.cos(angle))
    return pe


def init_params(key, input_size, output_size, d_model, n_enc, n_dec):
    d_ff = 4 * d_model
    keys = iter(jax.random.split(key, 256))

    def w(shape, scale=0.05):
        # Weights stored bf16 for MXU; accumulation stays f32 in-kernel.
        return (scale * jax.random.normal(next(keys), shape,
                                          jnp.float32)).astype(jnp.bfloat16)

    params = dict(
        emb_enc=jax.random.normal(next(keys), (input_size, d_model), jnp.float32),
        emb_dec=jax.random.normal(next(keys), (output_size, d_model), jnp.float32),
        enc=[], dec=[],
        gen_ln_g=jnp.ones((d_model,), jnp.float32),
        gen_ln_b=jnp.zeros((d_model,), jnp.float32),
        gen_w=w((d_model, output_size)),
        gen_b=jnp.zeros((output_size,), jnp.float32),
    )
    for _ in range(n_enc):
        params['enc'].append(dict(
            wq=w((d_model, d_model)), wo=w((d_model, d_model)),
            ln1_g=jnp.ones((d_model,), jnp.float32),
            ln1_b=jnp.zeros((d_model,), jnp.float32),
            ln2_g=jnp.ones((d_model,), jnp.float32),
            ln2_b=jnp.zeros((d_model,), jnp.float32),
            w1=w((d_model, d_ff)), b1=jnp.zeros((d_ff,), jnp.float32),
            w2=w((d_ff, d_model)), b2=jnp.zeros((d_model,), jnp.float32),
        ))
    for _ in range(n_dec):
        # One shared LayerNorm per decoder block (matches the reference module).
        params['dec'].append(dict(
            mwq=w((d_model, d_model)), mwo=w((d_model, d_model)),
            awq=w((d_model, d_model)), awo=w((d_model, d_model)),
            ln_g=jnp.ones((d_model,), jnp.float32),
            ln_b=jnp.zeros((d_model,), jnp.float32),
            w1=w((d_model, d_ff)), b1=jnp.zeros((d_ff,), jnp.float32),
            w2=w((d_ff, d_model)), b2=jnp.zeros((d_model,), jnp.float32),
        ))
    return params


def transformer_forward(params, x_tokens, lengths, y_tokens, pos_enc, *,
                        num_heads):
    B, Se = x_tokens.shape
    Sd = y_tokens.shape[1]
    lengths = lengths.astype(jnp.int32)

    # TODO(synk): dropout layers are identity here (inference mode).
    # Encoder: pre-LN self-attention with pad mask, then FFN (both fused).
    z = params['emb_enc'][x_tokens] + pos_enc[None, :Se, :]
    for p in params['enc']:
        z = attn_self(z, lengths, p['ln1_g'], p['ln1_b'], p['wq'], p['wo'],
                      num_heads, causal=False)
        z = ffn_block(z, p['ln2_g'], p['ln2_b'],
                      p['w1'], p['b1'], p['w2'], p['b2'])

    # Decoder (prev=None path): masked self-attn, cross-attn on encoder memory,
    # FFN; all LayerNorms in a block share the same params (reference behavior).
    h = params['emb_dec'][y_tokens] + pos_enc[None, :Sd, :]
    for p in params['dec']:
        h = attn_self(h, lengths, p['ln_g'], p['ln_b'], p['mwq'], p['mwo'],
                      num_heads, causal=True)
        h = attn_cross(h, z, lengths, p['ln_g'], p['ln_b'],
                       p['awq'], p['awo'], num_heads)
        h = ffn_block(h, p['ln_g'], p['ln_b'],
                      p['w1'], p['b1'], p['w2'], p['b2'])

    return generator(h, params['gen_ln_g'], params['gen_ln_b'],
                     params['gen_w'], params['gen_b'])


if __name__ == "__main__":
    B, Se, Sd = 2, 8, 8
    d_model, num_heads = 128, 4          # lane-dense: D and V multiples of 128
    input_size, output_size = 128, 128
    n_enc, n_dec = 2, 2
    max_length = 64

    key = jax.random.PRNGKey(0)
    kp, kx, ky = jax.random.split(key, 3)

    params = init_params(kp, input_size, output_size, d_model, n_enc, n_dec)
    pos_enc = make_pos_enc(d_model, max_length)

    x_tokens = jax.random.randint(kx, (B, Se), 0, input_size, dtype=jnp.int32)
    y_tokens = jax.random.randint(ky, (B, Sd), 0, output_size, dtype=jnp.int32)
    lengths = jnp.array([Se, Se - 3], dtype=jnp.int32)   # max(length) == Se

    fwd = jax.jit(functools.partial(transformer_forward, num_heads=num_heads))
    out = fwd(params, x_tokens, lengths, y_tokens, pos_enc)
    out = jax.block_until_ready(out)

    assert out.shape == (B, Sd, output_size)
    assert bool(jnp.all(jnp.isfinite(out)))
    print("KERNEL_OK")
</pallas_src>

<mosaic_0001>
module attributes {stable_mosaic.version = 11 : i64} {
  func.func @_self_attn_kernel(%arg0: i32, %arg1: memref<2xi32, #tpu.memory_space<smem>>, %arg2: memref<1x8x128xf32, #tpu.memory_space<vmem>>, %arg3: memref<1x128xf32, #tpu.memory_space<vmem>>, %arg4: memref<1x128xf32, #tpu.memory_space<vmem>>, %arg5: memref<128x128xbf16, #tpu.memory_space<vmem>>, %arg6: memref<128x128xbf16, #tpu.memory_space<vmem>>, %arg7: memref<1x8x128xf32, #tpu.memory_space<vmem>>) attributes {dimension_semantics = [#tpu.dimension_semantics<parallel>], iteration_bounds = array<i64: 2>, scalar_prefetch = 1 : i64, scratch_operands = 0 : i64, tpu.core_type = #tpu.core_type<tc>, window_params = [{transform_indices = @transform_0, window_bounds = array<i64: 1, 8, 128>}, {pipeline_mode = #tpu.pipeline_mode<synchronous>, transform_indices = @transform_1, window_bounds = array<i64: 1, 128>}, {pipeline_mode = #tpu.pipeline_mode<synchronous>, transform_indices = @transform_2, window_bounds = array<i64: 1, 128>}, {pipeline_mode = #tpu.pipeline_mode<synchronous>, transform_indices = @transform_3, window_bounds = array<i64: 128, 128>}, {pipeline_mode = #tpu.pipeline_mode<synchronous>, transform_indices = @transform_4, window_bounds = array<i64: 128, 128>}, {transform_indices = @transform_5, window_bounds = array<i64: 1, 8, 128>}]} {
    %c0 = arith.constant 0 : index
    %c0_0 = arith.constant 0 : index
    %c0_1 = arith.constant 0 : index
    %0 = vector.load %arg2[%c0, %c0_0, %c0_1] : memref<1x8x128xf32, #tpu.memory_space<vmem>>, vector<1x8x128xf32>
    %1 = vector.shape_cast %0 : vector<1x8x128xf32> to vector<8x128xf32>
    %c0_2 = arith.constant 0 : index
    %c0_3 = arith.constant 0 : index
    %2 = vector.load %arg3[%c0_2, %c0_3] : memref<1x128xf32, #tpu.memory_space<vmem>>, vector<1x128xf32>
    %c0_4 = arith.constant 0 : index
    %c0_5 = arith.constant 0 : index
    %3 = vector.load %arg4[%c0_4, %c0_5] : memref<1x128xf32, #tpu.memory_space<vmem>>, vector<1x128xf32>
    %cst = arith.constant dense<0.000000e+00> : vector<8xf32>
    %4 = vector.multi_reduction <add>, %1, %cst [1] : vector<8x128xf32> to vector<8xf32>
    %5 = vector.shape_cast %4 : vector<8xf32> to vector<8x1xf32>
    %cst_6 = arith.constant 1.280000e+02 : f32
    %6 = vector.broadcast %cst_6 : f32 to vector<8x1xf32>
    %7 = arith.divf %5, %6 : vector<8x1xf32>
    %8 = vector.broadcast %7 : vector<8x1xf32> to vector<8x128xf32>
    %9 = arith.subf %1, %8 : vector<8x128xf32>
    %10 = arith.mulf %9, %9 : vector<8x128xf32>
    %cst_7 = arith.constant dense<0.000000e+00> : vector<8xf32>
    %11 = vector.multi_reduction <add>, %10, %cst_7 [1] : vector<8x128xf32> to vector<8xf32>
    %12 = vector.shape_cast %11 : vector<8xf32> to vector<8x1xf32>
    %cst_8 = arith.constant 1.280000e+02 : f32
    %13 = vector.broadcast %cst_8 : f32 to vector<8x1xf32>
    %14 = arith.divf %12, %13 : vector<8x1xf32>
    %15 = vector.broadcast %7 : vector<8x1xf32> to vector<8x128xf32>
    %16 = arith.subf %1, %15 : vector<8x128xf32>
    %cst_9 = arith.constant 9.99999974E-6 : f32
    %17 = vector.broadcast %cst_9 : f32 to vector<8x1xf32>
    %18 = arith.addf %14, %17 : vector<8x1xf32>
    %19 = math.rsqrt %18 : vector<8x1xf32>
    %20 = vector.broadcast %19 : vector<8x1xf32> to vector<8x128xf32>
    %21 = arith.mulf %16, %20 : vector<8x128xf32>
    %22 = vector.broadcast %2 : vector<1x128xf32> to vector<8x128xf32>
    %23 = arith.mulf %21, %22 : vector<8x128xf32>
    %24 = vector.broadcast %3 : vector<1x128xf32> to vector<8x128xf32>
    %25 = arith.addf %23, %24 : vector<8x128xf32>
    %26 = arith.truncf %25 : vector<8x128xf32> to vector<8x128xbf16>
    %c0_10 = arith.constant 0 : index
    %c0_11 = arith.constant 0 : index
    %27 = vector.load %arg5[%c0_10, %c0_11] : memref<128x128xbf16, #tpu.memory_space<vmem>>, vector<128x128xbf16>
    %cst_12 = arith.constant dense<0.000000e+00> : vector<8x128xf32>
    %28 = tpu.matmul %26, %27, %cst_12 {dimension_numbers = #tpu.dot_dimension_numbers<[1], [0], [0], [1], [0, 0, 1, 1], [], []>} : vector<8x128xbf16>, vector<128x128xbf16>, vector<8x128xf32> -> vector<8x128xf32>
    %29 = arith.truncf %28 : vector<8x128xf32> to vector<8x128xbf16>
    %30 = tpu.iota {dimensions = array<i32: 1>} : vector<8x8xi32>
    %31 = arith.index_cast %arg0 : i32 to index
    %32 = memref.load %arg1[%31] : memref<2xi32, #tpu.memory_space<smem>>
    %33 = vector.broadcast %32 : i32 to vector<8x8xi32>
    %34 = arith.cmpi sge, %30, %33 : vector<8x8xi32>
    %35 = vector.extract_strided_slice %29 {offsets = [0, 0], sizes = [8, 32], strides = [1, 1]} : vector<8x128xbf16> to vector<8x32xbf16>
    %36 = vector.extract_strided_slice %29 {offsets = [0, 0], sizes = [8, 32], strides = [1, 1]} : vector<8x128xbf16> to vector<8x32xbf16>
    %cst_13 = arith.constant dense<0.000000e+00> : vector<8x8xf32>
    %37 = tpu.matmul %35, %36, %cst_13 {dimension_numbers = #tpu.dot_dimension_numbers<[1], [1], [0], [0], [0, 0, 1, 0], [], []>} : vector<8x32xbf16>, vector<8x32xbf16>, vector<8x8xf32> -> vector<8x8xf32>
    %cst_14 = arith.constant 0.176776692 : f32
    %38 = vector.broadcast %cst_14 : f32 to vector<8x8xf32>
    %39 = arith.mulf %37, %38 : vector<8x8xf32>
    %cst_15 = arith.constant 0xFF800000 : f32
    %40 = vector.broadcast %cst_15 : f32 to vector<8x8xf32>
    %41 = arith.select %34, %40, %39 : vector<8x8xi1>, vector<8x8xf32>
    %cst_16 = arith.constant dense<0xFF800000> : vector<8xf32>
    %42 = vector.multi_reduction <maximumf>, %41, %cst_16 [1] : vector<8x8xf32> to vector<8xf32>
    %43 = vector.shape_cast %42 : vector<8xf32> to vector<8x1xf32>
    %44 = vector.broadcast %43 : vector<8x1xf32> to vector<8x8xf32>
    %45 = arith.subf %41, %44 : vector<8x8xf32>
    %46 = math.exp %45 : vector<8x8xf32>
    %cst_17 = arith.constant dense<0.000000e+00> : vector<8xf32>
    %47 = vector.multi_reduction <add>, %46, %cst_17 [1] : vector<8x8xf32> to vector<8xf32>
    %48 = vector.shape_cast %47 : vector<8xf32> to vector<8x1xf32>
    %49 = tpu.reciprocal %48 {approx = true} : vector<8x1xf32> -> vector<8x1xf32>
    %50 = vector.broadcast %49 : vector<8x1xf32> to vector<8x8xf32>
    %51 = arith.mulf %46, %50 : vector<8x8xf32>
    %52 = arith.truncf %51 : vector<8x8xf32> to vector<8x8xbf16>
    %cst_18 = arith.constant dense<0.000000e+00> : vector<8x32xf32>
    %53 = tpu.matmul %52, %36, %cst_18 {dimension_numbers = #tpu.dot_dimension_numbers<[1], [0], [0], [1], [0, 0, 1, 1], [], []>} : vector<8x8xbf16>, vector<8x32xbf16>, vector<8x32xf32> -> vector<8x32xf32>
    %54 = vector.extract_strided_slice %29 {offsets = [0, 32], sizes = [8, 32], strides = [1, 1]} : vector<8x128xbf16> to vector<8x32xbf16>
    %55 = vector.extract_strided_slice %29 {offsets = [0, 32], sizes = [8, 32], strides = [1, 1]} : vector<8x128xbf16> to vector<8x32xbf16>
    %cst_19 = arith.constant dense<0.000000e+00> : vector<8x8xf32>
    %56 = tpu.matmul %54, %55, %cst_19 {dimension_numbers = #tpu.dot_dimension_numbers<[1], [1], [0], [0], [0, 0, 1, 0], [], []>} : vector<8x32xbf16>, vector<8x32xbf16>, vector<8x8xf32> -> vector<8x8xf32>
    %cst_20 = arith.constant 0.176776692 : f32
    %57 = vector.broadcast %cst_20 : f32 to vector<8x8xf32>
    %58 = arith.mulf %56, %57 : vector<8x8xf32>
    %cst_21 = arith.constant 0xFF800000 : f32
    %59 = vector.broadcast %cst_21 : f32 to vector<8x8xf32>
    %60 = arith.select %34, %59, %58 : vector<8x8xi1>, vector<8x8xf32>
    %cst_22 = arith.constant dense<0xFF800000> : vector<8xf32>
    %61 = vector.multi_reduction <maximumf>, %60, %cst_22 [1] : vector<8x8xf32> to vector<8xf32>
    %62 = vector.shape_cast %61 : vector<8xf32> to vector<8x1xf32>
    %63 = vector.broadcast %62 : vector<8x1xf32> to vector<8x8xf32>
    %64 = arith.subf %60, %63 : vector<8x8xf32>
    %65 = math.exp %64 : vector<8x8xf32>
    %cst_23 = arith.constant dense<0.000000e+00> : vector<8xf32>
    %66 = vector.multi_reduction <add>, %65, %cst_23 [1] : vector<8x8xf32> to vector<8xf32>
    %67 = vector.shape_cast %66 : vector<8xf32> to vector<8x1xf32>
    %68 = tpu.reciprocal %67 {approx = true} : vector<8x1xf32> -> vector<8x1xf32>
    %69 = vector.broadcast %68 : vector<8x1xf32> to vector<8x8xf32>
    %70 = arith.mulf %65, %69 : vector<8x8xf32>
    %71 = arith.truncf %70 : vector<8x8xf32> to vector<8x8xbf16>
    %cst_24 = arith.constant dense<0.000000e+00> : vector<8x32xf32>
    %72 = tpu.matmul %71, %55, %cst_24 {dimension_numbers = #tpu.dot_dimension_numbers<[1], [0], [0], [1], [0, 0, 1, 1], [], []>} : vector<8x8xbf16>, vector<8x32xbf16>, vector<8x32xf32> -> vector<8x32xf32>
    %73 = vector.extract_strided_slice %29 {offsets = [0, 64], sizes = [8, 32], strides = [1, 1]} : vector<8x128xbf16> to vector<8x32xbf16>
    %74 = vector.extract_strided_slice %29 {offsets = [0, 64], sizes = [8, 32], strides = [1, 1]} : vector<8x128xbf16> to vector<8x32xbf16>
    %cst_25 = arith.constant dense<0.000000e+00> : vector<8x8xf32>
    %75 = tpu.matmul %73, %74, %cst_25 {dimension_numbers = #tpu.dot_dimension_numbers<[1], [1], [0], [0], [0, 0, 1, 0], [], []>} : vector<8x32xbf16>, vector<8x32xbf16>, vector<8x8xf32> -> vector<8x8xf32>
    %cst_26 = arith.constant 0.176776692 : f32
    %76 = vector.broadcast %cst_26 : f32 to vector<8x8xf32>
    %77 = arith.mulf %75, %76 : vector<8x8xf32>
    %cst_27 = arith.constant 0xFF800000 : f32
    %78 = vector.broadcast %cst_27 : f32 to vector<8x8xf32>
    %79 = arith.select %34, %78, %77 : vector<8x8xi1>, vector<8x8xf32>
    %cst_28 = arith.constant dense<0xFF800000> : vector<8xf32>
    %80 = vector.multi_reduction <maximumf>, %79, %cst_28 [1] : vector<8x8xf32> to vector<8xf32>
    %81 = vector.shape_cast %80 : vector<8xf32> to vector<8x1xf32>
    %82 = vector.broadcast %81 : vector<8x1xf32> to vector<8x8xf32>
    %83 = arith.subf %79, %82 : vector<8x8xf32>
    %84 = math.exp %83 : vector<8x8xf32>
    %cst_29 = arith.constant dense<0.000000e+00> : vector<8xf32>
    %85 = vector.multi_reduction <add>, %84, %cst_29 [1] : vector<8x8xf32> to vector<8xf32>
    %86 = vector.shape_cast %85 : vector<8xf32> to vector<8x1xf32>
    %87 = tpu.reciprocal %86 {approx = true} : vector<8x1xf32> -> vector<8x1xf32>
    %88 = vector.broadcast %87 : vector<8x1xf32> to vector<8x8xf32>
    %89 = arith.mulf %84, %88 : vector<8x8xf32>
    %90 = arith.truncf %89 : vector<8x8xf32> to vector<8x8xbf16>
    %cst_30 = arith.constant dense<0.000000e+00> : vector<8x32xf32>
    %91 = tpu.matmul %90, %74, %cst_30 {dimension_numbers = #tpu.dot_dimension_numbers<[1], [0], [0], [1], [0, 0, 1, 1], [], []>} : vector<8x8xbf16>, vector<8x32xbf16>, vector<8x32xf32> -> vector<8x32xf32>
    %92 = vector.extract_strided_slice %29 {offsets = [0, 96], sizes = [8, 32], strides = [1, 1]} : vector<8x128xbf16> to vector<8x32xbf16>
    %93 = vector.extract_strided_slice %29 {offsets = [0, 96], sizes = [8, 32], strides = [1, 1]} : vector<8x128xbf16> to vector<8x32xbf16>
    %cst_31 = arith.constant dense<0.000000e+00> : vector<8x8xf32>
    %94 = tpu.matmul %92, %93, %cst_31 {dimension_numbers = #tpu.dot_dimension_numbers<[1], [1], [0], [0], [0, 0, 1, 0], [], []>} : vector<8x32xbf16>, vector<8x32xbf16>, vector<8x8xf32> -> vector<8x8xf32>
    %cst_32 = arith.constant 0.176776692 : f32
    %95 = vector.broadcast %cst_32 : f32 to vector<8x8xf32>
    %96 = arith.mulf %94, %95 : vector<8x8xf32>
    %cst_33 = arith.constant 0xFF800000 : f32
    %97 = vector.broadcast %cst_33 : f32 to vector<8x8xf32>
    %98 = arith.select %34, %97, %96 : vector<8x8xi1>, vector<8x8xf32>
    %cst_34 = arith.constant dense<0xFF800000> : vector<8xf32>
    %99 = vector.multi_reduction <maximumf>, %98, %cst_34 [1] : vector<8x8xf32> to vector<8xf32>
    %100 = vector.shape_cast %99 : vector<8xf32> to vector<8x1xf32>
    %101 = vector.broadcast %100 : vector<8x1xf32> to vector<8x8xf32>
    %102 = arith.subf %98, %101 : vector<8x8xf32>
    %103 = math.exp %102 : vector<8x8xf32>
    %cst_35 = arith.constant dense<0.000000e+00> : vector<8xf32>
    %104 = vector.multi_reduction <add>, %103, %cst_35 [1] : vector<8x8xf32> to vector<8xf32>
    %105 = vector.shape_cast %104 : vector<8xf32> to vector<8x1xf32>
    %106 = tpu.reciprocal %105 {approx = true} : vector<8x1xf32> -> vector<8x1xf32>
    %107 = vector.broadcast %106 : vector<8x1xf32> to vector<8x8xf32>
    %108 = arith.mulf %103, %107 : vector<8x8xf32>
    %109 = arith.truncf %108 : vector<8x8xf32> to vector<8x8xbf16>
    %cst_36 = arith.constant dense<0.000000e+00> : vector<8x32xf32>
    %110 = tpu.matmul %109, %93, %cst_36 {dimension_numbers = #tpu.dot_dimension_numbers<[1], [0], [0], [1], [0, 0, 1, 1], [], []>} : vector<8x8xbf16>, vector<8x32xbf16>, vector<8x32xf32> -> vector<8x32xf32>
    %111 = tpu.concatenate %53, %72, %91, %110 in 1 : vector<8x32xf32>, vector<8x32xf32>, vector<8x32xf32>, vector<8x32xf32> -> vector<8x128xf32>
    %112 = arith.truncf %111 : vector<8x128xf32> to vector<8x128xbf16>
    %c0_37 = arith.constant 0 : index
    %c0_38 = arith.constant 0 : index
    %113 = vector.load %arg6[%c0_37, %c0_38] : memref<128x128xbf16, #tpu.memory_space<vmem>>, vector<128x128xbf16>
    %cst_39 = arith.constant dense<0.000000e+00> : vector<8x128xf32>
    %114 = tpu.matmul %112, %113, %cst_39 {dimension_numbers = #tpu.dot_dimension_numbers<[1], [0], [0], [1], [0, 0, 1, 1], [], []>} : vector<8x128xbf16>, vector<128x128xbf16>, vector<8x128xf32> -> vector<8x128xf32>
    %115 = arith.addf %1, %114 : vector<8x128xf32>
    %c0_40 = arith.constant 0 : index
    %c0_41 = arith.constant 0 : index
    %c0_42 = arith.constant 0 : index
    %116 = vector.load %arg7[%c0_40, %c0_41, %c0_42] : memref<1x8x128xf32, #tpu.memory_space<vmem>>, vector<1x8x128xf32>
    %117 = vector.shape_cast %116 : vector<1x8x128xf32> to vector<8x128xf32>
    %118 = vector.shape_cast %115 : vector<8x128xf32> to vector<1x8x128xf32>
    tpu.vector_store %arg7[%c0_40, %c0_41, %c0_42], %118 {strides = array<i32>} : memref<1x8x128xf32, #tpu.memory_space<vmem>>, vector<1x8x128xf32>,
    return
  }
  func.func @transform_0(%arg0: i32, %arg1: memref<2xi32, #tpu.memory_space<smem>>) -> (i32, i32, i32) {
    %c0_i32 = arith.constant 0 : i32
    %c0_i32_0 = arith.constant 0 : i32
    %c0_i32_1 = arith.constant 0 : i32
    return %arg0, %c0_i32, %c0_i32_0 : i32, i32, i32
  }
  func.func @transform_1(%arg0: i32, %arg1: memref<2xi32, #tpu.memory_space<smem>>) -> (i32, i32) {
    %c0_i32 = arith.constant 0 : i32
    %c0_i32_0 = arith.constant 0 : i32
    %c0_i32_1 = arith.constant 0 : i32
    return %c0_i32, %c0_i32_0 : i32, i32
  }
  func.func @transform_2(%arg0: i32, %arg1: memref<2xi32, #tpu.memory_space<smem>>) -> (i32, i32) {
    %c0_i32 = arith.constant 0 : i32
    %c0_i32_0 = arith.constant 0 : i32
    %c0_i32_1 = arith.constant 0 : i32
    return %c0_i32, %c0_i32_0 : i32, i32
  }
  func.func @transform_3(%arg0: i32, %arg1: memref<2xi32, #tpu.memory_space<smem>>) -> (i32, i32) {
    %c0_i32 = arith.constant 0 : i32
    %c0_i32_0 = arith.constant 0 : i32
    %c0_i32_1 = arith.constant 0 : i32
    return %c0_i32, %c0_i32_0 : i32, i32
  }
  func.func @transform_4(%arg0: i32, %arg1: memref<2xi32, #tpu.memory_space<smem>>) -> (i32, i32) {
    %c0_i32 = arith.constant 0 : i32
    %c0_i32_0 = arith.constant 0 : i32
    %c0_i32_1 = arith.constant 0 : i32
    return %c0_i32, %c0_i32_0 : i32, i32
  }
  func.func @transform_5(%arg0: i32, %arg1: memref<2xi32, #tpu.memory_space<smem>>) -> (i32, i32, i32) {
    %c0_i32 = arith.constant 0 : i32
    %c0_i32_0 = arith.constant 0 : i32
    %c0_i32_1 = arith.constant 0 : i32
    return %arg0, %c0_i32, %c0_i32_0 : i32, i32, i32
  }
}

module attributes {stable_mosaic.version = 11 : i64} {
  func.func @_ffn_kernel(%arg0: i32, %arg1: memref<16x128xf32, #tpu.memory_space<vmem>>, %arg2: memref<1x128xf32, #tpu.memory_space<vmem>>, %arg3: memref<1x128xf32, #tpu.memory_space<vmem>>, %arg4: memref<128x512xbf16, #tpu.memory_space<vmem>>, %arg5: memref<1x512xf32, #tpu.memory_space<vmem>>, %arg6: memref<512x128xbf16, #tpu.memory_space<vmem>>, %arg7: memref<1x128xf32, #tpu.memory_space<vmem>>, %arg8: memref<16x128xf32, #tpu.memory_space<vmem>>) attributes {dimension_semantics = [#tpu.dimension_semantics<parallel>], iteration_bounds = array<i64: 1>, scalar_prefetch = 0 : i64, scratch_operands = 0 : i64, tpu.core_type = #tpu.core_type<tc>, window_params = [{transform_indices = @transform_0, window_bounds = array<i64: 16, 128>}, {pipeline_mode = #tpu.pipeline_mode<synchronous>, transform_indices = @transform_1, window_bounds = array<i64: 1, 128>}, {pipeline_mode = #tpu.pipeline_mode<synchronous>, transform_indices = @transform_2, window_bounds = array<i64: 1, 128>}, {pipeline_mode = #tpu.pipeline_mode<synchronous>, transform_indices = @transform_3, window_bounds = array<i64: 128, 512>}, {pipeline_mode = #tpu.pipeline_mode<synchronous>, transform_indices = @transform_4, window_bounds = array<i64: 1, 512>}, {pipeline_mode = #tpu.pipeline_mode<synchronous>, transform_indices = @transform_5, window_bounds = array<i64: 512, 128>}, {pipeline_mode = #tpu.pipeline_mode<synchronous>, transform_indices = @transform_6, window_bounds = array<i64: 1, 128>}, {transform_indices = @transform_7, window_bounds = array<i64: 16, 128>}]} {
    %c0 = arith.constant 0 : index
    %c0_0 = arith.constant 0 : index
    %0 = vector.load %arg1[%c0, %c0_0] : memref<16x128xf32, #tpu.memory_space<vmem>>, vector<16x128xf32>
    %c0_1 = arith.constant 0 : index
    %c0_2 = arith.constant 0 : index
    %1 = vector.load %arg2[%c0_1, %c0_2] : memref<1x128xf32, #tpu.memory_space<vmem>>, vector<1x128xf32>
    %c0_3 = arith.constant 0 : index
    %c0_4 = arith.constant 0 : index
    %2 = vector.load %arg3[%c0_3, %c0_4] : memref<1x128xf32, #tpu.memory_space<vmem>>, vector<1x128xf32>
    %cst = arith.constant dense<0.000000e+00> : vector<16xf32>
    %3 = vector.multi_reduction <add>, %0, %cst [1] : vector<16x128xf32> to vector<16xf32>
    %4 = vector.shape_cast %3 : vector<16xf32> to vector<16x1xf32>
    %cst_5 = arith.constant 1.280000e+02 : f32
    %5 = vector.broadcast %cst_5 : f32 to vector<16x1xf32>
    %6 = arith.divf %4, %5 : vector<16x1xf32>
    %7 = vector.broadcast %6 : vector<16x1xf32> to vector<16x128xf32>
    %8 = arith.subf %0, %7 : vector<16x128xf32>
    %9 = arith.mulf %8, %8 : vector<16x128xf32>
    %cst_6 = arith.constant dense<0.000000e+00> : vector<16xf32>
    %10 = vector.multi_reduction <add>, %9, %cst_6 [1] : vector<16x128xf32> to vector<16xf32>
    %11 = vector.shape_cast %10 : vector<16xf32> to vector<16x1xf32>
    %cst_7 = arith.constant 1.280000e+02 : f32
    %12 = vector.broadcast %cst_7 : f32 to vector<16x1xf32>
    %13 = arith.divf %11, %12 : vector<16x1xf32>
    %14 = vector.broadcast %6 : vector<16x1xf32> to vector<16x128xf32>
    %15 = arith.subf %0, %14 : vector<16x128xf32>
    %cst_8 = arith.constant 9.99999974E-6 : f32
    %16 = vector.broadcast %cst_8 : f32 to vector<16x1xf32>
    %17 = arith.addf %13, %16 : vector<16x1xf32>
    %18 = math.rsqrt %17 : vector<16x1xf32>
    %19 = vector.broadcast %18 : vector<16x1xf32> to vector<16x128xf32>
    %20 = arith.mulf %15, %19 : vector<16x128xf32>
    %21 = vector.broadcast %1 : vector<1x128xf32> to vector<16x128xf32>
    %22 = arith.mulf %20, %21 : vector<16x128xf32>
    %23 = vector.broadcast %2 : vector<1x128xf32> to vector<16x128xf32>
    %24 = arith.addf %22, %23 : vector<16x128xf32>
    %25 = arith.truncf %24 : vector<16x128xf32> to vector<16x128xbf16>
    %c0_9 = arith.constant 0 : index
    %c0_10 = arith.constant 0 : index
    %26 = vector.load %arg4[%c0_9, %c0_10] : memref<128x512xbf16, #tpu.memory_space<vmem>>, vector<128x512xbf16>
    %cst_11 = arith.constant dense<0.000000e+00> : vector<16x512xf32>
    %27 = tpu.matmul %25, %26, %cst_11 {dimension_numbers = #tpu.dot_dimension_numbers<[1], [0], [0], [1], [0, 0, 1, 1], [], []>} : vector<16x128xbf16>, vector<128x512xbf16>, vector<16x512xf32> -> vector<16x512xf32>
    %c0_12 = arith.constant 0 : index
    %c0_13 = arith.constant 0 : index
    %28 = vector.load %arg5[%c0_12, %c0_13] : memref<1x512xf32, #tpu.memory_space<vmem>>, vector<1x512xf32>
    %29 = vector.broadcast %28 : vector<1x512xf32> to vector<16x512xf32>
    %30 = arith.addf %27, %29 : vector<16x512xf32>
    %cst_14 = arith.constant 0.000000e+00 : f32
    %31 = vector.broadcast %cst_14 : f32 to vector<16x512xf32>
    %32 = arith.maximumf %30, %31 : vector<16x512xf32>
    %33 = arith.truncf %32 : vector<16x512xf32> to vector<16x512xbf16>
    %c0_15 = arith.constant 0 : index
    %c0_16 = arith.constant 0 : index
    %34 = vector.load %arg6[%c0_15, %c0_16] : memref<512x128xbf16, #tpu.memory_space<vmem>>, vector<512x128xbf16>
    %cst_17 = arith.constant dense<0.000000e+00> : vector<16x128xf32>
    %35 = tpu.matmul %33, %34, %cst_17 {dimension_numbers = #tpu.dot_dimension_numbers<[1], [0], [0], [1], [0, 0, 1, 1], [], []>} : vector<16x512xbf16>, vector<512x128xbf16>, vector<16x128xf32> -> vector<16x128xf32>
    %c0_18 = arith.constant 0 : index
    %c0_19 = arith.constant 0 : index
    %36 = vector.load %arg7[%c0_18, %c0_19] : memref<1x128xf32, #tpu.memory_space<vmem>>, vector<1x128xf32>
    %37 = vector.broadcast %36 : vector<1x128xf32> to vector<16x128xf32>
    %38 = arith.addf %35, %37 : vector<16x128xf32>
    %39 = arith.addf %0, %38 : vector<16x128xf32>
    %c0_20 = arith.constant 0 : index
    %c0_21 = arith.constant 0 : index
    %40 = vector.load %arg8[%c0_20, %c0_21] : memref<16x128xf32, #tpu.memory_space<vmem>>, vector<16x128xf32>
    tpu.vector_store %arg8[%c0_20, %c0_21], %39 {strides = array<i32>} : memref<16x128xf32, #tpu.memory_space<vmem>>, vector<16x128xf32>,
    return
  }
  func.func @transform_0(%arg0: i32) -> (i32, i32) {
    %c0_i32 = arith.constant 0 : i32
    %c0_i32_0 = arith.constant 0 : i32
    return %arg0, %c0_i32 : i32, i32
  }
  func.func @transform_1(%arg0: i32) -> (i32, i32) {
    %c0_i32 = arith.constant 0 : i32
    %c0_i32_0 = arith.constant 0 : i32
    %c0_i32_1 = arith.constant 0 : i32
    return %c0_i32, %c0_i32_0 : i32, i32
  }
  func.func @transform_2(%arg0: i32) -> (i32, i32) {
    %c0_i32 = arith.constant 0 : i32
    %c0_i32_0 = arith.constant 0 : i32
    %c0_i32_1 = arith.constant 0 : i32
    return %c0_i32, %c0_i32_0 : i32, i32
  }
  func.func @transform_3(%arg0: i32) -> (i32, i32) {
    %c0_i32 = arith.constant 0 : i32
    %c0_i32_0 = arith.constant 0 : i32
    %c0_i32_1 = arith.constant 0 : i32
    return %c0_i32, %c0_i32_0 : i32, i32
  }
  func.func @transform_4(%arg0: i32) -> (i32, i32) {
    %c0_i32 = arith.constant 0 : i32
    %c0_i32_0 = arith.constant 0 : i32
    %c0_i32_1 = arith.constant 0 : i32
    return %c0_i32, %c0_i32_0 : i32, i32
  }
  func.func @transform_5(%arg0: i32) -> (i32, i32) {
    %c0_i32 = arith.constant 0 : i32
    %c0_i32_0 = arith.constant 0 : i32
    %c0_i32_1 = arith.constant 0 : i32
    return %c0_i32, %c0_i32_0 : i32, i32
  }
  func.func @transform_6(%arg0: i32) -> (i32, i32) {
    %c0_i32 = arith.constant 0 : i32
    %c0_i32_0 = arith.constant 0 : i32
    %c0_i32_1 = arith.constant 0 : i32
    return %c0_i32, %c0_i32_0 : i32, i32
  }
  func.func @transform_7(%arg0: i32) -> (i32, i32) {
    %c0_i32 = arith.constant 0 : i32
    %c0_i32_0 = arith.constant 0 : i32
    return %arg0, %c0_i32 : i32, i32
  }
}

module attributes {stable_mosaic.version = 11 : i64} {
  func.func @_self_attn_kernel(%arg0: i32, %arg1: memref<2xi32, #tpu.memory_space<smem>>, %arg2: memref<1x8x128xf32, #tpu.memory_space<vmem>>, %arg3: memref<1x128xf32, #tpu.memory_space<vmem>>, %arg4: memref<1x128xf32, #tpu.memory_space<vmem>>, %arg5: memref<128x128xbf16, #tpu.memory_space<vmem>>, %arg6: memref<128x128xbf16, #tpu.memory_space<vmem>>, %arg7: memref<1x8x128xf32, #tpu.memory_space<vmem>>) attributes {dimension_semantics = [#tpu.dimension_semantics<parallel>], iteration_bounds = array<i64: 2>, scalar_prefetch = 1 : i64, scratch_operands = 0 : i64, tpu.core_type = #tpu.core_type<tc>, window_params = [{transform_indices = @transform_0, window_bounds = array<i64: 1, 8, 128>}, {pipeline_mode = #tpu.pipeline_mode<synchronous>, transform_indices = @transform_1, window_bounds = array<i64: 1, 128>}, {pipeline_mode = #tpu.pipeline_mode<synchronous>, transform_indices = @transform_2, window_bounds = array<i64: 1, 128>}, {pipeline_mode = #tpu.pipeline_mode<synchronous>, transform_indices = @transform_3, window_bounds = array<i64: 128, 128>}, {pipeline_mode = #tpu.pipeline_mode<synchronous>, transform_indices = @transform_4, window_bounds = array<i64: 128, 128>}, {transform_indices = @transform_5, window_bounds = array<i64: 1, 8, 128>}]} {
    %c0 = arith.constant 0 : index
    %c0_0 = arith.constant 0 : index
    %c0_1 = arith.constant 0 : index
    %0 = vector.load %arg2[%c0, %c0_0, %c0_1] : memref<1x8x128xf32, #tpu.memory_space<vmem>>, vector<1x8x128xf32>
    %1 = vector.shape_cast %0 : vector<1x8x128xf32> to vector<8x128xf32>
    %c0_2 = arith.constant 0 : index
    %c0_3 = arith.constant 0 : index
    %2 = vector.load %arg3[%c0_2, %c0_3] : memref<1x128xf32, #tpu.memory_space<vmem>>, vector<1x128xf32>
    %c0_4 = arith.constant 0 : index
    %c0_5 = arith.constant 0 : index
    %3 = vector.load %arg4[%c0_4, %c0_5] : memref<1x128xf32, #tpu.memory_space<vmem>>, vector<1x128xf32>
    %cst = arith.constant dense<0.000000e+00> : vector<8xf32>
    %4 = vector.multi_reduction <add>, %1, %cst [1] : vector<8x128xf32> to vector<8xf32>
    %5 = vector.shape_cast %4 : vector<8xf32> to vector<8x1xf32>
    %cst_6 = arith.constant 1.280000e+02 : f32
    %6 = vector.broadcast %cst_6 : f32 to vector<8x1xf32>
    %7 = arith.divf %5, %6 : vector<8x1xf32>
    %8 = vector.broadcast %7 : vector<8x1xf32> to vector<8x128xf32>
    %9 = arith.subf %1, %8 : vector<8x128xf32>
    %10 = arith.mulf %9, %9 : vector<8x128xf32>
    %cst_7 = arith.constant dense<0.000000e+00> : vector<8xf32>
    %11 = vector.multi_reduction <add>, %10, %cst_7 [1] : vector<8x128xf32> to vector<8xf32>
    %12 = vector.shape_cast %11 : vector<8xf32> to vector<8x1xf32>
    %cst_8 = arith.constant 1.280000e+02 : f32
    %13 = vector.broadcast %cst_8 : f32 to vector<8x1xf32>
    %14 = arith.divf %12, %13 : vector<8x1xf32>
    %15 = vector.broadcast %7 : vector<8x1xf32> to vector<8x128xf32>
    %16 = arith.subf %1, %15 : vector<8x128xf32>
    %cst_9 = arith.constant 9.99999974E-6 : f32
    %17 = vector.broadcast %cst_9 : f32 to vector<8x1xf32>
    %18 = arith.addf %14, %17 : vector<8x1xf32>
    %19 = math.rsqrt %18 : vector<8x1xf32>
    %20 = vector.broadcast %19 : vector<8x1xf32> to vector<8x128xf32>
    %21 = arith.mulf %16, %20 : vector<8x128xf32>
    %22 = vector.broadcast %2 : vector<1x128xf32> to vector<8x128xf32>
    %23 = arith.mulf %21, %22 : vector<8x128xf32>
    %24 = vector.broadcast %3 : vector<1x128xf32> to vector<8x128xf32>
    %25 = arith.addf %23, %24 : vector<8x128xf32>
    %26 = arith.truncf %25 : vector<8x128xf32> to vector<8x128xbf16>
    %c0_10 = arith.constant 0 : index
    %c0_11 = arith.constant 0 : index
    %27 = vector.load %arg5[%c0_10, %c0_11] : memref<128x128xbf16, #tpu.memory_space<vmem>>, vector<128x128xbf16>
    %cst_12 = arith.constant dense<0.000000e+00> : vector<8x128xf32>
    %28 = tpu.matmul %26, %27, %cst_12 {dimension_numbers = #tpu.dot_dimension_numbers<[1], [0], [0], [1], [0, 0, 1, 1], [], []>} : vector<8x128xbf16>, vector<128x128xbf16>, vector<8x128xf32> -> vector<8x128xf32>
    %29 = arith.truncf %28 : vector<8x128xf32> to vector<8x128xbf16>
    %30 = tpu.iota {dimensions = array<i32: 1>} : vector<8x8xi32>
    %31 = arith.index_cast %arg0 : i32 to index
    %32 = memref.load %arg1[%31] : memref<2xi32, #tpu.memory_space<smem>>
    %33 = vector.broadcast %32 : i32 to vector<8x8xi32>
    %34 = arith.cmpi sge, %30, %33 : vector<8x8xi32>
    %35 = vector.extract_strided_slice %29 {offsets = [0, 0], sizes = [8, 32], strides = [1, 1]} : vector<8x128xbf16> to vector<8x32xbf16>
    %36 = vector.extract_strided_slice %29 {offsets = [0, 0], sizes = [8, 32], strides = [1, 1]} : vector<8x128xbf16> to vector<8x32xbf16>
    %cst_13 = arith.constant dense<0.000000e+00> : vector<8x8xf32>
    %37 = tpu.matmul %35, %36, %cst_13 {dimension_numbers = #tpu.dot_dimension_numbers<[1], [1], [0], [0], [0, 0, 1, 0], [], []>} : vector<8x32xbf16>, vector<8x32xbf16>, vector<8x8xf32> -> vector<8x8xf32>
    %cst_14 = arith.constant 0.176776692 : f32
    %38 = vector.broadcast %cst_14 : f32 to vector<8x8xf32>
    %39 = arith.mulf %37, %38 : vector<8x8xf32>
    %cst_15 = arith.constant 0xFF800000 : f32
    %40 = vector.broadcast %cst_15 : f32 to vector<8x8xf32>
    %41 = arith.select %34, %40, %39 : vector<8x8xi1>, vector<8x8xf32>
    %cst_16 = arith.constant dense<0xFF800000> : vector<8xf32>
    %42 = vector.multi_reduction <maximumf>, %41, %cst_16 [1] : vector<8x8xf32> to vector<8xf32>
    %43 = vector.shape_cast %42 : vector<8xf32> to vector<8x1xf32>
    %44 = vector.broadcast %43 : vector<8x1xf32> to vector<8x8xf32>
    %45 = arith.subf %41, %44 : vector<8x8xf32>
    %46 = math.exp %45 : vector<8x8xf32>
    %cst_17 = arith.constant dense<0.000000e+00> : vector<8xf32>
    %47 = vector.multi_reduction <add>, %46, %cst_17 [1] : vector<8x8xf32> to vector<8xf32>
    %48 = vector.shape_cast %47 : vector<8xf32> to vector<8x1xf32>
    %49 = tpu.reciprocal %48 {approx = true} : vector<8x1xf32> -> vector<8x1xf32>
    %50 = vector.broadcast %49 : vector<8x1xf32> to vector<8x8xf32>
    %51 = arith.mulf %46, %50 : vector<8x8xf32>
    %52 = arith.truncf %51 : vector<8x8xf32> to vector<8x8xbf16>
    %cst_18 = arith.constant dense<0.000000e+00> : vector<8x32xf32>
    %53 = tpu.matmul %52, %36, %cst_18 {dimension_numbers = #tpu.dot_dimension_numbers<[1], [0], [0], [1], [0, 0, 1, 1], [], []>} : vector<8x8xbf16>, vector<8x32xbf16>, vector<8x32xf32> -> vector<8x32xf32>
    %54 = vector.extract_strided_slice %29 {offsets = [0, 32], sizes = [8, 32], strides = [1, 1]} : vector<8x128xbf16> to vector<8x32xbf16>
    %55 = vector.extract_strided_slice %29 {offsets = [0, 32], sizes = [8, 32], strides = [1, 1]} : vector<8x128xbf16> to vector<8x32xbf16>
    %cst_19 = arith.constant dense<0.000000e+00> : vector<8x8xf32>
    %56 = tpu.matmul %54, %55, %cst_19 {dimension_numbers = #tpu.dot_dimension_numbers<[1], [1], [0], [0], [0, 0, 1, 0], [], []>} : vector<8x32xbf16>, vector<8x32xbf16>, vector<8x8xf32> -> vector<8x8xf32>
    %cst_20 = arith.constant 0.176776692 : f32
    %57 = vector.broadcast %cst_20 : f32 to vector<8x8xf32>
    %58 = arith.mulf %56, %57 : vector<8x8xf32>
    %cst_21 = arith.constant 0xFF800000 : f32
    %59 = vector.broadcast %cst_21 : f32 to vector<8x8xf32>
    %60 = arith.select %34, %59, %58 : vector<8x8xi1>, vector<8x8xf32>
    %cst_22 = arith.constant dense<0xFF800000> : vector<8xf32>
    %61 = vector.multi_reduction <maximumf>, %60, %cst_22 [1] : vector<8x8xf32> to vector<8xf32>
    %62 = vector.shape_cast %61 : vector<8xf32> to vector<8x1xf32>
    %63 = vector.broadcast %62 : vector<8x1xf32> to vector<8x8xf32>
    %64 = arith.subf %60, %63 : vector<8x8xf32>
    %65 = math.exp %64 : vector<8x8xf32>
    %cst_23 = arith.constant dense<0.000000e+00> : vector<8xf32>
    %66 = vector.multi_reduction <add>, %65, %cst_23 [1] : vector<8x8xf32> to vector<8xf32>
    %67 = vector.shape_cast %66 : vector<8xf32> to vector<8x1xf32>
    %68 = tpu.reciprocal %67 {approx = true} : vector<8x1xf32> -> vector<8x1xf32>
    %69 = vector.broadcast %68 : vector<8x1xf32> to vector<8x8xf32>
    %70 = arith.mulf %65, %69 : vector<8x8xf32>
    %71 = arith.truncf %70 : vector<8x8xf32> to vector<8x8xbf16>
    %cst_24 = arith.constant dense<0.000000e+00> : vector<8x32xf32>
    %72 = tpu.matmul %71, %55, %cst_24 {dimension_numbers = #tpu.dot_dimension_numbers<[1], [0], [0], [1], [0, 0, 1, 1], [], []>} : vector<8x8xbf16>, vector<8x32xbf16>, vector<8x32xf32> -> vector<8x32xf32>
    %73 = vector.extract_strided_slice %29 {offsets = [0, 64], sizes = [8, 32], strides = [1, 1]} : vector<8x128xbf16> to vector<8x32xbf16>
    %74 = vector.extract_strided_slice %29 {offsets = [0, 64], sizes = [8, 32], strides = [1, 1]} : vector<8x128xbf16> to vector<8x32xbf16>
    %cst_25 = arith.constant dense<0.000000e+00> : vector<8x8xf32>
    %75 = tpu.matmul %73, %74, %cst_25 {dimension_numbers = #tpu.dot_dimension_numbers<[1], [1], [0], [0], [0, 0, 1, 0], [], []>} : vector<8x32xbf16>, vector<8x32xbf16>, vector<8x8xf32> -> vector<8x8xf32>
    %cst_26 = arith.constant 0.176776692 : f32
    %76 = vector.broadcast %cst_26 : f32 to vector<8x8xf32>
    %77 = arith.mulf %75, %76 : vector<8x8xf32>
    %cst_27 = arith.constant 0xFF800000 : f32
    %78 = vector.broadcast %cst_27 : f32 to vector<8x8xf32>
    %79 = arith.select %34, %78, %77 : vector<8x8xi1>, vector<8x8xf32>
    %cst_28 = arith.constant dense<0xFF800000> : vector<8xf32>
    %80 = vector.multi_reduction <maximumf>, %79, %cst_28 [1] : vector<8x8xf32> to vector<8xf32>
    %81 = vector.shape_cast %80 : vector<8xf32> to vector<8x1xf32>
    %82 = vector.broadcast %81 : vector<8x1xf32> to vector<8x8xf32>
    %83 = arith.subf %79, %82 : vector<8x8xf32>
    %84 = math.exp %83 : vector<8x8xf32>
    %cst_29 = arith.constant dense<0.000000e+00> : vector<8xf32>
    %85 = vector.multi_reduction <add>, %84, %cst_29 [1] : vector<8x8xf32> to vector<8xf32>
    %86 = vector.shape_cast %85 : vector<8xf32> to vector<8x1xf32>
    %87 = tpu.reciprocal %86 {approx = true} : vector<8x1xf32> -> vector<8x1xf32>
    %88 = vector.broadcast %87 : vector<8x1xf32> to vector<8x8xf32>
    %89 = arith.mulf %84, %88 : vector<8x8xf32>
    %90 = arith.truncf %89 : vector<8x8xf32> to vector<8x8xbf16>
    %cst_30 = arith.constant dense<0.000000e+00> : vector<8x32xf32>
    %91 = tpu.matmul %90, %74, %cst_30 {dimension_numbers = #tpu.dot_dimension_numbers<[1], [0], [0], [1], [0, 0, 1, 1], [], []>} : vector<8x8xbf16>, vector<8x32xbf16>, vector<8x32xf32> -> vector<8x32xf32>
    %92 = vector.extract_strided_slice %29 {offsets = [0, 96], sizes = [8, 32], strides = [1, 1]} : vector<8x128xbf16> to vector<8x32xbf16>
    %93 = vector.extract_strided_slice %29 {offsets = [0, 96], sizes = [8, 32], strides = [1, 1]} : vector<8x128xbf16> to vector<8x32xbf16>
    %cst_31 = arith.constant dense<0.000000e+00> : vector<8x8xf32>
    %94 = tpu.matmul %92, %93, %cst_31 {dimension_numbers = #tpu.dot_dimension_numbers<[1], [1], [0], [0], [0, 0, 1, 0], [], []>} : vector<8x32xbf16>, vector<8x32xbf16>, vector<8x8xf32> -> vector<8x8xf32>
    %cst_32 = arith.constant 0.176776692 : f32
    %95 = vector.broadcast %cst_32 : f32 to vector<8x8xf32>
    %96 = arith.mulf %94, %95 : vector<8x8xf32>
    %cst_33 = arith.constant 0xFF800000 : f32
    %97 = vector.broadcast %cst_33 : f32 to vector<8x8xf32>
    %98 = arith.select %34, %97, %96 : vector<8x8xi1>, vector<8x8xf32>
    %cst_34 = arith.constant dense<0xFF800000> : vector<8xf32>
    %99 = vector.multi_reduction <maximumf>, %98, %cst_34 [1] : vector<8x8xf32> to vector<8xf32>
    %100 = vector.shape_cast %99 : vector<8xf32> to vector<8x1xf32>
    %101 = vector.broadcast %100 : vector<8x1xf32> to vector<8x8xf32>
    %102 = arith.subf %98, %101 : vector<8x8xf32>
    %103 = math.exp %102 : vector<8x8xf32>
    %cst_35 = arith.constant dense<0.000000e+00> : vector<8xf32>
    %104 = vector.multi_reduction <add>, %103, %cst_35 [1] : vector<8x8xf32> to vector<8xf32>
    %105 = vector.shape_cast %104 : vector<8xf32> to vector<8x1xf32>
    %106 = tpu.reciprocal %105 {approx = true} : vector<8x1xf32> -> vector<8x1xf32>
    %107 = vector.broadcast %106 : vector<8x1xf32> to vector<8x8xf32>
    %108 = arith.mulf %103, %107 : vector<8x8xf32>
    %109 = arith.truncf %108 : vector<8x8xf32> to vector<8x8xbf16>
    %cst_36 = arith.constant dense<0.000000e+00> : vector<8x32xf32>
    %110 = tpu.matmul %109, %93, %cst_36 {dimension_numbers = #tpu.dot_dimension_numbers<[1], [0], [0], [1], [0, 0, 1, 1], [], []>} : vector<8x8xbf16>, vector<8x32xbf16>, vector<8x32xf32> -> vector<8x32xf32>
    %111 = tpu.concatenate %53, %72, %91, %110 in 1 : vector<8x32xf32>, vector<8x32xf32>, vector<8x32xf32>, vector<8x32xf32> -> vector<8x128xf32>
    %112 = arith.truncf %111 : vector<8x128xf32> to vector<8x128xbf16>
    %c0_37 = arith.constant 0 : index
    %c0_38 = arith.constant 0 : index
    %113 = vector.load %arg6[%c0_37, %c0_38] : memref<128x128xbf16, #tpu.memory_space<vmem>>, vector<128x128xbf16>
    %cst_39 = arith.constant dense<0.000000e+00> : vector<8x128xf32>
    %114 = tpu.matmul %112, %113, %cst_39 {dimension_numbers = #tpu.dot_dimension_numbers<[1], [0], [0], [1], [0, 0, 1, 1], [], []>} : vector<8x128xbf16>, vector<128x128xbf16>, vector<8x128xf32> -> vector<8x128xf32>
    %115 = arith.addf %1, %114 : vector<8x128xf32>
    %c0_40 = arith.constant 0 : index
    %c0_41 = arith.constant 0 : index
    %c0_42 = arith.constant 0 : index
    %116 = vector.load %arg7[%c0_40, %c0_41, %c0_42] : memref<1x8x128xf32, #tpu.memory_space<vmem>>, vector<1x8x128xf32>
    %117 = vector.shape_cast %116 : vector<1x8x128xf32> to vector<8x128xf32>
    %118 = vector.shape_cast %115 : vector<8x128xf32> to vector<1x8x128xf32>
    tpu.vector_store %arg7[%c0_40, %c0_41, %c0_42], %118 {strides = array<i32>} : memref<1x8x128xf32, #tpu.memory_space<vmem>>, vector<1x8x128xf32>,
    return
  }
  func.func @transform_0(%arg0: i32, %arg1: memref<2xi32, #tpu.memory_space<smem>>) -> (i32, i32, i32) {
    %c0_i32 = arith.constant 0 : i32
    %c0_i32_0 = arith.constant 0 : i32
    %c0_i32_1 = arith.constant 0 : i32
    return %arg0, %c0_i32, %c0_i32_0 : i32, i32, i32
  }
  func.func @transform_1(%arg0: i32, %arg1: memref<2xi32, #tpu.memory_space<smem>>) -> (i32, i32) {
    %c0_i32 = arith.constant 0 : i32
    %c0_i32_0 = arith.constant 0 : i32
    %c0_i32_1 = arith.constant 0 : i32
    return %c0_i32, %c0_i32_0 : i32, i32
  }
  func.func @transform_2(%arg0: i32, %arg1: memref<2xi32, #tpu.memory_space<smem>>) -> (i32, i32) {
    %c0_i32 = arith.constant 0 : i32
    %c0_i32_0 = arith.constant 0 : i32
    %c0_i32_1 = arith.constant 0 : i32
    return %c0_i32, %c0_i32_0 : i32, i32
  }
  func.func @transform_3(%arg0: i32, %arg1: memref<2xi32, #tpu.memory_space<smem>>) -> (i32, i32) {
    %c0_i32 = arith.constant 0 : i32
    %c0_i32_0 = arith.constant 0 : i32
    %c0_i32_1 = arith.constant 0 : i32
    return %c0_i32, %c0_i32_0 : i32, i32
  }
  func.func @transform_4(%arg0: i32, %arg1: memref<2xi32, #tpu.memory_space<smem>>) -> (i32, i32) {
    %c0_i32 = arith.constant 0 : i32
    %c0_i32_0 = arith.constant 0 : i32
    %c0_i32_1 = arith.constant 0 : i32
    return %c0_i32, %c0_i32_0 : i32, i32
  }
  func.func @transform_5(%arg0: i32, %arg1: memref<2xi32, #tpu.memory_space<smem>>) -> (i32, i32, i32) {
    %c0_i32 = arith.constant 0 : i32
    %c0_i32_0 = arith.constant 0 : i32
    %c0_i32_1 = arith.constant 0 : i32
    return %arg0, %c0_i32, %c0_i32_0 : i32, i32, i32
  }
}

module attributes {stable_mosaic.version = 11 : i64} {
  func.func @_ffn_kernel(%arg0: i32, %arg1: memref<16x128xf32, #tpu.memory_space<vmem>>, %arg2: memref<1x128xf32, #tpu.memory_space<vmem>>, %arg3: memref<1x128xf32, #tpu.memory_space<vmem>>, %arg4: memref<128x512xbf16, #tpu.memory_space<vmem>>, %arg5: memref<1x512xf32, #tpu.memory_space<vmem>>, %arg6: memref<512x128xbf16, #tpu.memory_space<vmem>>, %arg7: memref<1x128xf32, #tpu.memory_space<vmem>>, %arg8: memref<16x128xf32, #tpu.memory_space<vmem>>) attributes {dimension_semantics = [#tpu.dimension_semantics<parallel>], iteration_bounds = array<i64: 1>, scalar_prefetch = 0 : i64, scratch_operands = 0 : i64, tpu.core_type = #tpu.core_type<tc>, window_params = [{transform_indices = @transform_0, window_bounds = array<i64: 16, 128>}, {pipeline_mode = #tpu.pipeline_mode<synchronous>, transform_indices = @transform_1, window_bounds = array<i64: 1, 128>}, {pipeline_mode = #tpu.pipeline_mode<synchronous>, transform_indices = @transform_2, window_bounds = array<i64: 1, 128>}, {pipeline_mode = #tpu.pipeline_mode<synchronous>, transform_indices = @transform_3, window_bounds = array<i64: 128, 512>}, {pipeline_mode = #tpu.pipeline_mode<synchronous>, transform_indices = @transform_4, window_bounds = array<i64: 1, 512>}, {pipeline_mode = #tpu.pipeline_mode<synchronous>, transform_indices = @transform_5, window_bounds = array<i64: 512, 128>}, {pipeline_mode = #tpu.pipeline_mode<synchronous>, transform_indices = @transform_6, window_bounds = array<i64: 1, 128>}, {transform_indices = @transform_7, window_bounds = array<i64: 16, 128>}]} {
    %c0 = arith.constant 0 : index
    %c0_0 = arith.constant 0 : index
    %0 = vector.load %arg1[%c0, %c0_0] : memref<16x128xf32, #tpu.memory_space<vmem>>, vector<16x128xf32>
    %c0_1 = arith.constant 0 : index
    %c0_2 = arith.constant 0 : index
    %1 = vector.load %arg2[%c0_1, %c0_2] : memref<1x128xf32, #tpu.memory_space<vmem>>, vector<1x128xf32>
    %c0_3 = arith.constant 0 : index
    %c0_4 = arith.constant 0 : index
    %2 = vector.load %arg3[%c0_3, %c0_4] : memref<1x128xf32, #tpu.memory_space<vmem>>, vector<1x128xf32>
    %cst = arith.constant dense<0.000000e+00> : vector<16xf32>
    %3 = vector.multi_reduction <add>, %0, %cst [1] : vector<16x128xf32> to vector<16xf32>
    %4 = vector.shape_cast %3 : vector<16xf32> to vector<16x1xf32>
    %cst_5 = arith.constant 1.280000e+02 : f32
    %5 = vector.broadcast %cst_5 : f32 to vector<16x1xf32>
    %6 = arith.divf %4, %5 : vector<16x1xf32>
    %7 = vector.broadcast %6 : vector<16x1xf32> to vector<16x128xf32>
    %8 = arith.subf %0, %7 : vector<16x128xf32>
    %9 = arith.mulf %8, %8 : vector<16x128xf32>
    %cst_6 = arith.constant dense<0.000000e+00> : vector<16xf32>
    %10 = vector.multi_reduction <add>, %9, %cst_6 [1] : vector<16x128xf32> to vector<16xf32>
    %11 = vector.shape_cast %10 : vector<16xf32> to vector<16x1xf32>
    %cst_7 = arith.constant 1.280000e+02 : f32
    %12 = vector.broadcast %cst_7 : f32 to vector<16x1xf32>
    %13 = arith.divf %11, %12 : vector<16x1xf32>
    %14 = vector.broadcast %6 : vector<16x1xf32> to vector<16x128xf32>
    %15 = arith.subf %0, %14 : vector<16x128xf32>
    %cst_8 = arith.constant 9.99999974E-6 : f32
    %16 = vector.broadcast %cst_8 : f32 to vector<16x1xf32>
    %17 = arith.addf %13, %16 : vector<16x1xf32>
    %18 = math.rsqrt %17 : vector<16x1xf32>
    %19 = vector.broadcast %18 : vector<16x1xf32> to vector<16x128xf32>
    %20 = arith.mulf %15, %19 : vector<16x128xf32>
    %21 = vector.broadcast %1 : vector<1x128xf32> to vector<16x128xf32>
    %22 = arith.mulf %20, %21 : vector<16x128xf32>
    %23 = vector.broadcast %2 : vector<1x128xf32> to vector<16x128xf32>
    %24 = arith.addf %22, %23 : vector<16x128xf32>
    %25 = arith.truncf %24 : vector<16x128xf32> to vector<16x128xbf16>
    %c0_9 = arith.constant 0 : index
    %c0_10 = arith.constant 0 : index
    %26 = vector.load %arg4[%c0_9, %c0_10] : memref<128x512xbf16, #tpu.memory_space<vmem>>, vector<128x512xbf16>
    %cst_11 = arith.constant dense<0.000000e+00> : vector<16x512xf32>
    %27 = tpu.matmul %25, %26, %cst_11 {dimension_numbers = #tpu.dot_dimension_numbers<[1], [0], [0], [1], [0, 0, 1, 1], [], []>} : vector<16x128xbf16>, vector<128x512xbf16>, vector<16x512xf32> -> vector<16x512xf32>
    %c0_12 = arith.constant 0 : index
    %c0_13 = arith.constant 0 : index
    %28 = vector.load %arg5[%c0_12, %c0_13] : memref<1x512xf32, #tpu.memory_space<vmem>>, vector<1x512xf32>
    %29 = vector.broadcast %28 : vector<1x512xf32> to vector<16x512xf32>
    %30 = arith.addf %27, %29 : vector<16x512xf32>
    %cst_14 = arith.constant 0.000000e+00 : f32
    %31 = vector.broadcast %cst_14 : f32 to vector<16x512xf32>
    %32 = arith.maximumf %30, %31 : vector<16x512xf32>
    %33 = arith.truncf %32 : vector<16x512xf32> to vector<16x512xbf16>
    %c0_15 = arith.constant 0 : index
    %c0_16 = arith.constant 0 : index
    %34 = vector.load %arg6[%c0_15, %c0_16] : memref<512x128xbf16, #tpu.memory_space<vmem>>, vector<512x128xbf16>
    %cst_17 = arith.constant dense<0.000000e+00> : vector<16x128xf32>
    %35 = tpu.matmul %33, %34, %cst_17 {dimension_numbers = #tpu.dot_dimension_numbers<[1], [0], [0], [1], [0, 0, 1, 1], [], []>} : vector<16x512xbf16>, vector<512x128xbf16>, vector<16x128xf32> -> vector<16x128xf32>
    %c0_18 = arith.constant 0 : index
    %c0_19 = arith.constant 0 : index
    %36 = vector.load %arg7[%c0_18, %c0_19] : memref<1x128xf32, #tpu.memory_space<vmem>>, vector<1x128xf32>
    %37 = vector.broadcast %36 : vector<1x128xf32> to vector<16x128xf32>
    %38 = arith.addf %35, %37 : vector<16x128xf32>
    %39 = arith.addf %0, %38 : vector<16x128xf32>
    %c0_20 = arith.constant 0 : index
    %c0_21 = arith.constant 0 : index
    %40 = vector.load %arg8[%c0_20, %c0_21] : memref<16x128xf32, #tpu.memory_space<vmem>>, vector<16x128xf32>
    tpu.vector_store %arg8[%c0_20, %c0_21], %39 {strides = array<i32>} : memref<16x128xf32, #tpu.memory_space<vmem>>, vector<16x128xf32>,
    return
  }
  func.func @transform_0(%arg0: i32) -> (i32, i32) {
    %c0_i32 = arith.constant 0 : i32
    %c0_i32_0 = arith.constant 0 : i32
    return %arg0, %c0_i32 : i32, i32
  }
  func.func @transform_1(%arg0: i32) -> (i32, i32) {
    %c0_i32 = arith.constant 0 : i32
    %c0_i32_0 = arith.constant 0 : i32
    %c0_i32_1 = arith.constant 0 : i32
    return %c0_i32, %c0_i32_0 : i32, i32
  }
  func.func @transform_2(%arg0: i32) -> (i32, i32) {
    %c0_i32 = arith.constant 0 : i32
    %c0_i32_0 = arith.constant 0 : i32
    %c0_i32_1 = arith.constant 0 : i32
    return %c0_i32, %c0_i32_0 : i32, i32
  }
  func.func @transform_3(%arg0: i32) -> (i32, i32) {
    %c0_i32 = arith.constant 0 : i32
    %c0_i32_0 = arith.constant 0 : i32
    %c0_i32_1 = arith.constant 0 : i32
    return %c0_i32, %c0_i32_0 : i32, i32
  }
  func.func @transform_4(%arg0: i32) -> (i32, i32) {
    %c0_i32 = arith.constant 0 : i32
    %c0_i32_0 = arith.constant 0 : i32
    %c0_i32_1 = arith.constant 0 : i32
    return %c0_i32, %c0_i32_0 : i32, i32
  }
  func.func @transform_5(%arg0: i32) -> (i32, i32) {
    %c0_i32 = arith.constant 0 : i32
    %c0_i32_0 = arith.constant 0 : i32
    %c0_i32_1 = arith.constant 0 : i32
    return %c0_i32, %c0_i32_0 : i32, i32
  }
  func.func @transform_6(%arg0: i32) -> (i32, i32) {
    %c0_i32 = arith.constant 0 : i32
    %c0_i32_0 = arith.constant 0 : i32
    %c0_i32_1 = arith.constant 0 : i32
    return %c0_i32, %c0_i32_0 : i32, i32
  }
  func.func @transform_7(%arg0: i32) -> (i32, i32) {
    %c0_i32 = arith.constant 0 : i32
    %c0_i32_0 = arith.constant 0 : i32
    return %arg0, %c0_i32 : i32, i32
  }
}

module attributes {stable_mosaic.version = 11 : i64} {
  func.func @_self_attn_kernel(%arg0: i32, %arg1: memref<2xi32, #tpu.memory_space<smem>>, %arg2: memref<1x8x128xf32, #tpu.memory_space<vmem>>, %arg3: memref<1x128xf32, #tpu.memory_space<vmem>>, %arg4: memref<1x128xf32, #tpu.memory_space<vmem>>, %arg5: memref<128x128xbf16, #tpu.memory_space<vmem>>, %arg6: memref<128x128xbf16, #tpu.memory_space<vmem>>, %arg7: memref<1x8x128xf32, #tpu.memory_space<vmem>>) attributes {dimension_semantics = [#tpu.dimension_semantics<parallel>], iteration_bounds = array<i64: 2>, scalar_prefetch = 1 : i64, scratch_operands = 0 : i64, tpu.core_type = #tpu.core_type<tc>, window_params = [{transform_indices = @transform_0, window_bounds = array<i64: 1, 8, 128>}, {pipeline_mode = #tpu.pipeline_mode<synchronous>, transform_indices = @transform_1, window_bounds = array<i64: 1, 128>}, {pipeline_mode = #tpu.pipeline_mode<synchronous>, transform_indices = @transform_2, window_bounds = array<i64: 1, 128>}, {pipeline_mode = #tpu.pipeline_mode<synchronous>, transform_indices = @transform_3, window_bounds = array<i64: 128, 128>}, {pipeline_mode = #tpu.pipeline_mode<synchronous>, transform_indices = @transform_4, window_bounds = array<i64: 128, 128>}, {transform_indices = @transform_5, window_bounds = array<i64: 1, 8, 128>}]} {
    %c0 = arith.constant 0 : index
    %c0_0 = arith.constant 0 : index
    %c0_1 = arith.constant 0 : index
    %0 = vector.load %arg2[%c0, %c0_0, %c0_1] : memref<1x8x128xf32, #tpu.memory_space<vmem>>, vector<1x8x128xf32>
    %1 = vector.shape_cast %0 : vector<1x8x128xf32> to vector<8x128xf32>
    %c0_2 = arith.constant 0 : index
    %c0_3 = arith.constant 0 : index
    %2 = vector.load %arg3[%c0_2, %c0_3] : memref<1x128xf32, #tpu.memory_space<vmem>>, vector<1x128xf32>
    %c0_4 = arith.constant 0 : index
    %c0_5 = arith.constant 0 : index
    %3 = vector.load %arg4[%c0_4, %c0_5] : memref<1x128xf32, #tpu.memory_space<vmem>>, vector<1x128xf32>
    %cst = arith.constant dense<0.000000e+00> : vector<8xf32>
    %4 = vector.multi_reduction <add>, %1, %cst [1] : vector<8x128xf32> to vector<8xf32>
    %5 = vector.shape_cast %4 : vector<8xf32> to vector<8x1xf32>
    %cst_6 = arith.constant 1.280000e+02 : f32
    %6 = vector.broadcast %cst_6 : f32 to vector<8x1xf32>
    %7 = arith.divf %5, %6 : vector<8x1xf32>
    %8 = vector.broadcast %7 : vector<8x1xf32> to vector<8x128xf32>
    %9 = arith.subf %1, %8 : vector<8x128xf32>
    %10 = arith.mulf %9, %9 : vector<8x128xf32>
    %cst_7 = arith.constant dense<0.000000e+00> : vector<8xf32>
    %11 = vector.multi_reduction <add>, %10, %cst_7 [1] : vector<8x128xf32> to vector<8xf32>
    %12 = vector.shape_cast %11 : vector<8xf32> to vector<8x1xf32>
    %cst_8 = arith.constant 1.280000e+02 : f32
    %13 = vector.broadcast %cst_8 : f32 to vector<8x1xf32>
    %14 = arith.divf %12, %13 : vector<8x1xf32>
    %15 = vector.broadcast %7 : vector<8x1xf32> to vector<8x128xf32>
    %16 = arith.subf %1, %15 : vector<8x128xf32>
    %cst_9 = arith.constant 9.99999974E-6 : f32
    %17 = vector.broadcast %cst_9 : f32 to vector<8x1xf32>
    %18 = arith.addf %14, %17 : vector<8x1xf32>
    %19 = math.rsqrt %18 : vector<8x1xf32>
    %20 = vector.broadcast %19 : vector<8x1xf32> to vector<8x128xf32>
    %21 = arith.mulf %16, %20 : vector<8x128xf32>
    %22 = vector.broadcast %2 : vector<1x128xf32> to vector<8x128xf32>
    %23 = arith.mulf %21, %22 : vector<8x128xf32>
    %24 = vector.broadcast %3 : vector<1x128xf32> to vector<8x128xf32>
    %25 = arith.addf %23, %24 : vector<8x128xf32>
    %26 = arith.truncf %25 : vector<8x128xf32> to vector<8x128xbf16>
    %c0_10 = arith.constant 0 : index
    %c0_11 = arith.constant 0 : index
    %27 = vector.load %arg5[%c0_10, %c0_11] : memref<128x128xbf16, #tpu.memory_space<vmem>>, vector<128x128xbf16>
    %cst_12 = arith.constant dense<0.000000e+00> : vector<8x128xf32>
    %28 = tpu.matmul %26, %27, %cst_12 {dimension_numbers = #tpu.dot_dimension_numbers<[1], [0], [0], [1], [0, 0, 1, 1], [], []>} : vector<8x128xbf16>, vector<128x128xbf16>, vector<8x128xf32> -> vector<8x128xf32>
    %29 = arith.truncf %28 : vector<8x128xf32> to vector<8x128xbf16>
    %30 = tpu.iota {dimensions = array<i32: 0>} : vector<8x8xi32>
    %31 = tpu.iota {dimensions = array<i32: 1>} : vector<8x8xi32>
    %32 = arith.cmpi sgt, %31, %30 : vector<8x8xi32>
    %33 = vector.extract_strided_slice %29 {offsets = [0, 0], sizes = [8, 32], strides = [1, 1]} : vector<8x128xbf16> to vector<8x32xbf16>
    %34 = vector.extract_strided_slice %29 {offsets = [0, 0], sizes = [8, 32], strides = [1, 1]} : vector<8x128xbf16> to vector<8x32xbf16>
    %cst_13 = arith.constant dense<0.000000e+00> : vector<8x8xf32>
    %35 = tpu.matmul %33, %34, %cst_13 {dimension_numbers = #tpu.dot_dimension_numbers<[1], [1], [0], [0], [0, 0, 1, 0], [], []>} : vector<8x32xbf16>, vector<8x32xbf16>, vector<8x8xf32> -> vector<8x8xf32>
    %cst_14 = arith.constant 0.176776692 : f32
    %36 = vector.broadcast %cst_14 : f32 to vector<8x8xf32>
    %37 = arith.mulf %35, %36 : vector<8x8xf32>
    %cst_15 = arith.constant 0xFF800000 : f32
    %38 = vector.broadcast %cst_15 : f32 to vector<8x8xf32>
    %39 = arith.select %32, %38, %37 : vector<8x8xi1>, vector<8x8xf32>
    %cst_16 = arith.constant dense<0xFF800000> : vector<8xf32>
    %40 = vector.multi_reduction <maximumf>, %39, %cst_16 [1] : vector<8x8xf32> to vector<8xf32>
    %41 = vector.shape_cast %40 : vector<8xf32> to vector<8x1xf32>
    %42 = vector.broadcast %41 : vector<8x1xf32> to vector<8x8xf32>
    %43 = arith.subf %39, %42 : vector<8x8xf32>
    %44 = math.exp %43 : vector<8x8xf32>
    %cst_17 = arith.constant dense<0.000000e+00> : vector<8xf32>
    %45 = vector.multi_reduction <add>, %44, %cst_17 [1] : vector<8x8xf32> to vector<8xf32>
    %46 = vector.shape_cast %45 : vector<8xf32> to vector<8x1xf32>
    %47 = tpu.reciprocal %46 {approx = true} : vector<8x1xf32> -> vector<8x1xf32>
    %48 = vector.broadcast %47 : vector<8x1xf32> to vector<8x8xf32>
    %49 = arith.mulf %44, %48 : vector<8x8xf32>
    %50 = arith.truncf %49 : vector<8x8xf32> to vector<8x8xbf16>
    %cst_18 = arith.constant dense<0.000000e+00> : vector<8x32xf32>
    %51 = tpu.matmul %50, %34, %cst_18 {dimension_numbers = #tpu.dot_dimension_numbers<[1], [0], [0], [1], [0, 0, 1, 1], [], []>} : vector<8x8xbf16>, vector<8x32xbf16>, vector<8x32xf32> -> vector<8x32xf32>
    %52 = vector.extract_strided_slice %29 {offsets = [0, 32], sizes = [8, 32], strides = [1, 1]} : vector<8x128xbf16> to vector<8x32xbf16>
    %53 = vector.extract_strided_slice %29 {offsets = [0, 32], sizes = [8, 32], strides = [1, 1]} : vector<8x128xbf16> to vector<8x32xbf16>
    %cst_19 = arith.constant dense<0.000000e+00> : vector<8x8xf32>
    %54 = tpu.matmul %52, %53, %cst_19 {dimension_numbers = #tpu.dot_dimension_numbers<[1], [1], [0], [0], [0, 0, 1, 0], [], []>} : vector<8x32xbf16>, vector<8x32xbf16>, vector<8x8xf32> -> vector<8x8xf32>
    %cst_20 = arith.constant 0.176776692 : f32
    %55 = vector.broadcast %cst_20 : f32 to vector<8x8xf32>
    %56 = arith.mulf %54, %55 : vector<8x8xf32>
    %cst_21 = arith.constant 0xFF800000 : f32
    %57 = vector.broadcast %cst_21 : f32 to vector<8x8xf32>
    %58 = arith.select %32, %57, %56 : vector<8x8xi1>, vector<8x8xf32>
    %cst_22 = arith.constant dense<0xFF800000> : vector<8xf32>
    %59 = vector.multi_reduction <maximumf>, %58, %cst_22 [1] : vector<8x8xf32> to vector<8xf32>
    %60 = vector.shape_cast %59 : vector<8xf32> to vector<8x1xf32>
    %61 = vector.broadcast %60 : vector<8x1xf32> to vector<8x8xf32>
    %62 = arith.subf %58, %61 : vector<8x8xf32>
    %63 = math.exp %62 : vector<8x8xf32>
    %cst_23 = arith.constant dense<0.000000e+00> : vector<8xf32>
    %64 = vector.multi_reduction <add>, %63, %cst_23 [1] : vector<8x8xf32> to vector<8xf32>
    %65 = vector.shape_cast %64 : vector<8xf32> to vector<8x1xf32>
    %66 = tpu.reciprocal %65 {approx = true} : vector<8x1xf32> -> vector<8x1xf32>
    %67 = vector.broadcast %66 : vector<8x1xf32> to vector<8x8xf32>
    %68 = arith.mulf %63, %67 : vector<8x8xf32>
    %69 = arith.truncf %68 : vector<8x8xf32> to vector<8x8xbf16>
    %cst_24 = arith.constant dense<0.000000e+00> : vector<8x32xf32>
    %70 = tpu.matmul %69, %53, %cst_24 {dimension_numbers = #tpu.dot_dimension_numbers<[1], [0], [0], [1], [0, 0, 1, 1], [], []>} : vector<8x8xbf16>, vector<8x32xbf16>, vector<8x32xf32> -> vector<8x32xf32>
    %71 = vector.extract_strided_slice %29 {offsets = [0, 64], sizes = [8, 32], strides = [1, 1]} : vector<8x128xbf16> to vector<8x32xbf16>
    %72 = vector.extract_strided_slice %29 {offsets = [0, 64], sizes = [8, 32], strides = [1, 1]} : vector<8x128xbf16> to vector<8x32xbf16>
    %cst_25 = arith.constant dense<0.000000e+00> : vector<8x8xf32>
    %73 = tpu.matmul %71, %72, %cst_25 {dimension_numbers = #tpu.dot_dimension_numbers<[1], [1], [0], [0], [0, 0, 1, 0], [], []>} : vector<8x32xbf16>, vector<8x32xbf16>, vector<8x8xf32> -> vector<8x8xf32>
    %cst_26 = arith.constant 0.176776692 : f32
    %74 = vector.broadcast %cst_26 : f32 to vector<8x8xf32>
    %75 = arith.mulf %73, %74 : vector<8x8xf32>
    %cst_27 = arith.constant 0xFF800000 : f32
    %76 = vector.broadcast %cst_27 : f32 to vector<8x8xf32>
    %77 = arith.select %32, %76, %75 : vector<8x8xi1>, vector<8x8xf32>
    %cst_28 = arith.constant dense<0xFF800000> : vector<8xf32>
    %78 = vector.multi_reduction <maximumf>, %77, %cst_28 [1] : vector<8x8xf32> to vector<8xf32>
    %79 = vector.shape_cast %78 : vector<8xf32> to vector<8x1xf32>
    %80 = vector.broadcast %79 : vector<8x1xf32> to vector<8x8xf32>
    %81 = arith.subf %77, %80 : vector<8x8xf32>
    %82 = math.exp %81 : vector<8x8xf32>
    %cst_29 = arith.constant dense<0.000000e+00> : vector<8xf32>
    %83 = vector.multi_reduction <add>, %82, %cst_29 [1] : vector<8x8xf32> to vector<8xf32>
    %84 = vector.shape_cast %83 : vector<8xf32> to vector<8x1xf32>
    %85 = tpu.reciprocal %84 {approx = true} : vector<8x1xf32> -> vector<8x1xf32>
    %86 = vector.broadcast %85 : vector<8x1xf32> to vector<8x8xf32>
    %87 = arith.mulf %82, %86 : vector<8x8xf32>
    %88 = arith.truncf %87 : vector<8x8xf32> to vector<8x8xbf16>
    %cst_30 = arith.constant dense<0.000000e+00> : vector<8x32xf32>
    %89 = tpu.matmul %88, %72, %cst_30 {dimension_numbers = #tpu.dot_dimension_numbers<[1], [0], [0], [1], [0, 0, 1, 1], [], []>} : vector<8x8xbf16>, vector<8x32xbf16>, vector<8x32xf32> -> vector<8x32xf32>
    %90 = vector.extract_strided_slice %29 {offsets = [0, 96], sizes = [8, 32], strides = [1, 1]} : vector<8x128xbf16> to vector<8x32xbf16>
    %91 = vector.extract_strided_slice %29 {offsets = [0, 96], sizes = [8, 32], strides = [1, 1]} : vector<8x128xbf16> to vector<8x32xbf16>
    %cst_31 = arith.constant dense<0.000000e+00> : vector<8x8xf32>
    %92 = tpu.matmul %90, %91, %cst_31 {dimension_numbers = #tpu.dot_dimension_numbers<[1], [1], [0], [0], [0, 0, 1, 0], [], []>} : vector<8x32xbf16>, vector<8x32xbf16>, vector<8x8xf32> -> vector<8x8xf32>
    %cst_32 = arith.constant 0.176776692 : f32
    %93 = vector.broadcast %cst_32 : f32 to vector<8x8xf32>
    %94 = arith.mulf %92, %93 : vector<8x8xf32>
    %cst_33 = arith.constant 0xFF800000 : f32
    %95 = vector.broadcast %cst_33 : f32 to vector<8x8xf32>
    %96 = arith.select %32, %95, %94 : vector<8x8xi1>, vector<8x8xf32>
    %cst_34 = arith.constant dense<0xFF800000> : vector<8xf32>
    %97 = vector.multi_reduction <maximumf>, %96, %cst_34 [1] : vector<8x8xf32> to vector<8xf32>
    %98 = vector.shape_cast %97 : vector<8xf32> to vector<8x1xf32>
    %99 = vector.broadcast %98 : vector<8x1xf32> to vector<8x8xf32>
    %100 = arith.subf %96, %99 : vector<8x8xf32>
    %101 = math.exp %100 : vector<8x8xf32>
    %cst_35 = arith.constant dense<0.000000e+00> : vector<8xf32>
    %102 = vector.multi_reduction <add>, %101, %cst_35 [1] : vector<8x8xf32> to vector<8xf32>
    %103 = vector.shape_cast %102 : vector<8xf32> to vector<8x1xf32>
    %104 = tpu.reciprocal %103 {approx = true} : vector<8x1xf32> -> vector<8x1xf32>
    %105 = vector.broadcast %104 : vector<8x1xf32> to vector<8x8xf32>
    %106 = arith.mulf %101, %105 : vector<8x8xf32>
    %107 = arith.truncf %106 : vector<8x8xf32> to vector<8x8xbf16>
    %cst_36 = arith.constant dense<0.000000e+00> : vector<8x32xf32>
    %108 = tpu.matmul %107, %91, %cst_36 {dimension_numbers = #tpu.dot_dimension_numbers<[1], [0], [0], [1], [0, 0, 1, 1], [], []>} : vector<8x8xbf16>, vector<8x32xbf16>, vector<8x32xf32> -> vector<8x32xf32>
    %109 = tpu.concatenate %51, %70, %89, %108 in 1 : vector<8x32xf32>, vector<8x32xf32>, vector<8x32xf32>, vector<8x32xf32> -> vector<8x128xf32>
    %110 = arith.truncf %109 : vector<8x128xf32> to vector<8x128xbf16>
    %c0_37 = arith.constant 0 : index
    %c0_38 = arith.constant 0 : index
    %111 = vector.load %arg6[%c0_37, %c0_38] : memref<128x128xbf16, #tpu.memory_space<vmem>>, vector<128x128xbf16>
    %cst_39 = arith.constant dense<0.000000e+00> : vector<8x128xf32>
    %112 = tpu.matmul %110, %111, %cst_39 {dimension_numbers = #tpu.dot_dimension_numbers<[1], [0], [0], [1], [0, 0, 1, 1], [], []>} : vector<8x128xbf16>, vector<128x128xbf16>, vector<8x128xf32> -> vector<8x128xf32>
    %113 = arith.addf %1, %112 : vector<8x128xf32>
    %c0_40 = arith.constant 0 : index
    %c0_41 = arith.constant 0 : index
    %c0_42 = arith.constant 0 : index
    %114 = vector.load %arg7[%c0_40, %c0_41, %c0_42] : memref<1x8x128xf32, #tpu.memory_space<vmem>>, vector<1x8x128xf32>
    %115 = vector.shape_cast %114 : vector<1x8x128xf32> to vector<8x128xf32>
    %116 = vector.shape_cast %113 : vector<8x128xf32> to vector<1x8x128xf32>
    tpu.vector_store %arg7[%c0_40, %c0_41, %c0_42], %116 {strides = array<i32>} : memref<1x8x128xf32, #tpu.memory_space<vmem>>, vector<1x8x128xf32>,
    return
  }
  func.func @transform_0(%arg0: i32, %arg1: memref<2xi32, #tpu.memory_space<smem>>) -> (i32, i32, i32) {
    %c0_i32 = arith.constant 0 : i32
    %c0_i32_0 = arith.constant 0 : i32
    %c0_i32_1 = arith.constant 0 : i32
    return %arg0, %c0_i32, %c0_i32_0 : i32, i32, i32
  }
  func.func @transform_1(%arg0: i32, %arg1: memref<2xi32, #tpu.memory_space<smem>>) -> (i32, i32) {
    %c0_i32 = arith.constant 0 : i32
    %c0_i32_0 = arith.constant 0 : i32
    %c0_i32_1 = arith.constant 0 : i32
    return %c0_i32, %c0_i32_0 : i32, i32
  }
  func.func @transform_2(%arg0: i32, %arg1: memref<2xi32, #tpu.memory_space<smem>>) -> (i32, i32) {
    %c0_i32 = arith.constant 0 : i32
    %c0_i32_0 = arith.constant 0 : i32
    %c0_i32_1 = arith.constant 0 : i32
    return %c0_i32, %c0_i32_0 : i32, i32
  }
  func.func @transform_3(%arg0: i32, %arg1: memref<2xi32, #tpu.memory_space<smem>>) -> (i32, i32) {
    %c0_i32 = arith.constant 0 : i32
    %c0_i32_0 = arith.constant 0 : i32
    %c0_i32_1 = arith.constant 0 : i32
    return %c0_i32, %c0_i32_0 : i32, i32
  }
  func.func @transform_4(%arg0: i32, %arg1: memref<2xi32, #tpu.memory_space<smem>>) -> (i32, i32) {
    %c0_i32 = arith.constant 0 : i32
    %c0_i32_0 = arith.constant 0 : i32
    %c0_i32_1 = arith.constant 0 : i32
    return %c0_i32, %c0_i32_0 : i32, i32
  }
  func.func @transform_5(%arg0: i32, %arg1: memref<2xi32, #tpu.memory_space<smem>>) -> (i32, i32, i32) {
    %c0_i32 = arith.constant 0 : i32
    %c0_i32_0 = arith.constant 0 : i32
    %c0_i32_1 = arith.constant 0 : i32
    return %arg0, %c0_i32, %c0_i32_0 : i32, i32, i32
  }
}

module attributes {stable_mosaic.version = 11 : i64} {
  func.func @_generator_kernel(%arg0: i32, %arg1: memref<16x128xf32, #tpu.memory_space<vmem>>, %arg2: memref<1x128xf32, #tpu.memory_space<vmem>>, %arg3: memref<1x128xf32, #tpu.memory_space<vmem>>, %arg4: memref<128x128xbf16, #tpu.memory_space<vmem>>, %arg5: memref<1x128xf32, #tpu.memory_space<vmem>>, %arg6: memref<16x128xf32, #tpu.memory_space<vmem>>) attributes {dimension_semantics = [#tpu.dimension_semantics<parallel>], iteration_bounds = array<i64: 1>, scalar_prefetch = 0 : i64, scratch_operands = 0 : i64, tpu.core_type = #tpu.core_type<tc>, window_params = [{transform_indices = @transform_0, window_bounds = array<i64: 16, 128>}, {pipeline_mode = #tpu.pipeline_mode<synchronous>, transform_indices = @transform_1, window_bounds = array<i64: 1, 128>}, {pipeline_mode = #tpu.pipeline_mode<synchronous>, transform_indices = @transform_2, window_bounds = array<i64: 1, 128>}, {pipeline_mode = #tpu.pipeline_mode<synchronous>, transform_indices = @transform_3, window_bounds = array<i64: 128, 128>}, {pipeline_mode = #tpu.pipeline_mode<synchronous>, transform_indices = @transform_4, window_bounds = array<i64: 1, 128>}, {transform_indices = @transform_5, window_bounds = array<i64: 16, 128>}]} {
    %c0 = arith.constant 0 : index
    %c0_0 = arith.constant 0 : index
    %0 = vector.load %arg1[%c0, %c0_0] : memref<16x128xf32, #tpu.memory_space<vmem>>, vector<16x128xf32>
    %c0_1 = arith.constant 0 : index
    %c0_2 = arith.constant 0 : index
    %1 = vector.load %arg2[%c0_1, %c0_2] : memref<1x128xf32, #tpu.memory_space<vmem>>, vector<1x128xf32>
    %c0_3 = arith.constant 0 : index
    %c0_4 = arith.constant 0 : index
    %2 = vector.load %arg3[%c0_3, %c0_4] : memref<1x128xf32, #tpu.memory_space<vmem>>, vector<1x128xf32>
    %cst = arith.constant dense<0.000000e+00> : vector<16xf32>
    %3 = vector.multi_reduction <add>, %0, %cst [1] : vector<16x128xf32> to vector<16xf32>
    %4 = vector.shape_cast %3 : vector<16xf32> to vector<16x1xf32>
    %cst_5 = arith.constant 1.280000e+02 : f32
    %5 = vector.broadcast %cst_5 : f32 to vector<16x1xf32>
    %6 = arith.divf %4, %5 : vector<16x1xf32>
    %7 = vector.broadcast %6 : vector<16x1xf32> to vector<16x128xf32>
    %8 = arith.subf %0, %7 : vector<16x128xf32>
    %9 = arith.mulf %8, %8 : vector<16x128xf32>
    %cst_6 = arith.constant dense<0.000000e+00> : vector<16xf32>
    %10 = vector.multi_reduction <add>, %9, %cst_6 [1] : vector<16x128xf32> to vector<16xf32>
    %11 = vector.shape_cast %10 : vector<16xf32> to vector<16x1xf32>
    %cst_7 = arith.constant 1.280000e+02 : f32
    %12 = vector.broadcast %cst_7 : f32 to vector<16x1xf32>
    %13 = arith.divf %11, %12 : vector<16x1xf32>
    %14 = vector.broadcast %6 : vector<16x1xf32> to vector<16x128xf32>
    %15 = arith.subf %0, %14 : vector<16x128xf32>
    %cst_8 = arith.constant 9.99999974E-6 : f32
    %16 = vector.broadcast %cst_8 : f32 to vector<16x1xf32>
    %17 = arith.addf %13, %16 : vector<16x1xf32>
    %18 = math.rsqrt %17 : vector<16x1xf32>
    %19 = vector.broadcast %18 : vector<16x1xf32> to vector<16x128xf32>
    %20 = arith.mulf %15, %19 : vector<16x128xf32>
    %21 = vector.broadcast %1 : vector<1x128xf32> to vector<16x128xf32>
    %22 = arith.mulf %20, %21 : vector<16x128xf32>
    %23 = vector.broadcast %2 : vector<1x128xf32> to vector<16x128xf32>
    %24 = arith.addf %22, %23 : vector<16x128xf32>
    %25 = arith.truncf %24 : vector<16x128xf32> to vector<16x128xbf16>
    %c0_9 = arith.constant 0 : index
    %c0_10 = arith.constant 0 : index
    %26 = vector.load %arg4[%c0_9, %c0_10] : memref<128x128xbf16, #tpu.memory_space<vmem>>, vector<128x128xbf16>
    %cst_11 = arith.constant dense<0.000000e+00> : vector<16x128xf32>
    %27 = tpu.matmul %25, %26, %cst_11 {dimension_numbers = #tpu.dot_dimension_numbers<[1], [0], [0], [1], [0, 0, 1, 1], [], []>} : vector<16x128xbf16>, vector<128x128xbf16>, vector<16x128xf32> -> vector<16x128xf32>
    %c0_12 = arith.constant 0 : index
    %c0_13 = arith.constant 0 : index
    %28 = vector.load %arg5[%c0_12, %c0_13] : memref<1x128xf32, #tpu.memory_space<vmem>>, vector<1x128xf32>
    %29 = vector.broadcast %28 : vector<1x128xf32> to vector<16x128xf32>
    %30 = arith.addf %27, %29 : vector<16x128xf32>
    %cst_14 = arith.constant dense<0xFF800000> : vector<16xf32>
    %31 = vector.multi_reduction <maximumf>, %30, %cst_14 [1] : vector<16x128xf32> to vector<16xf32>
    %32 = vector.shape_cast %31 : vector<16xf32> to vector<16x1xf32>
    %33 = vector.broadcast %32 : vector<16x1xf32> to vector<16x128xf32>
    %34 = arith.subf %30, %33 : vector<16x128xf32>
    %35 = math.exp %34 : vector<16x128xf32>
    %cst_15 = arith.constant dense<0.000000e+00> : vector<16xf32>
    %36 = vector.multi_reduction <add>, %35, %cst_15 [1] : vector<16x128xf32> to vector<16xf32>
    %37 = vector.shape_cast %36 : vector<16xf32> to vector<16x1xf32>
    %38 = math.log %37 : vector<16x1xf32>
    %39 = vector.broadcast %38 : vector<16x1xf32> to vector<16x128xf32>
    %40 = arith.subf %34, %39 : vector<16x128xf32>
    %c0_16 = arith.constant 0 : index
    %c0_17 = arith.constant 0 : index
    %41 = vector.load %arg6[%c0_16, %c0_17] : memref<16x128xf32, #tpu.memory_space<vmem>>, vector<16x128xf32>
    tpu.vector_store %arg6[%c0_16, %c0_17], %40 {strides = array<i32>} : memref<16x128xf32, #tpu.memory_space<vmem>>, vector<16x128xf32>,
    return
  }
  func.func @transform_0(%arg0: i32) -> (i32, i32) {
    %c0_i32 = arith.constant 0 : i32
    %c0_i32_0 = arith.constant 0 : i32
    return %arg0, %c0_i32 : i32, i32
  }
  func.func @transform_1(%arg0: i32) -> (i32, i32) {
    %c0_i32 = arith.constant 0 : i32
    %c0_i32_0 = arith.constant 0 : i32
    %c0_i32_1 = arith.constant 0 : i32
    return %c0_i32, %c0_i32_0 : i32, i32
  }
  func.func @transform_2(%arg0: i32) -> (i32, i32) {
    %c0_i32 = arith.constant 0 : i32
    %c0_i32_0 = arith.constant 0 : i32
    %c0_i32_1 = arith.constant 0 : i32
    return %c0_i32, %c0_i32_0 : i32, i32
  }
  func.func @transform_3(%arg0: i32) -> (i32, i32) {
    %c0_i32 = arith.constant 0 : i32
    %c0_i32_0 = arith.constant 0 : i32
    %c0_i32_1 = arith.constant 0 : i32
    return %c0_i32, %c0_i32_0 : i32, i32
  }
  func.func @transform_4(%arg0: i32) -> (i32, i32) {
    %c0_i32 = arith.constant 0 : i32
    %c0_i32_0 = arith.constant 0 : i32
    %c0_i32_1 = arith.constant 0 : i32
    return %c0_i32, %c0_i32_0 : i32, i32
  }
  func.func @transform_5(%arg0: i32) -> (i32, i32) {
    %c0_i32 = arith.constant 0 : i32
    %c0_i32_0 = arith.constant 0 : i32
    return %arg0, %c0_i32 : i32, i32
  }
}

module attributes {stable_mosaic.version = 11 : i64} {
  func.func @_cross_attn_kernel(%arg0: i32, %arg1: memref<2xi32, #tpu.memory_space<smem>>, %arg2: memref<1x8x128xf32, #tpu.memory_space<vmem>>, %arg3: memref<1x8x128xf32, #tpu.memory_space<vmem>>, %arg4: memref<1x128xf32, #tpu.memory_space<vmem>>, %arg5: memref<1x128xf32, #tpu.memory_space<vmem>>, %arg6: memref<128x128xbf16, #tpu.memory_space<vmem>>, %arg7: memref<128x128xbf16, #tpu.memory_space<vmem>>, %arg8: memref<1x8x128xf32, #tpu.memory_space<vmem>>) attributes {dimension_semantics = [#tpu.dimension_semantics<parallel>], iteration_bounds = array<i64: 2>, scalar_prefetch = 1 : i64, scratch_operands = 0 : i64, tpu.core_type = #tpu.core_type<tc>, window_params = [{transform_indices = @transform_0, window_bounds = array<i64: 1, 8, 128>}, {transform_indices = @transform_1, window_bounds = array<i64: 1, 8, 128>}, {pipeline_mode = #tpu.pipeline_mode<synchronous>, transform_indices = @transform_2, window_bounds = array<i64: 1, 128>}, {pipeline_mode = #tpu.pipeline_mode<synchronous>, transform_indices = @transform_3, window_bounds = array<i64: 1, 128>}, {pipeline_mode = #tpu.pipeline_mode<synchronous>, transform_indices = @transform_4, window_bounds = array<i64: 128, 128>}, {pipeline_mode = #tpu.pipeline_mode<synchronous>, transform_indices = @transform_5, window_bounds = array<i64: 128, 128>}, {transform_indices = @transform_6, window_bounds = array<i64: 1, 8, 128>}]} {
    %c0 = arith.constant 0 : index
    %c0_0 = arith.constant 0 : index
    %c0_1 = arith.constant 0 : index
    %0 = vector.load %arg2[%c0, %c0_0, %c0_1] : memref<1x8x128xf32, #tpu.memory_space<vmem>>, vector<1x8x128xf32>
    %1 = vector.shape_cast %0 : vector<1x8x128xf32> to vector<8x128xf32>
    %c0_2 = arith.constant 0 : index
    %c0_3 = arith.constant 0 : index
    %c0_4 = arith.constant 0 : index
    %2 = vector.load %arg3[%c0_2, %c0_3, %c0_4] : memref<1x8x128xf32, #tpu.memory_space<vmem>>, vector<1x8x128xf32>
    %3 = vector.shape_cast %2 : vector<1x8x128xf32> to vector<8x128xf32>
    %c0_5 = arith.constant 0 : index
    %c0_6 = arith.constant 0 : index
    %4 = vector.load %arg4[%c0_5, %c0_6] : memref<1x128xf32, #tpu.memory_space<vmem>>, vector<1x128xf32>
    %c0_7 = arith.constant 0 : index
    %c0_8 = arith.constant 0 : index
    %5 = vector.load %arg5[%c0_7, %c0_8] : memref<1x128xf32, #tpu.memory_space<vmem>>, vector<1x128xf32>
    %c0_9 = arith.constant 0 : index
    %c0_10 = arith.constant 0 : index
    %6 = vector.load %arg6[%c0_9, %c0_10] : memref<128x128xbf16, #tpu.memory_space<vmem>>, vector<128x128xbf16>
    %cst = arith.constant dense<0.000000e+00> : vector<8xf32>
    %7 = vector.multi_reduction <add>, %1, %cst [1] : vector<8x128xf32> to vector<8xf32>
    %8 = vector.shape_cast %7 : vector<8xf32> to vector<8x1xf32>
    %cst_11 = arith.constant 1.280000e+02 : f32
    %9 = vector.broadcast %cst_11 : f32 to vector<8x1xf32>
    %10 = arith.divf %8, %9 : vector<8x1xf32>
    %11 = vector.broadcast %10 : vector<8x1xf32> to vector<8x128xf32>
    %12 = arith.subf %1, %11 : vector<8x128xf32>
    %13 = arith.mulf %12, %12 : vector<8x128xf32>
    %cst_12 = arith.constant dense<0.000000e+00> : vector<8xf32>
    %14 = vector.multi_reduction <add>, %13, %cst_12 [1] : vector<8x128xf32> to vector<8xf32>
    %15 = vector.shape_cast %14 : vector<8xf32> to vector<8x1xf32>
    %cst_13 = arith.constant 1.280000e+02 : f32
    %16 = vector.broadcast %cst_13 : f32 to vector<8x1xf32>
    %17 = arith.divf %15, %16 : vector<8x1xf32>
    %18 = vector.broadcast %10 : vector<8x1xf32> to vector<8x128xf32>
    %19 = arith.subf %1, %18 : vector<8x128xf32>
    %cst_14 = arith.constant 9.99999974E-6 : f32
    %20 = vector.broadcast %cst_14 : f32 to vector<8x1xf32>
    %21 = arith.addf %17, %20 : vector<8x1xf32>
    %22 = math.rsqrt %21 : vector<8x1xf32>
    %23 = vector.broadcast %22 : vector<8x1xf32> to vector<8x128xf32>
    %24 = arith.mulf %19, %23 : vector<8x128xf32>
    %25 = vector.broadcast %4 : vector<1x128xf32> to vector<8x128xf32>
    %26 = arith.mulf %24, %25 : vector<8x128xf32>
    %27 = vector.broadcast %5 : vector<1x128xf32> to vector<8x128xf32>
    %28 = arith.addf %26, %27 : vector<8x128xf32>
    %29 = arith.truncf %28 : vector<8x128xf32> to vector<8x128xbf16>
    %cst_15 = arith.constant dense<0.000000e+00> : vector<8x128xf32>
    %30 = tpu.matmul %29, %6, %cst_15 {dimension_numbers = #tpu.dot_dimension_numbers<[1], [0], [0], [1], [0, 0, 1, 1], [], []>} : vector<8x128xbf16>, vector<128x128xbf16>, vector<8x128xf32> -> vector<8x128xf32>
    %31 = arith.truncf %30 : vector<8x128xf32> to vector<8x128xbf16>
    %cst_16 = arith.constant dense<0.000000e+00> : vector<8xf32>
    %32 = vector.multi_reduction <add>, %3, %cst_16 [1] : vector<8x128xf32> to vector<8xf32>
    %33 = vector.shape_cast %32 : vector<8xf32> to vector<8x1xf32>
    %cst_17 = arith.constant 1.280000e+02 : f32
    %34 = vector.broadcast %cst_17 : f32 to vector<8x1xf32>
    %35 = arith.divf %33, %34 : vector<8x1xf32>
    %36 = vector.broadcast %35 : vector<8x1xf32> to vector<8x128xf32>
    %37 = arith.subf %3, %36 : vector<8x128xf32>
    %38 = arith.mulf %37, %37 : vector<8x128xf32>
    %cst_18 = arith.constant dense<0.000000e+00> : vector<8xf32>
    %39 = vector.multi_reduction <add>, %38, %cst_18 [1] : vector<8x128xf32> to vector<8xf32>
    %40 = vector.shape_cast %39 : vector<8xf32> to vector<8x1xf32>
    %cst_19 = arith.constant 1.280000e+02 : f32
    %41 = vector.broadcast %cst_19 : f32 to vector<8x1xf32>
    %42 = arith.divf %40, %41 : vector<8x1xf32>
    %43 = vector.broadcast %35 : vector<8x1xf32> to vector<8x128xf32>
    %44 = arith.subf %3, %43 : vector<8x128xf32>
    %cst_20 = arith.constant 9.99999974E-6 : f32
    %45 = vector.broadcast %cst_20 : f32 to vector<8x1xf32>
    %46 = arith.addf %42, %45 : vector<8x1xf32>
    %47 = math.rsqrt %46 : vector<8x1xf32>
    %48 = vector.broadcast %47 : vector<8x1xf32> to vector<8x128xf32>
    %49 = arith.mulf %44, %48 : vector<8x128xf32>
    %50 = vector.broadcast %4 : vector<1x128xf32> to vector<8x128xf32>
    %51 = arith.mulf %49, %50 : vector<8x128xf32>
    %52 = vector.broadcast %5 : vector<1x128xf32> to vector<8x128xf32>
    %53 = arith.addf %51, %52 : vector<8x128xf32>
    %54 = arith.truncf %53 : vector<8x128xf32> to vector<8x128xbf16>
    %cst_21 = arith.constant dense<0.000000e+00> : vector<8x128xf32>
    %55 = tpu.matmul %54, %6, %cst_21 {dimension_numbers = #tpu.dot_dimension_numbers<[1], [0], [0], [1], [0, 0, 1, 1], [], []>} : vector<8x128xbf16>, vector<128x128xbf16>, vector<8x128xf32> -> vector<8x128xf32>
    %56 = arith.truncf %55 : vector<8x128xf32> to vector<8x128xbf16>
    %57 = tpu.iota {dimensions = array<i32: 1>} : vector<8x8xi32>
    %58 = arith.index_cast %arg0 : i32 to index
    %59 = memref.load %arg1[%58] : memref<2xi32, #tpu.memory_space<smem>>
    %60 = vector.broadcast %59 : i32 to vector<8x8xi32>
    %61 = arith.cmpi sge, %57, %60 : vector<8x8xi32>
    %62 = vector.extract_strided_slice %31 {offsets = [0, 0], sizes = [8, 32], strides = [1, 1]} : vector<8x128xbf16> to vector<8x32xbf16>
    %63 = vector.extract_strided_slice %56 {offsets = [0, 0], sizes = [8, 32], strides = [1, 1]} : vector<8x128xbf16> to vector<8x32xbf16>
    %cst_22 = arith.constant dense<0.000000e+00> : vector<8x8xf32>
    %64 = tpu.matmul %62, %63, %cst_22 {dimension_numbers = #tpu.dot_dimension_numbers<[1], [1], [0], [0], [0, 0, 1, 0], [], []>} : vector<8x32xbf16>, vector<8x32xbf16>, vector<8x8xf32> -> vector<8x8xf32>
    %cst_23 = arith.constant 0.176776692 : f32
    %65 = vector.broadcast %cst_23 : f32 to vector<8x8xf32>
    %66 = arith.mulf %64, %65 : vector<8x8xf32>
    %cst_24 = arith.constant 0xFF800000 : f32
    %67 = vector.broadcast %cst_24 : f32 to vector<8x8xf32>
    %68 = arith.select %61, %67, %66 : vector<8x8xi1>, vector<8x8xf32>
    %cst_25 = arith.constant dense<0xFF800000> : vector<8xf32>
    %69 = vector.multi_reduction <maximumf>, %68, %cst_25 [1] : vector<8x8xf32> to vector<8xf32>
    %70 = vector.shape_cast %69 : vector<8xf32> to vector<8x1xf32>
    %71 = vector.broadcast %70 : vector<8x1xf32> to vector<8x8xf32>
    %72 = arith.subf %68, %71 : vector<8x8xf32>
    %73 = math.exp %72 : vector<8x8xf32>
    %cst_26 = arith.constant dense<0.000000e+00> : vector<8xf32>
    %74 = vector.multi_reduction <add>, %73, %cst_26 [1] : vector<8x8xf32> to vector<8xf32>
    %75 = vector.shape_cast %74 : vector<8xf32> to vector<8x1xf32>
    %76 = tpu.reciprocal %75 {approx = true} : vector<8x1xf32> -> vector<8x1xf32>
    %77 = vector.broadcast %76 : vector<8x1xf32> to vector<8x8xf32>
    %78 = arith.mulf %73, %77 : vector<8x8xf32>
    %79 = arith.truncf %78 : vector<8x8xf32> to vector<8x8xbf16>
    %cst_27 = arith.constant dense<0.000000e+00> : vector<8x32xf32>
    %80 = tpu.matmul %79, %63, %cst_27 {dimension_numbers = #tpu.dot_dimension_numbers<[1], [0], [0], [1], [0, 0, 1, 1], [], []>} : vector<8x8xbf16>, vector<8x32xbf16>, vector<8x32xf32> -> vector<8x32xf32>
    %81 = vector.extract_strided_slice %31 {offsets = [0, 32], sizes = [8, 32], strides = [1, 1]} : vector<8x128xbf16> to vector<8x32xbf16>
    %82 = vector.extract_strided_slice %56 {offsets = [0, 32], sizes = [8, 32], strides = [1, 1]} : vector<8x128xbf16> to vector<8x32xbf16>
    %cst_28 = arith.constant dense<0.000000e+00> : vector<8x8xf32>
    %83 = tpu.matmul %81, %82, %cst_28 {dimension_numbers = #tpu.dot_dimension_numbers<[1], [1], [0], [0], [0, 0, 1, 0], [], []>} : vector<8x32xbf16>, vector<8x32xbf16>, vector<8x8xf32> -> vector<8x8xf32>
    %cst_29 = arith.constant 0.176776692 : f32
    %84 = vector.broadcast %cst_29 : f32 to vector<8x8xf32>
    %85 = arith.mulf %83, %84 : vector<8x8xf32>
    %cst_30 = arith.constant 0xFF800000 : f32
    %86 = vector.broadcast %cst_30 : f32 to vector<8x8xf32>
    %87 = arith.select %61, %86, %85 : vector<8x8xi1>, vector<8x8xf32>
    %cst_31 = arith.constant dense<0xFF800000> : vector<8xf32>
    %88 = vector.multi_reduction <maximumf>, %87, %cst_31 [1] : vector<8x8xf32> to vector<8xf32>
    %89 = vector.shape_cast %88 : vector<8xf32> to vector<8x1xf32>
    %90 = vector.broadcast %89 : vector<8x1xf32> to vector<8x8xf32>
    %91 = arith.subf %87, %90 : vector<8x8xf32>
    %92 = math.exp %91 : vector<8x8xf32>
    %cst_32 = arith.constant dense<0.000000e+00> : vector<8xf32>
    %93 = vector.multi_reduction <add>, %92, %cst_32 [1] : vector<8x8xf32> to vector<8xf32>
    %94 = vector.shape_cast %93 : vector<8xf32> to vector<8x1xf32>
    %95 = tpu.reciprocal %94 {approx = true} : vector<8x1xf32> -> vector<8x1xf32>
    %96 = vector.broadcast %95 : vector<8x1xf32> to vector<8x8xf32>
    %97 = arith.mulf %92, %96 : vector<8x8xf32>
    %98 = arith.truncf %97 : vector<8x8xf32> to vector<8x8xbf16>
    %cst_33 = arith.constant dense<0.000000e+00> : vector<8x32xf32>
    %99 = tpu.matmul %98, %82, %cst_33 {dimension_numbers = #tpu.dot_dimension_numbers<[1], [0], [0], [1], [0, 0, 1, 1], [], []>} : vector<8x8xbf16>, vector<8x32xbf16>, vector<8x32xf32> -> vector<8x32xf32>
    %100 = vector.extract_strided_slice %31 {offsets = [0, 64], sizes = [8, 32], strides = [1, 1]} : vector<8x128xbf16> to vector<8x32xbf16>
    %101 = vector.extract_strided_slice %56 {offsets = [0, 64], sizes = [8, 32], strides = [1, 1]} : vector<8x128xbf16> to vector<8x32xbf16>
    %cst_34 = arith.constant dense<0.000000e+00> : vector<8x8xf32>
    %102 = tpu.matmul %100, %101, %cst_34 {dimension_numbers = #tpu.dot_dimension_numbers<[1], [1], [0], [0], [0, 0, 1, 0], [], []>} : vector<8x32xbf16>, vector<8x32xbf16>, vector<8x8xf32> -> vector<8x8xf32>
    %cst_35 = arith.constant 0.176776692 : f32
    %103 = vector.broadcast %cst_35 : f32 to vector<8x8xf32>
    %104 = arith.mulf %102, %103 : vector<8x8xf32>
    %cst_36 = arith.constant 0xFF800000 : f32
    %105 = vector.broadcast %cst_36 : f32 to vector<8x8xf32>
    %106 = arith.select %61, %105, %104 : vector<8x8xi1>, vector<8x8xf32>
    %cst_37 = arith.constant dense<0xFF800000> : vector<8xf32>
    %107 = vector.multi_reduction <maximumf>, %106, %cst_37 [1] : vector<8x8xf32> to vector<8xf32>
    %108 = vector.shape_cast %107 : vector<8xf32> to vector<8x1xf32>
    %109 = vector.broadcast %108 : vector<8x1xf32> to vector<8x8xf32>
    %110 = arith.subf %106, %109 : vector<8x8xf32>
    %111 = math.exp %110 : vector<8x8xf32>
    %cst_38 = arith.constant dense<0.000000e+00> : vector<8xf32>
    %112 = vector.multi_reduction <add>, %111, %cst_38 [1] : vector<8x8xf32> to vector<8xf32>
    %113 = vector.shape_cast %112 : vector<8xf32> to vector<8x1xf32>
    %114 = tpu.reciprocal %113 {approx = true} : vector<8x1xf32> -> vector<8x1xf32>
    %115 = vector.broadcast %114 : vector<8x1xf32> to vector<8x8xf32>
    %116 = arith.mulf %111, %115 : vector<8x8xf32>
    %117 = arith.truncf %116 : vector<8x8xf32> to vector<8x8xbf16>
    %cst_39 = arith.constant dense<0.000000e+00> : vector<8x32xf32>
    %118 = tpu.matmul %117, %101, %cst_39 {dimension_numbers = #tpu.dot_dimension_numbers<[1], [0], [0], [1], [0, 0, 1, 1], [], []>} : vector<8x8xbf16>, vector<8x32xbf16>, vector<8x32xf32> -> vector<8x32xf32>
    %119 = vector.extract_strided_slice %31 {offsets = [0, 96], sizes = [8, 32], strides = [1, 1]} : vector<8x128xbf16> to vector<8x32xbf16>
    %120 = vector.extract_strided_slice %56 {offsets = [0, 96], sizes = [8, 32], strides = [1, 1]} : vector<8x128xbf16> to vector<8x32xbf16>
    %cst_40 = arith.constant dense<0.000000e+00> : vector<8x8xf32>
    %121 = tpu.matmul %119, %120, %cst_40 {dimension_numbers = #tpu.dot_dimension_numbers<[1], [1], [0], [0], [0, 0, 1, 0], [], []>} : vector<8x32xbf16>, vector<8x32xbf16>, vector<8x8xf32> -> vector<8x8xf32>
    %cst_41 = arith.constant 0.176776692 : f32
    %122 = vector.broadcast %cst_41 : f32 to vector<8x8xf32>
    %123 = arith.mulf %121, %122 : vector<8x8xf32>
    %cst_42 = arith.constant 0xFF800000 : f32
    %124 = vector.broadcast %cst_42 : f32 to vector<8x8xf32>
    %125 = arith.select %61, %124, %123 : vector<8x8xi1>, vector<8x8xf32>
    %cst_43 = arith.constant dense<0xFF800000> : vector<8xf32>
    %126 = vector.multi_reduction <maximumf>, %125, %cst_43 [1] : vector<8x8xf32> to vector<8xf32>
    %127 = vector.shape_cast %126 : vector<8xf32> to vector<8x1xf32>
    %128 = vector.broadcast %127 : vector<8x1xf32> to vector<8x8xf32>
    %129 = arith.subf %125, %128 : vector<8x8xf32>
    %130 = math.exp %129 : vector<8x8xf32>
    %cst_44 = arith.constant dense<0.000000e+00> : vector<8xf32>
    %131 = vector.multi_reduction <add>, %130, %cst_44 [1] : vector<8x8xf32> to vector<8xf32>
    %132 = vector.shape_cast %131 : vector<8xf32> to vector<8x1xf32>
    %133 = tpu.reciprocal %132 {approx = true} : vector<8x1xf32> -> vector<8x1xf32>
    %134 = vector.broadcast %133 : vector<8x1xf32> to vector<8x8xf32>
    %135 = arith.mulf %130, %134 : vector<8x8xf32>
    %136 = arith.truncf %135 : vector<8x8xf32> to vector<8x8xbf16>
    %cst_45 = arith.constant dense<0.000000e+00> : vector<8x32xf32>
    %137 = tpu.matmul %136, %120, %cst_45 {dimension_numbers = #tpu.dot_dimension_numbers<[1], [0], [0], [1], [0, 0, 1, 1], [], []>} : vector<8x8xbf16>, vector<8x32xbf16>, vector<8x32xf32> -> vector<8x32xf32>
    %138 = tpu.concatenate %80, %99, %118, %137 in 1 : vector<8x32xf32>, vector<8x32xf32>, vector<8x32xf32>, vector<8x32xf32> -> vector<8x128xf32>
    %139 = arith.truncf %138 : vector<8x128xf32> to vector<8x128xbf16>
    %c0_46 = arith.constant 0 : index
    %c0_47 = arith.constant 0 : index
    %140 = vector.load %arg7[%c0_46, %c0_47] : memref<128x128xbf16, #tpu.memory_space<vmem>>, vector<128x128xbf16>
    %cst_48 = arith.constant dense<0.000000e+00> : vector<8x128xf32>
    %141 = tpu.matmul %139, %140, %cst_48 {dimension_numbers = #tpu.dot_dimension_numbers<[1], [0], [0], [1], [0, 0, 1, 1], [], []>} : vector<8x128xbf16>, vector<128x128xbf16>, vector<8x128xf32> -> vector<8x128xf32>
    %142 = arith.addf %1, %141 : vector<8x128xf32>
    %c0_49 = arith.constant 0 : index
    %c0_50 = arith.constant 0 : index
    %c0_51 = arith.constant 0 : index
    %143 = vector.load %arg8[%c0_49, %c0_50, %c0_51] : memref<1x8x128xf32, #tpu.memory_space<vmem>>, vector<1x8x128xf32>
    %144 = vector.shape_cast %143 : vector<1x8x128xf32> to vector<8x128xf32>
    %145 = vector.shape_cast %142 : vector<8x128xf32> to vector<1x8x128xf32>
    tpu.vector_store %arg8[%c0_49, %c0_50, %c0_51], %145 {strides = array<i32>} : memref<1x8x128xf32, #tpu.memory_space<vmem>>, vector<1x8x128xf32>,
    return
  }
  func.func @transform_0(%arg0: i32, %arg1: memref<2xi32, #tpu.memory_space<smem>>) -> (i32, i32, i32) {
    %c0_i32 = arith.constant 0 : i32
    %c0_i32_0 = arith.constant 0 : i32
    %c0_i32_1 = arith.constant 0 : i32
    return %arg0, %c0_i32, %c0_i32_0 : i32, i32, i32
  }
  func.func @transform_1(%arg0: i32, %arg1: memref<2xi32, #tpu.memory_space<smem>>) -> (i32, i32, i32) {
    %c0_i32 = arith.constant 0 : i32
    %c0_i32_0 = arith.constant 0 : i32
    %c0_i32_1 = arith.constant 0 : i32
    return %arg0, %c0_i32, %c0_i32_0 : i32, i32, i32
  }
  func.func @transform_2(%arg0: i32, %arg1: memref<2xi32, #tpu.memory_space<smem>>) -> (i32, i32) {
    %c0_i32 = arith.constant 0 : i32
    %c0_i32_0 = arith.constant 0 : i32
    %c0_i32_1 = arith.constant 0 : i32
    return %c0_i32, %c0_i32_0 : i32, i32
  }
  func.func @transform_3(%arg0: i32, %arg1: memref<2xi32, #tpu.memory_space<smem>>) -> (i32, i32) {
    %c0_i32 = arith.constant 0 : i32
    %c0_i32_0 = arith.constant 0 : i32
    %c0_i32_1 = arith.constant 0 : i32
    return %c0_i32, %c0_i32_0 : i32, i32
  }
  func.func @transform_4(%arg0: i32, %arg1: memref<2xi32, #tpu.memory_space<smem>>) -> (i32, i32) {
    %c0_i32 = arith.constant 0 : i32
    %c0_i32_0 = arith.constant 0 : i32
    %c0_i32_1 = arith.constant 0 : i32
    return %c0_i32, %c0_i32_0 : i32, i32
  }
  func.func @transform_5(%arg0: i32, %arg1: memref<2xi32, #tpu.memory_space<smem>>) -> (i32, i32) {
    %c0_i32 = arith.constant 0 : i32
    %c0_i32_0 = arith.constant 0 : i32
    %c0_i32_1 = arith.constant 0 : i32
    return %c0_i32, %c0_i32_0 : i32, i32
  }
  func.func @transform_6(%arg0: i32, %arg1: memref<2xi32, #tpu.memory_space<smem>>) -> (i32, i32, i32) {
    %c0_i32 = arith.constant 0 : i32
    %c0_i32_0 = arith.constant 0 : i32
    %c0_i32_1 = arith.constant 0 : i32
    return %arg0, %c0_i32, %c0_i32_0 : i32, i32, i32
  }
}

</mosaic_0001>

<llo_original>
// kernel: transformer_forward.11
$region0: #{transformer_forward.11}
  #allocation0 [shape = 'u32[]', space=smem, size = 0x4, offset = 0x4, fixed_abs, tag = 'smem constant byte address 0x4 - core index']
  #allocation1 [shape = 'u32[144,128]{1,0:T(1,128)}', space=vmem, size = 0x12000, scoped, tag = 'internal scratch']
  #allocation2 [shape = 's32[1]{0}', space=sflag, size = 0x4, scoped, tag = 'scoped memory for transformer_forward.11']
  #allocation3 [shape = 'u8[512]{0}', space=smem, size = 0x200, scoped, tag = 'prefetched SMEM operand 0']
  %s0 = inlined_call_operand.vmem [shape: s32[2], index: 0, kind: input, shape index: {}]
  %s1 = inlined_call_operand.vmem [shape: f32[2,8,128], index: 1, kind: input, shape index: {}]
  %s2 = inlined_call_operand.hbm [shape: f32[1,128], index: 2, kind: input, shape index: {}]
  %s3 = inlined_call_operand.hbm [shape: f32[1,128], index: 3, kind: input, shape index: {}]
  %s4 = inlined_call_operand.vmem [shape: bf16[128,128], index: 4, kind: input, shape index: {}]
  %s5 = inlined_call_operand.vmem [shape: bf16[128,128], index: 5, kind: input, shape index: {}]
  %s6 = inlined_call_operand.vmem [shape: f32[2,8,128], index: 6, kind: output, shape index: {}]
  %s7 = sld [smem:[#allocation0]]
  $region61: #{transformer_forward.11} parent=0
    _
  %s9 = ssub.s32 1, %s7
  %s10 = scalar_select 0, %s9, %s7
  %s11 = sshll.u32 %s0, 4
  %s12 = int_to_ptr.vmem [resolvable:$true] %s11
  %14 = dma.vmem_to_smem %s12, 16, [#allocation3], [#allocation2]
  %15 = dma.done [#allocation2], 16
  %16 = sfence
  $region1: #{transformer_forward.11} parent=0
    #allocation4 [shape = 'u8[512]{0}', space=vmem, size = 0x400, scoped, tag = 'input window, operand 2, single buffered']
    #allocation5 [shape = 's32[2]{0}', space=sflag, size = 0x8, scoped, tag = 'scoped memory for transformer_forward.11']
    #allocation6 [shape = 'u8[512]{0}', space=vmem, size = 0x400, scoped, tag = 'input window, operand 3, single buffered']
    #allocation7 [shape = 's32[1]{0}', space=sflag, size = 0x4, scoped, tag = 'scoped memory for transformer_forward.11']
    %17 = vsyncpa [#allocation5], 0
    %18 = vsyncpa [#allocation7], 0
    loop: start=0, step=1, limit=4
    $region2: #{transformer_forward.11} parent=1 // loop_pre_header
      _
    $region3: #{transformer_forward.11} parent=1 // loop_header
      %s20 = sphi 0, %s24
      %p21 = scmp.ge.s32.totalorder %s20, 4
      %s30 = sphi 0, %s32
      %s33 = sphi 0, %s30
      %s34 = sphi 0, %s33
      %s50 = sphi 0, %s34
      %s54 = sphi 0, %s54
      %s56 = sphi 0, %s54
      %s57 = sphi 0, %s56
      %s71 = sphi 0, %s57
      %s75 = sphi 0, %s75
      %s77 = sphi 0, %s75
      %s78 = sphi 0, %s77
      %s92 = sphi 0, %s78
      %s96 = sphi 0, %s96
      %s98 = sphi 0, %s96
      %s99 = sphi 0, %s98
      %s113 = sphi 0, %s99
      %s117 = sphi 0, %s117
      %s119 = sphi 0, %s117
      %s120 = sphi 0, %s119
      %s134 = sphi 0, %s120
      %s140 = sphi 0, %s142
      %s143 = sphi 0, %s140
      %s144 = sphi 0, %s143
      %s160 = sphi 0, %s144
    $region4: #{transformer_forward.11} parent=1 // loop_header_branch
      %23 = sbr.rel (%p21) target = $region8
    $region5: #{transformer_forward.11} parent=1 // loop_body
      %s25 = ssub.s32 %s20, 1
      %s26 = ssub.s32 %s20, 2
      %s27 = sadd.s32 %s20, 1
      %s28 = ssub.s32 %s20, %s27
      %p29 = scmp.eq.s32.totalorder %s28, 0
      %s31 = sadd.s32 %s30, 1
      %s32 = scalar_select %p29, %s30, %s31
      %p35 = pneg %p29
      %p36 = scmp.eq.s32.totalorder %s20, 1
      %p37 = por %p35, %p36
      %p38 = scmp.ne.s32.totalorder %s30, %s33
      %p39 = scmp.eq.s32.totalorder %s20, 0
      %p40 = por %p38, %p39
      %p41 = scmp.ne.s32.totalorder %s30, %s33
      %p42 = scmp.eq.s32.totalorder %s25, 1
      %p43 = por %p41, %p42
      %p44 = scmp.ne.s32.totalorder %s33, %s34
      %p45 = scmp.eq.s32.totalorder %s25, 0
      %p46 = por %p44, %p45
      %p47 = scmp.ne.s32.totalorder %s33, %s34
      %p48 = scmp.eq.s32.totalorder %s26, 1
      %p49 = por %p47, %p48
      %p51 = scmp.ne.s32.totalorder %s34, %s50
      %p52 = scmp.eq.s32.totalorder %s26, 0
      %p53 = por %p51, %p52
      %s55 = sadd.s32 %s54, 1
      %p58 = scmp.eq.s32.totalorder %s20, 1
      %p59 = scmp.ne.s32.totalorder %s54, %s56
      %p60 = scmp.eq.s32.totalorder %s20, 0
      %p61 = por %p59, %p60
      %p62 = scmp.ne.s32.totalorder %s54, %s56
      %p63 = scmp.eq.s32.totalorder %s25, 1
      %p64 = por %p62, %p63
      %p65 = scmp.ne.s32.totalorder %s56, %s57
      %p66 = scmp.eq.s32.totalorder %s25, 0
      %p67 = por %p65, %p66
      %p68 = scmp.ne.s32.totalorder %s56, %s57
      %p69 = scmp.eq.s32.totalorder %s26, 1
      %p70 = por %p68, %p69
      %p72 = scmp.ne.s32.totalorder %s57, %s71
      %p73 = scmp.eq.s32.totalorder %s26, 0
      %p74 = por %p72, %p73
      %s76 = sadd.s32 %s75, 1
      %p79 = scmp.eq.s32.totalorder %s20, 1
      %p80 = scmp.ne.s32.totalorder %s75, %s77
      %p81 = scmp.eq.s32.totalorder %s20, 0
      %p82 = por %p80, %p81
      %p83 = scmp.ne.s32.totalorder %s75, %s77
      %p84 = scmp.eq.s32.totalorder %s25, 1
      %p85 = por %p83, %p84
      %p86 = scmp.ne.s32.totalorder %s77, %s78
      %p87 = scmp.eq.s32.totalorder %s25, 0
      %p88 = por %p86, %p87
      %p89 = scmp.ne.s32.totalorder %s77, %s78
      %p90 = scmp.eq.s32.totalorder %s26, 1
      %p91 = por %p89, %p90
      %p93 = scmp.ne.s32.totalorder %s78, %s92
      %p94 = scmp.eq.s32.totalorder %s26, 0
      %p95 = por %p93, %p94
      %s97 = sadd.s32 %s96, 1
      %p100 = scmp.eq.s32.totalorder %s20, 1
      %p101 = scmp.ne.s32.totalorder %s96, %s98
      %p102 = scmp.eq.s32.totalorder %s20, 0
      %p103 = por %p101, %p102
      %p104 = scmp.ne.s32.totalorder %s96, %s98
      %p105 = scmp.eq.s32.totalorder %s25, 1
      %p106 = por %p104, %p105
      %p107 = scmp.ne.s32.totalorder %s98, %s99
      %p108 = scmp.eq.s32.totalorder %s25, 0
      %p109 = por %p107, %p108
      %p110 = scmp.ne.s32.totalorder %s98, %s99
      %p111 = scmp.eq.s32.totalorder %s26, 1
      %p112 = por %p110, %p111
      %p114 = scmp.ne.s32.totalorder %s99, %s113
      %p115 = scmp.eq.s32.totalorder %s26, 0
      %p116 = por %p114, %p115
      %s118 = sadd.s32 %s117, 1
      %p121 = scmp.eq.s32.totalorder %s20, 1
      %p122 = scmp.ne.s32.totalorder %s117, %s119
      %p123 = scmp.eq.s32.totalorder %s20, 0
      %p124 = por %p122, %p123
      %p125 = scmp.ne.s32.totalorder %s117, %s119
      %p126 = scmp.eq.s32.totalorder %s25, 1
      %p127 = por %p125, %p126
      %p128 = scmp.ne.s32.totalorder %s119, %s120
      %p129 = scmp.eq.s32.totalorder %s25, 0
      %p130 = por %p128, %p129
      %p131 = scmp.ne.s32.totalorder %s119, %s120
      %p132 = scmp.eq.s32.totalorder %s26, 1
      %p133 = por %p131, %p132
      %p135 = scmp.ne.s32.totalorder %s120, %s134
      %p136 = scmp.eq.s32.totalorder %s26, 0
      %p137 = por %p135, %p136
      %s138 = ssub.s32 %s20, %s27
      %p139 = scmp.eq.s32.totalorder %s138, 0
      %s141 = sadd.s32 %s140, 1
      %s142 = scalar_select %p139, %s140, %s141
      %p145 = pneg %p139
      %p146 = scmp.eq.s32.totalorder %s20, 1
      %p147 = por %p145, %p146
      %p148 = scmp.ne.s32.totalorder %s140, %s143
      %p149 = scmp.eq.s32.totalorder %s20, 0
      %p150 = por %p148, %p149
      %p151 = scmp.ne.s32.totalorder %s140, %s143
      %p152 = scmp.eq.s32.totalorder %s25, 1
      %p153 = por %p151, %p152
      %p154 = scmp.ne.s32.totalorder %s143, %s144
      %p155 = scmp.eq.s32.totalorder %s25, 0
      %p156 = por %p154, %p155
      %p157 = scmp.ne.s32.totalorder %s143, %s144
      %p158 = scmp.eq.s32.totalorder %s26, 1
      %p159 = por %p157, %p158
      %p161 = scmp.ne.s32.totalorder %s144, %s160
      %p162 = scmp.eq.s32.totalorder %s26, 0
      %p163 = por %p161, %p162
      %p164 = scmp.le.s32.totalorder 1, %s20
      %p165 = scmp.lt.s32.totalorder %s20, 3
      %p166 = pnand %p164, %p165
      %p167 = pneg %p166
      // Predicated region
      $region9: #{transformer_forward.11} parent=5 // pred_check
        _
      $region10: #{transformer_forward.11} parent=5 // pred_check_branch
        %169 = sbr.rel (%p166) target = $region12
      $region11: #{transformer_forward.11} parent=5 // pred_region
        %s170 = ssub.s32 %s20, 1
        // Predicated region
        $region13: #{transformer_forward.11} parent=11 // pred_check
          %p171 = pneg %p67
        $region14: #{transformer_forward.11} parent=11 // pred_check_branch
          %173 = sbr.rel (%p171) target = $region16
        $region15: #{transformer_forward.11} parent=11 // pred_region
          %s175 = ssub.s32 16, 16
          %176 = vsyncadd [#allocation5], %s175
          %s178 = sshll.u32 [#allocation4], 4
          %s179 = int_to_ptr.vmem [resolvable:$true] %s178
          %181 = dma.hbm_to_vmem [thread:$0]  %s2, 16, %s179, [#allocation5]
        $region16: #{transformer_forward.11} parent=11 // pred_fallthru
          _
        // Predicated region
        $region17: #{transformer_forward.11} parent=11 // pred_check
          %p182 = pneg %p88
        $region18: #{transformer_forward.11} parent=11 // pred_check_branch
          %184 = sbr.rel (%p182) target = $region20
        $region19: #{transformer_forward.11} parent=11 // pred_region
          %s186 = ssub.s32 16, 16
          %187 = vsyncadd [#allocation7], %s186
          %s189 = sshll.u32 [#allocation6], 4
          %s190 = int_to_ptr.vmem [resolvable:$true] %s189
          %192 = dma.hbm_to_vmem [thread:$0]  %s3, 16, %s190, [#allocation7]
        $region20: #{transformer_forward.11} parent=11 // pred_fallthru
          _
        // Predicated region
        $region21: #{transformer_forward.11} parent=11 // pred_check
          %p193 = pneg %p109
        $region22: #{transformer_forward.11} parent=11 // pred_check_branch
          %195 = sbr.rel (%p193) target = $region24
        $region23: #{transformer_forward.11} parent=11 // pred_region
          _
        $region24: #{transformer_forward.11} parent=11 // pred_fallthru
          _
        // Predicated region
        $region25: #{transformer_forward.11} parent=11 // pred_check
          %p196 = pneg %p130
        $region26: #{transformer_forward.11} parent=11 // pred_check_branch
          %198 = sbr.rel (%p196) target = $region28
        $region27: #{transformer_forward.11} parent=11 // pred_region
          _
        $region28: #{transformer_forward.11} parent=11 // pred_fallthru
          _
      $region12: #{transformer_forward.11} parent=5 // pred_fallthru
        _
      %p199 = scmp.lt.s32.totalorder %s20, 2
      // Predicated region
      $region29: #{transformer_forward.11} parent=5 // pred_check
        %p200 = pneg %p199
      $region30: #{transformer_forward.11} parent=5 // pred_check_branch
        %202 = sbr.rel (%p200) target = $region32
      $region31: #{transformer_forward.11} parent=5 // pred_region
        // Predicated region
        $region33: #{transformer_forward.11} parent=31 // pred_check
          %p203 = pneg %p40
        $region34: #{transformer_forward.11} parent=31 // pred_check_branch
          %205 = sbr.rel (%p203) target = $region36
        $region35: #{transformer_forward.11} parent=31 // pred_region
          %p206 = scmp.lt.s32.totalorder %s20, 1
          %s207 = scalar_select %p206, %s20, 1
          %s208 = smul.addr %s207, 8
          %s209 = scalar_lea.vmem %s1, %s208
        $region36: #{transformer_forward.11} parent=31 // pred_fallthru
          _
      $region32: #{transformer_forward.11} parent=5 // pred_fallthru
        _
      %p210 = scmp.le.s32.totalorder 1, %s20
      %p211 = scmp.lt.s32.totalorder %s20, 3
      %p212 = pnand %p210, %p211
      %p213 = pneg %p212
      // Predicated region
      $region37: #{transformer_forward.11} parent=5 // pred_check
        _
      $region38: #{transformer_forward.11} parent=5 // pred_check_branch
        %215 = sbr.rel (%p212) target = $region40
      $region39: #{transformer_forward.11} parent=5 // pred_region
        %s216 = ssub.s32 %s20, 1
        // Predicated region
        $region41: #{transformer_forward.11} parent=39 // pred_check
          %p217 = pneg %p67
        $region42: #{transformer_forward.11} parent=39 // pred_check_branch
          %219 = sbr.rel (%p217) target = $region44
        $region43: #{transformer_forward.11} parent=39 // pred_region
          %220 = dma.done [#allocation5], 16
        $region44: #{transformer_forward.11} parent=39 // pred_fallthru
          _
        // Predicated region
        $region45: #{transformer_forward.11} parent=39 // pred_check
          %p221 = pneg %p88
        $region46: #{transformer_forward.11} parent=39 // pred_check_branch
          %223 = sbr.rel (%p221) target = $region48
        $region47: #{transformer_forward.11} parent=39 // pred_region
          %224 = dma.done [#allocation7], 16
        $region48: #{transformer_forward.11} parent=39 // pred_fallthru
          _
        %p225 = scmp.lt.s32.totalorder %s25, 1
        %s226 = scalar_select %p225, %s25, 1
        %s227 = smul.addr %s226, 8
        %s228 = scalar_lea.vmem %s1, %s227
        %p229 = pneg %p46
        %p230 = pneg %p43
        %p231 = pneg %p67
        %p232 = pneg %p64
        %p233 = pneg %p88
        %p234 = pneg %p85
        %p235 = pneg %p109
        %p236 = pneg %p106
        %p237 = pneg %p130
        %p238 = pneg %p127
        %p239 = pneg %p156
        %p240 = pneg %p153
        %p241 = scmp.lt.s32.totalorder %s25, 1
        %s242 = scalar_select %p241, %s25, 1
        %s243 = smul.addr %s242, 8
        %s244 = scalar_lea.vmem %s6, %s243
        %p245 = scmp.lt.s32.totalorder %s25, 1
        %s246 = scalar_select %p245, %s25, 1
        %s247 = smul.addr %s246, 8
        %s248 = scalar_lea.vmem %s1, %s247
        %p249 = scmp.lt.s32.totalorder %s25, 1
        %s250 = scalar_select %p249, %s25, 1
        %s251 = smul.addr %s250, 8
        %s252 = scalar_lea.vmem %s6, %s251
        %v254 = vld [vmem:[%s248] sm:$0xff]
        %v255 = vld [vmem:[#allocation4] sm:$0x1]
        %v256 = vld [vmem:[#allocation6] sm:$0x1]
        %257 = vadd.xlane.f32.xlu0 %v254
        %v258 = vpop.xlane.xlu0 %257
        %v259 = vrcp.pop 128.0
        %v260 = vmul.f32 %v258, %v259
        %v261 = vsub.f32 %v254, %v260
        %v262 = vmul.f32 %v261, %v261
        %263 = vadd.xlane.f32.xlu0 %v262
        %v264 = vpop.xlane.xlu0 %263
        %v265 = vmul.f32 %v264, %v259
        %v266 = vadd.f32 %v265, 1e-05
        %v267 = vrsqrt.pop %v266
        %v268 = vmul.f32 %v261, %v267
        %v270 = vlaneseq
        %v271 = vshrl.u32 %v270, 7
        %v272 = vsub.s32 0, %v271
        %v273 = vrot.slane %v255, %v272
        %v275 = vmul.f32 %v268, %v273
        %v277 = vlaneseq
        %v278 = vshrl.u32 %v277, 7
        %v279 = vsub.s32 0, %v278
        %v280 = vrot.slane %v256, %v279
        %v282 = vadd.f32 %v275, %v280
        %v283 = vpack.c.bf16 %v282, %v282
        %v284 = vld [vmem:[%s4] sm:$0xf]
        %v285 = vld [vmem:[%s4 + $0x4] sm:$0xf]
        %v286 = vld [vmem:[%s4 + $0x8] sm:$0xf]
        %v287 = vld [vmem:[%s4 + $0xc] sm:$0xf]
        %v288 = vld [vmem:[%s4 + $0x10] sm:$0xf]
        %v289 = vld [vmem:[%s4 + $0x14] sm:$0xf]
        %v290 = vld [vmem:[%s4 + $0x18] sm:$0xf]
        %v291 = vld [vmem:[%s4 + $0x1c] sm:$0xf]
        %v292 = vld [vmem:[%s4 + $0x20] sm:$0xf]
        %v293 = vld [vmem:[%s4 + $0x24] sm:$0xf]
        %v294 = vld [vmem:[%s4 + $0x28] sm:$0xf]
        %v295 = vld [vmem:[%s4 + $0x2c] sm:$0xf]
        %v296 = vld [vmem:[%s4 + $0x30] sm:$0xf]
        %v297 = vld [vmem:[%s4 + $0x34] sm:$0xf]
        %v298 = vld [vmem:[%s4 + $0x38] sm:$0xf]
        %v299 = vld [vmem:[%s4 + $0x3c] sm:$0xf]
        %v316 = vunpack.c.l.b16 %v284
        %v317 = vunpack.c.l.b16 %v285
        %v318 = vunpack.c.l.b16 %v286
        %v319 = vunpack.c.l.b16 %v287
        %v320 = vunpack.c.l.b16 %v288
        %v321 = vunpack.c.l.b16 %v289
        %v322 = vunpack.c.l.b16 %v290
        %v323 = vunpack.c.l.b16 %v291
        %v324 = vunpack.c.l.b16 %v292
        %v325 = vunpack.c.l.b16 %v293
        %v326 = vunpack.c.l.b16 %v294
        %v327 = vunpack.c.l.b16 %v295
        %v328 = vunpack.c.l.b16 %v296
        %v329 = vunpack.c.l.b16 %v297
        %v330 = vunpack.c.l.b16 %v298
        %v331 = vunpack.c.l.b16 %v299
        %v332 = vpack.c.b16 %v317, %v316
        %v333 = vpack.c.b16 %v319, %v318
        %v334 = vpack.c.b16 %v321, %v320
        %v335 = vpack.c.b16 %v323, %v322
        %v336 = vpack.c.b16 %v325, %v324
        %v337 = vpack.c.b16 %v327, %v326
        %v338 = vpack.c.b16 %v329, %v328
        %v339 = vpack.c.b16 %v331, %v330
        %348 = vmatprep.subr.bf16.mxu0 0
        %349 = vmatpush1.bf16.msra.mxu0 %v332
        %350 = vmatprep.subr.bf16.mxu0 0
        %351 = vmatpush1.bf16.msra.mxu0 %v333
        %352 = vmatprep.subr.bf16.mxu0 0
        %353 = vmatpush1.bf16.msra.mxu0 %v334
        %354 = vmatprep.subr.bf16.mxu0 0
        %355 = vmatpush1.bf16.msra.mxu0 %v335
        %356 = vmatprep.subr.bf16.mxu0 0
        %357 = vmatpush1.bf16.msra.mxu0 %v336
        %358 = vmatprep.subr.bf16.mxu0 0
        %359 = vmatpush1.bf16.msra.mxu0 %v337
        %360 = vmatprep.subr.bf16.mxu0 0
        %361 = vmatpush1.bf16.msra.mxu0 %v338
        %362 = vmatprep.subr.bf16.mxu0 0
        %363 = vmatpush1.bf16.msra.mxu0 %v339
        %364 = vmatprep.subr.bf16.mxu0 0
        %365 = vmatpush1.bf16.msra.mxu0 0
        %366 = vmatprep.subr.bf16.mxu0 0
        %367 = vmatpush1.bf16.msra.mxu0 0
        %368 = vmatprep.subr.bf16.mxu0 0
        %369 = vmatpush1.bf16.msra.mxu0 0
        %370 = vmatprep.subr.bf16.mxu0 0
        %371 = vmatpush1.bf16.msra.mxu0 0
        %372 = vmatprep.subr.bf16.mxu0 0
        %373 = vmatpush1.bf16.msra.mxu0 0
        %374 = vmatprep.subr.bf16.mxu0 0
        %375 = vmatpush1.bf16.msra.mxu0 0
        %376 = vmatprep.subr.bf16.mxu0 0
        %377 = vmatpush1.bf16.msra.mxu0 0
        %378 = vmatprep.subr.bf16.mxu0 0
        %379 = vmatpush1.bf16.msra.mxu0 0
        %380 = vmatprep.mubr.bf16.mxu0 0
        %381 = vmatmul.mubr.bf16.gmra.mrb[0].mxu0 %v283
        %v382 = vpop.f32.mrb[0].mxu0
        %v383 = vadd.f32 0.0, %v382
        %v384 = vpop.f32.mrb[0].mxu0
        %v385 = vpop.f32.mrb[0].mxu0
        %v386 = vpop.f32.mrb[0].mxu0
        %387 = vdwg.mxu0
        %v388 = vpack.c.bf16 %v383, %v383
        %v389 = vlaneseq
        %v390 = vand.u32 %v389, 127
        %s391 = sld [smem:[#allocation3 + %s25]]
        %v392 = vstv %s391
        %vm393 = vcmp.ge.s32.totalorder %v390, %v392
        %vm394 = vcmask 261120
        %v396 = vsel %vm394, %v388, 0
        %398 = vmatprep.subr.bf16.mxu0 0
        %399 = vmatpush1.bf16.xpose.msra.mxu0 %v396
        %400 = vmatprep.subr.bf16.mxu0 0
        %401 = vmatpush1.bf16.xpose.msra.mxu0 0
        %402 = vmatprep.subr.bf16.mxu0 0
        %403 = vmatpush1.bf16.xpose.msra.mxu0 0
        %404 = vmatprep.subr.bf16.mxu0 0
        %405 = vmatpush1.bf16.xpose.msra.mxu0 0
        %406 = vmatprep.subr.bf16.mxu0 0
        %407 = vmatpush1.bf16.xpose.msra.mxu0 0
        %408 = vmatprep.subr.bf16.mxu0 0
        %409 = vmatpush1.bf16.xpose.msra.mxu0 0
        %410 = vmatprep.subr.bf16.mxu0 0
        %411 = vmatpush1.bf16.xpose.msra.mxu0 0
        %412 = vmatprep.subr.bf16.mxu0 0
        %413 = vmatpush1.bf16.xpose.msra.mxu0 0
        %414 = vmatprep.subr.bf16.mxu0 0
        %415 = vmatpush1.bf16.xpose.msra.mxu0 0
        %416 = vmatprep.subr.bf16.mxu0 0
        %417 = vmatpush1.bf16.xpose.msra.mxu0 0
        %418 = vmatprep.subr.bf16.mxu0 0
        %419 = vmatpush1.bf16.xpose.msra.mxu0 0
        %420 = vmatprep.subr.bf16.mxu0 0
        %421 = vmatpush1.bf16.xpose.msra.mxu0 0
        %422 = vmatprep.subr.bf16.mxu0 0
        %423 = vmatpush1.bf16.xpose.msra.mxu0 0
        %424 = vmatprep.subr.bf16.mxu0 0
        %425 = vmatpush1.bf16.xpose.msra.mxu0 0
        %426 = vmatprep.subr.bf16.mxu0 0
        %427 = vmatpush1.bf16.xpose.msra.mxu0 0
        %428 = vmatprep.subr.bf16.mxu0 0
        %429 = vmatpush1.bf16.xpose.msra.mxu0 0
        %430 = vmatprep.mubr.bf16.mxu0 0
        %431 = vmatmul.mubr.bf16.gmra.mrb[0].mxu0 %v396
        %v432 = vpop.f32.mrb[0].mxu0
        %v433 = vadd.f32 0.0, %v432
        %v434 = vpop.f32.mrb[0].mxu0
        %v435 = vpop.f32.mrb[0].mxu0
        %v436 = vpop.f32.mrb[0].mxu0
        %437 = vdwg.mxu0
        %v438 = vmul.f32 %v433, 0.17677669
        %v439 = vsel %vm393, -inf, %v438
        %vm440 = vcmask 64512
        %v441 = vsel %vm440, %v439, -inf
        %442 = vmax.xlane.f32.xlu0 %v441
        %v443 = vpop.xlane.xlu0 %442
        %v444 = vsub.f32 %v439, %v443
        %v445 = vmul.f32 %v444, 1.442695
        %v446 = vpow.pop %v445
        %v447 = vsel %vm440, %v446, 0.0
        %448 = vadd.xlane.f32.xlu0 %v447
        %v449 = vpop.xlane.xlu0 %448
        %v450 = vrcp.pop %v449
        %v451 = vmul.f32 %v446, %v450
        %v452 = vpack.c.bf16 %v451, %v451
        %v454 = vsel %vm440, %v452, 0
        %vm456 = vcmask 1043456
        %v457 = vsel %vm456, %v388, 0
        %459 = vmatprep.subr.bf16.mxu0 0
        %460 = vmatpush1.bf16.msra.mxu0 %v457
        %461 = vmatprep.subr.bf16.mxu0 0
        %462 = vmatpush1.bf16.msra.mxu0 0
        %463 = vmatprep.subr.bf16.mxu0 0
        %464 = vmatpush1.bf16.msra.mxu0 0
        %465 = vmatprep.subr.bf16.mxu0 0
        %466 = vmatpush1.bf16.msra.mxu0 0
        %467 = vmatprep.subr.bf16.mxu0 0
        %468 = vmatpush1.bf16.msra.mxu0 0
        %469 = vmatprep.subr.bf16.mxu0 0
        %470 = vmatpush1.bf16.msra.mxu0 0
        %471 = vmatprep.subr.bf16.mxu0 0
        %472 = vmatpush1.bf16.msra.mxu0 0
        %473 = vmatprep.subr.bf16.mxu0 0
        %474 = vmatpush1.bf16.msra.mxu0 0
        %475 = vmatprep.subr.bf16.mxu0 0
        %476 = vmatpush1.bf16.msra.mxu0 0
        %477 = vmatprep.subr.bf16.mxu0 0
        %478 = vmatpush1.bf16.msra.mxu0 0
        %479 = vmatprep.subr.bf16.mxu0 0
        %480 = vmatpush1.bf16.msra.mxu0 0
        %481 = vmatprep.subr.bf16.mxu0 0
        %482 = vmatpush1.bf16.msra.mxu0 0
        %483 = vmatprep.subr.bf16.mxu0 0
        %484 = vmatpush1.bf16.msra.mxu0 0
        %485 = vmatprep.subr.bf16.mxu0 0
        %486 = vmatpush1.bf16.msra.mxu0 0
        %487 = vmatprep.subr.bf16.mxu0 0
        %488 = vmatpush1.bf16.msra.mxu0 0
        %489 = vmatprep.subr.bf16.mxu0 0
        %490 = vmatpush1.bf16.msra.mxu0 0
        %491 = vmatprep.mubr.bf16.mxu0 0
        %492 = vmatmul.mubr.bf16.gmra.mrb[0].mxu0 %v454
        %v493 = vpop.f32.mrb[0].mxu0
        %v494 = vadd.f32 0.0, %v493
        %v495 = vpop.f32.mrb[0].mxu0
        %v496 = vpop.f32.mrb[0].mxu0
        %v497 = vpop.f32.mrb[0].mxu0
        %498 = vdwg.mxu0
        %500 = vrot.lane.b32.xlu0 %v388, 96
        %v501 = vpop.permute.xlu0 %500
        %v503 = vsel %vm394, %v501, 0
        %505 = vmatprep.subr.bf16.mxu0 0
        %506 = vmatpush1.bf16.xpose.msra.mxu0 %v503
        %507 = vmatprep.subr.bf16.mxu0 0
        %508 = vmatpush1.bf16.xpose.msra.mxu0 0
        %509 = vmatprep.subr.bf16.mxu0 0
        %510 = vmatpush1.bf16.xpose.msra.mxu0 0
        %511 = vmatprep.subr.bf16.mxu0 0
        %512 = vmatpush1.bf16.xpose.msra.mxu0 0
        %513 = vmatprep.subr.bf16.mxu0 0
        %514 = vmatpush1.bf16.xpose.msra.mxu0 0
        %515 = vmatprep.subr.bf16.mxu0 0
        %516 = vmatpush1.bf16.xpose.msra.mxu0 0
        %517 = vmatprep.subr.bf16.mxu0 0
        %518 = vmatpush1.bf16.xpose.msra.mxu0 0
        %519 = vmatprep.subr.bf16.mxu0 0
        %520 = vmatpush1.bf16.xpose.msra.mxu0 0
        %521 = vmatprep.subr.bf16.mxu0 0
        %522 = vmatpush1.bf16.xpose.msra.mxu0 0
        %523 = vmatprep.subr.bf16.mxu0 0
        %524 = vmatpush1.bf16.xpose.msra.mxu0 0
        %525 = vmatprep.subr.bf16.mxu0 0
        %526 = vmatpush1.bf16.xpose.msra.mxu0 0
        %527 = vmatprep.subr.bf16.mxu0 0
        %528 = vmatpush1.bf16.xpose.msra.mxu0 0
        %529 = vmatprep.subr.bf16.mxu0 0
        %530 = vmatpush1.bf16.xpose.msra.mxu0 0
        %531 = vmatprep.subr.bf16.mxu0 0
        %532 = vmatpush1.bf16.xpose.msra.mxu0 0
        %533 = vmatprep.subr.bf16.mxu0 0
        %534 = vmatpush1.bf16.xpose.msra.mxu0 0
        %535 = vmatprep.subr.bf16.mxu0 0
        %536 = vmatpush1.bf16.xpose.msra.mxu0 0
        %537 = vmatprep.mubr.bf16.mxu0 0
        %538 = vmatmul.mubr.bf16.gmra.mrb[0].mxu0 %v503
        %v539 = vpop.f32.mrb[0].mxu0
        %v540 = vadd.f32 0.0, %v539
        %v541 = vpop.f32.mrb[0].mxu0
        %v542 = vpop.f32.mrb[0].mxu0
        %v543 = vpop.f32.mrb[0].mxu0
        %544 = vdwg.mxu0
        %v545 = vmul.f32 %v540, 0.17677669
        %v546 = vsel %vm393, -inf, %v545
        %v547 = vsel %vm440, %v546, -inf
        %548 = vmax.xlane.f32.xlu0 %v547
        %v549 = vpop.xlane.xlu0 %548
        %v550 = vsub.f32 %v546, %v549
        %v551 = vmul.f32 %v550, 1.442695
        %v552 = vpow.pop %v551
        %v553 = vsel %vm440, %v552, 0.0
        %554 = vadd.xlane.f32.xlu0 %v553
        %v555 = vpop.xlane.xlu0 %554
        %v556 = vrcp.pop %v555
        %v557 = vmul.f32 %v552, %v556
        %v558 = vpack.c.bf16 %v557, %v557
        %v560 = vsel %vm440, %v558, 0
        %v562 = vsel %vm456, %v501, 0
        %564 = vmatprep.subr.bf16.mxu0 0
        %565 = vmatpush1.bf16.msra.mxu0 %v562
        %566 = vmatprep.subr.bf16.mxu0 0
        %567 = vmatpush1.bf16.msra.mxu0 0
        %568 = vmatprep.subr.bf16.mxu0 0
        %569 = vmatpush1.bf16.msra.mxu0 0
        %570 = vmatprep.subr.bf16.mxu0 0
        %571 = vmatpush1.bf16.msra.mxu0 0
        %572 = vmatprep.subr.bf16.mxu0 0
        %573 = vmatpush1.bf16.msra.mxu0 0
        %574 = vmatprep.subr.bf16.mxu0 0
        %575 = vmatpush1.bf16.msra.mxu0 0
        %576 = vmatprep.subr.bf16.mxu0 0
        %577 = vmatpush1.bf16.msra.mxu0 0
        %578 = vmatprep.subr.bf16.mxu0 0
        %579 = vmatpush1.bf16.msra.mxu0 0
        %580 = vmatprep.subr.bf16.mxu0 0
        %581 = vmatpush1.bf16.msra.mxu0 0
        %582 = vmatprep.subr.bf16.mxu0 0
        %583 = vmatpush1.bf16.msra.mxu0 0
        %584 = vmatprep.subr.bf16.mxu0 0
        %585 = vmatpush1.bf16.msra.mxu0 0
        %586 = vmatprep.subr.bf16.mxu0 0
        %587 = vmatpush1.bf16.msra.mxu0 0
        %588 = vmatprep.subr.bf16.mxu0 0
        %589 = vmatpush1.bf16.msra.mxu0 0
        %590 = vmatprep.subr.bf16.mxu0 0
        %591 = vmatpush1.bf16.msra.mxu0 0
        %592 = vmatprep.subr.bf16.mxu0 0
        %593 = vmatpush1.bf16.msra.mxu0 0
        %594 = vmatprep.subr.bf16.mxu0 0
        %595 = vmatpush1.bf16.msra.mxu0 0
        %596 = vmatprep.mubr.bf16.mxu0 0
        %597 = vmatmul.mubr.bf16.gmra.mrb[0].mxu0 %v560
        %v598 = vpop.f32.mrb[0].mxu0
        %v599 = vadd.f32 0.0, %v598
        %v600 = vpop.f32.mrb[0].mxu0
        %v601 = vpop.f32.mrb[0].mxu0
        %v602 = vpop.f32.mrb[0].mxu0
        %603 = vdwg.mxu0
        %604 = vrot.lane.b32.xlu0 %v388, 64
        %v605 = vpop.permute.xlu0 %604
        %v607 = vsel %vm394, %v605, 0
        %609 = vmatprep.subr.bf16.mxu0 0
        %610 = vmatpush1.bf16.xpose.msra.mxu0 %v607
        %611 = vmatprep.subr.bf16.mxu0 0
        %612 = vmatpush1.bf16.xpose.msra.mxu0 0
        %613 = vmatprep.subr.bf16.mxu0 0
        %614 = vmatpush1.bf16.xpose.msra.mxu0 0
        %615 = vmatprep.subr.bf16.mxu0 0
        %616 = vmatpush1.bf16.xpose.msra.mxu0 0
        %617 = vmatprep.subr.bf16.mxu0 0
        %618 = vmatpush1.bf16.xpose.msra.mxu0 0
        %619 = vmatprep.subr.bf16.mxu0 0
        %620 = vmatpush1.bf16.xpose.msra.mxu0 0
        %621 = vmatprep.subr.bf16.mxu0 0
        %622 = vmatpush1.bf16.xpose.msra.mxu0 0
        %623 = vmatprep.subr.bf16.mxu0 0
        %624 = vmatpush1.bf16.xpose.msra.mxu0 0
        %625 = vmatprep.subr.bf16.mxu0 0
        %626 = vmatpush1.bf16.xpose.msra.mxu0 0
        %627 = vmatprep.subr.bf16.mxu0 0
        %628 = vmatpush1.bf16.xpose.msra.mxu0 0
        %629 = vmatprep.subr.bf16.mxu0 0
        %630 = vmatpush1.bf16.xpose.msra.mxu0 0
        %631 = vmatprep.subr.bf16.mxu0 0
        %632 = vmatpush1.bf16.xpose.msra.mxu0 0
        %633 = vmatprep.subr.bf16.mxu0 0
        %634 = vmatpush1.bf16.xpose.msra.mxu0 0
        %635 = vmatprep.subr.bf16.mxu0 0
        %636 = vmatpush1.bf16.xpose.msra.mxu0 0
        %637 = vmatprep.subr.bf16.mxu0 0
        %638 = vmatpush1.bf16.xpose.msra.mxu0 0
        %639 = vmatprep.subr.bf16.mxu0 0
        %640 = vmatpush1.bf16.xpose.msra.mxu0 0
        %641 = vmatprep.mubr.bf16.mxu0 0
        %642 = vmatmul.mubr.bf16.gmra.mrb[0].mxu0 %v607
        %v643 = vpop.f32.mrb[0].mxu0
        %v644 = vadd.f32 0.0, %v643
        %v645 = vpop.f32.mrb[0].mxu0
        %v646 = vpop.f32.mrb[0].mxu0
        %v647 = vpop.f32.mrb[0].mxu0
        %648 = vdwg.mxu0
        %v649 = vmul.f32 %v644, 0.17677669
        %v650 = vsel %vm393, -inf, %v649
        %v651 = vsel %vm440, %v650, -inf
        %652 = vmax.xlane.f32.xlu0 %v651
        %v653 = vpop.xlane.xlu0 %652
        %v654 = vsub.f32 %v650, %v653
        %v655 = vmul.f32 %v654, 1.442695
        %v656 = vpow.pop %v655
        %v657 = vsel %vm440, %v656, 0.0
        %658 = vadd.xlane.f32.xlu0 %v657
        %v659 = vpop.xlane.xlu0 %658
        %v660 = vrcp.pop %v659
        %v661 = vmul.f32 %v656, %v660
        %v662 = vpack.c.bf16 %v661, %v661
        %v664 = vsel %vm440, %v662, 0
        %v666 = vsel %vm456, %v605, 0
        %668 = vmatprep.subr.bf16.mxu0 0
        %669 = vmatpush1.bf16.msra.mxu0 %v666
        %670 = vmatprep.subr.bf16.mxu0 0
        %671 = vmatpush1.bf16.msra.mxu0 0
        %672 = vmatprep.subr.bf16.mxu0 0
        %673 = vmatpush1.bf16.msra.mxu0 0
        %674 = vmatprep.subr.bf16.mxu0 0
        %675 = vmatpush1.bf16.msra.mxu0 0
        %676 = vmatprep.subr.bf16.mxu0 0
        %677 = vmatpush1.bf16.msra.mxu0 0
        %678 = vmatprep.subr.bf16.mxu0 0
        %679 = vmatpush1.bf16.msra.mxu0 0
        %680 = vmatprep.subr.bf16.mxu0 0
        %681 = vmatpush1.bf16.msra.mxu0 0
        %682 = vmatprep.subr.bf16.mxu0 0
        %683 = vmatpush1.bf16.msra.mxu0 0
        %684 = vmatprep.subr.bf16.mxu0 0
        %685 = vmatpush1.bf16.msra.mxu0 0
        %686 = vmatprep.subr.bf16.mxu0 0
        %687 = vmatpush1.bf16.msra.mxu0 0
        %688 = vmatprep.subr.bf16.mxu0 0
        %689 = vmatpush1.bf16.msra.mxu0 0
        %690 = vmatprep.subr.bf16.mxu0 0
        %691 = vmatpush1.bf16.msra.mxu0 0
        %692 = vmatprep.subr.bf16.mxu0 0
        %693 = vmatpush1.bf16.msra.mxu0 0
        %694 = vmatprep.subr.bf16.mxu0 0
        %695 = vmatpush1.bf16.msra.mxu0 0
        %696 = vmatprep.subr.bf16.mxu0 0
        %697 = vmatpush1.bf16.msra.mxu0 0
        %698 = vmatprep.subr.bf16.mxu0 0
        %699 = vmatpush1.bf16.msra.mxu0 0
        %700 = vmatprep.mubr.bf16.mxu0 0
        %701 = vmatmul.mubr.bf16.gmra.mrb[0].mxu0 %v664
        %v702 = vpop.f32.mrb[0].mxu0
        %v703 = vadd.f32 0.0, %v702
        %v704 = vpop.f32.mrb[0].mxu0
        %v705 = vpop.f32.mrb[0].mxu0
        %v706 = vpop.f32.mrb[0].mxu0
        %707 = vdwg.mxu0
        %708 = vrot.lane.b32.xlu0 %v388, 32
        %v709 = vpop.permute.xlu0 %708
        %v711 = vsel %vm394, %v709, 0
        %713 = vmatprep.subr.bf16.mxu0 0
        %714 = vmatpush1.bf16.xpose.msra.mxu0 %v711
        %715 = vmatprep.subr.bf16.mxu0 0
        %716 = vmatpush1.bf16.xpose.msra.mxu0 0
        %717 = vmatprep.subr.bf16.mxu0 0
        %718 = vmatpush1.bf16.xpose.msra.mxu0 0
        %719 = vmatprep.subr.bf16.mxu0 0
        %720 = vmatpush1.bf16.xpose.msra.mxu0 0
        %721 = vmatprep.subr.bf16.mxu0 0
        %722 = vmatpush1.bf16.xpose.msra.mxu0 0
        %723 = vmatprep.subr.bf16.mxu0 0
        %724 = vmatpush1.bf16.xpose.msra.mxu0 0
        %725 = vmatprep.subr.bf16.mxu0 0
        %726 = vmatpush1.bf16.xpose.msra.mxu0 0
        %727 = vmatprep.subr.bf16.mxu0 0
        %728 = vmatpush1.bf16.xpose.msra.mxu0 0
        %729 = vmatprep.subr.bf16.mxu0 0
        %730 = vmatpush1.bf16.xpose.msra.mxu0 0
        %731 = vmatprep.subr.bf16.mxu0 0
        %732 = vmatpush1.bf16.xpose.msra.mxu0 0
        %733 = vmatprep.subr.bf16.mxu0 0
        %734 = vmatpush1.bf16.xpose.msra.mxu0 0
        %735 = vmatprep.subr.bf16.mxu0 0
        %736 = vmatpush1.bf16.xpose.msra.mxu0 0
        %737 = vmatprep.subr.bf16.mxu0 0
        %738 = vmatpush1.bf16.xpose.msra.mxu0 0
        %739 = vmatprep.subr.bf16.mxu0 0
        %740 = vmatpush1.bf16.xpose.msra.mxu0 0
        %741 = vmatprep.subr.bf16.mxu0 0
        %742 = vmatpush1.bf16.xpose.msra.mxu0 0
        %743 = vmatprep.subr.bf16.mxu0 0
        %744 = vmatpush1.bf16.xpose.msra.mxu0 0
        %745 = vmatprep.mubr.bf16.mxu0 0
        %746 = vmatmul.mubr.bf16.gmra.mrb[0].mxu0 %v711
        %v747 = vpop.f32.mrb[0].mxu0
        %v748 = vadd.f32 0.0, %v747
        %v749 = vpop.f32.mrb[0].mxu0
        %v750 = vpop.f32.mrb[0].mxu0
        %v751 = vpop.f32.mrb[0].mxu0
        %752 = vdwg.mxu0
        %v753 = vmul.f32 %v748, 0.17677669
        %v754 = vsel %vm393, -inf, %v753
        %v755 = vsel %vm440, %v754, -inf
        %756 = vmax.xlane.f32.xlu0 %v755
        %v757 = vpop.xlane.xlu0 %756
        %v758 = vsub.f32 %v754, %v757
        %v759 = vmul.f32 %v758, 1.442695
        %v760 = vpow.pop %v759
        %v761 = vsel %vm440, %v760, 0.0
        %762 = vadd.xlane.f32.xlu0 %v761
        %v763 = vpop.xlane.xlu0 %762
        %v764 = vrcp.pop %v763
        %v765 = vmul.f32 %v760, %v764
        %v766 = vpack.c.bf16 %v765, %v765
        %v768 = vsel %vm440, %v766, 0
        %v770 = vsel %vm456, %v709, 0
        %772 = vmatprep.subr.bf16.mxu0 0
        %773 = vmatpush1.bf16.msra.mxu0 %v770
        %774 = vmatprep.subr.bf16.mxu0 0
        %775 = vmatpush1.bf16.msra.mxu0 0
        %776 = vmatprep.subr.bf16.mxu0 0
        %777 = vmatpush1.bf16.msra.mxu0 0
        %778 = vmatprep.subr.bf16.mxu0 0
        %779 = vmatpush1.bf16.msra.mxu0 0
        %780 = vmatprep.subr.bf16.mxu0 0
        %781 = vmatpush1.bf16.msra.mxu0 0
        %782 = vmatprep.subr.bf16.mxu0 0
        %783 = vmatpush1.bf16.msra.mxu0 0
        %784 = vmatprep.subr.bf16.mxu0 0
        %785 = vmatpush1.bf16.msra.mxu0 0
        %786 = vmatprep.subr.bf16.mxu0 0
        %787 = vmatpush1.bf16.msra.mxu0 0
        %788 = vmatprep.subr.bf16.mxu0 0
        %789 = vmatpush1.bf16.msra.mxu0 0
        %790 = vmatprep.subr.bf16.mxu0 0
        %791 = vmatpush1.bf16.msra.mxu0 0
        %792 = vmatprep.subr.bf16.mxu0 0
        %793 = vmatpush1.bf16.msra.mxu0 0
        %794 = vmatprep.subr.bf16.mxu0 0
        %795 = vmatpush1.bf16.msra.mxu0 0
        %796 = vmatprep.subr.bf16.mxu0 0
        %797 = vmatpush1.bf16.msra.mxu0 0
        %798 = vmatprep.subr.bf16.mxu0 0
        %799 = vmatpush1.bf16.msra.mxu0 0
        %800 = vmatprep.subr.bf16.mxu0 0
        %801 = vmatpush1.bf16.msra.mxu0 0
        %802 = vmatprep.subr.bf16.mxu0 0
        %803 = vmatpush1.bf16.msra.mxu0 0
        %804 = vmatprep.mubr.bf16.mxu0 0
        %805 = vmatmul.mubr.bf16.gmra.mrb[0].mxu0 %v768
        %v806 = vpop.f32.mrb[0].mxu0
        %v807 = vadd.f32 0.0, %v806
        %v808 = vpop.f32.mrb[0].mxu0
        %v809 = vpop.f32.mrb[0].mxu0
        %v810 = vpop.f32.mrb[0].mxu0
        %811 = vdwg.mxu0
        %813 = vrot.lane.b32.xlu0 %v599, 32
        %v814 = vpop.permute.xlu0 %813
        %817 = vrot.lane.b32.xlu0 %v703, 64
        %v818 = vpop.permute.xlu0 %817
        %821 = vrot.lane.b32.xlu0 %v807, 96
        %v822 = vpop.permute.xlu0 %821
        %v824 = vsel %vm394, %v494, %v814
        %vm825 = vcmask 523264
        %v826 = vsel %vm825, %v824, %v818
        %vm827 = vcmask 785408
        %v828 = vsel %vm827, %v826, %v822
        %v829 = vpack.c.bf16 %v828, %v828
        %v830 = vld [vmem:[%s5] sm:$0xf]
        %v831 = vld [vmem:[%s5 + $0x4] sm:$0xf]
        %v832 = vld [vmem:[%s5 + $0x8] sm:$0xf]
        %v833 = vld [vmem:[%s5 + $0xc] sm:$0xf]
        %v834 = vld [vmem:[%s5 + $0x10] sm:$0xf]
        %v835 = vld [vmem:[%s5 + $0x14] sm:$0xf]
        %v836 = vld [vmem:[%s5 + $0x18] sm:$0xf]
        %v837 = vld [vmem:[%s5 + $0x1c] sm:$0xf]
        %v838 = vld [vmem:[%s5 + $0x20] sm:$0xf]
        %v839 = vld [vmem:[%s5 + $0x24] sm:$0xf]
        %v840 = vld [vmem:[%s5 + $0x28] sm:$0xf]
        %v841 = vld [vmem:[%s5 + $0x2c] sm:$0xf]
        %v842 = vld [vmem:[%s5 + $0x30] sm:$0xf]
        %v843 = vld [vmem:[%s5 + $0x34] sm:$0xf]
        %v844 = vld [vmem:[%s5 + $0x38] sm:$0xf]
        %v845 = vld [vmem:[%s5 + $0x3c] sm:$0xf]
        %v862 = vunpack.c.l.b16 %v830
        %v863 = vunpack.c.l.b16 %v831
        %v864 = vunpack.c.l.b16 %v832
        %v865 = vunpack.c.l.b16 %v833
        %v866 = vunpack.c.l.b16 %v834
        %v867 = vunpack.c.l.b16 %v835
        %v868 = vunpack.c.l.b16 %v836
        %v869 = vunpack.c.l.b16 %v837
        %v870 = vunpack.c.l.b16 %v838
        %v871 = vunpack.c.l.b16 %v839
        %v872 = vunpack.c.l.b16 %v840
        %v873 = vunpack.c.l.b16 %v841
        %v874 = vunpack.c.l.b16 %v842
        %v875 = vunpack.c.l.b16 %v843
        %v876 = vunpack.c.l.b16 %v844
        %v877 = vunpack.c.l.b16 %v845
        %v878 = vpack.c.b16 %v863, %v862
        %v879 = vpack.c.b16 %v865, %v864
        %v880 = vpack.c.b16 %v867, %v866
        %v881 = vpack.c.b16 %v869, %v868
        %v882 = vpack.c.b16 %v871, %v870
        %v883 = vpack.c.b16 %v873, %v872
        %v884 = vpack.c.b16 %v875, %v874
        %v885 = vpack.c.b16 %v877, %v876
        %894 = vmatprep.subr.bf16.mxu0 0
        %895 = vmatpush1.bf16.msra.mxu0 %v878
        %896 = vmatprep.subr.bf16.mxu0 0
        %897 = vmatpush1.bf16.msra.mxu0 %v879
        %898 = vmatprep.subr.bf16.mxu0 0
        %899 = vmatpush1.bf16.msra.mxu0 %v880
        %900 = vmatprep.subr.bf16.mxu0 0
        %901 = vmatpush1.bf16.msra.mxu0 %v881
        %902 = vmatprep.subr.bf16.mxu0 0
        %903 = vmatpush1.bf16.msra.mxu0 %v882
        %904 = vmatprep.subr.bf16.mxu0 0
        %905 = vmatpush1.bf16.msra.mxu0 %v883
        %906 = vmatprep.subr.bf16.mxu0 0
        %907 = vmatpush1.bf16.msra.mxu0 %v884
        %908 = vmatprep.subr.bf16.mxu0 0
        %909 = vmatpush1.bf16.msra.mxu0 %v885
        %910 = vmatprep.subr.bf16.mxu0 0
        %911 = vmatpush1.bf16.msra.mxu0 0
        %912 = vmatprep.subr.bf16.mxu0 0
        %913 = vmatpush1.bf16.msra.mxu0 0
        %914 = vmatprep.subr.bf16.mxu0 0
        %915 = vmatpush1.bf16.msra.mxu0 0
        %916 = vmatprep.subr.bf16.mxu0 0
        %917 = vmatpush1.bf16.msra.mxu0 0
        %918 = vmatprep.subr.bf16.mxu0 0
        %919 = vmatpush1.bf16.msra.mxu0 0
        %920 = vmatprep.subr.bf16.mxu0 0
        %921 = vmatpush1.bf16.msra.mxu0 0
        %922 = vmatprep.subr.bf16.mxu0 0
        %923 = vmatpush1.bf16.msra.mxu0 0
        %924 = vmatprep.subr.bf16.mxu0 0
        %925 = vmatpush1.bf16.msra.mxu0 0
        %926 = vmatprep.mubr.bf16.mxu0 0
        %927 = vmatmul.mubr.bf16.gmra.mrb[0].mxu0 %v829
        %v928 = vpop.f32.mrb[0].mxu0
        %v929 = vadd.f32 0.0, %v928
        %v930 = vpop.f32.mrb[0].mxu0
        %v931 = vpop.f32.mrb[0].mxu0
        %v932 = vpop.f32.mrb[0].mxu0
        %933 = vdwg.mxu0
        %v934 = vadd.f32 %v254, %v929
        %935 = vst [vmem:[%s252] sm:$0xff] %v934
        %p936 = scmp.lt.s32.totalorder %s25, 1
        %s937 = scalar_select %p936, %s25, 1
        %s938 = smul.addr %s937, 8
        %s939 = scalar_lea.vmem %s6, %s938
        // Predicated region
        $region49: #{transformer_forward.11} parent=39 // pred_check
          %p940 = pneg %p153
        $region50: #{transformer_forward.11} parent=39 // pred_check_branch
          %942 = sbr.rel (%p940) target = $region52
        $region51: #{transformer_forward.11} parent=39 // pred_region
          _
        $region52: #{transformer_forward.11} parent=39 // pred_fallthru
          _
      $region40: #{transformer_forward.11} parent=5 // pred_fallthru
        _
      %p943 = scmp.le.s32.totalorder 2, %s20
      // Predicated region
      $region53: #{transformer_forward.11} parent=5 // pred_check
        %p944 = pneg %p943
      $region54: #{transformer_forward.11} parent=5 // pred_check_branch
        %946 = sbr.rel (%p944) target = $region56
      $region55: #{transformer_forward.11} parent=5 // pred_region
        %s947 = ssub.s32 %s20, 2
        // Predicated region
        $region57: #{transformer_forward.11} parent=55 // pred_check
          %p948 = pneg %p159
        $region58: #{transformer_forward.11} parent=55 // pred_check_branch
          %950 = sbr.rel (%p948) target = $region60
        $region59: #{transformer_forward.11} parent=55 // pred_region
          %p951 = scmp.lt.s32.totalorder %s26, 1
          %s952 = scalar_select %p951, %s26, 1
          %s953 = smul.addr %s952, 8
          %s954 = scalar_lea.vmem %s6, %s953
        $region60: #{transformer_forward.11} parent=55 // pred_fallthru
          _
      $region56: #{transformer_forward.11} parent=5 // pred_fallthru
        _
    $region6: #{transformer_forward.11} parent=1 // loop_footer
      %s24 = sadd.s32 1, %s20
    $region7: #{transformer_forward.11} parent=1 // loop_footer_branch
      %19 = sbr.rel target = $region3
    $region8: #{transformer_forward.11} parent=1 // loop_exit
      _
    %955 = vsyncpa [#allocation5], 1
    %s956 = scalar_lea.sflag [#allocation5], 1
    %957 = vsyncpa %s956, 1
    %958 = vsyncpa [#allocation7], 1

// kernel: transformer_forward.13
$region0: #{transformer_forward.13}
  #allocation0 [shape = 'u32[]', space=smem, size = 0x4, offset = 0x4, fixed_abs, tag = 'smem constant byte address 0x4 - core index']
  #allocation1 [shape = 'u32[144,128]{1,0:T(1,128)}', space=vmem, size = 0x12000, scoped, tag = 'internal scratch']
  #allocation2 [shape = 's32[1]{0}', space=sflag, size = 0x4, scoped, tag = 'scoped memory for transformer_forward.13']
  #allocation3 [shape = 'u8[512]{0}', space=smem, size = 0x200, scoped, tag = 'prefetched SMEM operand 0']
  %s0 = inlined_call_operand.vmem [shape: s32[2], index: 0, kind: input, shape index: {}]
  %s1 = inlined_call_operand.vmem [shape: f32[2,8,128], index: 1, kind: input, shape index: {}]
  %s2 = inlined_call_operand.vmem [shape: f32[1,128], index: 2, kind: input, shape index: {}]
  %s3 = inlined_call_operand.vmem [shape: f32[1,128], index: 3, kind: input, shape index: {}]
  %s4 = inlined_call_operand.vmem [shape: bf16[128,128], index: 4, kind: input, shape index: {}]
  %s5 = inlined_call_operand.vmem [shape: bf16[128,128], index: 5, kind: input, shape index: {}]
  %s6 = inlined_call_operand.vmem [shape: f32[2,8,128], index: 6, kind: output, shape index: {}]
  %s7 = sld [smem:[#allocation0]]
  $region53: #{transformer_forward.13} parent=0
    _
  %s9 = ssub.s32 1, %s7
  %s10 = scalar_select 0, %s9, %s7
  %s11 = sshll.u32 %s0, 4
  %s12 = int_to_ptr.vmem [resolvable:$true] %s11
  %14 = dma.vmem_to_smem %s12, 16, [#allocation3], [#allocation2]
  %15 = dma.done [#allocation2], 16
  %16 = sfence
  loop: start=0, step=1, limit=4
  $region2: #{transformer_forward.13} parent=0 // loop_pre_header
    _
  $region3: #{transformer_forward.13} parent=0 // loop_header
    %s18 = sphi 0, %s22
    %p19 = scmp.ge.s32.totalorder %s18, 4
    %s28 = sphi 0, %s30
    %s31 = sphi 0, %s28
    %s32 = sphi 0, %s31
    %s48 = sphi 0, %s32
    %s52 = sphi 0, %s52
    %s54 = sphi 0, %s52
    %s55 = sphi 0, %s54
    %s69 = sphi 0, %s55
    %s73 = sphi 0, %s73
    %s75 = sphi 0, %s73
    %s76 = sphi 0, %s75
    %s90 = sphi 0, %s76
    %s94 = sphi 0, %s94
    %s96 = sphi 0, %s94
    %s97 = sphi 0, %s96
    %s111 = sphi 0, %s97
    %s115 = sphi 0, %s115
    %s117 = sphi 0, %s115
    %s118 = sphi 0, %s117
    %s132 = sphi 0, %s118
    %s138 = sphi 0, %s140
    %s141 = sphi 0, %s138
    %s142 = sphi 0, %s141
    %s158 = sphi 0, %s142
  $region4: #{transformer_forward.13} parent=0 // loop_header_branch
    %21 = sbr.rel (%p19) target = $region8
  $region5: #{transformer_forward.13} parent=0 // loop_body
    %s23 = ssub.s32 %s18, 1
    %s24 = ssub.s32 %s18, 2
    %s25 = sadd.s32 %s18, 1
    %s26 = ssub.s32 %s18, %s25
    %p27 = scmp.eq.s32.totalorder %s26, 0
    %s29 = sadd.s32 %s28, 1
    %s30 = scalar_select %p27, %s28, %s29
    %p33 = pneg %p27
    %p34 = scmp.eq.s32.totalorder %s18, 1
    %p35 = por %p33, %p34
    %p36 = scmp.ne.s32.totalorder %s28, %s31
    %p37 = scmp.eq.s32.totalorder %s18, 0
    %p38 = por %p36, %p37
    %p39 = scmp.ne.s32.totalorder %s28, %s31
    %p40 = scmp.eq.s32.totalorder %s23, 1
    %p41 = por %p39, %p40
    %p42 = scmp.ne.s32.totalorder %s31, %s32
    %p43 = scmp.eq.s32.totalorder %s23, 0
    %p44 = por %p42, %p43
    %p45 = scmp.ne.s32.totalorder %s31, %s32
    %p46 = scmp.eq.s32.totalorder %s24, 1
    %p47 = por %p45, %p46
    %p49 = scmp.ne.s32.totalorder %s32, %s48
    %p50 = scmp.eq.s32.totalorder %s24, 0
    %p51 = por %p49, %p50
    %s53 = sadd.s32 %s52, 1
    %p56 = scmp.eq.s32.totalorder %s18, 1
    %p57 = scmp.ne.s32.totalorder %s52, %s54
    %p58 = scmp.eq.s32.totalorder %s18, 0
    %p59 = por %p57, %p58
    %p60 = scmp.ne.s32.totalorder %s52, %s54
    %p61 = scmp.eq.s32.totalorder %s23, 1
    %p62 = por %p60, %p61
    %p63 = scmp.ne.s32.totalorder %s54, %s55
    %p64 = scmp.eq.s32.totalorder %s23, 0
    %p65 = por %p63, %p64
    %p66 = scmp.ne.s32.totalorder %s54, %s55
    %p67 = scmp.eq.s32.totalorder %s24, 1
    %p68 = por %p66, %p67
    %p70 = scmp.ne.s32.totalorder %s55, %s69
    %p71 = scmp.eq.s32.totalorder %s24, 0
    %p72 = por %p70, %p71
    %s74 = sadd.s32 %s73, 1
    %p77 = scmp.eq.s32.totalorder %s18, 1
    %p78 = scmp.ne.s32.totalorder %s73, %s75
    %p79 = scmp.eq.s32.totalorder %s18, 0
    %p80 = por %p78, %p79
    %p81 = scmp.ne.s32.totalorder %s73, %s75
    %p82 = scmp.eq.s32.totalorder %s23, 1
    %p83 = por %p81, %p82
    %p84 = scmp.ne.s32.totalorder %s75, %s76
    %p85 = scmp.eq.s32.totalorder %s23, 0
    %p86 = por %p84, %p85
    %p87 = scmp.ne.s32.totalorder %s75, %s76
    %p88 = scmp.eq.s32.totalorder %s24, 1
    %p89 = por %p87, %p88
    %p91 = scmp.ne.s32.totalorder %s76, %s90
    %p92 = scmp.eq.s32.totalorder %s24, 0
    %p93 = por %p91, %p92
    %s95 = sadd.s32 %s94, 1
    %p98 = scmp.eq.s32.totalorder %s18, 1
    %p99 = scmp.ne.s32.totalorder %s94, %s96
    %p100 = scmp.eq.s32.totalorder %s18, 0
    %p101 = por %p99, %p100
    %p102 = scmp.ne.s32.totalorder %s94, %s96
    %p103 = scmp.eq.s32.totalorder %s23, 1
    %p104 = por %p102, %p103
    %p105 = scmp.ne.s32.totalorder %s96, %s97
    %p106 = scmp.eq.s32.totalorder %s23, 0
    %p107 = por %p105, %p106
    %p108 = scmp.ne.s32.totalorder %s96, %s97
    %p109 = scmp.eq.s32.totalorder %s24, 1
    %p110 = por %p108, %p109
    %p112 = scmp.ne.s32.totalorder %s97, %s111
    %p113 = scmp.eq.s32.totalorder %s24, 0
    %p114 = por %p112, %p113
    %s116 = sadd.s32 %s115, 1
    %p119 = scmp.eq.s32.totalorder %s18, 1
    %p120 = scmp.ne.s32.totalorder %s115, %s117
    %p121 = scmp.eq.s32.totalorder %s18, 0
    %p122 = por %p120, %p121
    %p123 = scmp.ne.s32.totalorder %s115, %s117
    %p124 = scmp.eq.s32.totalorder %s23, 1
    %p125 = por %p123, %p124
    %p126 = scmp.ne.s32.totalorder %s117, %s118
    %p127 = scmp.eq.s32.totalorder %s23, 0
    %p128 = por %p126, %p127
    %p129 = scmp.ne.s32.totalorder %s117, %s118
    %p130 = scmp.eq.s32.totalorder %s24, 1
    %p131 = por %p129, %p130
    %p133 = scmp.ne.s32.totalorder %s118, %s132
    %p134 = scmp.eq.s32.totalorder %s24, 0
    %p135 = por %p133, %p134
    %s136 = ssub.s32 %s18, %s25
    %p137 = scmp.eq.s32.totalorder %s136, 0
    %s139 = sadd.s32 %s138, 1
    %s140 = scalar_select %p137, %s138, %s139
    %p143 = pneg %p137
    %p144 = scmp.eq.s32.totalorder %s18, 1
    %p145 = por %p143, %p144
    %p146 = scmp.ne.s32.totalorder %s138, %s141
    %p147 = scmp.eq.s32.totalorder %s18, 0
    %p148 = por %p146, %p147
    %p149 = scmp.ne.s32.totalorder %s138, %s141
    %p150 = scmp.eq.s32.totalorder %s23, 1
    %p151 = por %p149, %p150
    %p152 = scmp.ne.s32.totalorder %s141, %s142
    %p153 = scmp.eq.s32.totalorder %s23, 0
    %p154 = por %p152, %p153
    %p155 = scmp.ne.s32.totalorder %s141, %s142
    %p156 = scmp.eq.s32.totalorder %s24, 1
    %p157 = por %p155, %p156
    %p159 = scmp.ne.s32.totalorder %s142, %s158
    %p160 = scmp.eq.s32.totalorder %s24, 0
    %p161 = por %p159, %p160
    %p162 = scmp.le.s32.totalorder 1, %s18
    %p163 = scmp.lt.s32.totalorder %s18, 3
    %p164 = pnand %p162, %p163
    %p165 = pneg %p164
    // Predicated region
    $region9: #{transformer_forward.13} parent=5 // pred_check
      _
    $region10: #{transformer_forward.13} parent=5 // pred_check_branch
      %167 = sbr.rel (%p164) target = $region12
    $region11: #{transformer_forward.13} parent=5 // pred_region
      %s168 = ssub.s32 %s18, 1
      // Predicated region
      $region13: #{transformer_forward.13} parent=11 // pred_check
        %p169 = pneg %p65
      $region14: #{transformer_forward.13} parent=11 // pred_check_branch
        %171 = sbr.rel (%p169) target = $region16
      $region15: #{transformer_forward.13} parent=11 // pred_region
        _
      $region16: #{transformer_forward.13} parent=11 // pred_fallthru
        _
      // Predicated region
      $region17: #{transformer_forward.13} parent=11 // pred_check
        %p172 = pneg %p86
      $region18: #{transformer_forward.13} parent=11 // pred_check_branch
        %174 = sbr.rel (%p172) target = $region20
      $region19: #{transformer_forward.13} parent=11 // pred_region
        _
      $region20: #{transformer_forward.13} parent=11 // pred_fallthru
        _
      // Predicated region
      $region21: #{transformer_forward.13} parent=11 // pred_check
        %p175 = pneg %p107
      $region22: #{transformer_forward.13} parent=11 // pred_check_branch
        %177 = sbr.rel (%p175) target = $region24
      $region23: #{transformer_forward.13} parent=11 // pred_region
        _
      $region24: #{transformer_forward.13} parent=11 // pred_fallthru
        _
      // Predicated region
      $region25: #{transformer_forward.13} parent=11 // pred_check
        %p178 = pneg %p128
      $region26: #{transformer_forward.13} parent=11 // pred_check_branch
        %180 = sbr.rel (%p178) target = $region28
      $region27: #{transformer_forward.13} parent=11 // pred_region
        _
      $region28: #{transformer_forward.13} parent=11 // pred_fallthru
        _
    $region12: #{transformer_forward.13} parent=5 // pred_fallthru
      _
    %p181 = scmp.lt.s32.totalorder %s18, 2
    // Predicated region
    $region29: #{transformer_forward.13} parent=5 // pred_check
      %p182 = pneg %p181
    $region30: #{transformer_forward.13} parent=5 // pred_check_branch
      %184 = sbr.rel (%p182) target = $region32
    $region31: #{transformer_forward.13} parent=5 // pred_region
      // Predicated region
      $region33: #{transformer_forward.13} parent=31 // pred_check
        %p185 = pneg %p38
      $region34: #{transformer_forward.13} parent=31 // pred_check_branch
        %187 = sbr.rel (%p185) target = $region36
      $region35: #{transformer_forward.13} parent=31 // pred_region
        %p188 = scmp.lt.s32.totalorder %s18, 1
        %s189 = scalar_select %p188, %s18, 1
        %s190 = smul.addr %s189, 8
        %s191 = scalar_lea.vmem %s1, %s190
      $region36: #{transformer_forward.13} parent=31 // pred_fallthru
        _
    $region32: #{transformer_forward.13} parent=5 // pred_fallthru
      _
    %p192 = scmp.le.s32.totalorder 1, %s18
    %p193 = scmp.lt.s32.totalorder %s18, 3
    %p194 = pnand %p192, %p193
    %p195 = pneg %p194
    // Predicated region
    $region37: #{transformer_forward.13} parent=5 // pred_check
      _
    $region38: #{transformer_forward.13} parent=5 // pred_check_branch
      %197 = sbr.rel (%p194) target = $region40
    $region39: #{transformer_forward.13} parent=5 // pred_region
      %s198 = ssub.s32 %s18, 1
      %p199 = scmp.lt.s32.totalorder %s23, 1
      %s200 = scalar_select %p199, %s23, 1
      %s201 = smul.addr %s200, 8
      %s202 = scalar_lea.vmem %s1, %s201
      %p203 = pneg %p44
      %p204 = pneg %p41
      %p205 = pneg %p65
      %p206 = pneg %p62
      %p207 = pneg %p86
      %p208 = pneg %p83
      %p209 = pneg %p107
      %p210 = pneg %p104
      %p211 = pneg %p128
      %p212 = pneg %p125
      %p213 = pneg %p154
      %p214 = pneg %p151
      %p215 = scmp.lt.s32.totalorder %s23, 1
      %s216 = scalar_select %p215, %s23, 1
      %s217 = smul.addr %s216, 8
      %s218 = scalar_lea.vmem %s6, %s217
      %p219 = scmp.lt.s32.totalorder %s23, 1
      %s220 = scalar_select %p219, %s23, 1
      %s221 = smul.addr %s220, 8
      %s222 = scalar_lea.vmem %s1, %s221
      %p223 = scmp.lt.s32.totalorder %s23, 1
      %s224 = scalar_select %p223, %s23, 1
      %s225 = smul.addr %s224, 8
      %s226 = scalar_lea.vmem %s6, %s225
      %v228 = vld [vmem:[%s222] sm:$0xff]
      %v229 = vld [vmem:[%s2] sm:$0x1]
      %v230 = vld [vmem:[%s3] sm:$0x1]
      %231 = vadd.xlane.f32.xlu0 %v228
      %v232 = vpop.xlane.xlu0 %231
      %v233 = vrcp.pop 128.0
      %v234 = vmul.f32 %v232, %v233
      %v235 = vsub.f32 %v228, %v234
      %v236 = vmul.f32 %v235, %v235
      %237 = vadd.xlane.f32.xlu0 %v236
      %v238 = vpop.xlane.xlu0 %237
      %v239 = vmul.f32 %v238, %v233
      %v240 = vadd.f32 %v239, 1e-05
      %v241 = vrsqrt.pop %v240
      %v242 = vmul.f32 %v235, %v241
      %v244 = vlaneseq
      %v245 = vshrl.u32 %v244, 7
      %v246 = vsub.s32 0, %v245
      %v247 = vrot.slane %v229, %v246
      %v249 = vmul.f32 %v242, %v247
      %v251 = vlaneseq
      %v252 = vshrl.u32 %v251, 7
      %v253 = vsub.s32 0, %v252
      %v254 = vrot.slane %v230, %v253
      %v256 = vadd.f32 %v249, %v254
      %v257 = vpack.c.bf16 %v256, %v256
      %v258 = vld [vmem:[%s4] sm:$0xf]
      %v259 = vld [vmem:[%s4 + $0x4] sm:$0xf]
      %v260 = vld [vmem:[%s4 + $0x8] sm:$0xf]
      %v261 = vld [vmem:[%s4 + $0xc] sm:$0xf]
      %v262 = vld [vmem:[%s4 + $0x10] sm:$0xf]
      %v263 = vld [vmem:[%s4 + $0x14] sm:$0xf]
      %v264 = vld [vmem:[%s4 + $0x18] sm:$0xf]
      %v265 = vld [vmem:[%s4 + $0x1c] sm:$0xf]
      %v266 = vld [vmem:[%s4 + $0x20] sm:$0xf]
      %v267 = vld [vmem:[%s4 + $0x24] sm:$0xf]
      %v268 = vld [vmem:[%s4 + $0x28] sm:$0xf]
      %v269 = vld [vmem:[%s4 + $0x2c] sm:$0xf]
      %v270 = vld [vmem:[%s4 + $0x30] sm:$0xf]
      %v271 = vld [vmem:[%s4 + $0x34] sm:$0xf]
      %v272 = vld [vmem:[%s4 + $0x38] sm:$0xf]
      %v273 = vld [vmem:[%s4 + $0x3c] sm:$0xf]
      %v290 = vunpack.c.l.b16 %v258
      %v291 = vunpack.c.l.b16 %v259
      %v292 = vunpack.c.l.b16 %v260
      %v293 = vunpack.c.l.b16 %v261
      %v294 = vunpack.c.l.b16 %v262
      %v295 = vunpack.c.l.b16 %v263
      %v296 = vunpack.c.l.b16 %v264
      %v297 = vunpack.c.l.b16 %v265
      %v298 = vunpack.c.l.b16 %v266
      %v299 = vunpack.c.l.b16 %v267
      %v300 = vunpack.c.l.b16 %v268
      %v301 = vunpack.c.l.b16 %v269
      %v302 = vunpack.c.l.b16 %v270
      %v303 = vunpack.c.l.b16 %v271
      %v304 = vunpack.c.l.b16 %v272
      %v305 = vunpack.c.l.b16 %v273
      %v306 = vpack.c.b16 %v291, %v290
      %v307 = vpack.c.b16 %v293, %v292
      %v308 = vpack.c.b16 %v295, %v294
      %v309 = vpack.c.b16 %v297, %v296
      %v310 = vpack.c.b16 %v299, %v298
      %v311 = vpack.c.b16 %v301, %v300
      %v312 = vpack.c.b16 %v303, %v302
      %v313 = vpack.c.b16 %v305, %v304
      %322 = vmatprep.subr.bf16.mxu0 0
      %323 = vmatpush1.bf16.msra.mxu0 %v306
      %324 = vmatprep.subr.bf16.mxu0 0
      %325 = vmatpush1.bf16.msra.mxu0 %v307
      %326 = vmatprep.subr.bf16.mxu0 0
      %327 = vmatpush1.bf16.msra.mxu0 %v308
      %328 = vmatprep.subr.bf16.mxu0 0
      %329 = vmatpush1.bf16.msra.mxu0 %v309
      %330 = vmatprep.subr.bf16.mxu0 0
      %331 = vmatpush1.bf16.msra.mxu0 %v310
      %332 = vmatprep.subr.bf16.mxu0 0
      %333 = vmatpush1.bf16.msra.mxu0 %v311
      %334 = vmatprep.subr.bf16.mxu0 0
      %335 = vmatpush1.bf16.msra.mxu0 %v312
      %336 = vmatprep.subr.bf16.mxu0 0
      %337 = vmatpush1.bf16.msra.mxu0 %v313
      %338 = vmatprep.subr.bf16.mxu0 0
      %339 = vmatpush1.bf16.msra.mxu0 0
      %340 = vmatprep.subr.bf16.mxu0 0
      %341 = vmatpush1.bf16.msra.mxu0 0
      %342 = vmatprep.subr.bf16.mxu0 0
      %343 = vmatpush1.bf16.msra.mxu0 0
      %344 = vmatprep.subr.bf16.mxu0 0
      %345 = vmatpush1.bf16.msra.mxu0 0
      %346 = vmatprep.subr.bf16.mxu0 0
      %347 = vmatpush1.bf16.msra.mxu0 0
      %348 = vmatprep.subr.bf16.mxu0 0
      %349 = vmatpush1.bf16.msra.mxu0 0
      %350 = vmatprep.subr.bf16.mxu0 0
      %351 = vmatpush1.bf16.msra.mxu0 0
      %352 = vmatprep.subr.bf16.mxu0 0
      %353 = vmatpush1.bf16.msra.mxu0 0
      %354 = vmatprep.mubr.bf16.mxu0 0
      %355 = vmatmul.mubr.bf16.gmra.mrb[0].mxu0 %v257
      %v356 = vpop.f32.mrb[0].mxu0
      %v357 = vadd.f32 0.0, %v356
      %v358 = vpop.f32.mrb[0].mxu0
      %v359 = vpop.f32.mrb[0].mxu0
      %v360 = vpop.f32.mrb[0].mxu0
      %361 = vdwg.mxu0
      %v362 = vpack.c.bf16 %v357, %v357
      %v363 = vlaneseq
      %v364 = vand.u32 %v363, 127
      %s365 = sld [smem:[#allocation3 + %s23]]
      %v366 = vstv %s365
      %vm367 = vcmp.ge.s32.totalorder %v364, %v366
      %vm368 = vcmask 261120
      %v370 = vsel %vm368, %v362, 0
      %372 = vmatprep.subr.bf16.mxu0 0
      %373 = vmatpush1.bf16.xpose.msra.mxu0 %v370
      %374 = vmatprep.subr.bf16.mxu0 0
      %375 = vmatpush1.bf16.xpose.msra.mxu0 0
      %376 = vmatprep.subr.bf16.mxu0 0
      %377 = vmatpush1.bf16.xpose.msra.mxu0 0
      %378 = vmatprep.subr.bf16.mxu0 0
      %379 = vmatpush1.bf16.xpose.msra.mxu0 0
      %380 = vmatprep.subr.bf16.mxu0 0
      %381 = vmatpush1.bf16.xpose.msra.mxu0 0
      %382 = vmatprep.subr.bf16.mxu0 0
      %383 = vmatpush1.bf16.xpose.msra.mxu0 0
      %384 = vmatprep.subr.bf16.mxu0 0
      %385 = vmatpush1.bf16.xpose.msra.mxu0 0
      %386 = vmatprep.subr.bf16.mxu0 0
      %387 = vmatpush1.bf16.xpose.msra.mxu0 0
      %388 = vmatprep.subr.bf16.mxu0 0
      %389 = vmatpush1.bf16.xpose.msra.mxu0 0
      %390 = vmatprep.subr.bf16.mxu0 0
      %391 = vmatpush1.bf16.xpose.msra.mxu0 0
      %392 = vmatprep.subr.bf16.mxu0 0
      %393 = vmatpush1.bf16.xpose.msra.mxu0 0
      %394 = vmatprep.subr.bf16.mxu0 0
      %395 = vmatpush1.bf16.xpose.msra.mxu0 0
      %396 = vmatprep.subr.bf16.mxu0 0
      %397 = vmatpush1.bf16.xpose.msra.mxu0 0
      %398 = vmatprep.subr.bf16.mxu0 0
      %399 = vmatpush1.bf16.xpose.msra.mxu0 0
      %400 = vmatprep.subr.bf16.mxu0 0
      %401 = vmatpush1.bf16.xpose.msra.mxu0 0
      %402 = vmatprep.subr.bf16.mxu0 0
      %403 = vmatpush1.bf16.xpose.msra.mxu0 0
      %404 = vmatprep.mubr.bf16.mxu0 0
      %405 = vmatmul.mubr.bf16.gmra.mrb[0].mxu0 %v370
      %v406 = vpop.f32.mrb[0].mxu0
      %v407 = vadd.f32 0.0, %v406
      %v408 = vpop.f32.mrb[0].mxu0
      %v409 = vpop.f32.mrb[0].mxu0
      %v410 = vpop.f32.mrb[0].mxu0
      %411 = vdwg.mxu0
      %v412 = vmul.f32 %v407, 0.17677669
      %v413 = vsel %vm367, -inf, %v412
      %vm414 = vcmask 64512
      %v415 = vsel %vm414, %v413, -inf
      %416 = vmax.xlane.f32.xlu0 %v415
      %v417 = vpop.xlane.xlu0 %416
      %v418 = vsub.f32 %v413, %v417
      %v419 = vmul.f32 %v418, 1.442695
      %v420 = vpow.pop %v419
      %v421 = vsel %vm414, %v420, 0.0
      %422 = vadd.xlane.f32.xlu0 %v421
      %v423 = vpop.xlane.xlu0 %422
      %v424 = vrcp.pop %v423
      %v425 = vmul.f32 %v420, %v424
      %v426 = vpack.c.bf16 %v425, %v425
      %v428 = vsel %vm414, %v426, 0
      %vm430 = vcmask 1043456
      %v431 = vsel %vm430, %v362, 0
      %433 = vmatprep.subr.bf16.mxu0 0
      %434 = vmatpush1.bf16.msra.mxu0 %v431
      %435 = vmatprep.subr.bf16.mxu0 0
      %436 = vmatpush1.bf16.msra.mxu0 0
      %437 = vmatprep.subr.bf16.mxu0 0
      %438 = vmatpush1.bf16.msra.mxu0 0
      %439 = vmatprep.subr.bf16.mxu0 0
      %440 = vmatpush1.bf16.msra.mxu0 0
      %441 = vmatprep.subr.bf16.mxu0 0
      %442 = vmatpush1.bf16.msra.mxu0 0
      %443 = vmatprep.subr.bf16.mxu0 0
      %444 = vmatpush1.bf16.msra.mxu0 0
      %445 = vmatprep.subr.bf16.mxu0 0
      %446 = vmatpush1.bf16.msra.mxu0 0
      %447 = vmatprep.subr.bf16.mxu0 0
      %448 = vmatpush1.bf16.msra.mxu0 0
      %449 = vmatprep.subr.bf16.mxu0 0
      %450 = vmatpush1.bf16.msra.mxu0 0
      %451 = vmatprep.subr.bf16.mxu0 0
      %452 = vmatpush1.bf16.msra.mxu0 0
      %453 = vmatprep.subr.bf16.mxu0 0
      %454 = vmatpush1.bf16.msra.mxu0 0
      %455 = vmatprep.subr.bf16.mxu0 0
      %456 = vmatpush1.bf16.msra.mxu0 0
      %457 = vmatprep.subr.bf16.mxu0 0
      %458 = vmatpush1.bf16.msra.mxu0 0
      %459 = vmatprep.subr.bf16.mxu0 0
      %460 = vmatpush1.bf16.msra.mxu0 0
      %461 = vmatprep.subr.bf16.mxu0 0
      %462 = vmatpush1.bf16.msra.mxu0 0
      %463 = vmatprep.subr.bf16.mxu0 0
      %464 = vmatpush1.bf16.msra.mxu0 0
      %465 = vmatprep.mubr.bf16.mxu0 0
      %466 = vmatmul.mubr.bf16.gmra.mrb[0].mxu0 %v428
      %v467 = vpop.f32.mrb[0].mxu0
      %v468 = vadd.f32 0.0, %v467
      %v469 = vpop.f32.mrb[0].mxu0
      %v470 = vpop.f32.mrb[0].mxu0
      %v471 = vpop.f32.mrb[0].mxu0
      %472 = vdwg.mxu0
      %474 = vrot.lane.b32.xlu0 %v362, 96
      %v475 = vpop.permute.xlu0 %474
      %v477 = vsel %vm368, %v475, 0
      %479 = vmatprep.subr.bf16.mxu0 0
      %480 = vmatpush1.bf16.xpose.msra.mxu0 %v477
      %481 = vmatprep.subr.bf16.mxu0 0
      %482 = vmatpush1.bf16.xpose.msra.mxu0 0
      %483 = vmatprep.subr.bf16.mxu0 0
      %484 = vmatpush1.bf16.xpose.msra.mxu0 0
      %485 = vmatprep.subr.bf16.mxu0 0
      %486 = vmatpush1.bf16.xpose.msra.mxu0 0
      %487 = vmatprep.subr.bf16.mxu0 0
      %488 = vmatpush1.bf16.xpose.msra.mxu0 0
      %489 = vmatprep.subr.bf16.mxu0 0
      %490 = vmatpush1.bf16.xpose.msra.mxu0 0
      %491 = vmatprep.subr.bf16.mxu0 0
      %492 = vmatpush1.bf16.xpose.msra.mxu0 0
      %493 = vmatprep.subr.bf16.mxu0 0
      %494 = vmatpush1.bf16.xpose.msra.mxu0 0
      %495 = vmatprep.subr.bf16.mxu0 0
      %496 = vmatpush1.bf16.xpose.msra.mxu0 0
      %497 = vmatprep.subr.bf16.mxu0 0
      %498 = vmatpush1.bf16.xpose.msra.mxu0 0
      %499 = vmatprep.subr.bf16.mxu0 0
      %500 = vmatpush1.bf16.xpose.msra.mxu0 0
      %501 = vmatprep.subr.bf16.mxu0 0
      %502 = vmatpush1.bf16.xpose.msra.mxu0 0
      %503 = vmatprep.subr.bf16.mxu0 0
      %504 = vmatpush1.bf16.xpose.msra.mxu0 0
      %505 = vmatprep.subr.bf16.mxu0 0
      %506 = vmatpush1.bf16.xpose.msra.mxu0 0
      %507 = vmatprep.subr.bf16.mxu0 0
      %508 = vmatpush1.bf16.xpose.msra.mxu0 0
      %509 = vmatprep.subr.bf16.mxu0 0
      %510 = vmatpush1.bf16.xpose.msra.mxu0 0
      %511 = vmatprep.mubr.bf16.mxu0 0
      %512 = vmatmul.mubr.bf16.gmra.mrb[0].mxu0 %v477
      %v513 = vpop.f32.mrb[0].mxu0
      %v514 = vadd.f32 0.0, %v513
      %v515 = vpop.f32.mrb[0].mxu0
      %v516 = vpop.f32.mrb[0].mxu0
      %v517 = vpop.f32.mrb[0].mxu0
      %518 = vdwg.mxu0
      %v519 = vmul.f32 %v514, 0.17677669
      %v520 = vsel %vm367, -inf, %v519
      %v521 = vsel %vm414, %v520, -inf
      %522 = vmax.xlane.f32.xlu0 %v521
      %v523 = vpop.xlane.xlu0 %522
      %v524 = vsub.f32 %v520, %v523
      %v525 = vmul.f32 %v524, 1.442695
      %v526 = vpow.pop %v525
      %v527 = vsel %vm414, %v526, 0.0
      %528 = vadd.xlane.f32.xlu0 %v527
      %v529 = vpop.xlane.xlu0 %528
      %v530 = vrcp.pop %v529
      %v531 = vmul.f32 %v526, %v530
      %v532 = vpack.c.bf16 %v531, %v531
      %v534 = vsel %vm414, %v532, 0
      %v536 = vsel %vm430, %v475, 0
      %538 = vmatprep.subr.bf16.mxu0 0
      %539 = vmatpush1.bf16.msra.mxu0 %v536
      %540 = vmatprep.subr.bf16.mxu0 0
      %541 = vmatpush1.bf16.msra.mxu0 0
      %542 = vmatprep.subr.bf16.mxu0 0
      %543 = vmatpush1.bf16.msra.mxu0 0
      %544 = vmatprep.subr.bf16.mxu0 0
      %545 = vmatpush1.bf16.msra.mxu0 0
      %546 = vmatprep.subr.bf16.mxu0 0
      %547 = vmatpush1.bf16.msra.mxu0 0
      %548 = vmatprep.subr.bf16.mxu0 0
      %549 = vmatpush1.bf16.msra.mxu0 0
      %550 = vmatprep.subr.bf16.mxu0 0
      %551 = vmatpush1.bf16.msra.mxu0 0
      %552 = vmatprep.subr.bf16.mxu0 0
      %553 = vmatpush1.bf16.msra.mxu0 0
      %554 = vmatprep.subr.bf16.mxu0 0
      %555 = vmatpush1.bf16.msra.mxu0 0
      %556 = vmatprep.subr.bf16.mxu0 0
      %557 = vmatpush1.bf16.msra.mxu0 0
      %558 = vmatprep.subr.bf16.mxu0 0
      %559 = vmatpush1.bf16.msra.mxu0 0
      %560 = vmatprep.subr.bf16.mxu0 0
      %561 = vmatpush1.bf16.msra.mxu0 0
      %562 = vmatprep.subr.bf16.mxu0 0
      %563 = vmatpush1.bf16.msra.mxu0 0
      %564 = vmatprep.subr.bf16.mxu0 0
      %565 = vmatpush1.bf16.msra.mxu0 0
      %566 = vmatprep.subr.bf16.mxu0 0
      %567 = vmatpush1.bf16.msra.mxu0 0
      %568 = vmatprep.subr.bf16.mxu0 0
      %569 = vmatpush1.bf16.msra.mxu0 0
      %570 = vmatprep.mubr.bf16.mxu0 0
      %571 = vmatmul.mubr.bf16.gmra.mrb[0].mxu0 %v534
      %v572 = vpop.f32.mrb[0].mxu0
      %v573 = vadd.f32 0.0, %v572
      %v574 = vpop.f32.mrb[0].mxu0
      %v575 = vpop.f32.mrb[0].mxu0
      %v576 = vpop.f32.mrb[0].mxu0
      %577 = vdwg.mxu0
      %578 = vrot.lane.b32.xlu0 %v362, 64
      %v579 = vpop.permute.xlu0 %578
      %v581 = vsel %vm368, %v579, 0
      %583 = vmatprep.subr.bf16.mxu0 0
      %584 = vmatpush1.bf16.xpose.msra.mxu0 %v581
      %585 = vmatprep.subr.bf16.mxu0 0
      %586 = vmatpush1.bf16.xpose.msra.mxu0 0
      %587 = vmatprep.subr.bf16.mxu0 0
      %588 = vmatpush1.bf16.xpose.msra.mxu0 0
      %589 = vmatprep.subr.bf16.mxu0 0
      %590 = vmatpush1.bf16.xpose.msra.mxu0 0
      %591 = vmatprep.subr.bf16.mxu0 0
      %592 = vmatpush1.bf16.xpose.msra.mxu0 0
      %593 = vmatprep.subr.bf16.mxu0 0
      %594 = vmatpush1.bf16.xpose.msra.mxu0 0
      %595 = vmatprep.subr.bf16.mxu0 0
      %596 = vmatpush1.bf16.xpose.msra.mxu0 0
      %597 = vmatprep.subr.bf16.mxu0 0
      %598 = vmatpush1.bf16.xpose.msra.mxu0 0
      %599 = vmatprep.subr.bf16.mxu0 0
      %600 = vmatpush1.bf16.xpose.msra.mxu0 0
      %601 = vmatprep.subr.bf16.mxu0 0
      %602 = vmatpush1.bf16.xpose.msra.mxu0 0
      %603 = vmatprep.subr.bf16.mxu0 0
      %604 = vmatpush1.bf16.xpose.msra.mxu0 0
      %605 = vmatprep.subr.bf16.mxu0 0
      %606 = vmatpush1.bf16.xpose.msra.mxu0 0
      %607 = vmatprep.subr.bf16.mxu0 0
      %608 = vmatpush1.bf16.xpose.msra.mxu0 0
      %609 = vmatprep.subr.bf16.mxu0 0
      %610 = vmatpush1.bf16.xpose.msra.mxu0 0
      %611 = vmatprep.subr.bf16.mxu0 0
      %612 = vmatpush1.bf16.xpose.msra.mxu0 0
      %613 = vmatprep.subr.bf16.mxu0 0
      %614 = vmatpush1.bf16.xpose.msra.mxu0 0
      %615 = vmatprep.mubr.bf16.mxu0 0
      %616 = vmatmul.mubr.bf16.gmra.mrb[0].mxu0 %v581
      %v617 = vpop.f32.mrb[0].mxu0
      %v618 = vadd.f32 0.0, %v617
      %v619 = vpop.f32.mrb[0].mxu0
      %v620 = vpop.f32.mrb[0].mxu0
      %v621 = vpop.f32.mrb[0].mxu0
      %622 = vdwg.mxu0
      %v623 = vmul.f32 %v618, 0.17677669
      %v624 = vsel %vm367, -inf, %v623
      %v625 = vsel %vm414, %v624, -inf
      %626 = vmax.xlane.f32.xlu0 %v625
      %v627 = vpop.xlane.xlu0 %626
      %v628 = vsub.f32 %v624, %v627
      %v629 = vmul.f32 %v628, 1.442695
      %v630 = vpow.pop %v629
      %v631 = vsel %vm414, %v630, 0.0
      %632 = vadd.xlane.f32.xlu0 %v631
      %v633 = vpop.xlane.xlu0 %632
      %v634 = vrcp.pop %v633
      %v635 = vmul.f32 %v630, %v634
      %v636 = vpack.c.bf16 %v635, %v635
      %v638 = vsel %vm414, %v636, 0
      %v640 = vsel %vm430, %v579, 0
      %642 = vmatprep.subr.bf16.mxu0 0
      %643 = vmatpush1.bf16.msra.mxu0 %v640
      %644 = vmatprep.subr.bf16.mxu0 0
      %645 = vmatpush1.bf16.msra.mxu0 0
      %646 = vmatprep.subr.bf16.mxu0 0
      %647 = vmatpush1.bf16.msra.mxu0 0
      %648 = vmatprep.subr.bf16.mxu0 0
      %649 = vmatpush1.bf16.msra.mxu0 0
      %650 = vmatprep.subr.bf16.mxu0 0
      %651 = vmatpush1.bf16.msra.mxu0 0
      %652 = vmatprep.subr.bf16.mxu0 0
      %653 = vmatpush1.bf16.msra.mxu0 0
      %654 = vmatprep.subr.bf16.mxu0 0
      %655 = vmatpush1.bf16.msra.mxu0 0
      %656 = vmatprep.subr.bf16.mxu0 0
      %657 = vmatpush1.bf16.msra.mxu0 0
      %658 = vmatprep.subr.bf16.mxu0 0
      %659 = vmatpush1.bf16.msra.mxu0 0
      %660 = vmatprep.subr.bf16.mxu0 0
      %661 = vmatpush1.bf16.msra.mxu0 0
      %662 = vmatprep.subr.bf16.mxu0 0
      %663 = vmatpush1.bf16.msra.mxu0 0
      %664 = vmatprep.subr.bf16.mxu0 0
      %665 = vmatpush1.bf16.msra.mxu0 0
      %666 = vmatprep.subr.bf16.mxu0 0
      %667 = vmatpush1.bf16.msra.mxu0 0
      %668 = vmatprep.subr.bf16.mxu0 0
      %669 = vmatpush1.bf16.msra.mxu0 0
      %670 = vmatprep.subr.bf16.mxu0 0
      %671 = vmatpush1.bf16.msra.mxu0 0
      %672 = vmatprep.subr.bf16.mxu0 0
      %673 = vmatpush1.bf16.msra.mxu0 0
      %674 = vmatprep.mubr.bf16.mxu0 0
      %675 = vmatmul.mubr.bf16.gmra.mrb[0].mxu0 %v638
      %v676 = vpop.f32.mrb[0].mxu0
      %v677 = vadd.f32 0.0, %v676
      %v678 = vpop.f32.mrb[0].mxu0
      %v679 = vpop.f32.mrb[0].mxu0
      %v680 = vpop.f32.mrb[0].mxu0
      %681 = vdwg.mxu0
      %682 = vrot.lane.b32.xlu0 %v362, 32
      %v683 = vpop.permute.xlu0 %682
      %v685 = vsel %vm368, %v683, 0
      %687 = vmatprep.subr.bf16.mxu0 0
      %688 = vmatpush1.bf16.xpose.msra.mxu0 %v685
      %689 = vmatprep.subr.bf16.mxu0 0
      %690 = vmatpush1.bf16.xpose.msra.mxu0 0
      %691 = vmatprep.subr.bf16.mxu0 0
      %692 = vmatpush1.bf16.xpose.msra.mxu0 0
      %693 = vmatprep.subr.bf16.mxu0 0
      %694 = vmatpush1.bf16.xpose.msra.mxu0 0
      %695 = vmatprep.subr.bf16.mxu0 0
      %696 = vmatpush1.bf16.xpose.msra.mxu0 0
      %697 = vmatprep.subr.bf16.mxu0 0
      %698 = vmatpush1.bf16.xpose.msra.mxu0 0
      %699 = vmatprep.subr.bf16.mxu0 0
      %700 = vmatpush1.bf16.xpose.msra.mxu0 0
      %701 = vmatprep.subr.bf16.mxu0 0
      %702 = vmatpush1.bf16.xpose.msra.mxu0 0
      %703 = vmatprep.subr.bf16.mxu0 0
      %704 = vmatpush1.bf16.xpose.msra.mxu0 0
      %705 = vmatprep.subr.bf16.mxu0 0
      %706 = vmatpush1.bf16.xpose.msra.mxu0 0
      %707 = vmatprep.subr.bf16.mxu0 0
      %708 = vmatpush1.bf16.xpose.msra.mxu0 0
      %709 = vmatprep.subr.bf16.mxu0 0
      %710 = vmatpush1.bf16.xpose.msra.mxu0 0
      %711 = vmatprep.subr.bf16.mxu0 0
      %712 = vmatpush1.bf16.xpose.msra.mxu0 0
      %713 = vmatprep.subr.bf16.mxu0 0
      %714 = vmatpush1.bf16.xpose.msra.mxu0 0
      %715 = vmatprep.subr.bf16.mxu0 0
      %716 = vmatpush1.bf16.xpose.msra.mxu0 0
      %717 = vmatprep.subr.bf16.mxu0 0
      %718 = vmatpush1.bf16.xpose.msra.mxu0 0
      %719 = vmatprep.mubr.bf16.mxu0 0
      %720 = vmatmul.mubr.bf16.gmra.mrb[0].mxu0 %v685
      %v721 = vpop.f32.mrb[0].mxu0
      %v722 = vadd.f32 0.0, %v721
      %v723 = vpop.f32.mrb[0].mxu0
      %v724 = vpop.f32.mrb[0].mxu0
      %v725 = vpop.f32.mrb[0].mxu0
      %726 = vdwg.mxu0
      %v727 = vmul.f32 %v722, 0.17677669
      %v728 = vsel %vm367, -inf, %v727
      %v729 = vsel %vm414, %v728, -inf
      %730 = vmax.xlane.f32.xlu0 %v729
      %v731 = vpop.xlane.xlu0 %730
      %v732 = vsub.f32 %v728, %v731
      %v733 = vmul.f32 %v732, 1.442695
      %v734 = vpow.pop %v733
      %v735 = vsel %vm414, %v734, 0.0
      %736 = vadd.xlane.f32.xlu0 %v735
      %v737 = vpop.xlane.xlu0 %736
      %v738 = vrcp.pop %v737
      %v739 = vmul.f32 %v734, %v738
      %v740 = vpack.c.bf16 %v739, %v739
      %v742 = vsel %vm414, %v740, 0
      %v744 = vsel %vm430, %v683, 0
      %746 = vmatprep.subr.bf16.mxu0 0
      %747 = vmatpush1.bf16.msra.mxu0 %v744
      %748 = vmatprep.subr.bf16.mxu0 0
      %749 = vmatpush1.bf16.msra.mxu0 0
      %750 = vmatprep.subr.bf16.mxu0 0
      %751 = vmatpush1.bf16.msra.mxu0 0
      %752 = vmatprep.subr.bf16.mxu0 0
      %753 = vmatpush1.bf16.msra.mxu0 0
      %754 = vmatprep.subr.bf16.mxu0 0
      %755 = vmatpush1.bf16.msra.mxu0 0
      %756 = vmatprep.subr.bf16.mxu0 0
      %757 = vmatpush1.bf16.msra.mxu0 0
      %758 = vmatprep.subr.bf16.mxu0 0
      %759 = vmatpush1.bf16.msra.mxu0 0
      %760 = vmatprep.subr.bf16.mxu0 0
      %761 = vmatpush1.bf16.msra.mxu0 0
      %762 = vmatprep.subr.bf16.mxu0 0
      %763 = vmatpush1.bf16.msra.mxu0 0
      %764 = vmatprep.subr.bf16.mxu0 0
      %765 = vmatpush1.bf16.msra.mxu0 0
      %766 = vmatprep.subr.bf16.mxu0 0
      %767 = vmatpush1.bf16.msra.mxu0 0
      %768 = vmatprep.subr.bf16.mxu0 0
      %769 = vmatpush1.bf16.msra.mxu0 0
      %770 = vmatprep.subr.bf16.mxu0 0
      %771 = vmatpush1.bf16.msra.mxu0 0
      %772 = vmatprep.subr.bf16.mxu0 0
      %773 = vmatpush1.bf16.msra.mxu0 0
      %774 = vmatprep.subr.bf16.mxu0 0
      %775 = vmatpush1.bf16.msra.mxu0 0
      %776 = vmatprep.subr.bf16.mxu0 0
      %777 = vmatpush1.bf16.msra.mxu0 0
      %778 = vmatprep.mubr.bf16.mxu0 0
      %779 = vmatmul.mubr.bf16.gmra.mrb[0].mxu0 %v742
      %v780 = vpop.f32.mrb[0].mxu0
      %v781 = vadd.f32 0.0, %v780
      %v782 = vpop.f32.mrb[0].mxu0
      %v783 = vpop.f32.mrb[0].mxu0
      %v784 = vpop.f32.mrb[0].mxu0
      %785 = vdwg.mxu0
      %787 = vrot.lane.b32.xlu0 %v573, 32
      %v788 = vpop.permute.xlu0 %787
      %791 = vrot.lane.b32.xlu0 %v677, 64
      %v792 = vpop.permute.xlu0 %791
      %795 = vrot.lane.b32.xlu0 %v781, 96
      %v796 = vpop.permute.xlu0 %795
      %v798 = vsel %vm368, %v468, %v788
      %vm799 = vcmask 523264
      %v800 = vsel %vm799, %v798, %v792
      %vm801 = vcmask 785408
      %v802 = vsel %vm801, %v800, %v796
      %v803 = vpack.c.bf16 %v802, %v802
      %v804 = vld [vmem:[%s5] sm:$0xf]
      %v805 = vld [vmem:[%s5 + $0x4] sm:$0xf]
      %v806 = vld [vmem:[%s5 + $0x8] sm:$0xf]
      %v807 = vld [vmem:[%s5 + $0xc] sm:$0xf]
      %v808 = vld [vmem:[%s5 + $0x10] sm:$0xf]
      %v809 = vld [vmem:[%s5 + $0x14] sm:$0xf]
      %v810 = vld [vmem:[%s5 + $0x18] sm:$0xf]
      %v811 = vld [vmem:[%s5 + $0x1c] sm:$0xf]
      %v812 = vld [vmem:[%s5 + $0x20] sm:$0xf]
      %v813 = vld [vmem:[%s5 + $0x24] sm:$0xf]
      %v814 = vld [vmem:[%s5 + $0x28] sm:$0xf]
      %v815 = vld [vmem:[%s5 + $0x2c] sm:$0xf]
      %v816 = vld [vmem:[%s5 + $0x30] sm:$0xf]
      %v817 = vld [vmem:[%s5 + $0x34] sm:$0xf]
      %v818 = vld [vmem:[%s5 + $0x38] sm:$0xf]
      %v819 = vld [vmem:[%s5 + $0x3c] sm:$0xf]
      %v836 = vunpack.c.l.b16 %v804
      %v837 = vunpack.c.l.b16 %v805
      %v838 = vunpack.c.l.b16 %v806
      %v839 = vunpack.c.l.b16 %v807
      %v840 = vunpack.c.l.b16 %v808
      %v841 = vunpack.c.l.b16 %v809
      %v842 = vunpack.c.l.b16 %v810
      %v843 = vunpack.c.l.b16 %v811
      %v844 = vunpack.c.l.b16 %v812
      %v845 = vunpack.c.l.b16 %v813
      %v846 = vunpack.c.l.b16 %v814
      %v847 = vunpack.c.l.b16 %v815
      %v848 = vunpack.c.l.b16 %v816
      %v849 = vunpack.c.l.b16 %v817
      %v850 = vunpack.c.l.b16 %v818
      %v851 = vunpack.c.l.b16 %v819
      %v852 = vpack.c.b16 %v837, %v836
      %v853 = vpack.c.b16 %v839, %v838
      %v854 = vpack.c.b16 %v841, %v840
      %v855 = vpack.c.b16 %v843, %v842
      %v856 = vpack.c.b16 %v845, %v844
      %v857 = vpack.c.b16 %v847, %v846
      %v858 = vpack.c.b16 %v849, %v848
      %v859 = vpack.c.b16 %v851, %v850
      %868 = vmatprep.subr.bf16.mxu0 0
      %869 = vmatpush1.bf16.msra.mxu0 %v852
      %870 = vmatprep.subr.bf16.mxu0 0
      %871 = vmatpush1.bf16.msra.mxu0 %v853
      %872 = vmatprep.subr.bf16.mxu0 0
      %873 = vmatpush1.bf16.msra.mxu0 %v854
      %874 = vmatprep.subr.bf16.mxu0 0
      %875 = vmatpush1.bf16.msra.mxu0 %v855
      %876 = vmatprep.subr.bf16.mxu0 0
      %877 = vmatpush1.bf16.msra.mxu0 %v856
      %878 = vmatprep.subr.bf16.mxu0 0
      %879 = vmatpush1.bf16.msra.mxu0 %v857
      %880 = vmatprep.subr.bf16.mxu0 0
      %881 = vmatpush1.bf16.msra.mxu0 %v858
      %882 = vmatprep.subr.bf16.mxu0 0
      %883 = vmatpush1.bf16.msra.mxu0 %v859
      %884 = vmatprep.subr.bf16.mxu0 0
      %885 = vmatpush1.bf16.msra.mxu0 0
      %886 = vmatprep.subr.bf16.mxu0 0
      %887 = vmatpush1.bf16.msra.mxu0 0
      %888 = vmatprep.subr.bf16.mxu0 0
      %889 = vmatpush1.bf16.msra.mxu0 0
      %890 = vmatprep.subr.bf16.mxu0 0
      %891 = vmatpush1.bf16.msra.mxu0 0
      %892 = vmatprep.subr.bf16.mxu0 0
      %893 = vmatpush1.bf16.msra.mxu0 0
      %894 = vmatprep.subr.bf16.mxu0 0
      %895 = vmatpush1.bf16.msra.mxu0 0
      %896 = vmatprep.subr.bf16.mxu0 0
      %897 = vmatpush1.bf16.msra.mxu0 0
      %898 = vmatprep.subr.bf16.mxu0 0
      %899 = vmatpush1.bf16.msra.mxu0 0
      %900 = vmatprep.mubr.bf16.mxu0 0
      %901 = vmatmul.mubr.bf16.gmra.mrb[0].mxu0 %v803
      %v902 = vpop.f32.mrb[0].mxu0
      %v903 = vadd.f32 0.0, %v902
      %v904 = vpop.f32.mrb[0].mxu0
      %v905 = vpop.f32.mrb[0].mxu0
      %v906 = vpop.f32.mrb[0].mxu0
      %907 = vdwg.mxu0
      %v908 = vadd.f32 %v228, %v903
      %909 = vst [vmem:[%s226] sm:$0xff] %v908
      %p910 = scmp.lt.s32.totalorder %s23, 1
      %s911 = scalar_select %p910, %s23, 1
      %s912 = smul.addr %s911, 8
      %s913 = scalar_lea.vmem %s6, %s912
      // Predicated region
      $region41: #{transformer_forward.13} parent=39 // pred_check
        %p914 = pneg %p151
      $region42: #{transformer_forward.13} parent=39 // pred_check_branch
        %916 = sbr.rel (%p914) target = $region44
      $region43: #{transformer_forward.13} parent=39 // pred_region
        _
      $region44: #{transformer_forward.13} parent=39 // pred_fallthru
        _
    $region40: #{transformer_forward.13} parent=5 // pred_fallthru
      _
    %p917 = scmp.le.s32.totalorder 2, %s18
    // Predicated region
    $region45: #{transformer_forward.13} parent=5 // pred_check
      %p918 = pneg %p917
    $region46: #{transformer_forward.13} parent=5 // pred_check_branch
      %920 = sbr.rel (%p918) target = $region48
    $region47: #{transformer_forward.13} parent=5 // pred_region
      %s921 = ssub.s32 %s18, 2
      // Predicated region
      $region49: #{transformer_forward.13} parent=47 // pred_check
        %p922 = pneg %p157
      $region50: #{transformer_forward.13} parent=47 // pred_check_branch
        %924 = sbr.rel (%p922) target = $region52
      $region51: #{transformer_forward.13} parent=47 // pred_region
        %p925 = scmp.lt.s32.totalorder %s24, 1
        %s926 = scalar_select %p925, %s24, 1
        %s927 = smul.addr %s926, 8
        %s928 = scalar_lea.vmem %s6, %s927
      $region52: #{transformer_forward.13} parent=47 // pred_fallthru
        _
    $region48: #{transformer_forward.13} parent=5 // pred_fallthru
      _
  $region6: #{transformer_forward.13} parent=0 // loop_footer
    %s22 = sadd.s32 1, %s18
  $region7: #{transformer_forward.13} parent=0 // loop_footer_branch
    %17 = sbr.rel target = $region3
  $region8: #{transformer_forward.13} parent=0 // loop_exit
    _

// kernel: transformer_forward.12
$region0: #{transformer_forward.12}
  #allocation0 [shape = 'u32[]', space=smem, size = 0x4, offset = 0x4, fixed_abs, tag = 'smem constant byte address 0x4 - core index']
  #allocation1 [shape = 'u32[144,128]{1,0:T(1,128)}', space=vmem, size = 0x12000, scoped, tag = 'internal scratch']
  %s0 = inlined_call_operand.vmem [shape: f32[16,128], index: 0, kind: input, shape index: {}]
  %s1 = inlined_call_operand.hbm [shape: f32[1,128], index: 1, kind: input, shape index: {}]
  %s2 = inlined_call_operand.hbm [shape: f32[1,128], index: 2, kind: input, shape index: {}]
  %s3 = inlined_call_operand.vmem [shape: bf16[128,512], index: 3, kind: input, shape index: {}]
  %s4 = inlined_call_operand.hbm [shape: f32[1,512], index: 4, kind: input, shape index: {}]
  %s5 = inlined_call_operand.vmem [shape: bf16[512,128], index: 5, kind: input, shape index: {}]
  %s6 = inlined_call_operand.hbm [shape: f32[1,128], index: 6, kind: input, shape index: {}]
  %s7 = inlined_call_operand.vmem [shape: f32[16,128], index: 7, kind: output, shape index: {}]
  %s8 = sld [smem:[#allocation0]]
  $region54: #{transformer_forward.12} parent=0
    _
  %s10 = ssub.s32 1, %s8
  %s11 = scalar_select 0, %s10, %s8
  $region1: #{transformer_forward.12} parent=0
    #allocation2 [shape = 'u8[512]{0}', space=vmem, size = 0x400, scoped, tag = 'input window, operand 1, single buffered']
    #allocation3 [shape = 's32[1]{0}', space=sflag, size = 0x4, scoped, tag = 'scoped memory for transformer_forward.12']
    #allocation4 [shape = 'u8[512]{0}', space=vmem, size = 0x400, scoped, tag = 'input window, operand 2, single buffered']
    #allocation5 [shape = 's32[1]{0}', space=sflag, size = 0x4, scoped, tag = 'scoped memory for transformer_forward.12']
    #allocation6 [shape = 'u8[2048]{0}', space=vmem, size = 0x800, scoped, tag = 'input window, operand 4, single buffered']
    #allocation7 [shape = 'u8[512]{0}', space=vmem, size = 0x400, scoped, tag = 'input window, operand 6, single buffered']
    #allocation8 [shape = 's32[1]{0}', space=sflag, size = 0x4, scoped, tag = 'scoped memory for transformer_forward.12']
    %12 = vsyncpa [#allocation3], 0
    %13 = vsyncpa [#allocation5], 0
    %14 = vsyncpa [#allocation8], 0
    // Predicated region
    $region2: #{transformer_forward.12} parent=1 // pred_check
      _
    $region3: #{transformer_forward.12} parent=1 // pred_check_branch
      %16 = sbr.rel (0) target = $region5
    $region4: #{transformer_forward.12} parent=1 // pred_region
      _
    $region5: #{transformer_forward.12} parent=1 // pred_fallthru
      _
    // Predicated region
    $region6: #{transformer_forward.12} parent=1 // pred_check
      _
    $region7: #{transformer_forward.12} parent=1 // pred_check_branch
      %18 = sbr.rel (0) target = $region9
    $region8: #{transformer_forward.12} parent=1 // pred_region
      %s20 = ssub.s32 16, 16
      %21 = vsyncadd [#allocation3], %s20
      %s23 = sshll.u32 [#allocation2], 4
      %s24 = int_to_ptr.vmem [resolvable:$true] %s23
      %26 = dma.hbm_to_vmem [thread:$0]  %s1, 16, %s24, [#allocation3]
    $region9: #{transformer_forward.12} parent=1 // pred_fallthru
      _
    // Predicated region
    $region10: #{transformer_forward.12} parent=1 // pred_check
      _
    $region11: #{transformer_forward.12} parent=1 // pred_check_branch
      %28 = sbr.rel (0) target = $region13
    $region12: #{transformer_forward.12} parent=1 // pred_region
      %s30 = ssub.s32 16, 16
      %31 = vsyncadd [#allocation5], %s30
      %s33 = sshll.u32 [#allocation4], 4
      %s34 = int_to_ptr.vmem [resolvable:$true] %s33
      %36 = dma.hbm_to_vmem [thread:$0]  %s2, 16, %s34, [#allocation5]
    $region13: #{transformer_forward.12} parent=1 // pred_fallthru
      _
    // Predicated region
    $region14: #{transformer_forward.12} parent=1 // pred_check
      _
    $region15: #{transformer_forward.12} parent=1 // pred_check_branch
      %38 = sbr.rel (0) target = $region17
    $region16: #{transformer_forward.12} parent=1 // pred_region
      _
    $region17: #{transformer_forward.12} parent=1 // pred_fallthru
      _
    // Predicated region
    $region18: #{transformer_forward.12} parent=1 // pred_check
      _
    $region19: #{transformer_forward.12} parent=1 // pred_check_branch
      %40 = sbr.rel (0) target = $region21
    $region20: #{transformer_forward.12} parent=1 // pred_region
      %s42 = ssub.s32 64, 64
      %43 = vsyncadd [#allocation5], %s42
      %s45 = sshll.u32 [#allocation6], 4
      %s46 = int_to_ptr.vmem [resolvable:$true] %s45
      %48 = dma.hbm_to_vmem [thread:$0]  %s4, 64, %s46, [#allocation5]
    $region21: #{transformer_forward.12} parent=1 // pred_fallthru
      _
    // Predicated region
    $region22: #{transformer_forward.12} parent=1 // pred_check
      _
    $region23: #{transformer_forward.12} parent=1 // pred_check_branch
      %50 = sbr.rel (0) target = $region25
    $region24: #{transformer_forward.12} parent=1 // pred_region
      _
    $region25: #{transformer_forward.12} parent=1 // pred_fallthru
      _
    // Predicated region
    $region26: #{transformer_forward.12} parent=1 // pred_check
      _
    $region27: #{transformer_forward.12} parent=1 // pred_check_branch
      %52 = sbr.rel (0) target = $region29
    $region28: #{transformer_forward.12} parent=1 // pred_region
      %s54 = ssub.s32 16, 16
      %55 = vsyncadd [#allocation8], %s54
      %s57 = sshll.u32 [#allocation7], 4
      %s58 = int_to_ptr.vmem [resolvable:$true] %s57
      %60 = dma.hbm_to_vmem [thread:$0]  %s6, 16, %s58, [#allocation8]
    $region29: #{transformer_forward.12} parent=1 // pred_fallthru
      _
    // Predicated region
    $region30: #{transformer_forward.12} parent=1 // pred_check
      _
    $region31: #{transformer_forward.12} parent=1 // pred_check_branch
      %62 = sbr.rel (0) target = $region33
    $region32: #{transformer_forward.12} parent=1 // pred_region
      %63 = dma.done [#allocation3], 16
    $region33: #{transformer_forward.12} parent=1 // pred_fallthru
      _
    // Predicated region
    $region34: #{transformer_forward.12} parent=1 // pred_check
      _
    $region35: #{transformer_forward.12} parent=1 // pred_check_branch
      %65 = sbr.rel (0) target = $region37
    $region36: #{transformer_forward.12} parent=1 // pred_region
      %66 = dma.done [#allocation5], 16
    $region37: #{transformer_forward.12} parent=1 // pred_fallthru
      _
    // Predicated region
    $region38: #{transformer_forward.12} parent=1 // pred_check
      _
    $region39: #{transformer_forward.12} parent=1 // pred_check_branch
      %68 = sbr.rel (0) target = $region41
    $region40: #{transformer_forward.12} parent=1 // pred_region
      %69 = dma.done [#allocation5], 64
    $region41: #{transformer_forward.12} parent=1 // pred_fallthru
      _
    // Predicated region
    $region42: #{transformer_forward.12} parent=1 // pred_check
      _
    $region43: #{transformer_forward.12} parent=1 // pred_check_branch
      %71 = sbr.rel (0) target = $region45
    $region44: #{transformer_forward.12} parent=1 // pred_region
      %72 = dma.done [#allocation8], 16
    $region45: #{transformer_forward.12} parent=1 // pred_fallthru
      _
    %v74 = vld [vmem:[%s0] sm:$0xff]
    %v75 = vld [vmem:[%s0 + $0x8] sm:$0xff]
    %v76 = vld [vmem:[#allocation2] sm:$0x1]
    %v77 = vld [vmem:[#allocation4] sm:$0x1]
    %78 = vadd.xlane.f32.xlu0 %v74
    %v79 = vpop.xlane.xlu0 %78
    %80 = vadd.xlane.f32.xlu0 %v75
    %v81 = vpop.xlane.xlu0 %80
    %v82 = vrcp.pop 128.0
    %v83 = vmul.f32 %v79, %v82
    %v84 = vmul.f32 %v81, %v82
    %v85 = vsub.f32 %v74, %v83
    %v86 = vsub.f32 %v75, %v84
    %v87 = vmul.f32 %v85, %v85
    %v88 = vmul.f32 %v86, %v86
    %89 = vadd.xlane.f32.xlu0 %v87
    %v90 = vpop.xlane.xlu0 %89
    %91 = vadd.xlane.f32.xlu0 %v88
    %v92 = vpop.xlane.xlu0 %91
    %v93 = vmul.f32 %v90, %v82
    %v94 = vmul.f32 %v92, %v82
    %v95 = vadd.f32 %v93, 1e-05
    %v96 = vadd.f32 %v94, 1e-05
    %v97 = vrsqrt.pop %v95
    %v98 = vrsqrt.pop %v96
    %v99 = vmul.f32 %v85, %v97
    %v100 = vmul.f32 %v86, %v98
    %v102 = vlaneseq
    %v103 = vshrl.u32 %v102, 7
    %v104 = vsub.s32 0, %v103
    %v105 = vrot.slane %v76, %v104
    %v107 = vmul.f32 %v99, %v105
    %v108 = vmul.f32 %v100, %v105
    %v110 = vlaneseq
    %v111 = vshrl.u32 %v110, 7
    %v112 = vsub.s32 0, %v111
    %v113 = vrot.slane %v77, %v112
    %v115 = vadd.f32 %v107, %v113
    %v116 = vadd.f32 %v108, %v113
    %v117 = vpack.c.bf16 %v116, %v115
    %v118 = vld [vmem:[%s3] sm:$0xff]
    %v119 = vld [vmem:[%s3 + $0x8] sm:$0xff]
    %v120 = vld [vmem:[%s3 + $0x10] sm:$0xff]
    %v121 = vld [vmem:[%s3 + $0x18] sm:$0xff]
    %v122 = vld [vmem:[%s3 + $0x20] sm:$0xff]
    %v123 = vld [vmem:[%s3 + $0x28] sm:$0xff]
    %v124 = vld [vmem:[%s3 + $0x30] sm:$0xff]
    %v125 = vld [vmem:[%s3 + $0x38] sm:$0xff]
    %v126 = vld [vmem:[%s3 + $0x40] sm:$0xff]
    %v127 = vld [vmem:[%s3 + $0x48] sm:$0xff]
    %v128 = vld [vmem:[%s3 + $0x50] sm:$0xff]
    %v129 = vld [vmem:[%s3 + $0x58] sm:$0xff]
    %v130 = vld [vmem:[%s3 + $0x60] sm:$0xff]
    %v131 = vld [vmem:[%s3 + $0x68] sm:$0xff]
    %v132 = vld [vmem:[%s3 + $0x70] sm:$0xff]
    %v133 = vld [vmem:[%s3 + $0x78] sm:$0xff]
    %v134 = vld [vmem:[%s3 + $0x80] sm:$0xff]
    %v135 = vld [vmem:[%s3 + $0x88] sm:$0xff]
    %v136 = vld [vmem:[%s3 + $0x90] sm:$0xff]
    %v137 = vld [vmem:[%s3 + $0x98] sm:$0xff]
    %v138 = vld [vmem:[%s3 + $0xa0] sm:$0xff]
    %v139 = vld [vmem:[%s3 + $0xa8] sm:$0xff]
    %v140 = vld [vmem:[%s3 + $0xb0] sm:$0xff]
    %v141 = vld [vmem:[%s3 + $0xb8] sm:$0xff]
    %v142 = vld [vmem:[%s3 + $0xc0] sm:$0xff]
    %v143 = vld [vmem:[%s3 + $0xc8] sm:$0xff]
    %v144 = vld [vmem:[%s3 + $0xd0] sm:$0xff]
    %v145 = vld [vmem:[%s3 + $0xd8] sm:$0xff]
    %v146 = vld [vmem:[%s3 + $0xe0] sm:$0xff]
    %v147 = vld [vmem:[%s3 + $0xe8] sm:$0xff]
    %v148 = vld [vmem:[%s3 + $0xf0] sm:$0xff]
    %v149 = vld [vmem:[%s3 + $0xf8] sm:$0xff]
    %v150 = vld [vmem:[#allocation6] sm:$0xf]
    %v152 = vlaneseq
    %v153 = vshrl.u32 %v152, 7
    %v154 = vsub.s32 0, %v153
    %v155 = vrot.slane %v150, %v154
    %v156 = vlaneseq
    %v157 = vshrl.u32 %v156, 7
    %v158 = vsub.s32 1, %v157
    %v159 = vrot.slane %v150, %v158
    %v160 = vlaneseq
    %v161 = vshrl.u32 %v160, 7
    %v162 = vsub.s32 2, %v161
    %v163 = vrot.slane %v150, %v162
    %v164 = vlaneseq
    %v165 = vshrl.u32 %v164, 7
    %v166 = vsub.s32 3, %v165
    %v167 = vrot.slane %v150, %v166
    %v204 = vunpack.c.l.b16 %v118
    %v205 = vunpack.c.h.b16 %v118
    %v206 = vunpack.c.l.b16 %v119
    %v207 = vunpack.c.h.b16 %v119
    %v208 = vunpack.c.l.b16 %v120
    %v209 = vunpack.c.h.b16 %v120
    %v210 = vunpack.c.l.b16 %v121
    %v211 = vunpack.c.h.b16 %v121
    %v212 = vunpack.c.l.b16 %v122
    %v213 = vunpack.c.h.b16 %v122
    %v214 = vunpack.c.l.b16 %v123
    %v215 = vunpack.c.h.b16 %v123
    %v216 = vunpack.c.l.b16 %v124
    %v217 = vunpack.c.h.b16 %v124
    %v218 = vunpack.c.l.b16 %v125
    %v219 = vunpack.c.h.b16 %v125
    %v220 = vunpack.c.l.b16 %v126
    %v221 = vunpack.c.h.b16 %v126
    %v222 = vunpack.c.l.b16 %v127
    %v223 = vunpack.c.h.b16 %v127
    %v224 = vunpack.c.l.b16 %v128
    %v225 = vunpack.c.h.b16 %v128
    %v226 = vunpack.c.l.b16 %v129
    %v227 = vunpack.c.h.b16 %v129
    %v228 = vunpack.c.l.b16 %v130
    %v229 = vunpack.c.h.b16 %v130
    %v230 = vunpack.c.l.b16 %v131
    %v231 = vunpack.c.h.b16 %v131
    %v232 = vunpack.c.l.b16 %v132
    %v233 = vunpack.c.h.b16 %v132
    %v234 = vunpack.c.l.b16 %v133
    %v235 = vunpack.c.h.b16 %v133
    %v236 = vunpack.c.l.b16 %v134
    %v237 = vunpack.c.h.b16 %v134
    %v238 = vunpack.c.l.b16 %v135
    %v239 = vunpack.c.h.b16 %v135
    %v240 = vunpack.c.l.b16 %v136
    %v241 = vunpack.c.h.b16 %v136
    %v242 = vunpack.c.l.b16 %v137
    %v243 = vunpack.c.h.b16 %v137
    %v244 = vunpack.c.l.b16 %v138
    %v245 = vunpack.c.h.b16 %v138
    %v246 = vunpack.c.l.b16 %v139
    %v247 = vunpack.c.h.b16 %v139
    %v248 = vunpack.c.l.b16 %v140
    %v249 = vunpack.c.h.b16 %v140
    %v250 = vunpack.c.l.b16 %v141
    %v251 = vunpack.c.h.b16 %v141
    %v252 = vunpack.c.l.b16 %v142
    %v253 = vunpack.c.h.b16 %v142
    %v254 = vunpack.c.l.b16 %v143
    %v255 = vunpack.c.h.b16 %v143
    %v256 = vunpack.c.l.b16 %v144
    %v257 = vunpack.c.h.b16 %v144
    %v258 = vunpack.c.l.b16 %v145
    %v259 = vunpack.c.h.b16 %v145
    %v260 = vunpack.c.l.b16 %v146
    %v261 = vunpack.c.h.b16 %v146
    %v262 = vunpack.c.l.b16 %v147
    %v263 = vunpack.c.h.b16 %v147
    %v264 = vunpack.c.l.b16 %v148
    %v265 = vunpack.c.h.b16 %v148
    %v266 = vunpack.c.l.b16 %v149
    %v267 = vunpack.c.h.b16 %v149
    %v268 = vpack.c.b16 %v208, %v204
    %v269 = vpack.c.b16 %v209, %v205
    %v270 = vpack.c.b16 %v210, %v206
    %v271 = vpack.c.b16 %v211, %v207
    %v272 = vpack.c.b16 %v216, %v212
    %v273 = vpack.c.b16 %v217, %v213
    %v274 = vpack.c.b16 %v218, %v214
    %v275 = vpack.c.b16 %v219, %v215
    %v276 = vpack.c.b16 %v224, %v220
    %v277 = vpack.c.b16 %v225, %v221
    %v278 = vpack.c.b16 %v226, %v222
    %v279 = vpack.c.b16 %v227, %v223
    %v280 = vpack.c.b16 %v232, %v228
    %v281 = vpack.c.b16 %v233, %v229
    %v282 = vpack.c.b16 %v234, %v230
    %v283 = vpack.c.b16 %v235, %v231
    %v284 = vpack.c.b16 %v240, %v236
    %v285 = vpack.c.b16 %v241, %v237
    %v286 = vpack.c.b16 %v242, %v238
    %v287 = vpack.c.b16 %v243, %v239
    %v288 = vpack.c.b16 %v248, %v244
    %v289 = vpack.c.b16 %v249, %v245
    %v290 = vpack.c.b16 %v250, %v246
    %v291 = vpack.c.b16 %v251, %v247
    %v292 = vpack.c.b16 %v256, %v252
    %v293 = vpack.c.b16 %v257, %v253
    %v294 = vpack.c.b16 %v258, %v254
    %v295 = vpack.c.b16 %v259, %v255
    %v296 = vpack.c.b16 %v264, %v260
    %v297 = vpack.c.b16 %v265, %v261
    %v298 = vpack.c.b16 %v266, %v262
    %v299 = vpack.c.b16 %v267, %v263
    %332 = vmatprep.subr.bf16.mxu0 %v269
    %333 = vmatpush1.bf16.msra.mxu0 %v268
    %334 = vmatprep.subr.bf16.mxu0 %v273
    %335 = vmatpush1.bf16.msra.mxu0 %v272
    %336 = vmatprep.subr.bf16.mxu0 %v277
    %337 = vmatpush1.bf16.msra.mxu0 %v276
    %338 = vmatprep.subr.bf16.mxu0 %v281
    %339 = vmatpush1.bf16.msra.mxu0 %v280
    %340 = vmatprep.subr.bf16.mxu0 %v285
    %341 = vmatpush1.bf16.msra.mxu0 %v284
    %342 = vmatprep.subr.bf16.mxu0 %v289
    %343 = vmatpush1.bf16.msra.mxu0 %v288
    %344 = vmatprep.subr.bf16.mxu0 %v293
    %345 = vmatpush1.bf16.msra.mxu0 %v292
    %346 = vmatprep.subr.bf16.mxu0 %v297
    %347 = vmatpush1.bf16.msra.mxu0 %v296
    %348 = vmatprep.subr.bf16.mxu0 0
    %349 = vmatpush1.bf16.msra.mxu0 0
    %350 = vmatprep.subr.bf16.mxu0 0
    %351 = vmatpush1.bf16.msra.mxu0 0
    %352 = vmatprep.subr.bf16.mxu0 0
    %353 = vmatpush1.bf16.msra.mxu0 0
    %354 = vmatprep.subr.bf16.mxu0 0
    %355 = vmatpush1.bf16.msra.mxu0 0
    %356 = vmatprep.subr.bf16.mxu0 0
    %357 = vmatpush1.bf16.msra.mxu0 0
    %358 = vmatprep.subr.bf16.mxu0 0
    %359 = vmatpush1.bf16.msra.mxu0 0
    %360 = vmatprep.subr.bf16.mxu0 0
    %361 = vmatpush1.bf16.msra.mxu0 0
    %362 = vmatprep.subr.bf16.mxu0 0
    %363 = vmatpush1.bf16.msra.mxu0 0
    %364 = vmatprep.mubr.bf16.mxu0 0
    %365 = vmatmul.mubr.bf16.gmra.mrb[0].mxu0 %v117
    %v366 = vpop.f32.mrb[0].mxu0
    %v367 = vadd.f32 %v155, %v366
    %v368 = vpop.f32.mrb[0].mxu0
    %v369 = vadd.f32 %v159, %v368
    %v370 = vpop.f32.mrb[0].mxu0
    %v371 = vadd.f32 %v155, %v370
    %v372 = vpop.f32.mrb[0].mxu0
    %v373 = vadd.f32 %v159, %v372
    %374 = vdwg.mxu0
    %375 = vmatprep.subr.bf16.mxu0 %v271
    %376 = vmatpush1.bf16.msra.mxu0 %v270
    %377 = vmatprep.subr.bf16.mxu0 %v275
    %378 = vmatpush1.bf16.msra.mxu0 %v274
    %379 = vmatprep.subr.bf16.mxu0 %v279
    %380 = vmatpush1.bf16.msra.mxu0 %v278
    %381 = vmatprep.subr.bf16.mxu0 %v283
    %382 = vmatpush1.bf16.msra.mxu0 %v282
    %383 = vmatprep.subr.bf16.mxu0 %v287
    %384 = vmatpush1.bf16.msra.mxu0 %v286
    %385 = vmatprep.subr.bf16.mxu0 %v291
    %386 = vmatpush1.bf16.msra.mxu0 %v290
    %387 = vmatprep.subr.bf16.mxu0 %v295
    %388 = vmatpush1.bf16.msra.mxu0 %v294
    %389 = vmatprep.subr.bf16.mxu0 %v299
    %390 = vmatpush1.bf16.msra.mxu0 %v298
    %391 = vmatprep.subr.bf16.mxu0 0
    %392 = vmatpush1.bf16.msra.mxu0 0
    %393 = vmatprep.subr.bf16.mxu0 0
    %394 = vmatpush1.bf16.msra.mxu0 0
    %395 = vmatprep.subr.bf16.mxu0 0
    %396 = vmatpush1.bf16.msra.mxu0 0
    %397 = vmatprep.subr.bf16.mxu0 0
    %398 = vmatpush1.bf16.msra.mxu0 0
    %399 = vmatprep.subr.bf16.mxu0 0
    %400 = vmatpush1.bf16.msra.mxu0 0
    %401 = vmatprep.subr.bf16.mxu0 0
    %402 = vmatpush1.bf16.msra.mxu0 0
    %403 = vmatprep.subr.bf16.mxu0 0
    %404 = vmatpush1.bf16.msra.mxu0 0
    %405 = vmatprep.subr.bf16.mxu0 0
    %406 = vmatpush1.bf16.msra.mxu0 0
    %407 = vmatprep.mubr.bf16.mxu0 0
    %408 = vmatmul.mubr.bf16.gmra.mrb[0].mxu0 %v117
    %v409 = vpop.f32.mrb[0].mxu0
    %v410 = vadd.f32 %v163, %v409
    %v411 = vpop.f32.mrb[0].mxu0
    %v412 = vadd.f32 %v167, %v411
    %v413 = vpop.f32.mrb[0].mxu0
    %v414 = vadd.f32 %v163, %v413
    %v415 = vpop.f32.mrb[0].mxu0
    %v416 = vadd.f32 %v167, %v415
    %417 = vdwg.mxu0
    %v418 = vmax.f32 %v367, 0.0
    %v419 = vmax.f32 %v369, 0.0
    %v420 = vmax.f32 %v410, 0.0
    %v421 = vmax.f32 %v412, 0.0
    %v422 = vmax.f32 %v371, 0.0
    %v423 = vmax.f32 %v373, 0.0
    %v424 = vmax.f32 %v414, 0.0
    %v425 = vmax.f32 %v416, 0.0
    %v426 = vpack.c.bf16 %v422, %v418
    %v427 = vpack.c.bf16 %v423, %v419
    %v428 = vpack.c.bf16 %v424, %v420
    %v429 = vpack.c.bf16 %v425, %v421
    %v430 = vld [vmem:[%s5] sm:$0xf]
    %v431 = vld [vmem:[%s5 + $0x4] sm:$0xf]
    %v432 = vld [vmem:[%s5 + $0x8] sm:$0xf]
    %v433 = vld [vmem:[%s5 + $0xc] sm:$0xf]
    %v434 = vld [vmem:[%s5 + $0x10] sm:$0xf]
    %v435 = vld [vmem:[%s5 + $0x14] sm:$0xf]
    %v436 = vld [vmem:[%s5 + $0x18] sm:$0xf]
    %v437 = vld [vmem:[%s5 + $0x1c] sm:$0xf]
    %v438 = vld [vmem:[%s5 + $0x20] sm:$0xf]
    %v439 = vld [vmem:[%s5 + $0x24] sm:$0xf]
    %v440 = vld [vmem:[%s5 + $0x28] sm:$0xf]
    %v441 = vld [vmem:[%s5 + $0x2c] sm:$0xf]
    %v442 = vld [vmem:[%s5 + $0x30] sm:$0xf]
    %v443 = vld [vmem:[%s5 + $0x34] sm:$0xf]
    %v444 = vld [vmem:[%s5 + $0x38] sm:$0xf]
    %v445 = vld [vmem:[%s5 + $0x3c] sm:$0xf]
    %v446 = vld [vmem:[%s5 + $0x40] sm:$0xf]
    %v447 = vld [vmem:[%s5 + $0x44] sm:$0xf]
    %v448 = vld [vmem:[%s5 + $0x48] sm:$0xf]
    %v449 = vld [vmem:[%s5 + $0x4c] sm:$0xf]
    %v450 = vld [vmem:[%s5 + $0x50] sm:$0xf]
    %v451 = vld [vmem:[%s5 + $0x54] sm:$0xf]
    %v452 = vld [vmem:[%s5 + $0x58] sm:$0xf]
    %v453 = vld [vmem:[%s5 + $0x5c] sm:$0xf]
    %v454 = vld [vmem:[%s5 + $0x60] sm:$0xf]
    %v455 = vld [vmem:[%s5 + $0x64] sm:$0xf]
    %v456 = vld [vmem:[%s5 + $0x68] sm:$0xf]
    %v457 = vld [vmem:[%s5 + $0x6c] sm:$0xf]
    %v458 = vld [vmem:[%s5 + $0x70] sm:$0xf]
    %v459 = vld [vmem:[%s5 + $0x74] sm:$0xf]
    %v460 = vld [vmem:[%s5 + $0x78] sm:$0xf]
    %v461 = vld [vmem:[%s5 + $0x7c] sm:$0xf]
    %v462 = vld [vmem:[%s5 + $0x80] sm:$0xf]
    %v463 = vld [vmem:[%s5 + $0x84] sm:$0xf]
    %v464 = vld [vmem:[%s5 + $0x88] sm:$0xf]
    %v465 = vld [vmem:[%s5 + $0x8c] sm:$0xf]
    %v466 = vld [vmem:[%s5 + $0x90] sm:$0xf]
    %v467 = vld [vmem:[%s5 + $0x94] sm:$0xf]
    %v468 = vld [vmem:[%s5 + $0x98] sm:$0xf]
    %v469 = vld [vmem:[%s5 + $0x9c] sm:$0xf]
    %v470 = vld [vmem:[%s5 + $0xa0] sm:$0xf]
    %v471 = vld [vmem:[%s5 + $0xa4] sm:$0xf]
    %v472 = vld [vmem:[%s5 + $0xa8] sm:$0xf]
    %v473 = vld [vmem:[%s5 + $0xac] sm:$0xf]
    %v474 = vld [vmem:[%s5 + $0xb0] sm:$0xf]
    %v475 = vld [vmem:[%s5 + $0xb4] sm:$0xf]
    %v476 = vld [vmem:[%s5 + $0xb8] sm:$0xf]
    %v477 = vld [vmem:[%s5 + $0xbc] sm:$0xf]
    %v478 = vld [vmem:[%s5 + $0xc0] sm:$0xf]
    %v479 = vld [vmem:[%s5 + $0xc4] sm:$0xf]
    %v480 = vld [vmem:[%s5 + $0xc8] sm:$0xf]
    %v481 = vld [vmem:[%s5 + $0xcc] sm:$0xf]
    %v482 = vld [vmem:[%s5 + $0xd0] sm:$0xf]
    %v483 = vld [vmem:[%s5 + $0xd4] sm:$0xf]
    %v484 = vld [vmem:[%s5 + $0xd8] sm:$0xf]
    %v485 = vld [vmem:[%s5 + $0xdc] sm:$0xf]
    %v486 = vld [vmem:[%s5 + $0xe0] sm:$0xf]
    %v487 = vld [vmem:[%s5 + $0xe4] sm:$0xf]
    %v488 = vld [vmem:[%s5 + $0xe8] sm:$0xf]
    %v489 = vld [vmem:[%s5 + $0xec] sm:$0xf]
    %v490 = vld [vmem:[%s5 + $0xf0] sm:$0xf]
    %v491 = vld [vmem:[%s5 + $0xf4] sm:$0xf]
    %v492 = vld [vmem:[%s5 + $0xf8] sm:$0xf]
    %v493 = vld [vmem:[%s5 + $0xfc] sm:$0xf]
    %v494 = vld [vmem:[#allocation7] sm:$0x1]
    %v496 = vlaneseq
    %v497 = vshrl.u32 %v496, 7
    %v498 = vsub.s32 0, %v497
    %v499 = vrot.slane %v494, %v498
    %v565 = vunpack.c.l.b16 %v430
    %v566 = vunpack.c.l.b16 %v431
    %v567 = vunpack.c.l.b16 %v432
    %v568 = vunpack.c.l.b16 %v433
    %v569 = vunpack.c.l.b16 %v434
    %v570 = vunpack.c.l.b16 %v435
    %v571 = vunpack.c.l.b16 %v436
    %v572 = vunpack.c.l.b16 %v437
    %v573 = vunpack.c.l.b16 %v438
    %v574 = vunpack.c.l.b16 %v439
    %v575 = vunpack.c.l.b16 %v440
    %v576 = vunpack.c.l.b16 %v441
    %v577 = vunpack.c.l.b16 %v442
    %v578 = vunpack.c.l.b16 %v443
    %v579 = vunpack.c.l.b16 %v444
    %v580 = vunpack.c.l.b16 %v445
    %v581 = vunpack.c.l.b16 %v446
    %v582 = vunpack.c.l.b16 %v447
    %v583 = vunpack.c.l.b16 %v448
    %v584 = vunpack.c.l.b16 %v449
    %v585 = vunpack.c.l.b16 %v450
    %v586 = vunpack.c.l.b16 %v451
    %v587 = vunpack.c.l.b16 %v452
    %v588 = vunpack.c.l.b16 %v453
    %v589 = vunpack.c.l.b16 %v454
    %v590 = vunpack.c.l.b16 %v455
    %v591 = vunpack.c.l.b16 %v456
    %v592 = vunpack.c.l.b16 %v457
    %v593 = vunpack.c.l.b16 %v458
    %v594 = vunpack.c.l.b16 %v459
    %v595 = vunpack.c.l.b16 %v460
    %v596 = vunpack.c.l.b16 %v461
    %v597 = vunpack.c.l.b16 %v462
    %v598 = vunpack.c.l.b16 %v463
    %v599 = vunpack.c.l.b16 %v464
    %v600 = vunpack.c.l.b16 %v465
    %v601 = vunpack.c.l.b16 %v466
    %v602 = vunpack.c.l.b16 %v467
    %v603 = vunpack.c.l.b16 %v468
    %v604 = vunpack.c.l.b16 %v469
    %v605 = vunpack.c.l.b16 %v470
    %v606 = vunpack.c.l.b16 %v471
    %v607 = vunpack.c.l.b16 %v472
    %v608 = vunpack.c.l.b16 %v473
    %v609 = vunpack.c.l.b16 %v474
    %v610 = vunpack.c.l.b16 %v475
    %v611 = vunpack.c.l.b16 %v476
    %v612 = vunpack.c.l.b16 %v477
    %v613 = vunpack.c.l.b16 %v478
    %v614 = vunpack.c.l.b16 %v479
    %v615 = vunpack.c.l.b16 %v480
    %v616 = vunpack.c.l.b16 %v481
    %v617 = vunpack.c.l.b16 %v482
    %v618 = vunpack.c.l.b16 %v483
    %v619 = vunpack.c.l.b16 %v484
    %v620 = vunpack.c.l.b16 %v485
    %v621 = vunpack.c.l.b16 %v486
    %v622 = vunpack.c.l.b16 %v487
    %v623 = vunpack.c.l.b16 %v488
    %v624 = vunpack.c.l.b16 %v489
    %v625 = vunpack.c.l.b16 %v490
    %v626 = vunpack.c.l.b16 %v491
    %v627 = vunpack.c.l.b16 %v492
    %v628 = vunpack.c.l.b16 %v493
    %v629 = vpack.c.b16 %v566, %v565
    %v630 = vpack.c.b16 %v568, %v567
    %v631 = vpack.c.b16 %v570, %v569
    %v632 = vpack.c.b16 %v572, %v571
    %v633 = vpack.c.b16 %v574, %v573
    %v634 = vpack.c.b16 %v576, %v575
    %v635 = vpack.c.b16 %v578, %v577
    %v636 = vpack.c.b16 %v580, %v579
    %v637 = vpack.c.b16 %v582, %v581
    %v638 = vpack.c.b16 %v584, %v583
    %v639 = vpack.c.b16 %v586, %v585
    %v640 = vpack.c.b16 %v588, %v587
    %v641 = vpack.c.b16 %v590, %v589
    %v642 = vpack.c.b16 %v592, %v591
    %v643 = vpack.c.b16 %v594, %v593
    %v644 = vpack.c.b16 %v596, %v595
    %v645 = vpack.c.b16 %v598, %v597
    %v646 = vpack.c.b16 %v600, %v599
    %v647 = vpack.c.b16 %v602, %v601
    %v648 = vpack.c.b16 %v604, %v603
    %v649 = vpack.c.b16 %v606, %v605
    %v650 = vpack.c.b16 %v608, %v607
    %v651 = vpack.c.b16 %v610, %v609
    %v652 = vpack.c.b16 %v612, %v611
    %v653 = vpack.c.b16 %v614, %v613
    %v654 = vpack.c.b16 %v616, %v615
    %v655 = vpack.c.b16 %v618, %v617
    %v656 = vpack.c.b16 %v620, %v619
    %v657 = vpack.c.b16 %v622, %v621
    %v658 = vpack.c.b16 %v624, %v623
    %v659 = vpack.c.b16 %v626, %v625
    %v660 = vpack.c.b16 %v628, %v627
    %693 = vmatprep.subr.bf16.mxu0 0
    %694 = vmatpush1.bf16.msra.mxu0 %v629
    %695 = vmatprep.subr.bf16.mxu0 0
    %696 = vmatpush1.bf16.msra.mxu0 %v630
    %697 = vmatprep.subr.bf16.mxu0 0
    %698 = vmatpush1.bf16.msra.mxu0 %v631
    %699 = vmatprep.subr.bf16.mxu0 0
    %700 = vmatpush1.bf16.msra.mxu0 %v632
    %701 = vmatprep.subr.bf16.mxu0 0
    %702 = vmatpush1.bf16.msra.mxu0 %v633
    %703 = vmatprep.subr.bf16.mxu0 0
    %704 = vmatpush1.bf16.msra.mxu0 %v634
    %705 = vmatprep.subr.bf16.mxu0 0
    %706 = vmatpush1.bf16.msra.mxu0 %v635
    %707 = vmatprep.subr.bf16.mxu0 0
    %708 = vmatpush1.bf16.msra.mxu0 %v636
    %709 = vmatprep.subr.bf16.mxu0 0
    %710 = vmatpush1.bf16.msra.mxu0 %v637
    %711 = vmatprep.subr.bf16.mxu0 0
    %712 = vmatpush1.bf16.msra.mxu0 %v638
    %713 = vmatprep.subr.bf16.mxu0 0
    %714 = vmatpush1.bf16.msra.mxu0 %v639
    %715 = vmatprep.subr.bf16.mxu0 0
    %716 = vmatpush1.bf16.msra.mxu0 %v640
    %717 = vmatprep.subr.bf16.mxu0 0
    %718 = vmatpush1.bf16.msra.mxu0 %v641
    %719 = vmatprep.subr.bf16.mxu0 0
    %720 = vmatpush1.bf16.msra.mxu0 %v642
    %721 = vmatprep.subr.bf16.mxu0 0
    %722 = vmatpush1.bf16.msra.mxu0 %v643
    %723 = vmatprep.subr.bf16.mxu0 0
    %724 = vmatpush1.bf16.msra.mxu0 %v644
    %725 = vmatprep.mubr.bf16.mxu0 %v427
    %726 = vmatmul.mubr.bf16.gmra.mrb[0].mxu0 %v426
    %v727 = vpop.f32.mrb[0].mxu0
    %v728 = vadd.f32 %v499, %v727
    %v729 = vpop.f32.mrb[0].mxu0
    %v730 = vpop.f32.mrb[0].mxu0
    %v731 = vadd.f32 %v499, %v730
    %v732 = vpop.f32.mrb[0].mxu0
    %733 = vdwg.mxu0
    %734 = vmatprep.subr.bf16.mxu0 0
    %735 = vmatpush1.bf16.msra.mxu0 %v645
    %736 = vmatprep.subr.bf16.mxu0 0
    %737 = vmatpush1.bf16.msra.mxu0 %v646
    %738 = vmatprep.subr.bf16.mxu0 0
    %739 = vmatpush1.bf16.msra.mxu0 %v647
    %740 = vmatprep.subr.bf16.mxu0 0
    %741 = vmatpush1.bf16.msra.mxu0 %v648
    %742 = vmatprep.subr.bf16.mxu0 0
    %743 = vmatpush1.bf16.msra.mxu0 %v649
    %744 = vmatprep.subr.bf16.mxu0 0
    %745 = vmatpush1.bf16.msra.mxu0 %v650
    %746 = vmatprep.subr.bf16.mxu0 0
    %747 = vmatpush1.bf16.msra.mxu0 %v651
    %748 = vmatprep.subr.bf16.mxu0 0
    %749 = vmatpush1.bf16.msra.mxu0 %v652
    %750 = vmatprep.subr.bf16.mxu0 0
    %751 = vmatpush1.bf16.msra.mxu0 %v653
    %752 = vmatprep.subr.bf16.mxu0 0
    %753 = vmatpush1.bf16.msra.mxu0 %v654
    %754 = vmatprep.subr.bf16.mxu0 0
    %755 = vmatpush1.bf16.msra.mxu0 %v655
    %756 = vmatprep.subr.bf16.mxu0 0
    %757 = vmatpush1.bf16.msra.mxu0 %v656
    %758 = vmatprep.subr.bf16.mxu0 0
    %759 = vmatpush1.bf16.msra.mxu0 %v657
    %760 = vmatprep.subr.bf16.mxu0 0
    %761 = vmatpush1.bf16.msra.mxu0 %v658
    %762 = vmatprep.subr.bf16.mxu0 0
    %763 = vmatpush1.bf16.msra.mxu0 %v659
    %764 = vmatprep.subr.bf16.mxu0 0
    %765 = vmatpush1.bf16.msra.mxu0 %v660
    %766 = vmatprep.mubr.bf16.mxu0 %v429
    %767 = vmatmul.mubr.bf16.gmra.mrb[0].mxu0 %v428
    %v768 = vpop.f32.mrb[0].mxu0
    %v769 = vadd.f32 %v728, %v768
    %v770 = vpop.f32.mrb[0].mxu0
    %v771 = vpop.f32.mrb[0].mxu0
    %v772 = vadd.f32 %v731, %v771
    %v773 = vpop.f32.mrb[0].mxu0
    %774 = vdwg.mxu0
    %v775 = vadd.f32 %v74, %v769
    %v776 = vadd.f32 %v75, %v772
    %777 = vst [vmem:[%s7] sm:$0xff] %v775
    %778 = vst [vmem:[%s7 + $0x8] sm:$0xff] %v776
    // Predicated region
    $region46: #{transformer_forward.12} parent=1 // pred_check
      _
    $region47: #{transformer_forward.12} parent=1 // pred_check_branch
      %780 = sbr.rel (0) target = $region49
    $region48: #{transformer_forward.12} parent=1 // pred_region
      _
    $region49: #{transformer_forward.12} parent=1 // pred_fallthru
      _
    // Predicated region
    $region50: #{transformer_forward.12} parent=1 // pred_check
      _
    $region51: #{transformer_forward.12} parent=1 // pred_check_branch
      %782 = sbr.rel (0) target = $region53
    $region52: #{transformer_forward.12} parent=1 // pred_region
      _
    $region53: #{transformer_forward.12} parent=1 // pred_fallthru
      _
    %783 = vsyncpa [#allocation3], 1
    %784 = vsyncpa [#allocation5], 1
    %785 = vsyncpa [#allocation8], 1

// kernel: transformer_forward.14
$region0: #{transformer_forward.14}
  #allocation0 [shape = 'u32[]', space=smem, size = 0x4, offset = 0x4, fixed_abs, tag = 'smem constant byte address 0x4 - core index']
  #allocation1 [shape = 'u32[144,128]{1,0:T(1,128)}', space=vmem, size = 0x12000, scoped, tag = 'internal scratch']
  %s0 = inlined_call_operand.vmem [shape: f32[16,128], index: 0, kind: input, shape index: {}]
  %s1 = inlined_call_operand.vmem [shape: f32[1,128], index: 1, kind: input, shape index: {}]
  %s2 = inlined_call_operand.vmem [shape: f32[1,128], index: 2, kind: input, shape index: {}]
  %s3 = inlined_call_operand.vmem [shape: bf16[128,512], index: 3, kind: input, shape index: {}]
  %s4 = inlined_call_operand.vmem [shape: f32[1,512], index: 4, kind: input, shape index: {}]
  %s5 = inlined_call_operand.vmem [shape: bf16[512,128], index: 5, kind: input, shape index: {}]
  %s6 = inlined_call_operand.vmem [shape: f32[1,128], index: 6, kind: input, shape index: {}]
  %s7 = inlined_call_operand.vmem [shape: f32[16,128], index: 7, kind: output, shape index: {}]
  %s8 = sld [smem:[#allocation0]]
  $region38: #{transformer_forward.14} parent=0
    _
  %s10 = ssub.s32 1, %s8
  %s11 = scalar_select 0, %s10, %s8
  // Predicated region
  $region2: #{transformer_forward.14} parent=0 // pred_check
    _
  $region3: #{transformer_forward.14} parent=0 // pred_check_branch
    %13 = sbr.rel (0) target = $region5
  $region4: #{transformer_forward.14} parent=0 // pred_region
    _
  $region5: #{transformer_forward.14} parent=0 // pred_fallthru
    _
  // Predicated region
  $region6: #{transformer_forward.14} parent=0 // pred_check
    _
  $region7: #{transformer_forward.14} parent=0 // pred_check_branch
    %15 = sbr.rel (0) target = $region9
  $region8: #{transformer_forward.14} parent=0 // pred_region
    _
  $region9: #{transformer_forward.14} parent=0 // pred_fallthru
    _
  // Predicated region
  $region10: #{transformer_forward.14} parent=0 // pred_check
    _
  $region11: #{transformer_forward.14} parent=0 // pred_check_branch
    %17 = sbr.rel (0) target = $region13
  $region12: #{transformer_forward.14} parent=0 // pred_region
    _
  $region13: #{transformer_forward.14} parent=0 // pred_fallthru
    _
  // Predicated region
  $region14: #{transformer_forward.14} parent=0 // pred_check
    _
  $region15: #{transformer_forward.14} parent=0 // pred_check_branch
    %19 = sbr.rel (0) target = $region17
  $region16: #{transformer_forward.14} parent=0 // pred_region
    _
  $region17: #{transformer_forward.14} parent=0 // pred_fallthru
    _
  // Predicated region
  $region18: #{transformer_forward.14} parent=0 // pred_check
    _
  $region19: #{transformer_forward.14} parent=0 // pred_check_branch
    %21 = sbr.rel (0) target = $region21
  $region20: #{transformer_forward.14} parent=0 // pred_region
    _
  $region21: #{transformer_forward.14} parent=0 // pred_fallthru
    _
  // Predicated region
  $region22: #{transformer_forward.14} parent=0 // pred_check
    _
  $region23: #{transformer_forward.14} parent=0 // pred_check_branch
    %23 = sbr.rel (0) target = $region25
  $region24: #{transformer_forward.14} parent=0 // pred_region
    _
  $region25: #{transformer_forward.14} parent=0 // pred_fallthru
    _
  // Predicated region
  $region26: #{transformer_forward.14} parent=0 // pred_check
    _
  $region27: #{transformer_forward.14} parent=0 // pred_check_branch
    %25 = sbr.rel (0) target = $region29
  $region28: #{transformer_forward.14} parent=0 // pred_region
    _
  $region29: #{transformer_forward.14} parent=0 // pred_fallthru
    _
  %v27 = vld [vmem:[%s0] sm:$0xff]
  %v28 = vld [vmem:[%s0 + $0x8] sm:$0xff]
  %v29 = vld [vmem:[%s1] sm:$0x1]
  %v30 = vld [vmem:[%s2] sm:$0x1]
  %31 = vadd.xlane.f32.xlu0 %v27
  %v32 = vpop.xlane.xlu0 %31
  %33 = vadd.xlane.f32.xlu0 %v28
  %v34 = vpop.xlane.xlu0 %33
  %v35 = vrcp.pop 128.0
  %v36 = vmul.f32 %v32, %v35
  %v37 = vmul.f32 %v34, %v35
  %v38 = vsub.f32 %v27, %v36
  %v39 = vsub.f32 %v28, %v37
  %v40 = vmul.f32 %v38, %v38
  %v41 = vmul.f32 %v39, %v39
  %42 = vadd.xlane.f32.xlu0 %v40
  %v43 = vpop.xlane.xlu0 %42
  %44 = vadd.xlane.f32.xlu0 %v41
  %v45 = vpop.xlane.xlu0 %44
  %v46 = vmul.f32 %v43, %v35
  %v47 = vmul.f32 %v45, %v35
  %v48 = vadd.f32 %v46, 1e-05
  %v49 = vadd.f32 %v47, 1e-05
  %v50 = vrsqrt.pop %v48
  %v51 = vrsqrt.pop %v49
  %v52 = vmul.f32 %v38, %v50
  %v53 = vmul.f32 %v39, %v51
  %v55 = vlaneseq
  %v56 = vshrl.u32 %v55, 7
  %v57 = vsub.s32 0, %v56
  %v58 = vrot.slane %v29, %v57
  %v60 = vmul.f32 %v52, %v58
  %v61 = vmul.f32 %v53, %v58
  %v63 = vlaneseq
  %v64 = vshrl.u32 %v63, 7
  %v65 = vsub.s32 0, %v64
  %v66 = vrot.slane %v30, %v65
  %v68 = vadd.f32 %v60, %v66
  %v69 = vadd.f32 %v61, %v66
  %v70 = vpack.c.bf16 %v69, %v68
  %v71 = vld [vmem:[%s3] sm:$0xff]
  %v72 = vld [vmem:[%s3 + $0x8] sm:$0xff]
  %v73 = vld [vmem:[%s3 + $0x10] sm:$0xff]
  %v74 = vld [vmem:[%s3 + $0x18] sm:$0xff]
  %v75 = vld [vmem:[%s3 + $0x20] sm:$0xff]
  %v76 = vld [vmem:[%s3 + $0x28] sm:$0xff]
  %v77 = vld [vmem:[%s3 + $0x30] sm:$0xff]
  %v78 = vld [vmem:[%s3 + $0x38] sm:$0xff]
  %v79 = vld [vmem:[%s3 + $0x40] sm:$0xff]
  %v80 = vld [vmem:[%s3 + $0x48] sm:$0xff]
  %v81 = vld [vmem:[%s3 + $0x50] sm:$0xff]
  %v82 = vld [vmem:[%s3 + $0x58] sm:$0xff]
  %v83 = vld [vmem:[%s3 + $0x60] sm:$0xff]
  %v84 = vld [vmem:[%s3 + $0x68] sm:$0xff]
  %v85 = vld [vmem:[%s3 + $0x70] sm:$0xff]
  %v86 = vld [vmem:[%s3 + $0x78] sm:$0xff]
  %v87 = vld [vmem:[%s3 + $0x80] sm:$0xff]
  %v88 = vld [vmem:[%s3 + $0x88] sm:$0xff]
  %v89 = vld [vmem:[%s3 + $0x90] sm:$0xff]
  %v90 = vld [vmem:[%s3 + $0x98] sm:$0xff]
  %v91 = vld [vmem:[%s3 + $0xa0] sm:$0xff]
  %v92 = vld [vmem:[%s3 + $0xa8] sm:$0xff]
  %v93 = vld [vmem:[%s3 + $0xb0] sm:$0xff]
  %v94 = vld [vmem:[%s3 + $0xb8] sm:$0xff]
  %v95 = vld [vmem:[%s3 + $0xc0] sm:$0xff]
  %v96 = vld [vmem:[%s3 + $0xc8] sm:$0xff]
  %v97 = vld [vmem:[%s3 + $0xd0] sm:$0xff]
  %v98 = vld [vmem:[%s3 + $0xd8] sm:$0xff]
  %v99 = vld [vmem:[%s3 + $0xe0] sm:$0xff]
  %v100 = vld [vmem:[%s3 + $0xe8] sm:$0xff]
  %v101 = vld [vmem:[%s3 + $0xf0] sm:$0xff]
  %v102 = vld [vmem:[%s3 + $0xf8] sm:$0xff]
  %v103 = vld [vmem:[%s4] sm:$0xf]
  %v105 = vlaneseq
  %v106 = vshrl.u32 %v105, 7
  %v107 = vsub.s32 0, %v106
  %v108 = vrot.slane %v103, %v107
  %v109 = vlaneseq
  %v110 = vshrl.u32 %v109, 7
  %v111 = vsub.s32 1, %v110
  %v112 = vrot.slane %v103, %v111
  %v113 = vlaneseq
  %v114 = vshrl.u32 %v113, 7
  %v115 = vsub.s32 2, %v114
  %v116 = vrot.slane %v103, %v115
  %v117 = vlaneseq
  %v118 = vshrl.u32 %v117, 7
  %v119 = vsub.s32 3, %v118
  %v120 = vrot.slane %v103, %v119
  %v157 = vunpack.c.l.b16 %v71
  %v158 = vunpack.c.h.b16 %v71
  %v159 = vunpack.c.l.b16 %v72
  %v160 = vunpack.c.h.b16 %v72
  %v161 = vunpack.c.l.b16 %v73
  %v162 = vunpack.c.h.b16 %v73
  %v163 = vunpack.c.l.b16 %v74
  %v164 = vunpack.c.h.b16 %v74
  %v165 = vunpack.c.l.b16 %v75
  %v166 = vunpack.c.h.b16 %v75
  %v167 = vunpack.c.l.b16 %v76
  %v168 = vunpack.c.h.b16 %v76
  %v169 = vunpack.c.l.b16 %v77
  %v170 = vunpack.c.h.b16 %v77
  %v171 = vunpack.c.l.b16 %v78
  %v172 = vunpack.c.h.b16 %v78
  %v173 = vunpack.c.l.b16 %v79
  %v174 = vunpack.c.h.b16 %v79
  %v175 = vunpack.c.l.b16 %v80
  %v176 = vunpack.c.h.b16 %v80
  %v177 = vunpack.c.l.b16 %v81
  %v178 = vunpack.c.h.b16 %v81
  %v179 = vunpack.c.l.b16 %v82
  %v180 = vunpack.c.h.b16 %v82
  %v181 = vunpack.c.l.b16 %v83
  %v182 = vunpack.c.h.b16 %v83
  %v183 = vunpack.c.l.b16 %v84
  %v184 = vunpack.c.h.b16 %v84
  %v185 = vunpack.c.l.b16 %v85
  %v186 = vunpack.c.h.b16 %v85
  %v187 = vunpack.c.l.b16 %v86
  %v188 = vunpack.c.h.b16 %v86
  %v189 = vunpack.c.l.b16 %v87
  %v190 = vunpack.c.h.b16 %v87
  %v191 = vunpack.c.l.b16 %v88
  %v192 = vunpack.c.h.b16 %v88
  %v193 = vunpack.c.l.b16 %v89
  %v194 = vunpack.c.h.b16 %v89
  %v195 = vunpack.c.l.b16 %v90
  %v196 = vunpack.c.h.b16 %v90
  %v197 = vunpack.c.l.b16 %v91
  %v198 = vunpack.c.h.b16 %v91
  %v199 = vunpack.c.l.b16 %v92
  %v200 = vunpack.c.h.b16 %v92
  %v201 = vunpack.c.l.b16 %v93
  %v202 = vunpack.c.h.b16 %v93
  %v203 = vunpack.c.l.b16 %v94
  %v204 = vunpack.c.h.b16 %v94
  %v205 = vunpack.c.l.b16 %v95
  %v206 = vunpack.c.h.b16 %v95
  %v207 = vunpack.c.l.b16 %v96
  %v208 = vunpack.c.h.b16 %v96
  %v209 = vunpack.c.l.b16 %v97
  %v210 = vunpack.c.h.b16 %v97
  %v211 = vunpack.c.l.b16 %v98
  %v212 = vunpack.c.h.b16 %v98
  %v213 = vunpack.c.l.b16 %v99
  %v214 = vunpack.c.h.b16 %v99
  %v215 = vunpack.c.l.b16 %v100
  %v216 = vunpack.c.h.b16 %v100
  %v217 = vunpack.c.l.b16 %v101
  %v218 = vunpack.c.h.b16 %v101
  %v219 = vunpack.c.l.b16 %v102
  %v220 = vunpack.c.h.b16 %v102
  %v221 = vpack.c.b16 %v161, %v157
  %v222 = vpack.c.b16 %v162, %v158
  %v223 = vpack.c.b16 %v163, %v159
  %v224 = vpack.c.b16 %v164, %v160
  %v225 = vpack.c.b16 %v169, %v165
  %v226 = vpack.c.b16 %v170, %v166
  %v227 = vpack.c.b16 %v171, %v167
  %v228 = vpack.c.b16 %v172, %v168
  %v229 = vpack.c.b16 %v177, %v173
  %v230 = vpack.c.b16 %v178, %v174
  %v231 = vpack.c.b16 %v179, %v175
  %v232 = vpack.c.b16 %v180, %v176
  %v233 = vpack.c.b16 %v185, %v181
  %v234 = vpack.c.b16 %v186, %v182
  %v235 = vpack.c.b16 %v187, %v183
  %v236 = vpack.c.b16 %v188, %v184
  %v237 = vpack.c.b16 %v193, %v189
  %v238 = vpack.c.b16 %v194, %v190
  %v239 = vpack.c.b16 %v195, %v191
  %v240 = vpack.c.b16 %v196, %v192
  %v241 = vpack.c.b16 %v201, %v197
  %v242 = vpack.c.b16 %v202, %v198
  %v243 = vpack.c.b16 %v203, %v199
  %v244 = vpack.c.b16 %v204, %v200
  %v245 = vpack.c.b16 %v209, %v205
  %v246 = vpack.c.b16 %v210, %v206
  %v247 = vpack.c.b16 %v211, %v207
  %v248 = vpack.c.b16 %v212, %v208
  %v249 = vpack.c.b16 %v217, %v213
  %v250 = vpack.c.b16 %v218, %v214
  %v251 = vpack.c.b16 %v219, %v215
  %v252 = vpack.c.b16 %v220, %v216
  %285 = vmatprep.subr.bf16.mxu0 %v222
  %286 = vmatpush1.bf16.msra.mxu0 %v221
  %287 = vmatprep.subr.bf16.mxu0 %v226
  %288 = vmatpush1.bf16.msra.mxu0 %v225
  %289 = vmatprep.subr.bf16.mxu0 %v230
  %290 = vmatpush1.bf16.msra.mxu0 %v229
  %291 = vmatprep.subr.bf16.mxu0 %v234
  %292 = vmatpush1.bf16.msra.mxu0 %v233
  %293 = vmatprep.subr.bf16.mxu0 %v238
  %294 = vmatpush1.bf16.msra.mxu0 %v237
  %295 = vmatprep.subr.bf16.mxu0 %v242
  %296 = vmatpush1.bf16.msra.mxu0 %v241
  %297 = vmatprep.subr.bf16.mxu0 %v246
  %298 = vmatpush1.bf16.msra.mxu0 %v245
  %299 = vmatprep.subr.bf16.mxu0 %v250
  %300 = vmatpush1.bf16.msra.mxu0 %v249
  %301 = vmatprep.subr.bf16.mxu0 0
  %302 = vmatpush1.bf16.msra.mxu0 0
  %303 = vmatprep.subr.bf16.mxu0 0
  %304 = vmatpush1.bf16.msra.mxu0 0
  %305 = vmatprep.subr.bf16.mxu0 0
  %306 = vmatpush1.bf16.msra.mxu0 0
  %307 = vmatprep.subr.bf16.mxu0 0
  %308 = vmatpush1.bf16.msra.mxu0 0
  %309 = vmatprep.subr.bf16.mxu0 0
  %310 = vmatpush1.bf16.msra.mxu0 0
  %311 = vmatprep.subr.bf16.mxu0 0
  %312 = vmatpush1.bf16.msra.mxu0 0
  %313 = vmatprep.subr.bf16.mxu0 0
  %314 = vmatpush1.bf16.msra.mxu0 0
  %315 = vmatprep.subr.bf16.mxu0 0
  %316 = vmatpush1.bf16.msra.mxu0 0
  %317 = vmatprep.mubr.bf16.mxu0 0
  %318 = vmatmul.mubr.bf16.gmra.mrb[0].mxu0 %v70
  %v319 = vpop.f32.mrb[0].mxu0
  %v320 = vadd.f32 %v108, %v319
  %v321 = vpop.f32.mrb[0].mxu0
  %v322 = vadd.f32 %v112, %v321
  %v323 = vpop.f32.mrb[0].mxu0
  %v324 = vadd.f32 %v108, %v323
  %v325 = vpop.f32.mrb[0].mxu0
  %v326 = vadd.f32 %v112, %v325
  %327 = vdwg.mxu0
  %328 = vmatprep.subr.bf16.mxu0 %v224
  %329 = vmatpush1.bf16.msra.mxu0 %v223
  %330 = vmatprep.subr.bf16.mxu0 %v228
  %331 = vmatpush1.bf16.msra.mxu0 %v227
  %332 = vmatprep.subr.bf16.mxu0 %v232
  %333 = vmatpush1.bf16.msra.mxu0 %v231
  %334 = vmatprep.subr.bf16.mxu0 %v236
  %335 = vmatpush1.bf16.msra.mxu0 %v235
  %336 = vmatprep.subr.bf16.mxu0 %v240
  %337 = vmatpush1.bf16.msra.mxu0 %v239
  %338 = vmatprep.subr.bf16.mxu0 %v244
  %339 = vmatpush1.bf16.msra.mxu0 %v243
  %340 = vmatprep.subr.bf16.mxu0 %v248
  %341 = vmatpush1.bf16.msra.mxu0 %v247
  %342 = vmatprep.subr.bf16.mxu0 %v252
  %343 = vmatpush1.bf16.msra.mxu0 %v251
  %344 = vmatprep.subr.bf16.mxu0 0
  %345 = vmatpush1.bf16.msra.mxu0 0
  %346 = vmatprep.subr.bf16.mxu0 0
  %347 = vmatpush1.bf16.msra.mxu0 0
  %348 = vmatprep.subr.bf16.mxu0 0
  %349 = vmatpush1.bf16.msra.mxu0 0
  %350 = vmatprep.subr.bf16.mxu0 0
  %351 = vmatpush1.bf16.msra.mxu0 0
  %352 = vmatprep.subr.bf16.mxu0 0
  %353 = vmatpush1.bf16.msra.mxu0 0
  %354 = vmatprep.subr.bf16.mxu0 0
  %355 = vmatpush1.bf16.msra.mxu0 0
  %356 = vmatprep.subr.bf16.mxu0 0
  %357 = vmatpush1.bf16.msra.mxu0 0
  %358 = vmatprep.subr.bf16.mxu0 0
  %359 = vmatpush1.bf16.msra.mxu0 0
  %360 = vmatprep.mubr.bf16.mxu0 0
  %361 = vmatmul.mubr.bf16.gmra.mrb[0].mxu0 %v70
  %v362 = vpop.f32.mrb[0].mxu0
  %v363 = vadd.f32 %v116, %v362
  %v364 = vpop.f32.mrb[0].mxu0
  %v365 = vadd.f32 %v120, %v364
  %v366 = vpop.f32.mrb[0].mxu0
  %v367 = vadd.f32 %v116, %v366
  %v368 = vpop.f32.mrb[0].mxu0
  %v369 = vadd.f32 %v120, %v368
  %370 = vdwg.mxu0
  %v371 = vmax.f32 %v320, 0.0
  %v372 = vmax.f32 %v322, 0.0
  %v373 = vmax.f32 %v363, 0.0
  %v374 = vmax.f32 %v365, 0.0
  %v375 = vmax.f32 %v324, 0.0
  %v376 = vmax.f32 %v326, 0.0
  %v377 = vmax.f32 %v367, 0.0
  %v378 = vmax.f32 %v369, 0.0
  %v379 = vpack.c.bf16 %v375, %v371
  %v380 = vpack.c.bf16 %v376, %v372
  %v381 = vpack.c.bf16 %v377, %v373
  %v382 = vpack.c.bf16 %v378, %v374
  %v383 = vld [vmem:[%s5] sm:$0xf]
  %v384 = vld [vmem:[%s5 + $0x4] sm:$0xf]
  %v385 = vld [vmem:[%s5 + $0x8] sm:$0xf]
  %v386 = vld [vmem:[%s5 + $0xc] sm:$0xf]
  %v387 = vld [vmem:[%s5 + $0x10] sm:$0xf]
  %v388 = vld [vmem:[%s5 + $0x14] sm:$0xf]
  %v389 = vld [vmem:[%s5 + $0x18] sm:$0xf]
  %v390 = vld [vmem:[%s5 + $0x1c] sm:$0xf]
  %v391 = vld [vmem:[%s5 + $0x20] sm:$0xf]
  %v392 = vld [vmem:[%s5 + $0x24] sm:$0xf]
  %v393 = vld [vmem:[%s5 + $0x28] sm:$0xf]
  %v394 = vld [vmem:[%s5 + $0x2c] sm:$0xf]
  %v395 = vld [vmem:[%s5 + $0x30] sm:$0xf]
  %v396 = vld [vmem:[%s5 + $0x34] sm:$0xf]
  %v397 = vld [vmem:[%s5 + $0x38] sm:$0xf]
  %v398 = vld [vmem:[%s5 + $0x3c] sm:$0xf]
  %v399 = vld [vmem:[%s5 + $0x40] sm:$0xf]
  %v400 = vld [vmem:[%s5 + $0x44] sm:$0xf]
  %v401 = vld [vmem:[%s5 + $0x48] sm:$0xf]
  %v402 = vld [vmem:[%s5 + $0x4c] sm:$0xf]
  %v403 = vld [vmem:[%s5 + $0x50] sm:$0xf]
  %v404 = vld [vmem:[%s5 + $0x54] sm:$0xf]
  %v405 = vld [vmem:[%s5 + $0x58] sm:$0xf]
  %v406 = vld [vmem:[%s5 + $0x5c] sm:$0xf]
  %v407 = vld [vmem:[%s5 + $0x60] sm:$0xf]
  %v408 = vld [vmem:[%s5 + $0x64] sm:$0xf]
  %v409 = vld [vmem:[%s5 + $0x68] sm:$0xf]
  %v410 = vld [vmem:[%s5 + $0x6c] sm:$0xf]
  %v411 = vld [vmem:[%s5 + $0x70] sm:$0xf]
  %v412 = vld [vmem:[%s5 + $0x74] sm:$0xf]
  %v413 = vld [vmem:[%s5 + $0x78] sm:$0xf]
  %v414 = vld [vmem:[%s5 + $0x7c] sm:$0xf]
  %v415 = vld [vmem:[%s5 + $0x80] sm:$0xf]
  %v416 = vld [vmem:[%s5 + $0x84] sm:$0xf]
  %v417 = vld [vmem:[%s5 + $0x88] sm:$0xf]
  %v418 = vld [vmem:[%s5 + $0x8c] sm:$0xf]
  %v419 = vld [vmem:[%s5 + $0x90] sm:$0xf]
  %v420 = vld [vmem:[%s5 + $0x94] sm:$0xf]
  %v421 = vld [vmem:[%s5 + $0x98] sm:$0xf]
  %v422 = vld [vmem:[%s5 + $0x9c] sm:$0xf]
  %v423 = vld [vmem:[%s5 + $0xa0] sm:$0xf]
  %v424 = vld [vmem:[%s5 + $0xa4] sm:$0xf]
  %v425 = vld [vmem:[%s5 + $0xa8] sm:$0xf]
  %v426 = vld [vmem:[%s5 + $0xac] sm:$0xf]
  %v427 = vld [vmem:[%s5 + $0xb0] sm:$0xf]
  %v428 = vld [vmem:[%s5 + $0xb4] sm:$0xf]
  %v429 = vld [vmem:[%s5 + $0xb8] sm:$0xf]
  %v430 = vld [vmem:[%s5 + $0xbc] sm:$0xf]
  %v431 = vld [vmem:[%s5 + $0xc0] sm:$0xf]
  %v432 = vld [vmem:[%s5 + $0xc4] sm:$0xf]
  %v433 = vld [vmem:[%s5 + $0xc8] sm:$0xf]
  %v434 = vld [vmem:[%s5 + $0xcc] sm:$0xf]
  %v435 = vld [vmem:[%s5 + $0xd0] sm:$0xf]
  %v436 = vld [vmem:[%s5 + $0xd4] sm:$0xf]
  %v437 = vld [vmem:[%s5 + $0xd8] sm:$0xf]
  %v438 = vld [vmem:[%s5 + $0xdc] sm:$0xf]
  %v439 = vld [vmem:[%s5 + $0xe0] sm:$0xf]
  %v440 = vld [vmem:[%s5 + $0xe4] sm:$0xf]
  %v441 = vld [vmem:[%s5 + $0xe8] sm:$0xf]
  %v442 = vld [vmem:[%s5 + $0xec] sm:$0xf]
  %v443 = vld [vmem:[%s5 + $0xf0] sm:$0xf]
  %v444 = vld [vmem:[%s5 + $0xf4] sm:$0xf]
  %v445 = vld [vmem:[%s5 + $0xf8] sm:$0xf]
  %v446 = vld [vmem:[%s5 + $0xfc] sm:$0xf]
  %v447 = vld [vmem:[%s6] sm:$0x1]
  %v449 = vlaneseq
  %v450 = vshrl.u32 %v449, 7
  %v451 = vsub.s32 0, %v450
  %v452 = vrot.slane %v447, %v451
  %v518 = vunpack.c.l.b16 %v383
  %v519 = vunpack.c.l.b16 %v384
  %v520 = vunpack.c.l.b16 %v385
  %v521 = vunpack.c.l.b16 %v386
  %v522 = vunpack.c.l.b16 %v387
  %v523 = vunpack.c.l.b16 %v388
  %v524 = vunpack.c.l.b16 %v389
  %v525 = vunpack.c.l.b16 %v390
  %v526 = vunpack.c.l.b16 %v391
  %v527 = vunpack.c.l.b16 %v392
  %v528 = vunpack.c.l.b16 %v393
  %v529 = vunpack.c.l.b16 %v394
  %v530 = vunpack.c.l.b16 %v395
  %v531 = vunpack.c.l.b16 %v396
  %v532 = vunpack.c.l.b16 %v397
  %v533 = vunpack.c.l.b16 %v398
  %v534 = vunpack.c.l.b16 %v399
  %v535 = vunpack.c.l.b16 %v400
  %v536 = vunpack.c.l.b16 %v401
  %v537 = vunpack.c.l.b16 %v402
  %v538 = vunpack.c.l.b16 %v403
  %v539 = vunpack.c.l.b16 %v404
  %v540 = vunpack.c.l.b16 %v405
  %v541 = vunpack.c.l.b16 %v406
  %v542 = vunpack.c.l.b16 %v407
  %v543 = vunpack.c.l.b16 %v408
  %v544 = vunpack.c.l.b16 %v409
  %v545 = vunpack.c.l.b16 %v410
  %v546 = vunpack.c.l.b16 %v411
  %v547 = vunpack.c.l.b16 %v412
  %v548 = vunpack.c.l.b16 %v413
  %v549 = vunpack.c.l.b16 %v414
  %v550 = vunpack.c.l.b16 %v415
  %v551 = vunpack.c.l.b16 %v416
  %v552 = vunpack.c.l.b16 %v417
  %v553 = vunpack.c.l.b16 %v418
  %v554 = vunpack.c.l.b16 %v419
  %v555 = vunpack.c.l.b16 %v420
  %v556 = vunpack.c.l.b16 %v421
  %v557 = vunpack.c.l.b16 %v422
  %v558 = vunpack.c.l.b16 %v423
  %v559 = vunpack.c.l.b16 %v424
  %v560 = vunpack.c.l.b16 %v425
  %v561 = vunpack.c.l.b16 %v426
  %v562 = vunpack.c.l.b16 %v427
  %v563 = vunpack.c.l.b16 %v428
  %v564 = vunpack.c.l.b16 %v429
  %v565 = vunpack.c.l.b16 %v430
  %v566 = vunpack.c.l.b16 %v431
  %v567 = vunpack.c.l.b16 %v432
  %v568 = vunpack.c.l.b16 %v433
  %v569 = vunpack.c.l.b16 %v434
  %v570 = vunpack.c.l.b16 %v435
  %v571 = vunpack.c.l.b16 %v436
  %v572 = vunpack.c.l.b16 %v437
  %v573 = vunpack.c.l.b16 %v438
  %v574 = vunpack.c.l.b16 %v439
  %v575 = vunpack.c.l.b16 %v440
  %v576 = vunpack.c.l.b16 %v441
  %v577 = vunpack.c.l.b16 %v442
  %v578 = vunpack.c.l.b16 %v443
  %v579 = vunpack.c.l.b16 %v444
  %v580 = vunpack.c.l.b16 %v445
  %v581 = vunpack.c.l.b16 %v446
  %v582 = vpack.c.b16 %v519, %v518
  %v583 = vpack.c.b16 %v521, %v520
  %v584 = vpack.c.b16 %v523, %v522
  %v585 = vpack.c.b16 %v525, %v524
  %v586 = vpack.c.b16 %v527, %v526
  %v587 = vpack.c.b16 %v529, %v528
  %v588 = vpack.c.b16 %v531, %v530
  %v589 = vpack.c.b16 %v533, %v532
  %v590 = vpack.c.b16 %v535, %v534
  %v591 = vpack.c.b16 %v537, %v536
  %v592 = vpack.c.b16 %v539, %v538
  %v593 = vpack.c.b16 %v541, %v540
  %v594 = vpack.c.b16 %v543, %v542
  %v595 = vpack.c.b16 %v545, %v544
  %v596 = vpack.c.b16 %v547, %v546
  %v597 = vpack.c.b16 %v549, %v548
  %v598 = vpack.c.b16 %v551, %v550
  %v599 = vpack.c.b16 %v553, %v552
  %v600 = vpack.c.b16 %v555, %v554
  %v601 = vpack.c.b16 %v557, %v556
  %v602 = vpack.c.b16 %v559, %v558
  %v603 = vpack.c.b16 %v561, %v560
  %v604 = vpack.c.b16 %v563, %v562
  %v605 = vpack.c.b16 %v565, %v564
  %v606 = vpack.c.b16 %v567, %v566
  %v607 = vpack.c.b16 %v569, %v568
  %v608 = vpack.c.b16 %v571, %v570
  %v609 = vpack.c.b16 %v573, %v572
  %v610 = vpack.c.b16 %v575, %v574
  %v611 = vpack.c.b16 %v577, %v576
  %v612 = vpack.c.b16 %v579, %v578
  %v613 = vpack.c.b16 %v581, %v580
  %646 = vmatprep.subr.bf16.mxu0 0
  %647 = vmatpush1.bf16.msra.mxu0 %v582
  %648 = vmatprep.subr.bf16.mxu0 0
  %649 = vmatpush1.bf16.msra.mxu0 %v583
  %650 = vmatprep.subr.bf16.mxu0 0
  %651 = vmatpush1.bf16.msra.mxu0 %v584
  %652 = vmatprep.subr.bf16.mxu0 0
  %653 = vmatpush1.bf16.msra.mxu0 %v585
  %654 = vmatprep.subr.bf16.mxu0 0
  %655 = vmatpush1.bf16.msra.mxu0 %v586
  %656 = vmatprep.subr.bf16.mxu0 0
  %657 = vmatpush1.bf16.msra.mxu0 %v587
  %658 = vmatprep.subr.bf16.mxu0 0
  %659 = vmatpush1.bf16.msra.mxu0 %v588
  %660 = vmatprep.subr.bf16.mxu0 0
  %661 = vmatpush1.bf16.msra.mxu0 %v589
  %662 = vmatprep.subr.bf16.mxu0 0
  %663 = vmatpush1.bf16.msra.mxu0 %v590
  %664 = vmatprep.subr.bf16.mxu0 0
  %665 = vmatpush1.bf16.msra.mxu0 %v591
  %666 = vmatprep.subr.bf16.mxu0 0
  %667 = vmatpush1.bf16.msra.mxu0 %v592
  %668 = vmatprep.subr.bf16.mxu0 0
  %669 = vmatpush1.bf16.msra.mxu0 %v593
  %670 = vmatprep.subr.bf16.mxu0 0
  %671 = vmatpush1.bf16.msra.mxu0 %v594
  %672 = vmatprep.subr.bf16.mxu0 0
  %673 = vmatpush1.bf16.msra.mxu0 %v595
  %674 = vmatprep.subr.bf16.mxu0 0
  %675 = vmatpush1.bf16.msra.mxu0 %v596
  %676 = vmatprep.subr.bf16.mxu0 0
  %677 = vmatpush1.bf16.msra.mxu0 %v597
  %678 = vmatprep.mubr.bf16.mxu0 %v380
  %679 = vmatmul.mubr.bf16.gmra.mrb[0].mxu0 %v379
  %v680 = vpop.f32.mrb[0].mxu0
  %v681 = vadd.f32 %v452, %v680
  %v682 = vpop.f32.mrb[0].mxu0
  %v683 = vpop.f32.mrb[0].mxu0
  %v684 = vadd.f32 %v452, %v683
  %v685 = vpop.f32.mrb[0].mxu0
  %686 = vdwg.mxu0
  %687 = vmatprep.subr.bf16.mxu0 0
  %688 = vmatpush1.bf16.msra.mxu0 %v598
  %689 = vmatprep.subr.bf16.mxu0 0
  %690 = vmatpush1.bf16.msra.mxu0 %v599
  %691 = vmatprep.subr.bf16.mxu0 0
  %692 = vmatpush1.bf16.msra.mxu0 %v600
  %693 = vmatprep.subr.bf16.mxu0 0
  %694 = vmatpush1.bf16.msra.mxu0 %v601
  %695 = vmatprep.subr.bf16.mxu0 0
  %696 = vmatpush1.bf16.msra.mxu0 %v602
  %697 = vmatprep.subr.bf16.mxu0 0
  %698 = vmatpush1.bf16.msra.mxu0 %v603
  %699 = vmatprep.subr.bf16.mxu0 0
  %700 = vmatpush1.bf16.msra.mxu0 %v604
  %701 = vmatprep.subr.bf16.mxu0 0
  %702 = vmatpush1.bf16.msra.mxu0 %v605
  %703 = vmatprep.subr.bf16.mxu0 0
  %704 = vmatpush1.bf16.msra.mxu0 %v606
  %705 = vmatprep.subr.bf16.mxu0 0
  %706 = vmatpush1.bf16.msra.mxu0 %v607
  %707 = vmatprep.subr.bf16.mxu0 0
  %708 = vmatpush1.bf16.msra.mxu0 %v608
  %709 = vmatprep.subr.bf16.mxu0 0
  %710 = vmatpush1.bf16.msra.mxu0 %v609
  %711 = vmatprep.subr.bf16.mxu0 0
  %712 = vmatpush1.bf16.msra.mxu0 %v610
  %713 = vmatprep.subr.bf16.mxu0 0
  %714 = vmatpush1.bf16.msra.mxu0 %v611
  %715 = vmatprep.subr.bf16.mxu0 0
  %716 = vmatpush1.bf16.msra.mxu0 %v612
  %717 = vmatprep.subr.bf16.mxu0 0
  %718 = vmatpush1.bf16.msra.mxu0 %v613
  %719 = vmatprep.mubr.bf16.mxu0 %v382
  %720 = vmatmul.mubr.bf16.gmra.mrb[0].mxu0 %v381
  %v721 = vpop.f32.mrb[0].mxu0
  %v722 = vadd.f32 %v681, %v721
  %v723 = vpop.f32.mrb[0].mxu0
  %v724 = vpop.f32.mrb[0].mxu0
  %v725 = vadd.f32 %v684, %v724
  %v726 = vpop.f32.mrb[0].mxu0
  %727 = vdwg.mxu0
  %v728 = vadd.f32 %v27, %v722
  %v729 = vadd.f32 %v28, %v725
  %730 = vst [vmem:[%s7] sm:$0xff] %v728
  %731 = vst [vmem:[%s7 + $0x8] sm:$0xff] %v729
  // Predicated region
  $region30: #{transformer_forward.14} parent=0 // pred_check
    _
  $region31: #{transformer_forward.14} parent=0 // pred_check_branch
    %733 = sbr.rel (0) target = $region33
  $region32: #{transformer_forward.14} parent=0 // pred_region
    _
  $region33: #{transformer_forward.14} parent=0 // pred_fallthru
    _
  // Predicated region
  $region34: #{transformer_forward.14} parent=0 // pred_check
    _
  $region35: #{transformer_forward.14} parent=0 // pred_check_branch
    %735 = sbr.rel (0) target = $region37
  $region36: #{transformer_forward.14} parent=0 // pred_region
    _
  $region37: #{transformer_forward.14} parent=0 // pred_fallthru
    _

// kernel: transformer_forward.21
$region0: #{transformer_forward.21}
  #allocation0 [shape = 'u32[]', space=smem, size = 0x4, offset = 0x4, fixed_abs, tag = 'smem constant byte address 0x4 - core index']
  #allocation1 [shape = 'u32[144,128]{1,0:T(1,128)}', space=vmem, size = 0x12000, scoped, tag = 'internal scratch']
  %s0 = inlined_call_operand.vmem [shape: f32[16,128], index: 0, kind: input, shape index: {}]
  %s1 = inlined_call_operand.vmem [shape: f32[1,128], index: 1, kind: input, shape index: {}]
  %s2 = inlined_call_operand.vmem [shape: f32[1,128], index: 2, kind: input, shape index: {}]
  %s3 = inlined_call_operand.vmem [shape: bf16[128,128], index: 3, kind: input, shape index: {}]
  %s4 = inlined_call_operand.vmem [shape: f32[1,128], index: 4, kind: input, shape index: {}]
  %s5 = inlined_call_operand.hbm [shape: f32[16,128], index: 5, kind: output, shape index: {}]
  %s6 = sld [smem:[#allocation0]]
  $region30: #{transformer_forward.21} parent=0
    _
  %s8 = ssub.s32 1, %s6
  %s9 = scalar_select 0, %s8, %s6
  $region1: #{transformer_forward.21} parent=0
    #allocation2 [shape = 'u8[8192]{0}', space=vmem, size = 0x2000, scoped, tag = 'output window, operand 0, single buffered']
    #allocation3 [shape = 's32[1]{0}', space=sflag, size = 0x4, scoped, tag = 'scoped memory for transformer_forward.21']
    %10 = vsyncpa [#allocation3], 0
    // Predicated region
    $region2: #{transformer_forward.21} parent=1 // pred_check
      _
    $region3: #{transformer_forward.21} parent=1 // pred_check_branch
      %12 = sbr.rel (0) target = $region5
    $region4: #{transformer_forward.21} parent=1 // pred_region
      _
    $region5: #{transformer_forward.21} parent=1 // pred_fallthru
      _
    // Predicated region
    $region6: #{transformer_forward.21} parent=1 // pred_check
      _
    $region7: #{transformer_forward.21} parent=1 // pred_check_branch
      %14 = sbr.rel (0) target = $region9
    $region8: #{transformer_forward.21} parent=1 // pred_region
      _
    $region9: #{transformer_forward.21} parent=1 // pred_fallthru
      _
    // Predicated region
    $region10: #{transformer_forward.21} parent=1 // pred_check
      _
    $region11: #{transformer_forward.21} parent=1 // pred_check_branch
      %16 = sbr.rel (0) target = $region13
    $region12: #{transformer_forward.21} parent=1 // pred_region
      _
    $region13: #{transformer_forward.21} parent=1 // pred_fallthru
      _
    // Predicated region
    $region14: #{transformer_forward.21} parent=1 // pred_check
      _
    $region15: #{transformer_forward.21} parent=1 // pred_check_branch
      %18 = sbr.rel (0) target = $region17
    $region16: #{transformer_forward.21} parent=1 // pred_region
      _
    $region17: #{transformer_forward.21} parent=1 // pred_fallthru
      _
    // Predicated region
    $region18: #{transformer_forward.21} parent=1 // pred_check
      _
    $region19: #{transformer_forward.21} parent=1 // pred_check_branch
      %20 = sbr.rel (0) target = $region21
    $region20: #{transformer_forward.21} parent=1 // pred_region
      _
    $region21: #{transformer_forward.21} parent=1 // pred_fallthru
      _
    %v22 = vld [vmem:[%s0] sm:$0xff]
    %v23 = vld [vmem:[%s0 + $0x8] sm:$0xff]
    %v24 = vld [vmem:[%s1] sm:$0x1]
    %v25 = vld [vmem:[%s2] sm:$0x1]
    %26 = vadd.xlane.f32.xlu0 %v22
    %v27 = vpop.xlane.xlu0 %26
    %28 = vadd.xlane.f32.xlu0 %v23
    %v29 = vpop.xlane.xlu0 %28
    %v30 = vrcp.pop 128.0
    %v31 = vmul.f32 %v27, %v30
    %v32 = vmul.f32 %v29, %v30
    %v33 = vsub.f32 %v22, %v31
    %v34 = vsub.f32 %v23, %v32
    %v35 = vmul.f32 %v33, %v33
    %v36 = vmul.f32 %v34, %v34
    %37 = vadd.xlane.f32.xlu0 %v35
    %v38 = vpop.xlane.xlu0 %37
    %39 = vadd.xlane.f32.xlu0 %v36
    %v40 = vpop.xlane.xlu0 %39
    %v41 = vmul.f32 %v38, %v30
    %v42 = vmul.f32 %v40, %v30
    %v43 = vadd.f32 %v41, 1e-05
    %v44 = vadd.f32 %v42, 1e-05
    %v45 = vrsqrt.pop %v43
    %v46 = vrsqrt.pop %v44
    %v47 = vmul.f32 %v33, %v45
    %v48 = vmul.f32 %v34, %v46
    %v50 = vlaneseq
    %v51 = vshrl.u32 %v50, 7
    %v52 = vsub.s32 0, %v51
    %v53 = vrot.slane %v24, %v52
    %v55 = vmul.f32 %v47, %v53
    %v56 = vmul.f32 %v48, %v53
    %v58 = vlaneseq
    %v59 = vshrl.u32 %v58, 7
    %v60 = vsub.s32 0, %v59
    %v61 = vrot.slane %v25, %v60
    %v63 = vadd.f32 %v55, %v61
    %v64 = vadd.f32 %v56, %v61
    %v65 = vpack.c.bf16 %v64, %v63
    %v66 = vld [vmem:[%s3] sm:$0xf]
    %v67 = vld [vmem:[%s3 + $0x4] sm:$0xf]
    %v68 = vld [vmem:[%s3 + $0x8] sm:$0xf]
    %v69 = vld [vmem:[%s3 + $0xc] sm:$0xf]
    %v70 = vld [vmem:[%s3 + $0x10] sm:$0xf]
    %v71 = vld [vmem:[%s3 + $0x14] sm:$0xf]
    %v72 = vld [vmem:[%s3 + $0x18] sm:$0xf]
    %v73 = vld [vmem:[%s3 + $0x1c] sm:$0xf]
    %v74 = vld [vmem:[%s3 + $0x20] sm:$0xf]
    %v75 = vld [vmem:[%s3 + $0x24] sm:$0xf]
    %v76 = vld [vmem:[%s3 + $0x28] sm:$0xf]
    %v77 = vld [vmem:[%s3 + $0x2c] sm:$0xf]
    %v78 = vld [vmem:[%s3 + $0x30] sm:$0xf]
    %v79 = vld [vmem:[%s3 + $0x34] sm:$0xf]
    %v80 = vld [vmem:[%s3 + $0x38] sm:$0xf]
    %v81 = vld [vmem:[%s3 + $0x3c] sm:$0xf]
    %v82 = vld [vmem:[%s4] sm:$0x1]
    %v84 = vlaneseq
    %v85 = vshrl.u32 %v84, 7
    %v86 = vsub.s32 0, %v85
    %v87 = vrot.slane %v82, %v86
    %v105 = vunpack.c.l.b16 %v66
    %v106 = vunpack.c.l.b16 %v67
    %v107 = vunpack.c.l.b16 %v68
    %v108 = vunpack.c.l.b16 %v69
    %v109 = vunpack.c.l.b16 %v70
    %v110 = vunpack.c.l.b16 %v71
    %v111 = vunpack.c.l.b16 %v72
    %v112 = vunpack.c.l.b16 %v73
    %v113 = vunpack.c.l.b16 %v74
    %v114 = vunpack.c.l.b16 %v75
    %v115 = vunpack.c.l.b16 %v76
    %v116 = vunpack.c.l.b16 %v77
    %v117 = vunpack.c.l.b16 %v78
    %v118 = vunpack.c.l.b16 %v79
    %v119 = vunpack.c.l.b16 %v80
    %v120 = vunpack.c.l.b16 %v81
    %v121 = vpack.c.b16 %v106, %v105
    %v122 = vpack.c.b16 %v108, %v107
    %v123 = vpack.c.b16 %v110, %v109
    %v124 = vpack.c.b16 %v112, %v111
    %v125 = vpack.c.b16 %v114, %v113
    %v126 = vpack.c.b16 %v116, %v115
    %v127 = vpack.c.b16 %v118, %v117
    %v128 = vpack.c.b16 %v120, %v119
    %137 = vmatprep.subr.bf16.mxu0 0
    %138 = vmatpush1.bf16.msra.mxu0 %v121
    %139 = vmatprep.subr.bf16.mxu0 0
    %140 = vmatpush1.bf16.msra.mxu0 %v122
    %141 = vmatprep.subr.bf16.mxu0 0
    %142 = vmatpush1.bf16.msra.mxu0 %v123
    %143 = vmatprep.subr.bf16.mxu0 0
    %144 = vmatpush1.bf16.msra.mxu0 %v124
    %145 = vmatprep.subr.bf16.mxu0 0
    %146 = vmatpush1.bf16.msra.mxu0 %v125
    %147 = vmatprep.subr.bf16.mxu0 0
    %148 = vmatpush1.bf16.msra.mxu0 %v126
    %149 = vmatprep.subr.bf16.mxu0 0
    %150 = vmatpush1.bf16.msra.mxu0 %v127
    %151 = vmatprep.subr.bf16.mxu0 0
    %152 = vmatpush1.bf16.msra.mxu0 %v128
    %153 = vmatprep.subr.bf16.mxu0 0
    %154 = vmatpush1.bf16.msra.mxu0 0
    %155 = vmatprep.subr.bf16.mxu0 0
    %156 = vmatpush1.bf16.msra.mxu0 0
    %157 = vmatprep.subr.bf16.mxu0 0
    %158 = vmatpush1.bf16.msra.mxu0 0
    %159 = vmatprep.subr.bf16.mxu0 0
    %160 = vmatpush1.bf16.msra.mxu0 0
    %161 = vmatprep.subr.bf16.mxu0 0
    %162 = vmatpush1.bf16.msra.mxu0 0
    %163 = vmatprep.subr.bf16.mxu0 0
    %164 = vmatpush1.bf16.msra.mxu0 0
    %165 = vmatprep.subr.bf16.mxu0 0
    %166 = vmatpush1.bf16.msra.mxu0 0
    %167 = vmatprep.subr.bf16.mxu0 0
    %168 = vmatpush1.bf16.msra.mxu0 0
    %169 = vmatprep.mubr.bf16.mxu0 0
    %170 = vmatmul.mubr.bf16.gmra.mrb[0].mxu0 %v65
    %v171 = vpop.f32.mrb[0].mxu0
    %v172 = vadd.f32 %v87, %v171
    %v173 = vpop.f32.mrb[0].mxu0
    %v174 = vpop.f32.mrb[0].mxu0
    %v175 = vadd.f32 %v87, %v174
    %v176 = vpop.f32.mrb[0].mxu0
    %177 = vdwg.mxu0
    %178 = vmax.xlane.f32.xlu0 %v172
    %v179 = vpop.xlane.xlu0 %178
    %180 = vmax.xlane.f32.xlu0 %v175
    %v181 = vpop.xlane.xlu0 %180
    %v182 = vsub.f32 %v172, %v179
    %v183 = vsub.f32 %v175, %v181
    %v184 = vmul.f32 %v182, 1.442695
    %v185 = vpow.pop %v184
    %v186 = vmul.f32 %v183, 1.442695
    %v187 = vpow.pop %v186
    %188 = vadd.xlane.f32.xlu0 %v185
    %v189 = vpop.xlane.xlu0 %188
    %190 = vadd.xlane.f32.xlu0 %v187
    %v191 = vpop.xlane.xlu0 %190
    %v192 = vlog2.pop %v189
    %v193 = vmul.f32 %v192, 0.6931472
    %v194 = vlog2.pop %v191
    %v195 = vmul.f32 %v194, 0.6931472
    %v196 = vsub.f32 %v182, %v193
    %v197 = vsub.f32 %v183, %v195
    %198 = vst [vmem:[#allocation2] sm:$0xff] %v196
    %199 = vst [vmem:[#allocation2 + $0x8] sm:$0xff] %v197
    // Predicated region
    $region22: #{transformer_forward.21} parent=1 // pred_check
      _
    $region23: #{transformer_forward.21} parent=1 // pred_check_branch
      %201 = sbr.rel (0) target = $region25
    $region24: #{transformer_forward.21} parent=1 // pred_region
      %s203 = ssub.s32 256, 256
      %204 = vsyncadd [#allocation3], %s203
      %s205 = sshll.u32 [#allocation2], 4
      %s206 = int_to_ptr.vmem [resolvable:$true] %s205
      %211 = dma.vmem_to_hbm [thread:$0]  %s206, 256, %s5, [#allocation3], 128, 128, 8
    $region25: #{transformer_forward.21} parent=1 // pred_fallthru
      _
    // Predicated region
    $region26: #{transformer_forward.21} parent=1 // pred_check
      _
    $region27: #{transformer_forward.21} parent=1 // pred_check_branch
      %213 = sbr.rel (0) target = $region29
    $region28: #{transformer_forward.21} parent=1 // pred_region
      %214 = dma.done [#allocation3], 256
    $region29: #{transformer_forward.21} parent=1 // pred_fallthru
      _
    %215 = vsyncpa [#allocation3], 1

// kernel: transformer_forward.15
$region0: #{transformer_forward.15}
  #allocation0 [shape = 'u32[]', space=smem, size = 0x4, offset = 0x4, fixed_abs, tag = 'smem constant byte address 0x4 - core index']
  #allocation1 [shape = 'u32[144,128]{1,0:T(1,128)}', space=vmem, size = 0x12000, scoped, tag = 'internal scratch']
  #allocation2 [shape = 's32[1]{0}', space=sflag, size = 0x4, scoped, tag = 'scoped memory for transformer_forward.15']
  #allocation3 [shape = 'u8[512]{0}', space=smem, size = 0x200, scoped, tag = 'prefetched SMEM operand 0']
  %s0 = inlined_call_operand.vmem [shape: s32[2], index: 0, kind: input, shape index: {}]
  %s1 = inlined_call_operand.vmem [shape: f32[2,8,128], index: 1, kind: input, shape index: {}]
  %s2 = inlined_call_operand.vmem [shape: f32[1,128], index: 2, kind: input, shape index: {}]
  %s3 = inlined_call_operand.vmem [shape: f32[1,128], index: 3, kind: input, shape index: {}]
  %s4 = inlined_call_operand.vmem [shape: bf16[128,128], index: 4, kind: input, shape index: {}]
  %s5 = inlined_call_operand.vmem [shape: bf16[128,128], index: 5, kind: input, shape index: {}]
  %s6 = inlined_call_operand.vmem [shape: f32[2,8,128], index: 6, kind: output, shape index: {}]
  %s7 = sld [smem:[#allocation0]]
  $region53: #{transformer_forward.15} parent=0
    _
  %s9 = ssub.s32 1, %s7
  %s10 = scalar_select 0, %s9, %s7
  %s11 = sshll.u32 %s0, 4
  %s12 = int_to_ptr.vmem [resolvable:$true] %s11
  %14 = dma.vmem_to_smem %s12, 16, [#allocation3], [#allocation2]
  %15 = dma.done [#allocation2], 16
  %16 = sfence
  loop: start=0, step=1, limit=4
  $region2: #{transformer_forward.15} parent=0 // loop_pre_header
    _
  $region3: #{transformer_forward.15} parent=0 // loop_header
    %s18 = sphi 0, %s22
    %p19 = scmp.ge.s32.totalorder %s18, 4
    %s28 = sphi 0, %s30
    %s31 = sphi 0, %s28
    %s32 = sphi 0, %s31
    %s48 = sphi 0, %s32
    %s52 = sphi 0, %s52
    %s54 = sphi 0, %s52
    %s55 = sphi 0, %s54
    %s69 = sphi 0, %s55
    %s73 = sphi 0, %s73
    %s75 = sphi 0, %s73
    %s76 = sphi 0, %s75
    %s90 = sphi 0, %s76
    %s94 = sphi 0, %s94
    %s96 = sphi 0, %s94
    %s97 = sphi 0, %s96
    %s111 = sphi 0, %s97
    %s115 = sphi 0, %s115
    %s117 = sphi 0, %s115
    %s118 = sphi 0, %s117
    %s132 = sphi 0, %s118
    %s138 = sphi 0, %s140
    %s141 = sphi 0, %s138
    %s142 = sphi 0, %s141
    %s158 = sphi 0, %s142
  $region4: #{transformer_forward.15} parent=0 // loop_header_branch
    %21 = sbr.rel (%p19) target = $region8
  $region5: #{transformer_forward.15} parent=0 // loop_body
    %s23 = ssub.s32 %s18, 1
    %s24 = ssub.s32 %s18, 2
    %s25 = sadd.s32 %s18, 1
    %s26 = ssub.s32 %s18, %s25
    %p27 = scmp.eq.s32.totalorder %s26, 0
    %s29 = sadd.s32 %s28, 1
    %s30 = scalar_select %p27, %s28, %s29
    %p33 = pneg %p27
    %p34 = scmp.eq.s32.totalorder %s18, 1
    %p35 = por %p33, %p34
    %p36 = scmp.ne.s32.totalorder %s28, %s31
    %p37 = scmp.eq.s32.totalorder %s18, 0
    %p38 = por %p36, %p37
    %p39 = scmp.ne.s32.totalorder %s28, %s31
    %p40 = scmp.eq.s32.totalorder %s23, 1
    %p41 = por %p39, %p40
    %p42 = scmp.ne.s32.totalorder %s31, %s32
    %p43 = scmp.eq.s32.totalorder %s23, 0
    %p44 = por %p42, %p43
    %p45 = scmp.ne.s32.totalorder %s31, %s32
    %p46 = scmp.eq.s32.totalorder %s24, 1
    %p47 = por %p45, %p46
    %p49 = scmp.ne.s32.totalorder %s32, %s48
    %p50 = scmp.eq.s32.totalorder %s24, 0
    %p51 = por %p49, %p50
    %s53 = sadd.s32 %s52, 1
    %p56 = scmp.eq.s32.totalorder %s18, 1
    %p57 = scmp.ne.s32.totalorder %s52, %s54
    %p58 = scmp.eq.s32.totalorder %s18, 0
    %p59 = por %p57, %p58
    %p60 = scmp.ne.s32.totalorder %s52, %s54
    %p61 = scmp.eq.s32.totalorder %s23, 1
    %p62 = por %p60, %p61
    %p63 = scmp.ne.s32.totalorder %s54, %s55
    %p64 = scmp.eq.s32.totalorder %s23, 0
    %p65 = por %p63, %p64
    %p66 = scmp.ne.s32.totalorder %s54, %s55
    %p67 = scmp.eq.s32.totalorder %s24, 1
    %p68 = por %p66, %p67
    %p70 = scmp.ne.s32.totalorder %s55, %s69
    %p71 = scmp.eq.s32.totalorder %s24, 0
    %p72 = por %p70, %p71
    %s74 = sadd.s32 %s73, 1
    %p77 = scmp.eq.s32.totalorder %s18, 1
    %p78 = scmp.ne.s32.totalorder %s73, %s75
    %p79 = scmp.eq.s32.totalorder %s18, 0
    %p80 = por %p78, %p79
    %p81 = scmp.ne.s32.totalorder %s73, %s75
    %p82 = scmp.eq.s32.totalorder %s23, 1
    %p83 = por %p81, %p82
    %p84 = scmp.ne.s32.totalorder %s75, %s76
    %p85 = scmp.eq.s32.totalorder %s23, 0
    %p86 = por %p84, %p85
    %p87 = scmp.ne.s32.totalorder %s75, %s76
    %p88 = scmp.eq.s32.totalorder %s24, 1
    %p89 = por %p87, %p88
    %p91 = scmp.ne.s32.totalorder %s76, %s90
    %p92 = scmp.eq.s32.totalorder %s24, 0
    %p93 = por %p91, %p92
    %s95 = sadd.s32 %s94, 1
    %p98 = scmp.eq.s32.totalorder %s18, 1
    %p99 = scmp.ne.s32.totalorder %s94, %s96
    %p100 = scmp.eq.s32.totalorder %s18, 0
    %p101 = por %p99, %p100
    %p102 = scmp.ne.s32.totalorder %s94, %s96
    %p103 = scmp.eq.s32.totalorder %s23, 1
    %p104 = por %p102, %p103
    %p105 = scmp.ne.s32.totalorder %s96, %s97
    %p106 = scmp.eq.s32.totalorder %s23, 0
    %p107 = por %p105, %p106
    %p108 = scmp.ne.s32.totalorder %s96, %s97
    %p109 = scmp.eq.s32.totalorder %s24, 1
    %p110 = por %p108, %p109
    %p112 = scmp.ne.s32.totalorder %s97, %s111
    %p113 = scmp.eq.s32.totalorder %s24, 0
    %p114 = por %p112, %p113
    %s116 = sadd.s32 %s115, 1
    %p119 = scmp.eq.s32.totalorder %s18, 1
    %p120 = scmp.ne.s32.totalorder %s115, %s117
    %p121 = scmp.eq.s32.totalorder %s18, 0
    %p122 = por %p120, %p121
    %p123 = scmp.ne.s32.totalorder %s115, %s117
    %p124 = scmp.eq.s32.totalorder %s23, 1
    %p125 = por %p123, %p124
    %p126 = scmp.ne.s32.totalorder %s117, %s118
    %p127 = scmp.eq.s32.totalorder %s23, 0
    %p128 = por %p126, %p127
    %p129 = scmp.ne.s32.totalorder %s117, %s118
    %p130 = scmp.eq.s32.totalorder %s24, 1
    %p131 = por %p129, %p130
    %p133 = scmp.ne.s32.totalorder %s118, %s132
    %p134 = scmp.eq.s32.totalorder %s24, 0
    %p135 = por %p133, %p134
    %s136 = ssub.s32 %s18, %s25
    %p137 = scmp.eq.s32.totalorder %s136, 0
    %s139 = sadd.s32 %s138, 1
    %s140 = scalar_select %p137, %s138, %s139
    %p143 = pneg %p137
    %p144 = scmp.eq.s32.totalorder %s18, 1
    %p145 = por %p143, %p144
    %p146 = scmp.ne.s32.totalorder %s138, %s141
    %p147 = scmp.eq.s32.totalorder %s18, 0
    %p148 = por %p146, %p147
    %p149 = scmp.ne.s32.totalorder %s138, %s141
    %p150 = scmp.eq.s32.totalorder %s23, 1
    %p151 = por %p149, %p150
    %p152 = scmp.ne.s32.totalorder %s141, %s142
    %p153 = scmp.eq.s32.totalorder %s23, 0
    %p154 = por %p152, %p153
    %p155 = scmp.ne.s32.totalorder %s141, %s142
    %p156 = scmp.eq.s32.totalorder %s24, 1
    %p157 = por %p155, %p156
    %p159 = scmp.ne.s32.totalorder %s142, %s158
    %p160 = scmp.eq.s32.totalorder %s24, 0
    %p161 = por %p159, %p160
    %p162 = scmp.le.s32.totalorder 1, %s18
    %p163 = scmp.lt.s32.totalorder %s18, 3
    %p164 = pnand %p162, %p163
    %p165 = pneg %p164
    // Predicated region
    $region9: #{transformer_forward.15} parent=5 // pred_check
      _
    $region10: #{transformer_forward.15} parent=5 // pred_check_branch
      %167 = sbr.rel (%p164) target = $region12
    $region11: #{transformer_forward.15} parent=5 // pred_region
      %s168 = ssub.s32 %s18, 1
      // Predicated region
      $region13: #{transformer_forward.15} parent=11 // pred_check
        %p169 = pneg %p65
      $region14: #{transformer_forward.15} parent=11 // pred_check_branch
        %171 = sbr.rel (%p169) target = $region16
      $region15: #{transformer_forward.15} parent=11 // pred_region
        _
      $region16: #{transformer_forward.15} parent=11 // pred_fallthru
        _
      // Predicated region
      $region17: #{transformer_forward.15} parent=11 // pred_check
        %p172 = pneg %p86
      $region18: #{transformer_forward.15} parent=11 // pred_check_branch
        %174 = sbr.rel (%p172) target = $region20
      $region19: #{transformer_forward.15} parent=11 // pred_region
        _
      $region20: #{transformer_forward.15} parent=11 // pred_fallthru
        _
      // Predicated region
      $region21: #{transformer_forward.15} parent=11 // pred_check
        %p175 = pneg %p107
      $region22: #{transformer_forward.15} parent=11 // pred_check_branch
        %177 = sbr.rel (%p175) target = $region24
      $region23: #{transformer_forward.15} parent=11 // pred_region
        _
      $region24: #{transformer_forward.15} parent=11 // pred_fallthru
        _
      // Predicated region
      $region25: #{transformer_forward.15} parent=11 // pred_check
        %p178 = pneg %p128
      $region26: #{transformer_forward.15} parent=11 // pred_check_branch
        %180 = sbr.rel (%p178) target = $region28
      $region27: #{transformer_forward.15} parent=11 // pred_region
        _
      $region28: #{transformer_forward.15} parent=11 // pred_fallthru
        _
    $region12: #{transformer_forward.15} parent=5 // pred_fallthru
      _
    %p181 = scmp.lt.s32.totalorder %s18, 2
    // Predicated region
    $region29: #{transformer_forward.15} parent=5 // pred_check
      %p182 = pneg %p181
    $region30: #{transformer_forward.15} parent=5 // pred_check_branch
      %184 = sbr.rel (%p182) target = $region32
    $region31: #{transformer_forward.15} parent=5 // pred_region
      // Predicated region
      $region33: #{transformer_forward.15} parent=31 // pred_check
        %p185 = pneg %p38
      $region34: #{transformer_forward.15} parent=31 // pred_check_branch
        %187 = sbr.rel (%p185) target = $region36
      $region35: #{transformer_forward.15} parent=31 // pred_region
        %p188 = scmp.lt.s32.totalorder %s18, 1
        %s189 = scalar_select %p188, %s18, 1
        %s190 = smul.addr %s189, 8
        %s191 = scalar_lea.vmem %s1, %s190
      $region36: #{transformer_forward.15} parent=31 // pred_fallthru
        _
    $region32: #{transformer_forward.15} parent=5 // pred_fallthru
      _
    %p192 = scmp.le.s32.totalorder 1, %s18
    %p193 = scmp.lt.s32.totalorder %s18, 3
    %p194 = pnand %p192, %p193
    %p195 = pneg %p194
    // Predicated region
    $region37: #{transformer_forward.15} parent=5 // pred_check
      _
    $region38: #{transformer_forward.15} parent=5 // pred_check_branch
      %197 = sbr.rel (%p194) target = $region40
    $region39: #{transformer_forward.15} parent=5 // pred_region
      %s198 = ssub.s32 %s18, 1
      %p199 = scmp.lt.s32.totalorder %s23, 1
      %s200 = scalar_select %p199, %s23, 1
      %s201 = smul.addr %s200, 8
      %s202 = scalar_lea.vmem %s1, %s201
      %p203 = pneg %p44
      %p204 = pneg %p41
      %p205 = pneg %p65
      %p206 = pneg %p62
      %p207 = pneg %p86
      %p208 = pneg %p83
      %p209 = pneg %p107
      %p210 = pneg %p104
      %p211 = pneg %p128
      %p212 = pneg %p125
      %p213 = pneg %p154
      %p214 = pneg %p151
      %p215 = scmp.lt.s32.totalorder %s23, 1
      %s216 = scalar_select %p215, %s23, 1
      %s217 = smul.addr %s216, 8
      %s218 = scalar_lea.vmem %s6, %s217
      %p219 = scmp.lt.s32.totalorder %s23, 1
      %s220 = scalar_select %p219, %s23, 1
      %s221 = smul.addr %s220, 8
      %s222 = scalar_lea.vmem %s1, %s221
      %p223 = scmp.lt.s32.totalorder %s23, 1
      %s224 = scalar_select %p223, %s23, 1
      %s225 = smul.addr %s224, 8
      %s226 = scalar_lea.vmem %s6, %s225
      %v228 = vld [vmem:[%s222] sm:$0xff]
      %v229 = vld [vmem:[%s2] sm:$0x1]
      %v230 = vld [vmem:[%s3] sm:$0x1]
      %231 = vadd.xlane.f32.xlu0 %v228
      %v232 = vpop.xlane.xlu0 %231
      %v233 = vrcp.pop 128.0
      %v234 = vmul.f32 %v232, %v233
      %v235 = vsub.f32 %v228, %v234
      %v236 = vmul.f32 %v235, %v235
      %237 = vadd.xlane.f32.xlu0 %v236
      %v238 = vpop.xlane.xlu0 %237
      %v239 = vmul.f32 %v238, %v233
      %v240 = vadd.f32 %v239, 1e-05
      %v241 = vrsqrt.pop %v240
      %v242 = vmul.f32 %v235, %v241
      %v244 = vlaneseq
      %v245 = vshrl.u32 %v244, 7
      %v246 = vsub.s32 0, %v245
      %v247 = vrot.slane %v229, %v246
      %v249 = vmul.f32 %v242, %v247
      %v251 = vlaneseq
      %v252 = vshrl.u32 %v251, 7
      %v253 = vsub.s32 0, %v252
      %v254 = vrot.slane %v230, %v253
      %v256 = vadd.f32 %v249, %v254
      %v257 = vpack.c.bf16 %v256, %v256
      %v258 = vld [vmem:[%s4] sm:$0xf]
      %v259 = vld [vmem:[%s4 + $0x4] sm:$0xf]
      %v260 = vld [vmem:[%s4 + $0x8] sm:$0xf]
      %v261 = vld [vmem:[%s4 + $0xc] sm:$0xf]
      %v262 = vld [vmem:[%s4 + $0x10] sm:$0xf]
      %v263 = vld [vmem:[%s4 + $0x14] sm:$0xf]
      %v264 = vld [vmem:[%s4 + $0x18] sm:$0xf]
      %v265 = vld [vmem:[%s4 + $0x1c] sm:$0xf]
      %v266 = vld [vmem:[%s4 + $0x20] sm:$0xf]
      %v267 = vld [vmem:[%s4 + $0x24] sm:$0xf]
      %v268 = vld [vmem:[%s4 + $0x28] sm:$0xf]
      %v269 = vld [vmem:[%s4 + $0x2c] sm:$0xf]
      %v270 = vld [vmem:[%s4 + $0x30] sm:$0xf]
      %v271 = vld [vmem:[%s4 + $0x34] sm:$0xf]
      %v272 = vld [vmem:[%s4 + $0x38] sm:$0xf]
      %v273 = vld [vmem:[%s4 + $0x3c] sm:$0xf]
      %v290 = vunpack.c.l.b16 %v258
      %v291 = vunpack.c.l.b16 %v259
      %v292 = vunpack.c.l.b16 %v260
      %v293 = vunpack.c.l.b16 %v261
      %v294 = vunpack.c.l.b16 %v262
      %v295 = vunpack.c.l.b16 %v263
      %v296 = vunpack.c.l.b16 %v264
      %v297 = vunpack.c.l.b16 %v265
      %v298 = vunpack.c.l.b16 %v266
      %v299 = vunpack.c.l.b16 %v267
      %v300 = vunpack.c.l.b16 %v268
      %v301 = vunpack.c.l.b16 %v269
      %v302 = vunpack.c.l.b16 %v270
      %v303 = vunpack.c.l.b16 %v271
      %v304 = vunpack.c.l.b16 %v272
      %v305 = vunpack.c.l.b16 %v273
      %v306 = vpack.c.b16 %v291, %v290
      %v307 = vpack.c.b16 %v293, %v292
      %v308 = vpack.c.b16 %v295, %v294
      %v309 = vpack.c.b16 %v297, %v296
      %v310 = vpack.c.b16 %v299, %v298
      %v311 = vpack.c.b16 %v301, %v300
      %v312 = vpack.c.b16 %v303, %v302
      %v313 = vpack.c.b16 %v305, %v304
      %322 = vmatprep.subr.bf16.mxu0 0
      %323 = vmatpush1.bf16.msra.mxu0 %v306
      %324 = vmatprep.subr.bf16.mxu0 0
      %325 = vmatpush1.bf16.msra.mxu0 %v307
      %326 = vmatprep.subr.bf16.mxu0 0
      %327 = vmatpush1.bf16.msra.mxu0 %v308
      %328 = vmatprep.subr.bf16.mxu0 0
      %329 = vmatpush1.bf16.msra.mxu0 %v309
      %330 = vmatprep.subr.bf16.mxu0 0
      %331 = vmatpush1.bf16.msra.mxu0 %v310
      %332 = vmatprep.subr.bf16.mxu0 0
      %333 = vmatpush1.bf16.msra.mxu0 %v311
      %334 = vmatprep.subr.bf16.mxu0 0
      %335 = vmatpush1.bf16.msra.mxu0 %v312
      %336 = vmatprep.subr.bf16.mxu0 0
      %337 = vmatpush1.bf16.msra.mxu0 %v313
      %338 = vmatprep.subr.bf16.mxu0 0
      %339 = vmatpush1.bf16.msra.mxu0 0
      %340 = vmatprep.subr.bf16.mxu0 0
      %341 = vmatpush1.bf16.msra.mxu0 0
      %342 = vmatprep.subr.bf16.mxu0 0
      %343 = vmatpush1.bf16.msra.mxu0 0
      %344 = vmatprep.subr.bf16.mxu0 0
      %345 = vmatpush1.bf16.msra.mxu0 0
      %346 = vmatprep.subr.bf16.mxu0 0
      %347 = vmatpush1.bf16.msra.mxu0 0
      %348 = vmatprep.subr.bf16.mxu0 0
      %349 = vmatpush1.bf16.msra.mxu0 0
      %350 = vmatprep.subr.bf16.mxu0 0
      %351 = vmatpush1.bf16.msra.mxu0 0
      %352 = vmatprep.subr.bf16.mxu0 0
      %353 = vmatpush1.bf16.msra.mxu0 0
      %354 = vmatprep.mubr.bf16.mxu0 0
      %355 = vmatmul.mubr.bf16.gmra.mrb[0].mxu0 %v257
      %v356 = vpop.f32.mrb[0].mxu0
      %v357 = vadd.f32 0.0, %v356
      %v358 = vpop.f32.mrb[0].mxu0
      %v359 = vpop.f32.mrb[0].mxu0
      %v360 = vpop.f32.mrb[0].mxu0
      %361 = vdwg.mxu0
      %v362 = vpack.c.bf16 %v357, %v357
      %v363 = vlaneseq
      %v364 = vshrl.u32 %v363, 7
      %v365 = vlaneseq
      %v366 = vand.u32 %v365, 127
      %vm367 = vcmp.gt.s32.totalorder %v366, %v364
      %vm368 = vcmask 261120
      %v370 = vsel %vm368, %v362, 0
      %372 = vmatprep.subr.bf16.mxu0 0
      %373 = vmatpush1.bf16.xpose.msra.mxu0 %v370
      %374 = vmatprep.subr.bf16.mxu0 0
      %375 = vmatpush1.bf16.xpose.msra.mxu0 0
      %376 = vmatprep.subr.bf16.mxu0 0
      %377 = vmatpush1.bf16.xpose.msra.mxu0 0
      %378 = vmatprep.subr.bf16.mxu0 0
      %379 = vmatpush1.bf16.xpose.msra.mxu0 0
      %380 = vmatprep.subr.bf16.mxu0 0
      %381 = vmatpush1.bf16.xpose.msra.mxu0 0
      %382 = vmatprep.subr.bf16.mxu0 0
      %383 = vmatpush1.bf16.xpose.msra.mxu0 0
      %384 = vmatprep.subr.bf16.mxu0 0
      %385 = vmatpush1.bf16.xpose.msra.mxu0 0
      %386 = vmatprep.subr.bf16.mxu0 0
      %387 = vmatpush1.bf16.xpose.msra.mxu0 0
      %388 = vmatprep.subr.bf16.mxu0 0
      %389 = vmatpush1.bf16.xpose.msra.mxu0 0
      %390 = vmatprep.subr.bf16.mxu0 0
      %391 = vmatpush1.bf16.xpose.msra.mxu0 0
      %392 = vmatprep.subr.bf16.mxu0 0
      %393 = vmatpush1.bf16.xpose.msra.mxu0 0
      %394 = vmatprep.subr.bf16.mxu0 0
      %395 = vmatpush1.bf16.xpose.msra.mxu0 0
      %396 = vmatprep.subr.bf16.mxu0 0
      %397 = vmatpush1.bf16.xpose.msra.mxu0 0
      %398 = vmatprep.subr.bf16.mxu0 0
      %399 = vmatpush1.bf16.xpose.msra.mxu0 0
      %400 = vmatprep.subr.bf16.mxu0 0
      %401 = vmatpush1.bf16.xpose.msra.mxu0 0
      %402 = vmatprep.subr.bf16.mxu0 0
      %403 = vmatpush1.bf16.xpose.msra.mxu0 0
      %404 = vmatprep.mubr.bf16.mxu0 0
      %405 = vmatmul.mubr.bf16.gmra.mrb[0].mxu0 %v370
      %v406 = vpop.f32.mrb[0].mxu0
      %v407 = vadd.f32 0.0, %v406
      %v408 = vpop.f32.mrb[0].mxu0
      %v409 = vpop.f32.mrb[0].mxu0
      %v410 = vpop.f32.mrb[0].mxu0
      %411 = vdwg.mxu0
      %v412 = vmul.f32 %v407, 0.17677669
      %v413 = vsel %vm367, -inf, %v412
      %vm414 = vcmask 64512
      %v415 = vsel %vm414, %v413, -inf
      %416 = vmax.xlane.f32.xlu0 %v415
      %v417 = vpop.xlane.xlu0 %416
      %v418 = vsub.f32 %v413, %v417
      %v419 = vmul.f32 %v418, 1.442695
      %v420 = vpow.pop %v419
      %v421 = vsel %vm414, %v420, 0.0
      %422 = vadd.xlane.f32.xlu0 %v421
      %v423 = vpop.xlane.xlu0 %422
      %v424 = vrcp.pop %v423
      %v425 = vmul.f32 %v420, %v424
      %v426 = vpack.c.bf16 %v425, %v425
      %v428 = vsel %vm414, %v426, 0
      %vm430 = vcmask 1043456
      %v431 = vsel %vm430, %v362, 0
      %433 = vmatprep.subr.bf16.mxu0 0
      %434 = vmatpush1.bf16.msra.mxu0 %v431
      %435 = vmatprep.subr.bf16.mxu0 0
      %436 = vmatpush1.bf16.msra.mxu0 0
      %437 = vmatprep.subr.bf16.mxu0 0
      %438 = vmatpush1.bf16.msra.mxu0 0
      %439 = vmatprep.subr.bf16.mxu0 0
      %440 = vmatpush1.bf16.msra.mxu0 0
      %441 = vmatprep.subr.bf16.mxu0 0
      %442 = vmatpush1.bf16.msra.mxu0 0
      %443 = vmatprep.subr.bf16.mxu0 0
      %444 = vmatpush1.bf16.msra.mxu0 0
      %445 = vmatprep.subr.bf16.mxu0 0
      %446 = vmatpush1.bf16.msra.mxu0 0
      %447 = vmatprep.subr.bf16.mxu0 0
      %448 = vmatpush1.bf16.msra.mxu0 0
      %449 = vmatprep.subr.bf16.mxu0 0
      %450 = vmatpush1.bf16.msra.mxu0 0
      %451 = vmatprep.subr.bf16.mxu0 0
      %452 = vmatpush1.bf16.msra.mxu0 0
      %453 = vmatprep.subr.bf16.mxu0 0
      %454 = vmatpush1.bf16.msra.mxu0 0
      %455 = vmatprep.subr.bf16.mxu0 0
      %456 = vmatpush1.bf16.msra.mxu0 0
      %457 = vmatprep.subr.bf16.mxu0 0
      %458 = vmatpush1.bf16.msra.mxu0 0
      %459 = vmatprep.subr.bf16.mxu0 0
      %460 = vmatpush1.bf16.msra.mxu0 0
      %461 = vmatprep.subr.bf16.mxu0 0
      %462 = vmatpush1.bf16.msra.mxu0 0
      %463 = vmatprep.subr.bf16.mxu0 0
      %464 = vmatpush1.bf16.msra.mxu0 0
      %465 = vmatprep.mubr.bf16.mxu0 0
      %466 = vmatmul.mubr.bf16.gmra.mrb[0].mxu0 %v428
      %v467 = vpop.f32.mrb[0].mxu0
      %v468 = vadd.f32 0.0, %v467
      %v469 = vpop.f32.mrb[0].mxu0
      %v470 = vpop.f32.mrb[0].mxu0
      %v471 = vpop.f32.mrb[0].mxu0
      %472 = vdwg.mxu0
      %474 = vrot.lane.b32.xlu0 %v362, 96
      %v475 = vpop.permute.xlu0 %474
      %v477 = vsel %vm368, %v475, 0
      %479 = vmatprep.subr.bf16.mxu0 0
      %480 = vmatpush1.bf16.xpose.msra.mxu0 %v477
      %481 = vmatprep.subr.bf16.mxu0 0
      %482 = vmatpush1.bf16.xpose.msra.mxu0 0
      %483 = vmatprep.subr.bf16.mxu0 0
      %484 = vmatpush1.bf16.xpose.msra.mxu0 0
      %485 = vmatprep.subr.bf16.mxu0 0
      %486 = vmatpush1.bf16.xpose.msra.mxu0 0
      %487 = vmatprep.subr.bf16.mxu0 0
      %488 = vmatpush1.bf16.xpose.msra.mxu0 0
      %489 = vmatprep.subr.bf16.mxu0 0
      %490 = vmatpush1.bf16.xpose.msra.mxu0 0
      %491 = vmatprep.subr.bf16.mxu0 0
      %492 = vmatpush1.bf16.xpose.msra.mxu0 0
      %493 = vmatprep.subr.bf16.mxu0 0
      %494 = vmatpush1.bf16.xpose.msra.mxu0 0
      %495 = vmatprep.subr.bf16.mxu0 0
      %496 = vmatpush1.bf16.xpose.msra.mxu0 0
      %497 = vmatprep.subr.bf16.mxu0 0
      %498 = vmatpush1.bf16.xpose.msra.mxu0 0
      %499 = vmatprep.subr.bf16.mxu0 0
      %500 = vmatpush1.bf16.xpose.msra.mxu0 0
      %501 = vmatprep.subr.bf16.mxu0 0
      %502 = vmatpush1.bf16.xpose.msra.mxu0 0
      %503 = vmatprep.subr.bf16.mxu0 0
      %504 = vmatpush1.bf16.xpose.msra.mxu0 0
      %505 = vmatprep.subr.bf16.mxu0 0
      %506 = vmatpush1.bf16.xpose.msra.mxu0 0
      %507 = vmatprep.subr.bf16.mxu0 0
      %508 = vmatpush1.bf16.xpose.msra.mxu0 0
      %509 = vmatprep.subr.bf16.mxu0 0
      %510 = vmatpush1.bf16.xpose.msra.mxu0 0
      %511 = vmatprep.mubr.bf16.mxu0 0
      %512 = vmatmul.mubr.bf16.gmra.mrb[0].mxu0 %v477
      %v513 = vpop.f32.mrb[0].mxu0
      %v514 = vadd.f32 0.0, %v513
      %v515 = vpop.f32.mrb[0].mxu0
      %v516 = vpop.f32.mrb[0].mxu0
      %v517 = vpop.f32.mrb[0].mxu0
      %518 = vdwg.mxu0
      %v519 = vmul.f32 %v514, 0.17677669
      %v520 = vsel %vm367, -inf, %v519
      %v521 = vsel %vm414, %v520, -inf
      %522 = vmax.xlane.f32.xlu0 %v521
      %v523 = vpop.xlane.xlu0 %522
      %v524 = vsub.f32 %v520, %v523
      %v525 = vmul.f32 %v524, 1.442695
      %v526 = vpow.pop %v525
      %v527 = vsel %vm414, %v526, 0.0
      %528 = vadd.xlane.f32.xlu0 %v527
      %v529 = vpop.xlane.xlu0 %528
      %v530 = vrcp.pop %v529
      %v531 = vmul.f32 %v526, %v530
      %v532 = vpack.c.bf16 %v531, %v531
      %v534 = vsel %vm414, %v532, 0
      %v536 = vsel %vm430, %v475, 0
      %538 = vmatprep.subr.bf16.mxu0 0
      %539 = vmatpush1.bf16.msra.mxu0 %v536
      %540 = vmatprep.subr.bf16.mxu0 0
      %541 = vmatpush1.bf16.msra.mxu0 0
      %542 = vmatprep.subr.bf16.mxu0 0
      %543 = vmatpush1.bf16.msra.mxu0 0
      %544 = vmatprep.subr.bf16.mxu0 0
      %545 = vmatpush1.bf16.msra.mxu0 0
      %546 = vmatprep.subr.bf16.mxu0 0
      %547 = vmatpush1.bf16.msra.mxu0 0
      %548 = vmatprep.subr.bf16.mxu0 0
      %549 = vmatpush1.bf16.msra.mxu0 0
      %550 = vmatprep.subr.bf16.mxu0 0
      %551 = vmatpush1.bf16.msra.mxu0 0
      %552 = vmatprep.subr.bf16.mxu0 0
      %553 = vmatpush1.bf16.msra.mxu0 0
      %554 = vmatprep.subr.bf16.mxu0 0
      %555 = vmatpush1.bf16.msra.mxu0 0
      %556 = vmatprep.subr.bf16.mxu0 0
      %557 = vmatpush1.bf16.msra.mxu0 0
      %558 = vmatprep.subr.bf16.mxu0 0
      %559 = vmatpush1.bf16.msra.mxu0 0
      %560 = vmatprep.subr.bf16.mxu0 0
      %561 = vmatpush1.bf16.msra.mxu0 0
      %562 = vmatprep.subr.bf16.mxu0 0
      %563 = vmatpush1.bf16.msra.mxu0 0
      %564 = vmatprep.subr.bf16.mxu0 0
      %565 = vmatpush1.bf16.msra.mxu0 0
      %566 = vmatprep.subr.bf16.mxu0 0
      %567 = vmatpush1.bf16.msra.mxu0 0
      %568 = vmatprep.subr.bf16.mxu0 0
      %569 = vmatpush1.bf16.msra.mxu0 0
      %570 = vmatprep.mubr.bf16.mxu0 0
      %571 = vmatmul.mubr.bf16.gmra.mrb[0].mxu0 %v534
      %v572 = vpop.f32.mrb[0].mxu0
      %v573 = vadd.f32 0.0, %v572
      %v574 = vpop.f32.mrb[0].mxu0
      %v575 = vpop.f32.mrb[0].mxu0
      %v576 = vpop.f32.mrb[0].mxu0
      %577 = vdwg.mxu0
      %578 = vrot.lane.b32.xlu0 %v362, 64
      %v579 = vpop.permute.xlu0 %578
      %v581 = vsel %vm368, %v579, 0
      %583 = vmatprep.subr.bf16.mxu0 0
      %584 = vmatpush1.bf16.xpose.msra.mxu0 %v581
      %585 = vmatprep.subr.bf16.mxu0 0
      %586 = vmatpush1.bf16.xpose.msra.mxu0 0
      %587 = vmatprep.subr.bf16.mxu0 0
      %588 = vmatpush1.bf16.xpose.msra.mxu0 0
      %589 = vmatprep.subr.bf16.mxu0 0
      %590 = vmatpush1.bf16.xpose.msra.mxu0 0
      %591 = vmatprep.subr.bf16.mxu0 0
      %592 = vmatpush1.bf16.xpose.msra.mxu0 0
      %593 = vmatprep.subr.bf16.mxu0 0
      %594 = vmatpush1.bf16.xpose.msra.mxu0 0
      %595 = vmatprep.subr.bf16.mxu0 0
      %596 = vmatpush1.bf16.xpose.msra.mxu0 0
      %597 = vmatprep.subr.bf16.mxu0 0
      %598 = vmatpush1.bf16.xpose.msra.mxu0 0
      %599 = vmatprep.subr.bf16.mxu0 0
      %600 = vmatpush1.bf16.xpose.msra.mxu0 0
      %601 = vmatprep.subr.bf16.mxu0 0
      %602 = vmatpush1.bf16.xpose.msra.mxu0 0
      %603 = vmatprep.subr.bf16.mxu0 0
      %604 = vmatpush1.bf16.xpose.msra.mxu0 0
      %605 = vmatprep.subr.bf16.mxu0 0
      %606 = vmatpush1.bf16.xpose.msra.mxu0 0
      %607 = vmatprep.subr.bf16.mxu0 0
      %608 = vmatpush1.bf16.xpose.msra.mxu0 0
      %609 = vmatprep.subr.bf16.mxu0 0
      %610 = vmatpush1.bf16.xpose.msra.mxu0 0
      %611 = vmatprep.subr.bf16.mxu0 0
      %612 = vmatpush1.bf16.xpose.msra.mxu0 0
      %613 = vmatprep.subr.bf16.mxu0 0
      %614 = vmatpush1.bf16.xpose.msra.mxu0 0
      %615 = vmatprep.mubr.bf16.mxu0 0
      %616 = vmatmul.mubr.bf16.gmra.mrb[0].mxu0 %v581
      %v617 = vpop.f32.mrb[0].mxu0
      %v618 = vadd.f32 0.0, %v617
      %v619 = vpop.f32.mrb[0].mxu0
      %v620 = vpop.f32.mrb[0].mxu0
      %v621 = vpop.f32.mrb[0].mxu0
      %622 = vdwg.mxu0
      %v623 = vmul.f32 %v618, 0.17677669
      %v624 = vsel %vm367, -inf, %v623
      %v625 = vsel %vm414, %v624, -inf
      %626 = vmax.xlane.f32.xlu0 %v625
      %v627 = vpop.xlane.xlu0 %626
      %v628 = vsub.f32 %v624, %v627
      %v629 = vmul.f32 %v628, 1.442695
      %v630 = vpow.pop %v629
      %v631 = vsel %vm414, %v630, 0.0
      %632 = vadd.xlane.f32.xlu0 %v631
      %v633 = vpop.xlane.xlu0 %632
      %v634 = vrcp.pop %v633
      %v635 = vmul.f32 %v630, %v634
      %v636 = vpack.c.bf16 %v635, %v635
      %v638 = vsel %vm414, %v636, 0
      %v640 = vsel %vm430, %v579, 0
      %642 = vmatprep.subr.bf16.mxu0 0
      %643 = vmatpush1.bf16.msra.mxu0 %v640
      %644 = vmatprep.subr.bf16.mxu0 0
      %645 = vmatpush1.bf16.msra.mxu0 0
      %646 = vmatprep.subr.bf16.mxu0 0
      %647 = vmatpush1.bf16.msra.mxu0 0
      %648 = vmatprep.subr.bf16.mxu0 0
      %649 = vmatpush1.bf16.msra.mxu0 0
      %650 = vmatprep.subr.bf16.mxu0 0
      %651 = vmatpush1.bf16.msra.mxu0 0
      %652 = vmatprep.subr.bf16.mxu0 0
      %653 = vmatpush1.bf16.msra.mxu0 0
      %654 = vmatprep.subr.bf16.mxu0 0
      %655 = vmatpush1.bf16.msra.mxu0 0
      %656 = vmatprep.subr.bf16.mxu0 0
      %657 = vmatpush1.bf16.msra.mxu0 0
      %658 = vmatprep.subr.bf16.mxu0 0
      %659 = vmatpush1.bf16.msra.mxu0 0
      %660 = vmatprep.subr.bf16.mxu0 0
      %661 = vmatpush1.bf16.msra.mxu0 0
      %662 = vmatprep.subr.bf16.mxu0 0
      %663 = vmatpush1.bf16.msra.mxu0 0
      %664 = vmatprep.subr.bf16.mxu0 0
      %665 = vmatpush1.bf16.msra.mxu0 0
      %666 = vmatprep.subr.bf16.mxu0 0
      %667 = vmatpush1.bf16.msra.mxu0 0
      %668 = vmatprep.subr.bf16.mxu0 0
      %669 = vmatpush1.bf16.msra.mxu0 0
      %670 = vmatprep.subr.bf16.mxu0 0
      %671 = vmatpush1.bf16.msra.mxu0 0
      %672 = vmatprep.subr.bf16.mxu0 0
      %673 = vmatpush1.bf16.msra.mxu0 0
      %674 = vmatprep.mubr.bf16.mxu0 0
      %675 = vmatmul.mubr.bf16.gmra.mrb[0].mxu0 %v638
      %v676 = vpop.f32.mrb[0].mxu0
      %v677 = vadd.f32 0.0, %v676
      %v678 = vpop.f32.mrb[0].mxu0
      %v679 = vpop.f32.mrb[0].mxu0
      %v680 = vpop.f32.mrb[0].mxu0
      %681 = vdwg.mxu0
      %682 = vrot.lane.b32.xlu0 %v362, 32
      %v683 = vpop.permute.xlu0 %682
      %v685 = vsel %vm368, %v683, 0
      %687 = vmatprep.subr.bf16.mxu0 0
      %688 = vmatpush1.bf16.xpose.msra.mxu0 %v685
      %689 = vmatprep.subr.bf16.mxu0 0
      %690 = vmatpush1.bf16.xpose.msra.mxu0 0
      %691 = vmatprep.subr.bf16.mxu0 0
      %692 = vmatpush1.bf16.xpose.msra.mxu0 0
      %693 = vmatprep.subr.bf16.mxu0 0
      %694 = vmatpush1.bf16.xpose.msra.mxu0 0
      %695 = vmatprep.subr.bf16.mxu0 0
      %696 = vmatpush1.bf16.xpose.msra.mxu0 0
      %697 = vmatprep.subr.bf16.mxu0 0
      %698 = vmatpush1.bf16.xpose.msra.mxu0 0
      %699 = vmatprep.subr.bf16.mxu0 0
      %700 = vmatpush1.bf16.xpose.msra.mxu0 0
      %701 = vmatprep.subr.bf16.mxu0 0
      %702 = vmatpush1.bf16.xpose.msra.mxu0 0
      %703 = vmatprep.subr.bf16.mxu0 0
      %704 = vmatpush1.bf16.xpose.msra.mxu0 0
      %705 = vmatprep.subr.bf16.mxu0 0
      %706 = vmatpush1.bf16.xpose.msra.mxu0 0
      %707 = vmatprep.subr.bf16.mxu0 0
      %708 = vmatpush1.bf16.xpose.msra.mxu0 0
      %709 = vmatprep.subr.bf16.mxu0 0
      %710 = vmatpush1.bf16.xpose.msra.mxu0 0
      %711 = vmatprep.subr.bf16.mxu0 0
      %712 = vmatpush1.bf16.xpose.msra.mxu0 0
      %713 = vmatprep.subr.bf16.mxu0 0
      %714 = vmatpush1.bf16.xpose.msra.mxu0 0
      %715 = vmatprep.subr.bf16.mxu0 0
      %716 = vmatpush1.bf16.xpose.msra.mxu0 0
      %717 = vmatprep.subr.bf16.mxu0 0
      %718 = vmatpush1.bf16.xpose.msra.mxu0 0
      %719 = vmatprep.mubr.bf16.mxu0 0
      %720 = vmatmul.mubr.bf16.gmra.mrb[0].mxu0 %v685
      %v721 = vpop.f32.mrb[0].mxu0
      %v722 = vadd.f32 0.0, %v721
      %v723 = vpop.f32.mrb[0].mxu0
      %v724 = vpop.f32.mrb[0].mxu0
      %v725 = vpop.f32.mrb[0].mxu0
      %726 = vdwg.mxu0
      %v727 = vmul.f32 %v722, 0.17677669
      %v728 = vsel %vm367, -inf, %v727
      %v729 = vsel %vm414, %v728, -inf
      %730 = vmax.xlane.f32.xlu0 %v729
      %v731 = vpop.xlane.xlu0 %730
      %v732 = vsub.f32 %v728, %v731
      %v733 = vmul.f32 %v732, 1.442695
      %v734 = vpow.pop %v733
      %v735 = vsel %vm414, %v734, 0.0
      %736 = vadd.xlane.f32.xlu0 %v735
      %v737 = vpop.xlane.xlu0 %736
      %v738 = vrcp.pop %v737
      %v739 = vmul.f32 %v734, %v738
      %v740 = vpack.c.bf16 %v739, %v739
      %v742 = vsel %vm414, %v740, 0
      %v744 = vsel %vm430, %v683, 0
      %746 = vmatprep.subr.bf16.mxu0 0
      %747 = vmatpush1.bf16.msra.mxu0 %v744
      %748 = vmatprep.subr.bf16.mxu0 0
      %749 = vmatpush1.bf16.msra.mxu0 0
      %750 = vmatprep.subr.bf16.mxu0 0
      %751 = vmatpush1.bf16.msra.mxu0 0
      %752 = vmatprep.subr.bf16.mxu0 0
      %753 = vmatpush1.bf16.msra.mxu0 0
      %754 = vmatprep.subr.bf16.mxu0 0
      %755 = vmatpush1.bf16.msra.mxu0 0
      %756 = vmatprep.subr.bf16.mxu0 0
      %757 = vmatpush1.bf16.msra.mxu0 0
      %758 = vmatprep.subr.bf16.mxu0 0
      %759 = vmatpush1.bf16.msra.mxu0 0
      %760 = vmatprep.subr.bf16.mxu0 0
      %761 = vmatpush1.bf16.msra.mxu0 0
      %762 = vmatprep.subr.bf16.mxu0 0
      %763 = vmatpush1.bf16.msra.mxu0 0
      %764 = vmatprep.subr.bf16.mxu0 0
      %765 = vmatpush1.bf16.msra.mxu0 0
      %766 = vmatprep.subr.bf16.mxu0 0
      %767 = vmatpush1.bf16.msra.mxu0 0
      %768 = vmatprep.subr.bf16.mxu0 0
      %769 = vmatpush1.bf16.msra.mxu0 0
      %770 = vmatprep.subr.bf16.mxu0 0
      %771 = vmatpush1.bf16.msra.mxu0 0
      %772 = vmatprep.subr.bf16.mxu0 0
      %773 = vmatpush1.bf16.msra.mxu0 0
      %774 = vmatprep.subr.bf16.mxu0 0
      %775 = vmatpush1.bf16.msra.mxu0 0
      %776 = vmatprep.subr.bf16.mxu0 0
      %777 = vmatpush1.bf16.msra.mxu0 0
      %778 = vmatprep.mubr.bf16.mxu0 0
      %779 = vmatmul.mubr.bf16.gmra.mrb[0].mxu0 %v742
      %v780 = vpop.f32.mrb[0].mxu0
      %v781 = vadd.f32 0.0, %v780
      %v782 = vpop.f32.mrb[0].mxu0
      %v783 = vpop.f32.mrb[0].mxu0
      %v784 = vpop.f32.mrb[0].mxu0
      %785 = vdwg.mxu0
      %787 = vrot.lane.b32.xlu0 %v573, 32
      %v788 = vpop.permute.xlu0 %787
      %791 = vrot.lane.b32.xlu0 %v677, 64
      %v792 = vpop.permute.xlu0 %791
      %795 = vrot.lane.b32.xlu0 %v781, 96
      %v796 = vpop.permute.xlu0 %795
      %v798 = vsel %vm368, %v468, %v788
      %vm799 = vcmask 523264
      %v800 = vsel %vm799, %v798, %v792
      %vm801 = vcmask 785408
      %v802 = vsel %vm801, %v800, %v796
      %v803 = vpack.c.bf16 %v802, %v802
      %v804 = vld [vmem:[%s5] sm:$0xf]
      %v805 = vld [vmem:[%s5 + $0x4] sm:$0xf]
      %v806 = vld [vmem:[%s5 + $0x8] sm:$0xf]
      %v807 = vld [vmem:[%s5 + $0xc] sm:$0xf]
      %v808 = vld [vmem:[%s5 + $0x10] sm:$0xf]
      %v809 = vld [vmem:[%s5 + $0x14] sm:$0xf]
      %v810 = vld [vmem:[%s5 + $0x18] sm:$0xf]
      %v811 = vld [vmem:[%s5 + $0x1c] sm:$0xf]
      %v812 = vld [vmem:[%s5 + $0x20] sm:$0xf]
      %v813 = vld [vmem:[%s5 + $0x24] sm:$0xf]
      %v814 = vld [vmem:[%s5 + $0x28] sm:$0xf]
      %v815 = vld [vmem:[%s5 + $0x2c] sm:$0xf]
      %v816 = vld [vmem:[%s5 + $0x30] sm:$0xf]
      %v817 = vld [vmem:[%s5 + $0x34] sm:$0xf]
      %v818 = vld [vmem:[%s5 + $0x38] sm:$0xf]
      %v819 = vld [vmem:[%s5 + $0x3c] sm:$0xf]
      %v836 = vunpack.c.l.b16 %v804
      %v837 = vunpack.c.l.b16 %v805
      %v838 = vunpack.c.l.b16 %v806
      %v839 = vunpack.c.l.b16 %v807
      %v840 = vunpack.c.l.b16 %v808
      %v841 = vunpack.c.l.b16 %v809
      %v842 = vunpack.c.l.b16 %v810
      %v843 = vunpack.c.l.b16 %v811
      %v844 = vunpack.c.l.b16 %v812
      %v845 = vunpack.c.l.b16 %v813
      %v846 = vunpack.c.l.b16 %v814
      %v847 = vunpack.c.l.b16 %v815
      %v848 = vunpack.c.l.b16 %v816
      %v849 = vunpack.c.l.b16 %v817
      %v850 = vunpack.c.l.b16 %v818
      %v851 = vunpack.c.l.b16 %v819
      %v852 = vpack.c.b16 %v837, %v836
      %v853 = vpack.c.b16 %v839, %v838
      %v854 = vpack.c.b16 %v841, %v840
      %v855 = vpack.c.b16 %v843, %v842
      %v856 = vpack.c.b16 %v845, %v844
      %v857 = vpack.c.b16 %v847, %v846
      %v858 = vpack.c.b16 %v849, %v848
      %v859 = vpack.c.b16 %v851, %v850
      %868 = vmatprep.subr.bf16.mxu0 0
      %869 = vmatpush1.bf16.msra.mxu0 %v852
      %870 = vmatprep.subr.bf16.mxu0 0
      %871 = vmatpush1.bf16.msra.mxu0 %v853
      %872 = vmatprep.subr.bf16.mxu0 0
      %873 = vmatpush1.bf16.msra.mxu0 %v854
      %874 = vmatprep.subr.bf16.mxu0 0
      %875 = vmatpush1.bf16.msra.mxu0 %v855
      %876 = vmatprep.subr.bf16.mxu0 0
      %877 = vmatpush1.bf16.msra.mxu0 %v856
      %878 = vmatprep.subr.bf16.mxu0 0
      %879 = vmatpush1.bf16.msra.mxu0 %v857
      %880 = vmatprep.subr.bf16.mxu0 0
      %881 = vmatpush1.bf16.msra.mxu0 %v858
      %882 = vmatprep.subr.bf16.mxu0 0
      %883 = vmatpush1.bf16.msra.mxu0 %v859
      %884 = vmatprep.subr.bf16.mxu0 0
      %885 = vmatpush1.bf16.msra.mxu0 0
      %886 = vmatprep.subr.bf16.mxu0 0
      %887 = vmatpush1.bf16.msra.mxu0 0
      %888 = vmatprep.subr.bf16.mxu0 0
      %889 = vmatpush1.bf16.msra.mxu0 0
      %890 = vmatprep.subr.bf16.mxu0 0
      %891 = vmatpush1.bf16.msra.mxu0 0
      %892 = vmatprep.subr.bf16.mxu0 0
      %893 = vmatpush1.bf16.msra.mxu0 0
      %894 = vmatprep.subr.bf16.mxu0 0
      %895 = vmatpush1.bf16.msra.mxu0 0
      %896 = vmatprep.subr.bf16.mxu0 0
      %897 = vmatpush1.bf16.msra.mxu0 0
      %898 = vmatprep.subr.bf16.mxu0 0
      %899 = vmatpush1.bf16.msra.mxu0 0
      %900 = vmatprep.mubr.bf16.mxu0 0
      %901 = vmatmul.mubr.bf16.gmra.mrb[0].mxu0 %v803
      %v902 = vpop.f32.mrb[0].mxu0
      %v903 = vadd.f32 0.0, %v902
      %v904 = vpop.f32.mrb[0].mxu0
      %v905 = vpop.f32.mrb[0].mxu0
      %v906 = vpop.f32.mrb[0].mxu0
      %907 = vdwg.mxu0
      %v908 = vadd.f32 %v228, %v903
      %909 = vst [vmem:[%s226] sm:$0xff] %v908
      %p910 = scmp.lt.s32.totalorder %s23, 1
      %s911 = scalar_select %p910, %s23, 1
      %s912 = smul.addr %s911, 8
      %s913 = scalar_lea.vmem %s6, %s912
      // Predicated region
      $region41: #{transformer_forward.15} parent=39 // pred_check
        %p914 = pneg %p151
      $region42: #{transformer_forward.15} parent=39 // pred_check_branch
        %916 = sbr.rel (%p914) target = $region44
      $region43: #{transformer_forward.15} parent=39 // pred_region
        _
      $region44: #{transformer_forward.15} parent=39 // pred_fallthru
        _
    $region40: #{transformer_forward.15} parent=5 // pred_fallthru
      _
    %p917 = scmp.le.s32.totalorder 2, %s18
    // Predicated region
    $region45: #{transformer_forward.15} parent=5 // pred_check
      %p918 = pneg %p917
    $region46: #{transformer_forward.15} parent=5 // pred_check_branch
      %920 = sbr.rel (%p918) target = $region48
    $region47: #{transformer_forward.15} parent=5 // pred_region
      %s921 = ssub.s32 %s18, 2
      // Predicated region
      $region49: #{transformer_forward.15} parent=47 // pred_check
        %p922 = pneg %p157
      $region50: #{transformer_forward.15} parent=47 // pred_check_branch
        %924 = sbr.rel (%p922) target = $region52
      $region51: #{transformer_forward.15} parent=47 // pred_region
        %p925 = scmp.lt.s32.totalorder %s24, 1
        %s926 = scalar_select %p925, %s24, 1
        %s927 = smul.addr %s926, 8
        %s928 = scalar_lea.vmem %s6, %s927
      $region52: #{transformer_forward.15} parent=47 // pred_fallthru
        _
    $region48: #{transformer_forward.15} parent=5 // pred_fallthru
      _
  $region6: #{transformer_forward.15} parent=0 // loop_footer
    %s22 = sadd.s32 1, %s18
  $region7: #{transformer_forward.15} parent=0 // loop_footer_branch
    %17 = sbr.rel target = $region3
  $region8: #{transformer_forward.15} parent=0 // loop_exit
    _

// kernel: transformer_forward.16
$region0: #{transformer_forward.16}
  #allocation0 [shape = 'u32[]', space=smem, size = 0x4, offset = 0x4, fixed_abs, tag = 'smem constant byte address 0x4 - core index']
  #allocation1 [shape = 'u32[144,128]{1,0:T(1,128)}', space=vmem, size = 0x12000, scoped, tag = 'internal scratch']
  #allocation2 [shape = 's32[1]{0}', space=sflag, size = 0x4, scoped, tag = 'scoped memory for transformer_forward.16']
  #allocation3 [shape = 'u8[512]{0}', space=smem, size = 0x200, scoped, tag = 'prefetched SMEM operand 0']
  %s0 = inlined_call_operand.vmem [shape: s32[2], index: 0, kind: input, shape index: {}]
  %s1 = inlined_call_operand.vmem [shape: f32[2,8,128], index: 1, kind: input, shape index: {}]
  %s2 = inlined_call_operand.vmem [shape: f32[2,8,128], index: 2, kind: input, shape index: {}]
  %s3 = inlined_call_operand.vmem [shape: f32[1,128], index: 3, kind: input, shape index: {}]
  %s4 = inlined_call_operand.vmem [shape: f32[1,128], index: 4, kind: input, shape index: {}]
  %s5 = inlined_call_operand.vmem [shape: bf16[128,128], index: 5, kind: input, shape index: {}]
  %s6 = inlined_call_operand.vmem [shape: bf16[128,128], index: 6, kind: input, shape index: {}]
  %s7 = inlined_call_operand.vmem [shape: f32[2,8,128], index: 7, kind: output, shape index: {}]
  %s8 = sld [smem:[#allocation0]]
  $region57: #{transformer_forward.16} parent=0
    _
  %s10 = ssub.s32 1, %s8
  %s11 = scalar_select 0, %s10, %s8
  %s12 = sshll.u32 %s0, 4
  %s13 = int_to_ptr.vmem [resolvable:$true] %s12
  %15 = dma.vmem_to_smem %s13, 16, [#allocation3], [#allocation2]
  %16 = dma.done [#allocation2], 16
  %17 = sfence
  loop: start=0, step=1, limit=4
  $region2: #{transformer_forward.16} parent=0 // loop_pre_header
    _
  $region3: #{transformer_forward.16} parent=0 // loop_header
    %s19 = sphi 0, %s23
    %p20 = scmp.ge.s32.totalorder %s19, 4
    %s29 = sphi 0, %s31
    %s32 = sphi 0, %s29
    %s33 = sphi 0, %s32
    %s49 = sphi 0, %s33
    %s55 = sphi 0, %s57
    %s58 = sphi 0, %s55
    %s59 = sphi 0, %s58
    %s75 = sphi 0, %s59
    %s79 = sphi 0, %s79
    %s81 = sphi 0, %s79
    %s82 = sphi 0, %s81
    %s96 = sphi 0, %s82
    %s100 = sphi 0, %s100
    %s102 = sphi 0, %s100
    %s103 = sphi 0, %s102
    %s117 = sphi 0, %s103
    %s121 = sphi 0, %s121
    %s123 = sphi 0, %s121
    %s124 = sphi 0, %s123
    %s138 = sphi 0, %s124
    %s142 = sphi 0, %s142
    %s144 = sphi 0, %s142
    %s145 = sphi 0, %s144
    %s159 = sphi 0, %s145
    %s165 = sphi 0, %s167
    %s168 = sphi 0, %s165
    %s169 = sphi 0, %s168
    %s185 = sphi 0, %s169
  $region4: #{transformer_forward.16} parent=0 // loop_header_branch
    %22 = sbr.rel (%p20) target = $region8
  $region5: #{transformer_forward.16} parent=0 // loop_body
    %s24 = ssub.s32 %s19, 1
    %s25 = ssub.s32 %s19, 2
    %s26 = sadd.s32 %s19, 1
    %s27 = ssub.s32 %s19, %s26
    %p28 = scmp.eq.s32.totalorder %s27, 0
    %s30 = sadd.s32 %s29, 1
    %s31 = scalar_select %p28, %s29, %s30
    %p34 = pneg %p28
    %p35 = scmp.eq.s32.totalorder %s19, 1
    %p36 = por %p34, %p35
    %p37 = scmp.ne.s32.totalorder %s29, %s32
    %p38 = scmp.eq.s32.totalorder %s19, 0
    %p39 = por %p37, %p38
    %p40 = scmp.ne.s32.totalorder %s29, %s32
    %p41 = scmp.eq.s32.totalorder %s24, 1
    %p42 = por %p40, %p41
    %p43 = scmp.ne.s32.totalorder %s32, %s33
    %p44 = scmp.eq.s32.totalorder %s24, 0
    %p45 = por %p43, %p44
    %p46 = scmp.ne.s32.totalorder %s32, %s33
    %p47 = scmp.eq.s32.totalorder %s25, 1
    %p48 = por %p46, %p47
    %p50 = scmp.ne.s32.totalorder %s33, %s49
    %p51 = scmp.eq.s32.totalorder %s25, 0
    %p52 = por %p50, %p51
    %s53 = ssub.s32 %s19, %s26
    %p54 = scmp.eq.s32.totalorder %s53, 0
    %s56 = sadd.s32 %s55, 1
    %s57 = scalar_select %p54, %s55, %s56
    %p60 = pneg %p54
    %p61 = scmp.eq.s32.totalorder %s19, 1
    %p62 = por %p60, %p61
    %p63 = scmp.ne.s32.totalorder %s55, %s58
    %p64 = scmp.eq.s32.totalorder %s19, 0
    %p65 = por %p63, %p64
    %p66 = scmp.ne.s32.totalorder %s55, %s58
    %p67 = scmp.eq.s32.totalorder %s24, 1
    %p68 = por %p66, %p67
    %p69 = scmp.ne.s32.totalorder %s58, %s59
    %p70 = scmp.eq.s32.totalorder %s24, 0
    %p71 = por %p69, %p70
    %p72 = scmp.ne.s32.totalorder %s58, %s59
    %p73 = scmp.eq.s32.totalorder %s25, 1
    %p74 = por %p72, %p73
    %p76 = scmp.ne.s32.totalorder %s59, %s75
    %p77 = scmp.eq.s32.totalorder %s25, 0
    %p78 = por %p76, %p77
    %s80 = sadd.s32 %s79, 1
    %p83 = scmp.eq.s32.totalorder %s19, 1
    %p84 = scmp.ne.s32.totalorder %s79, %s81
    %p85 = scmp.eq.s32.totalorder %s19, 0
    %p86 = por %p84, %p85
    %p87 = scmp.ne.s32.totalorder %s79, %s81
    %p88 = scmp.eq.s32.totalorder %s24, 1
    %p89 = por %p87, %p88
    %p90 = scmp.ne.s32.totalorder %s81, %s82
    %p91 = scmp.eq.s32.totalorder %s24, 0
    %p92 = por %p90, %p91
    %p93 = scmp.ne.s32.totalorder %s81, %s82
    %p94 = scmp.eq.s32.totalorder %s25, 1
    %p95 = por %p93, %p94
    %p97 = scmp.ne.s32.totalorder %s82, %s96
    %p98 = scmp.eq.s32.totalorder %s25, 0
    %p99 = por %p97, %p98
    %s101 = sadd.s32 %s100, 1
    %p104 = scmp.eq.s32.totalorder %s19, 1
    %p105 = scmp.ne.s32.totalorder %s100, %s102
    %p106 = scmp.eq.s32.totalorder %s19, 0
    %p107 = por %p105, %p106
    %p108 = scmp.ne.s32.totalorder %s100, %s102
    %p109 = scmp.eq.s32.totalorder %s24, 1
    %p110 = por %p108, %p109
    %p111 = scmp.ne.s32.totalorder %s102, %s103
    %p112 = scmp.eq.s32.totalorder %s24, 0
    %p113 = por %p111, %p112
    %p114 = scmp.ne.s32.totalorder %s102, %s103
    %p115 = scmp.eq.s32.totalorder %s25, 1
    %p116 = por %p114, %p115
    %p118 = scmp.ne.s32.totalorder %s103, %s117
    %p119 = scmp.eq.s32.totalorder %s25, 0
    %p120 = por %p118, %p119
    %s122 = sadd.s32 %s121, 1
    %p125 = scmp.eq.s32.totalorder %s19, 1
    %p126 = scmp.ne.s32.totalorder %s121, %s123
    %p127 = scmp.eq.s32.totalorder %s19, 0
    %p128 = por %p126, %p127
    %p129 = scmp.ne.s32.totalorder %s121, %s123
    %p130 = scmp.eq.s32.totalorder %s24, 1
    %p131 = por %p129, %p130
    %p132 = scmp.ne.s32.totalorder %s123, %s124
    %p133 = scmp.eq.s32.totalorder %s24, 0
    %p134 = por %p132, %p133
    %p135 = scmp.ne.s32.totalorder %s123, %s124
    %p136 = scmp.eq.s32.totalorder %s25, 1
    %p137 = por %p135, %p136
    %p139 = scmp.ne.s32.totalorder %s124, %s138
    %p140 = scmp.eq.s32.totalorder %s25, 0
    %p141 = por %p139, %p140
    %s143 = sadd.s32 %s142, 1
    %p146 = scmp.eq.s32.totalorder %s19, 1
    %p147 = scmp.ne.s32.totalorder %s142, %s144
    %p148 = scmp.eq.s32.totalorder %s19, 0
    %p149 = por %p147, %p148
    %p150 = scmp.ne.s32.totalorder %s142, %s144
    %p151 = scmp.eq.s32.totalorder %s24, 1
    %p152 = por %p150, %p151
    %p153 = scmp.ne.s32.totalorder %s144, %s145
    %p154 = scmp.eq.s32.totalorder %s24, 0
    %p155 = por %p153, %p154
    %p156 = scmp.ne.s32.totalorder %s144, %s145
    %p157 = scmp.eq.s32.totalorder %s25, 1
    %p158 = por %p156, %p157
    %p160 = scmp.ne.s32.totalorder %s145, %s159
    %p161 = scmp.eq.s32.totalorder %s25, 0
    %p162 = por %p160, %p161
    %s163 = ssub.s32 %s19, %s26
    %p164 = scmp.eq.s32.totalorder %s163, 0
    %s166 = sadd.s32 %s165, 1
    %s167 = scalar_select %p164, %s165, %s166
    %p170 = pneg %p164
    %p171 = scmp.eq.s32.totalorder %s19, 1
    %p172 = por %p170, %p171
    %p173 = scmp.ne.s32.totalorder %s165, %s168
    %p174 = scmp.eq.s32.totalorder %s19, 0
    %p175 = por %p173, %p174
    %p176 = scmp.ne.s32.totalorder %s165, %s168
    %p177 = scmp.eq.s32.totalorder %s24, 1
    %p178 = por %p176, %p177
    %p179 = scmp.ne.s32.totalorder %s168, %s169
    %p180 = scmp.eq.s32.totalorder %s24, 0
    %p181 = por %p179, %p180
    %p182 = scmp.ne.s32.totalorder %s168, %s169
    %p183 = scmp.eq.s32.totalorder %s25, 1
    %p184 = por %p182, %p183
    %p186 = scmp.ne.s32.totalorder %s169, %s185
    %p187 = scmp.eq.s32.totalorder %s25, 0
    %p188 = por %p186, %p187
    %p189 = scmp.le.s32.totalorder 1, %s19
    %p190 = scmp.lt.s32.totalorder %s19, 3
    %p191 = pnand %p189, %p190
    %p192 = pneg %p191
    // Predicated region
    $region9: #{transformer_forward.16} parent=5 // pred_check
      _
    $region10: #{transformer_forward.16} parent=5 // pred_check_branch
      %194 = sbr.rel (%p191) target = $region12
    $region11: #{transformer_forward.16} parent=5 // pred_region
      %s195 = ssub.s32 %s19, 1
      // Predicated region
      $region13: #{transformer_forward.16} parent=11 // pred_check
        %p196 = pneg %p92
      $region14: #{transformer_forward.16} parent=11 // pred_check_branch
        %198 = sbr.rel (%p196) target = $region16
      $region15: #{transformer_forward.16} parent=11 // pred_region
        _
      $region16: #{transformer_forward.16} parent=11 // pred_fallthru
        _
      // Predicated region
      $region17: #{transformer_forward.16} parent=11 // pred_check
        %p199 = pneg %p113
      $region18: #{transformer_forward.16} parent=11 // pred_check_branch
        %201 = sbr.rel (%p199) target = $region20
      $region19: #{transformer_forward.16} parent=11 // pred_region
        _
      $region20: #{transformer_forward.16} parent=11 // pred_fallthru
        _
      // Predicated region
      $region21: #{transformer_forward.16} parent=11 // pred_check
        %p202 = pneg %p134
      $region22: #{transformer_forward.16} parent=11 // pred_check_branch
        %204 = sbr.rel (%p202) target = $region24
      $region23: #{transformer_forward.16} parent=11 // pred_region
        _
      $region24: #{transformer_forward.16} parent=11 // pred_fallthru
        _
      // Predicated region
      $region25: #{transformer_forward.16} parent=11 // pred_check
        %p205 = pneg %p155
      $region26: #{transformer_forward.16} parent=11 // pred_check_branch
        %207 = sbr.rel (%p205) target = $region28
      $region27: #{transformer_forward.16} parent=11 // pred_region
        _
      $region28: #{transformer_forward.16} parent=11 // pred_fallthru
        _
    $region12: #{transformer_forward.16} parent=5 // pred_fallthru
      _
    %p208 = scmp.lt.s32.totalorder %s19, 2
    // Predicated region
    $region29: #{transformer_forward.16} parent=5 // pred_check
      %p209 = pneg %p208
    $region30: #{transformer_forward.16} parent=5 // pred_check_branch
      %211 = sbr.rel (%p209) target = $region32
    $region31: #{transformer_forward.16} parent=5 // pred_region
      // Predicated region
      $region33: #{transformer_forward.16} parent=31 // pred_check
        %p212 = pneg %p39
      $region34: #{transformer_forward.16} parent=31 // pred_check_branch
        %214 = sbr.rel (%p212) target = $region36
      $region35: #{transformer_forward.16} parent=31 // pred_region
        %p215 = scmp.lt.s32.totalorder %s19, 1
        %s216 = scalar_select %p215, %s19, 1
        %s217 = smul.addr %s216, 8
        %s218 = scalar_lea.vmem %s1, %s217
      $region36: #{transformer_forward.16} parent=31 // pred_fallthru
        _
      // Predicated region
      $region37: #{transformer_forward.16} parent=31 // pred_check
        %p219 = pneg %p65
      $region38: #{transformer_forward.16} parent=31 // pred_check_branch
        %221 = sbr.rel (%p219) target = $region40
      $region39: #{transformer_forward.16} parent=31 // pred_region
        %p222 = scmp.lt.s32.totalorder %s19, 1
        %s223 = scalar_select %p222, %s19, 1
        %s224 = smul.addr %s223, 8
        %s225 = scalar_lea.vmem %s2, %s224
      $region40: #{transformer_forward.16} parent=31 // pred_fallthru
        _
    $region32: #{transformer_forward.16} parent=5 // pred_fallthru
      _
    %p226 = scmp.le.s32.totalorder 1, %s19
    %p227 = scmp.lt.s32.totalorder %s19, 3
    %p228 = pnand %p226, %p227
    %p229 = pneg %p228
    // Predicated region
    $region41: #{transformer_forward.16} parent=5 // pred_check
      _
    $region42: #{transformer_forward.16} parent=5 // pred_check_branch
      %231 = sbr.rel (%p228) target = $region44
    $region43: #{transformer_forward.16} parent=5 // pred_region
      %s232 = ssub.s32 %s19, 1
      %p233 = scmp.lt.s32.totalorder %s24, 1
      %s234 = scalar_select %p233, %s24, 1
      %s235 = smul.addr %s234, 8
      %s236 = scalar_lea.vmem %s1, %s235
      %p237 = pneg %p45
      %p238 = pneg %p42
      %p239 = scmp.lt.s32.totalorder %s24, 1
      %s240 = scalar_select %p239, %s24, 1
      %s241 = smul.addr %s240, 8
      %s242 = scalar_lea.vmem %s2, %s241
      %p243 = pneg %p71
      %p244 = pneg %p68
      %p245 = pneg %p92
      %p246 = pneg %p89
      %p247 = pneg %p113
      %p248 = pneg %p110
      %p249 = pneg %p134
      %p250 = pneg %p131
      %p251 = pneg %p155
      %p252 = pneg %p152
      %p253 = pneg %p181
      %p254 = pneg %p178
      %p255 = scmp.lt.s32.totalorder %s24, 1
      %s256 = scalar_select %p255, %s24, 1
      %s257 = smul.addr %s256, 8
      %s258 = scalar_lea.vmem %s7, %s257
      %p259 = scmp.lt.s32.totalorder %s24, 1
      %s260 = scalar_select %p259, %s24, 1
      %s261 = smul.addr %s260, 8
      %s262 = scalar_lea.vmem %s1, %s261
      %p263 = scmp.lt.s32.totalorder %s24, 1
      %s264 = scalar_select %p263, %s24, 1
      %s265 = smul.addr %s264, 8
      %s266 = scalar_lea.vmem %s2, %s265
      %p267 = scmp.lt.s32.totalorder %s24, 1
      %s268 = scalar_select %p267, %s24, 1
      %s269 = smul.addr %s268, 8
      %s270 = scalar_lea.vmem %s7, %s269
      %v272 = vld [vmem:[%s262] sm:$0xff]
      %v273 = vld [vmem:[%s266] sm:$0xff]
      %v274 = vld [vmem:[%s3] sm:$0x1]
      %v275 = vld [vmem:[%s4] sm:$0x1]
      %v276 = vld [vmem:[%s5] sm:$0xf]
      %v277 = vld [vmem:[%s5 + $0x4] sm:$0xf]
      %v278 = vld [vmem:[%s5 + $0x8] sm:$0xf]
      %v279 = vld [vmem:[%s5 + $0xc] sm:$0xf]
      %v280 = vld [vmem:[%s5 + $0x10] sm:$0xf]
      %v281 = vld [vmem:[%s5 + $0x14] sm:$0xf]
      %v282 = vld [vmem:[%s5 + $0x18] sm:$0xf]
      %v283 = vld [vmem:[%s5 + $0x1c] sm:$0xf]
      %v284 = vld [vmem:[%s5 + $0x20] sm:$0xf]
      %v285 = vld [vmem:[%s5 + $0x24] sm:$0xf]
      %v286 = vld [vmem:[%s5 + $0x28] sm:$0xf]
      %v287 = vld [vmem:[%s5 + $0x2c] sm:$0xf]
      %v288 = vld [vmem:[%s5 + $0x30] sm:$0xf]
      %v289 = vld [vmem:[%s5 + $0x34] sm:$0xf]
      %v290 = vld [vmem:[%s5 + $0x38] sm:$0xf]
      %v291 = vld [vmem:[%s5 + $0x3c] sm:$0xf]
      %292 = vadd.xlane.f32.xlu0 %v272
      %v293 = vpop.xlane.xlu0 %292
      %v294 = vrcp.pop 128.0
      %v295 = vmul.f32 %v293, %v294
      %v296 = vsub.f32 %v272, %v295
      %v297 = vmul.f32 %v296, %v296
      %298 = vadd.xlane.f32.xlu0 %v297
      %v299 = vpop.xlane.xlu0 %298
      %v300 = vmul.f32 %v299, %v294
      %v301 = vadd.f32 %v300, 1e-05
      %v302 = vrsqrt.pop %v301
      %v303 = vmul.f32 %v296, %v302
      %v305 = vlaneseq
      %v306 = vshrl.u32 %v305, 7
      %v307 = vsub.s32 0, %v306
      %v308 = vrot.slane %v274, %v307
      %v310 = vmul.f32 %v303, %v308
      %v312 = vlaneseq
      %v313 = vshrl.u32 %v312, 7
      %v314 = vsub.s32 0, %v313
      %v315 = vrot.slane %v275, %v314
      %v317 = vadd.f32 %v310, %v315
      %v318 = vpack.c.bf16 %v317, %v317
      %v335 = vunpack.c.l.b16 %v276
      %v336 = vunpack.c.l.b16 %v277
      %v337 = vunpack.c.l.b16 %v278
      %v338 = vunpack.c.l.b16 %v279
      %v339 = vunpack.c.l.b16 %v280
      %v340 = vunpack.c.l.b16 %v281
      %v341 = vunpack.c.l.b16 %v282
      %v342 = vunpack.c.l.b16 %v283
      %v343 = vunpack.c.l.b16 %v284
      %v344 = vunpack.c.l.b16 %v285
      %v345 = vunpack.c.l.b16 %v286
      %v346 = vunpack.c.l.b16 %v287
      %v347 = vunpack.c.l.b16 %v288
      %v348 = vunpack.c.l.b16 %v289
      %v349 = vunpack.c.l.b16 %v290
      %v350 = vunpack.c.l.b16 %v291
      %v351 = vpack.c.b16 %v336, %v335
      %v352 = vpack.c.b16 %v338, %v337
      %v353 = vpack.c.b16 %v340, %v339
      %v354 = vpack.c.b16 %v342, %v341
      %v355 = vpack.c.b16 %v344, %v343
      %v356 = vpack.c.b16 %v346, %v345
      %v357 = vpack.c.b16 %v348, %v347
      %v358 = vpack.c.b16 %v350, %v349
      %367 = vmatprep.subr.bf16.mxu0 0
      %368 = vmatpush1.bf16.msra.mxu0 %v351
      %369 = vmatprep.subr.bf16.mxu0 0
      %370 = vmatpush1.bf16.msra.mxu0 %v352
      %371 = vmatprep.subr.bf16.mxu0 0
      %372 = vmatpush1.bf16.msra.mxu0 %v353
      %373 = vmatprep.subr.bf16.mxu0 0
      %374 = vmatpush1.bf16.msra.mxu0 %v354
      %375 = vmatprep.subr.bf16.mxu0 0
      %376 = vmatpush1.bf16.msra.mxu0 %v355
      %377 = vmatprep.subr.bf16.mxu0 0
      %378 = vmatpush1.bf16.msra.mxu0 %v356
      %379 = vmatprep.subr.bf16.mxu0 0
      %380 = vmatpush1.bf16.msra.mxu0 %v357
      %381 = vmatprep.subr.bf16.mxu0 0
      %382 = vmatpush1.bf16.msra.mxu0 %v358
      %383 = vmatprep.subr.bf16.mxu0 0
      %384 = vmatpush1.bf16.msra.mxu0 0
      %385 = vmatprep.subr.bf16.mxu0 0
      %386 = vmatpush1.bf16.msra.mxu0 0
      %387 = vmatprep.subr.bf16.mxu0 0
      %388 = vmatpush1.bf16.msra.mxu0 0
      %389 = vmatprep.subr.bf16.mxu0 0
      %390 = vmatpush1.bf16.msra.mxu0 0
      %391 = vmatprep.subr.bf16.mxu0 0
      %392 = vmatpush1.bf16.msra.mxu0 0
      %393 = vmatprep.subr.bf16.mxu0 0
      %394 = vmatpush1.bf16.msra.mxu0 0
      %395 = vmatprep.subr.bf16.mxu0 0
      %396 = vmatpush1.bf16.msra.mxu0 0
      %397 = vmatprep.subr.bf16.mxu0 0
      %398 = vmatpush1.bf16.msra.mxu0 0
      %399 = vmatprep.mubr.bf16.mxu0 0
      %400 = vmatmul.mubr.bf16.gmra.mrb[0].mxu0 %v318
      %v401 = vpop.f32.mrb[0].mxu0
      %v402 = vadd.f32 0.0, %v401
      %v403 = vpop.f32.mrb[0].mxu0
      %v404 = vpop.f32.mrb[0].mxu0
      %v405 = vpop.f32.mrb[0].mxu0
      %406 = vdwg.mxu0
      %v407 = vpack.c.bf16 %v402, %v402
      %408 = vadd.xlane.f32.xlu0 %v273
      %v409 = vpop.xlane.xlu0 %408
      %v410 = vmul.f32 %v409, %v294
      %v411 = vsub.f32 %v273, %v410
      %v412 = vmul.f32 %v411, %v411
      %413 = vadd.xlane.f32.xlu0 %v412
      %v414 = vpop.xlane.xlu0 %413
      %v415 = vmul.f32 %v414, %v294
      %v416 = vadd.f32 %v415, 1e-05
      %v417 = vrsqrt.pop %v416
      %v418 = vmul.f32 %v411, %v417
      %v419 = vmul.f32 %v418, %v308
      %v420 = vadd.f32 %v419, %v315
      %v421 = vpack.c.bf16 %v420, %v420
      %422 = vmatprep.subr.bf16.mxu0 0
      %423 = vmatpush1.bf16.msra.mxu0 %v351
      %424 = vmatprep.subr.bf16.mxu0 0
      %425 = vmatpush1.bf16.msra.mxu0 %v352
      %426 = vmatprep.subr.bf16.mxu0 0
      %427 = vmatpush1.bf16.msra.mxu0 %v353
      %428 = vmatprep.subr.bf16.mxu0 0
      %429 = vmatpush1.bf16.msra.mxu0 %v354
      %430 = vmatprep.subr.bf16.mxu0 0
      %431 = vmatpush1.bf16.msra.mxu0 %v355
      %432 = vmatprep.subr.bf16.mxu0 0
      %433 = vmatpush1.bf16.msra.mxu0 %v356
      %434 = vmatprep.subr.bf16.mxu0 0
      %435 = vmatpush1.bf16.msra.mxu0 %v357
      %436 = vmatprep.subr.bf16.mxu0 0
      %437 = vmatpush1.bf16.msra.mxu0 %v358
      %438 = vmatprep.subr.bf16.mxu0 0
      %439 = vmatpush1.bf16.msra.mxu0 0
      %440 = vmatprep.subr.bf16.mxu0 0
      %441 = vmatpush1.bf16.msra.mxu0 0
      %442 = vmatprep.subr.bf16.mxu0 0
      %443 = vmatpush1.bf16.msra.mxu0 0
      %444 = vmatprep.subr.bf16.mxu0 0
      %445 = vmatpush1.bf16.msra.mxu0 0
      %446 = vmatprep.subr.bf16.mxu0 0
      %447 = vmatpush1.bf16.msra.mxu0 0
      %448 = vmatprep.subr.bf16.mxu0 0
      %449 = vmatpush1.bf16.msra.mxu0 0
      %450 = vmatprep.subr.bf16.mxu0 0
      %451 = vmatpush1.bf16.msra.mxu0 0
      %452 = vmatprep.subr.bf16.mxu0 0
      %453 = vmatpush1.bf16.msra.mxu0 0
      %454 = vmatprep.mubr.bf16.mxu0 0
      %455 = vmatmul.mubr.bf16.gmra.mrb[0].mxu0 %v421
      %v456 = vpop.f32.mrb[0].mxu0
      %v457 = vadd.f32 0.0, %v456
      %v458 = vpop.f32.mrb[0].mxu0
      %v459 = vpop.f32.mrb[0].mxu0
      %v460 = vpop.f32.mrb[0].mxu0
      %461 = vdwg.mxu0
      %v462 = vpack.c.bf16 %v457, %v457
      %v463 = vlaneseq
      %v464 = vand.u32 %v463, 127
      %s465 = sld [smem:[#allocation3 + %s24]]
      %v466 = vstv %s465
      %vm467 = vcmp.ge.s32.totalorder %v464, %v466
      %vm468 = vcmask 261120
      %v470 = vsel %vm468, %v407, 0
      %v473 = vsel %vm468, %v462, 0
      %475 = vmatprep.subr.bf16.mxu0 0
      %476 = vmatpush1.bf16.xpose.msra.mxu0 %v473
      %477 = vmatprep.subr.bf16.mxu0 0
      %478 = vmatpush1.bf16.xpose.msra.mxu0 0
      %479 = vmatprep.subr.bf16.mxu0 0
      %480 = vmatpush1.bf16.xpose.msra.mxu0 0
      %481 = vmatprep.subr.bf16.mxu0 0
      %482 = vmatpush1.bf16.xpose.msra.mxu0 0
      %483 = vmatprep.subr.bf16.mxu0 0
      %484 = vmatpush1.bf16.xpose.msra.mxu0 0
      %485 = vmatprep.subr.bf16.mxu0 0
      %486 = vmatpush1.bf16.xpose.msra.mxu0 0
      %487 = vmatprep.subr.bf16.mxu0 0
      %488 = vmatpush1.bf16.xpose.msra.mxu0 0
      %489 = vmatprep.subr.bf16.mxu0 0
      %490 = vmatpush1.bf16.xpose.msra.mxu0 0
      %491 = vmatprep.subr.bf16.mxu0 0
      %492 = vmatpush1.bf16.xpose.msra.mxu0 0
      %493 = vmatprep.subr.bf16.mxu0 0
      %494 = vmatpush1.bf16.xpose.msra.mxu0 0
      %495 = vmatprep.subr.bf16.mxu0 0
      %496 = vmatpush1.bf16.xpose.msra.mxu0 0
      %497 = vmatprep.subr.bf16.mxu0 0
      %498 = vmatpush1.bf16.xpose.msra.mxu0 0
      %499 = vmatprep.subr.bf16.mxu0 0
      %500 = vmatpush1.bf16.xpose.msra.mxu0 0
      %501 = vmatprep.subr.bf16.mxu0 0
      %502 = vmatpush1.bf16.xpose.msra.mxu0 0
      %503 = vmatprep.subr.bf16.mxu0 0
      %504 = vmatpush1.bf16.xpose.msra.mxu0 0
      %505 = vmatprep.subr.bf16.mxu0 0
      %506 = vmatpush1.bf16.xpose.msra.mxu0 0
      %507 = vmatprep.mubr.bf16.mxu0 0
      %508 = vmatmul.mubr.bf16.gmra.mrb[0].mxu0 %v470
      %v509 = vpop.f32.mrb[0].mxu0
      %v510 = vadd.f32 0.0, %v509
      %v511 = vpop.f32.mrb[0].mxu0
      %v512 = vpop.f32.mrb[0].mxu0
      %v513 = vpop.f32.mrb[0].mxu0
      %514 = vdwg.mxu0
      %v515 = vmul.f32 %v510, 0.17677669
      %v516 = vsel %vm467, -inf, %v515
      %vm517 = vcmask 64512
      %v518 = vsel %vm517, %v516, -inf
      %519 = vmax.xlane.f32.xlu0 %v518
      %v520 = vpop.xlane.xlu0 %519
      %v521 = vsub.f32 %v516, %v520
      %v522 = vmul.f32 %v521, 1.442695
      %v523 = vpow.pop %v522
      %v524 = vsel %vm517, %v523, 0.0
      %525 = vadd.xlane.f32.xlu0 %v524
      %v526 = vpop.xlane.xlu0 %525
      %v527 = vrcp.pop %v526
      %v528 = vmul.f32 %v523, %v527
      %v529 = vpack.c.bf16 %v528, %v528
      %v531 = vsel %vm517, %v529, 0
      %vm533 = vcmask 1043456
      %v534 = vsel %vm533, %v462, 0
      %536 = vmatprep.subr.bf16.mxu0 0
      %537 = vmatpush1.bf16.msra.mxu0 %v534
      %538 = vmatprep.subr.bf16.mxu0 0
      %539 = vmatpush1.bf16.msra.mxu0 0
      %540 = vmatprep.subr.bf16.mxu0 0
      %541 = vmatpush1.bf16.msra.mxu0 0
      %542 = vmatprep.subr.bf16.mxu0 0
      %543 = vmatpush1.bf16.msra.mxu0 0
      %544 = vmatprep.subr.bf16.mxu0 0
      %545 = vmatpush1.bf16.msra.mxu0 0
      %546 = vmatprep.subr.bf16.mxu0 0
      %547 = vmatpush1.bf16.msra.mxu0 0
      %548 = vmatprep.subr.bf16.mxu0 0
      %549 = vmatpush1.bf16.msra.mxu0 0
      %550 = vmatprep.subr.bf16.mxu0 0
      %551 = vmatpush1.bf16.msra.mxu0 0
      %552 = vmatprep.subr.bf16.mxu0 0
      %553 = vmatpush1.bf16.msra.mxu0 0
      %554 = vmatprep.subr.bf16.mxu0 0
      %555 = vmatpush1.bf16.msra.mxu0 0
      %556 = vmatprep.subr.bf16.mxu0 0
      %557 = vmatpush1.bf16.msra.mxu0 0
      %558 = vmatprep.subr.bf16.mxu0 0
      %559 = vmatpush1.bf16.msra.mxu0 0
      %560 = vmatprep.subr.bf16.mxu0 0
      %561 = vmatpush1.bf16.msra.mxu0 0
      %562 = vmatprep.subr.bf16.mxu0 0
      %563 = vmatpush1.bf16.msra.mxu0 0
      %564 = vmatprep.subr.bf16.mxu0 0
      %565 = vmatpush1.bf16.msra.mxu0 0
      %566 = vmatprep.subr.bf16.mxu0 0
      %567 = vmatpush1.bf16.msra.mxu0 0
      %568 = vmatprep.mubr.bf16.mxu0 0
      %569 = vmatmul.mubr.bf16.gmra.mrb[0].mxu0 %v531
      %v570 = vpop.f32.mrb[0].mxu0
      %v571 = vadd.f32 0.0, %v570
      %v572 = vpop.f32.mrb[0].mxu0
      %v573 = vpop.f32.mrb[0].mxu0
      %v574 = vpop.f32.mrb[0].mxu0
      %575 = vdwg.mxu0
      %577 = vrot.lane.b32.xlu0 %v407, 96
      %v578 = vpop.permute.xlu0 %577
      %580 = vrot.lane.b32.xlu0 %v462, 96
      %v581 = vpop.permute.xlu0 %580
      %v583 = vsel %vm468, %v578, 0
      %v586 = vsel %vm468, %v581, 0
      %588 = vmatprep.subr.bf16.mxu0 0
      %589 = vmatpush1.bf16.xpose.msra.mxu0 %v586
      %590 = vmatprep.subr.bf16.mxu0 0
      %591 = vmatpush1.bf16.xpose.msra.mxu0 0
      %592 = vmatprep.subr.bf16.mxu0 0
      %593 = vmatpush1.bf16.xpose.msra.mxu0 0
      %594 = vmatprep.subr.bf16.mxu0 0
      %595 = vmatpush1.bf16.xpose.msra.mxu0 0
      %596 = vmatprep.subr.bf16.mxu0 0
      %597 = vmatpush1.bf16.xpose.msra.mxu0 0
      %598 = vmatprep.subr.bf16.mxu0 0
      %599 = vmatpush1.bf16.xpose.msra.mxu0 0
      %600 = vmatprep.subr.bf16.mxu0 0
      %601 = vmatpush1.bf16.xpose.msra.mxu0 0
      %602 = vmatprep.subr.bf16.mxu0 0
      %603 = vmatpush1.bf16.xpose.msra.mxu0 0
      %604 = vmatprep.subr.bf16.mxu0 0
      %605 = vmatpush1.bf16.xpose.msra.mxu0 0
      %606 = vmatprep.subr.bf16.mxu0 0
      %607 = vmatpush1.bf16.xpose.msra.mxu0 0
      %608 = vmatprep.subr.bf16.mxu0 0
      %609 = vmatpush1.bf16.xpose.msra.mxu0 0
      %610 = vmatprep.subr.bf16.mxu0 0
      %611 = vmatpush1.bf16.xpose.msra.mxu0 0
      %612 = vmatprep.subr.bf16.mxu0 0
      %613 = vmatpush1.bf16.xpose.msra.mxu0 0
      %614 = vmatprep.subr.bf16.mxu0 0
      %615 = vmatpush1.bf16.xpose.msra.mxu0 0
      %616 = vmatprep.subr.bf16.mxu0 0
      %617 = vmatpush1.bf16.xpose.msra.mxu0 0
      %618 = vmatprep.subr.bf16.mxu0 0
      %619 = vmatpush1.bf16.xpose.msra.mxu0 0
      %620 = vmatprep.mubr.bf16.mxu0 0
      %621 = vmatmul.mubr.bf16.gmra.mrb[0].mxu0 %v583
      %v622 = vpop.f32.mrb[0].mxu0
      %v623 = vadd.f32 0.0, %v622
      %v624 = vpop.f32.mrb[0].mxu0
      %v625 = vpop.f32.mrb[0].mxu0
      %v626 = vpop.f32.mrb[0].mxu0
      %627 = vdwg.mxu0
      %v628 = vmul.f32 %v623, 0.17677669
      %v629 = vsel %vm467, -inf, %v628
      %v630 = vsel %vm517, %v629, -inf
      %631 = vmax.xlane.f32.xlu0 %v630
      %v632 = vpop.xlane.xlu0 %631
      %v633 = vsub.f32 %v629, %v632
      %v634 = vmul.f32 %v633, 1.442695
      %v635 = vpow.pop %v634
      %v636 = vsel %vm517, %v635, 0.0
      %637 = vadd.xlane.f32.xlu0 %v636
      %v638 = vpop.xlane.xlu0 %637
      %v639 = vrcp.pop %v638
      %v640 = vmul.f32 %v635, %v639
      %v641 = vpack.c.bf16 %v640, %v640
      %v643 = vsel %vm517, %v641, 0
      %v645 = vsel %vm533, %v581, 0
      %647 = vmatprep.subr.bf16.mxu0 0
      %648 = vmatpush1.bf16.msra.mxu0 %v645
      %649 = vmatprep.subr.bf16.mxu0 0
      %650 = vmatpush1.bf16.msra.mxu0 0
      %651 = vmatprep.subr.bf16.mxu0 0
      %652 = vmatpush1.bf16.msra.mxu0 0
      %653 = vmatprep.subr.bf16.mxu0 0
      %654 = vmatpush1.bf16.msra.mxu0 0
      %655 = vmatprep.subr.bf16.mxu0 0
      %656 = vmatpush1.bf16.msra.mxu0 0
      %657 = vmatprep.subr.bf16.mxu0 0
      %658 = vmatpush1.bf16.msra.mxu0 0
      %659 = vmatprep.subr.bf16.mxu0 0
      %660 = vmatpush1.bf16.msra.mxu0 0
      %661 = vmatprep.subr.bf16.mxu0 0
      %662 = vmatpush1.bf16.msra.mxu0 0
      %663 = vmatprep.subr.bf16.mxu0 0
      %664 = vmatpush1.bf16.msra.mxu0 0
      %665 = vmatprep.subr.bf16.mxu0 0
      %666 = vmatpush1.bf16.msra.mxu0 0
      %667 = vmatprep.subr.bf16.mxu0 0
      %668 = vmatpush1.bf16.msra.mxu0 0
      %669 = vmatprep.subr.bf16.mxu0 0
      %670 = vmatpush1.bf16.msra.mxu0 0
      %671 = vmatprep.subr.bf16.mxu0 0
      %672 = vmatpush1.bf16.msra.mxu0 0
      %673 = vmatprep.subr.bf16.mxu0 0
      %674 = vmatpush1.bf16.msra.mxu0 0
      %675 = vmatprep.subr.bf16.mxu0 0
      %676 = vmatpush1.bf16.msra.mxu0 0
      %677 = vmatprep.subr.bf16.mxu0 0
      %678 = vmatpush1.bf16.msra.mxu0 0
      %679 = vmatprep.mubr.bf16.mxu0 0
      %680 = vmatmul.mubr.bf16.gmra.mrb[0].mxu0 %v643
      %v681 = vpop.f32.mrb[0].mxu0
      %v682 = vadd.f32 0.0, %v681
      %v683 = vpop.f32.mrb[0].mxu0
      %v684 = vpop.f32.mrb[0].mxu0
      %v685 = vpop.f32.mrb[0].mxu0
      %686 = vdwg.mxu0
      %687 = vrot.lane.b32.xlu0 %v407, 64
      %v688 = vpop.permute.xlu0 %687
      %689 = vrot.lane.b32.xlu0 %v462, 64
      %v690 = vpop.permute.xlu0 %689
      %v692 = vsel %vm468, %v688, 0
      %v695 = vsel %vm468, %v690, 0
      %697 = vmatprep.subr.bf16.mxu0 0
      %698 = vmatpush1.bf16.xpose.msra.mxu0 %v695
      %699 = vmatprep.subr.bf16.mxu0 0
      %700 = vmatpush1.bf16.xpose.msra.mxu0 0
      %701 = vmatprep.subr.bf16.mxu0 0
      %702 = vmatpush1.bf16.xpose.msra.mxu0 0
      %703 = vmatprep.subr.bf16.mxu0 0
      %704 = vmatpush1.bf16.xpose.msra.mxu0 0
      %705 = vmatprep.subr.bf16.mxu0 0
      %706 = vmatpush1.bf16.xpose.msra.mxu0 0
      %707 = vmatprep.subr.bf16.mxu0 0
      %708 = vmatpush1.bf16.xpose.msra.mxu0 0
      %709 = vmatprep.subr.bf16.mxu0 0
      %710 = vmatpush1.bf16.xpose.msra.mxu0 0
      %711 = vmatprep.subr.bf16.mxu0 0
      %712 = vmatpush1.bf16.xpose.msra.mxu0 0
      %713 = vmatprep.subr.bf16.mxu0 0
      %714 = vmatpush1.bf16.xpose.msra.mxu0 0
      %715 = vmatprep.subr.bf16.mxu0 0
      %716 = vmatpush1.bf16.xpose.msra.mxu0 0
      %717 = vmatprep.subr.bf16.mxu0 0
      %718 = vmatpush1.bf16.xpose.msra.mxu0 0
      %719 = vmatprep.subr.bf16.mxu0 0
      %720 = vmatpush1.bf16.xpose.msra.mxu0 0
      %721 = vmatprep.subr.bf16.mxu0 0
      %722 = vmatpush1.bf16.xpose.msra.mxu0 0
      %723 = vmatprep.subr.bf16.mxu0 0
      %724 = vmatpush1.bf16.xpose.msra.mxu0 0
      %725 = vmatprep.subr.bf16.mxu0 0
      %726 = vmatpush1.bf16.xpose.msra.mxu0 0
      %727 = vmatprep.subr.bf16.mxu0 0
      %728 = vmatpush1.bf16.xpose.msra.mxu0 0
      %729 = vmatprep.mubr.bf16.mxu0 0
      %730 = vmatmul.mubr.bf16.gmra.mrb[0].mxu0 %v692
      %v731 = vpop.f32.mrb[0].mxu0
      %v732 = vadd.f32 0.0, %v731
      %v733 = vpop.f32.mrb[0].mxu0
      %v734 = vpop.f32.mrb[0].mxu0
      %v735 = vpop.f32.mrb[0].mxu0
      %736 = vdwg.mxu0
      %v737 = vmul.f32 %v732, 0.17677669
      %v738 = vsel %vm467, -inf, %v737
      %v739 = vsel %vm517, %v738, -inf
      %740 = vmax.xlane.f32.xlu0 %v739
      %v741 = vpop.xlane.xlu0 %740
      %v742 = vsub.f32 %v738, %v741
      %v743 = vmul.f32 %v742, 1.442695
      %v744 = vpow.pop %v743
      %v745 = vsel %vm517, %v744, 0.0
      %746 = vadd.xlane.f32.xlu0 %v745
      %v747 = vpop.xlane.xlu0 %746
      %v748 = vrcp.pop %v747
      %v749 = vmul.f32 %v744, %v748
      %v750 = vpack.c.bf16 %v749, %v749
      %v752 = vsel %vm517, %v750, 0
      %v754 = vsel %vm533, %v690, 0
      %756 = vmatprep.subr.bf16.mxu0 0
      %757 = vmatpush1.bf16.msra.mxu0 %v754
      %758 = vmatprep.subr.bf16.mxu0 0
      %759 = vmatpush1.bf16.msra.mxu0 0
      %760 = vmatprep.subr.bf16.mxu0 0
      %761 = vmatpush1.bf16.msra.mxu0 0
      %762 = vmatprep.subr.bf16.mxu0 0
      %763 = vmatpush1.bf16.msra.mxu0 0
      %764 = vmatprep.subr.bf16.mxu0 0
      %765 = vmatpush1.bf16.msra.mxu0 0
      %766 = vmatprep.subr.bf16.mxu0 0
      %767 = vmatpush1.bf16.msra.mxu0 0
      %768 = vmatprep.subr.bf16.mxu0 0
      %769 = vmatpush1.bf16.msra.mxu0 0
      %770 = vmatprep.subr.bf16.mxu0 0
      %771 = vmatpush1.bf16.msra.mxu0 0
      %772 = vmatprep.subr.bf16.mxu0 0
      %773 = vmatpush1.bf16.msra.mxu0 0
      %774 = vmatprep.subr.bf16.mxu0 0
      %775 = vmatpush1.bf16.msra.mxu0 0
      %776 = vmatprep.subr.bf16.mxu0 0
      %777 = vmatpush1.bf16.msra.mxu0 0
      %778 = vmatprep.subr.bf16.mxu0 0
      %779 = vmatpush1.bf16.msra.mxu0 0
      %780 = vmatprep.subr.bf16.mxu0 0
      %781 = vmatpush1.bf16.msra.mxu0 0
      %782 = vmatprep.subr.bf16.mxu0 0
      %783 = vmatpush1.bf16.msra.mxu0 0
      %784 = vmatprep.subr.bf16.mxu0 0
      %785 = vmatpush1.bf16.msra.mxu0 0
      %786 = vmatprep.subr.bf16.mxu0 0
      %787 = vmatpush1.bf16.msra.mxu0 0
      %788 = vmatprep.mubr.bf16.mxu0 0
      %789 = vmatmul.mubr.bf16.gmra.mrb[0].mxu0 %v752
      %v790 = vpop.f32.mrb[0].mxu0
      %v791 = vadd.f32 0.0, %v790
      %v792 = vpop.f32.mrb[0].mxu0
      %v793 = vpop.f32.mrb[0].mxu0
      %v794 = vpop.f32.mrb[0].mxu0
      %795 = vdwg.mxu0
      %796 = vrot.lane.b32.xlu0 %v407, 32
      %v797 = vpop.permute.xlu0 %796
      %798 = vrot.lane.b32.xlu0 %v462, 32
      %v799 = vpop.permute.xlu0 %798
      %v801 = vsel %vm468, %v797, 0
      %v804 = vsel %vm468, %v799, 0
      %806 = vmatprep.subr.bf16.mxu0 0
      %807 = vmatpush1.bf16.xpose.msra.mxu0 %v804
      %808 = vmatprep.subr.bf16.mxu0 0
      %809 = vmatpush1.bf16.xpose.msra.mxu0 0
      %810 = vmatprep.subr.bf16.mxu0 0
      %811 = vmatpush1.bf16.xpose.msra.mxu0 0
      %812 = vmatprep.subr.bf16.mxu0 0
      %813 = vmatpush1.bf16.xpose.msra.mxu0 0
      %814 = vmatprep.subr.bf16.mxu0 0
      %815 = vmatpush1.bf16.xpose.msra.mxu0 0
      %816 = vmatprep.subr.bf16.mxu0 0
      %817 = vmatpush1.bf16.xpose.msra.mxu0 0
      %818 = vmatprep.subr.bf16.mxu0 0
      %819 = vmatpush1.bf16.xpose.msra.mxu0 0
      %820 = vmatprep.subr.bf16.mxu0 0
      %821 = vmatpush1.bf16.xpose.msra.mxu0 0
      %822 = vmatprep.subr.bf16.mxu0 0
      %823 = vmatpush1.bf16.xpose.msra.mxu0 0
      %824 = vmatprep.subr.bf16.mxu0 0
      %825 = vmatpush1.bf16.xpose.msra.mxu0 0
      %826 = vmatprep.subr.bf16.mxu0 0
      %827 = vmatpush1.bf16.xpose.msra.mxu0 0
      %828 = vmatprep.subr.bf16.mxu0 0
      %829 = vmatpush1.bf16.xpose.msra.mxu0 0
      %830 = vmatprep.subr.bf16.mxu0 0
      %831 = vmatpush1.bf16.xpose.msra.mxu0 0
      %832 = vmatprep.subr.bf16.mxu0 0
      %833 = vmatpush1.bf16.xpose.msra.mxu0 0
      %834 = vmatprep.subr.bf16.mxu0 0
      %835 = vmatpush1.bf16.xpose.msra.mxu0 0
      %836 = vmatprep.subr.bf16.mxu0 0
      %837 = vmatpush1.bf16.xpose.msra.mxu0 0
      %838 = vmatprep.mubr.bf16.mxu0 0
      %839 = vmatmul.mubr.bf16.gmra.mrb[0].mxu0 %v801
      %v840 = vpop.f32.mrb[0].mxu0
      %v841 = vadd.f32 0.0, %v840
      %v842 = vpop.f32.mrb[0].mxu0
      %v843 = vpop.f32.mrb[0].mxu0
      %v844 = vpop.f32.mrb[0].mxu0
      %845 = vdwg.mxu0
      %v846 = vmul.f32 %v841, 0.17677669
      %v847 = vsel %vm467, -inf, %v846
      %v848 = vsel %vm517, %v847, -inf
      %849 = vmax.xlane.f32.xlu0 %v848
      %v850 = vpop.xlane.xlu0 %849
      %v851 = vsub.f32 %v847, %v850
      %v852 = vmul.f32 %v851, 1.442695
      %v853 = vpow.pop %v852
      %v854 = vsel %vm517, %v853, 0.0
      %855 = vadd.xlane.f32.xlu0 %v854
      %v856 = vpop.xlane.xlu0 %855
      %v857 = vrcp.pop %v856
      %v858 = vmul.f32 %v853, %v857
      %v859 = vpack.c.bf16 %v858, %v858
      %v861 = vsel %vm517, %v859, 0
      %v863 = vsel %vm533, %v799, 0
      %865 = vmatprep.subr.bf16.mxu0 0
      %866 = vmatpush1.bf16.msra.mxu0 %v863
      %867 = vmatprep.subr.bf16.mxu0 0
      %868 = vmatpush1.bf16.msra.mxu0 0
      %869 = vmatprep.subr.bf16.mxu0 0
      %870 = vmatpush1.bf16.msra.mxu0 0
      %871 = vmatprep.subr.bf16.mxu0 0
      %872 = vmatpush1.bf16.msra.mxu0 0
      %873 = vmatprep.subr.bf16.mxu0 0
      %874 = vmatpush1.bf16.msra.mxu0 0
      %875 = vmatprep.subr.bf16.mxu0 0
      %876 = vmatpush1.bf16.msra.mxu0 0
      %877 = vmatprep.subr.bf16.mxu0 0
      %878 = vmatpush1.bf16.msra.mxu0 0
      %879 = vmatprep.subr.bf16.mxu0 0
      %880 = vmatpush1.bf16.msra.mxu0 0
      %881 = vmatprep.subr.bf16.mxu0 0
      %882 = vmatpush1.bf16.msra.mxu0 0
      %883 = vmatprep.subr.bf16.mxu0 0
      %884 = vmatpush1.bf16.msra.mxu0 0
      %885 = vmatprep.subr.bf16.mxu0 0
      %886 = vmatpush1.bf16.msra.mxu0 0
      %887 = vmatprep.subr.bf16.mxu0 0
      %888 = vmatpush1.bf16.msra.mxu0 0
      %889 = vmatprep.subr.bf16.mxu0 0
      %890 = vmatpush1.bf16.msra.mxu0 0
      %891 = vmatprep.subr.bf16.mxu0 0
      %892 = vmatpush1.bf16.msra.mxu0 0
      %893 = vmatprep.subr.bf16.mxu0 0
      %894 = vmatpush1.bf16.msra.mxu0 0
      %895 = vmatprep.subr.bf16.mxu0 0
      %896 = vmatpush1.bf16.msra.mxu0 0
      %897 = vmatprep.mubr.bf16.mxu0 0
      %898 = vmatmul.mubr.bf16.gmra.mrb[0].mxu0 %v861
      %v899 = vpop.f32.mrb[0].mxu0
      %v900 = vadd.f32 0.0, %v899
      %v901 = vpop.f32.mrb[0].mxu0
      %v902 = vpop.f32.mrb[0].mxu0
      %v903 = vpop.f32.mrb[0].mxu0
      %904 = vdwg.mxu0
      %906 = vrot.lane.b32.xlu0 %v682, 32
      %v907 = vpop.permute.xlu0 %906
      %910 = vrot.lane.b32.xlu0 %v791, 64
      %v911 = vpop.permute.xlu0 %910
      %914 = vrot.lane.b32.xlu0 %v900, 96
      %v915 = vpop.permute.xlu0 %914
      %v917 = vsel %vm468, %v571, %v907
      %vm918 = vcmask 523264
      %v919 = vsel %vm918, %v917, %v911
      %vm920 = vcmask 785408
      %v921 = vsel %vm920, %v919, %v915
      %v922 = vpack.c.bf16 %v921, %v921
      %v923 = vld [vmem:[%s6] sm:$0xf]
      %v924 = vld [vmem:[%s6 + $0x4] sm:$0xf]
      %v925 = vld [vmem:[%s6 + $0x8] sm:$0xf]
      %v926 = vld [vmem:[%s6 + $0xc] sm:$0xf]
      %v927 = vld [vmem:[%s6 + $0x10] sm:$0xf]
      %v928 = vld [vmem:[%s6 + $0x14] sm:$0xf]
      %v929 = vld [vmem:[%s6 + $0x18] sm:$0xf]
      %v930 = vld [vmem:[%s6 + $0x1c] sm:$0xf]
      %v931 = vld [vmem:[%s6 + $0x20] sm:$0xf]
      %v932 = vld [vmem:[%s6 + $0x24] sm:$0xf]
      %v933 = vld [vmem:[%s6 + $0x28] sm:$0xf]
      %v934 = vld [vmem:[%s6 + $0x2c] sm:$0xf]
      %v935 = vld [vmem:[%s6 + $0x30] sm:$0xf]
      %v936 = vld [vmem:[%s6 + $0x34] sm:$0xf]
      %v937 = vld [vmem:[%s6 + $0x38] sm:$0xf]
      %v938 = vld [vmem:[%s6 + $0x3c] sm:$0xf]
      %v955 = vunpack.c.l.b16 %v923
      %v956 = vunpack.c.l.b16 %v924
      %v957 = vunpack.c.l.b16 %v925
      %v958 = vunpack.c.l.b16 %v926
      %v959 = vunpack.c.l.b16 %v927
      %v960 = vunpack.c.l.b16 %v928
      %v961 = vunpack.c.l.b16 %v929
      %v962 = vunpack.c.l.b16 %v930
      %v963 = vunpack.c.l.b16 %v931
      %v964 = vunpack.c.l.b16 %v932
      %v965 = vunpack.c.l.b16 %v933
      %v966 = vunpack.c.l.b16 %v934
      %v967 = vunpack.c.l.b16 %v935
      %v968 = vunpack.c.l.b16 %v936
      %v969 = vunpack.c.l.b16 %v937
      %v970 = vunpack.c.l.b16 %v938
      %v971 = vpack.c.b16 %v956, %v955
      %v972 = vpack.c.b16 %v958, %v957
      %v973 = vpack.c.b16 %v960, %v959
      %v974 = vpack.c.b16 %v962, %v961
      %v975 = vpack.c.b16 %v964, %v963
      %v976 = vpack.c.b16 %v966, %v965
      %v977 = vpack.c.b16 %v968, %v967
      %v978 = vpack.c.b16 %v970, %v969
      %987 = vmatprep.subr.bf16.mxu0 0
      %988 = vmatpush1.bf16.msra.mxu0 %v971
      %989 = vmatprep.subr.bf16.mxu0 0
      %990 = vmatpush1.bf16.msra.mxu0 %v972
      %991 = vmatprep.subr.bf16.mxu0 0
      %992 = vmatpush1.bf16.msra.mxu0 %v973
      %993 = vmatprep.subr.bf16.mxu0 0
      %994 = vmatpush1.bf16.msra.mxu0 %v974
      %995 = vmatprep.subr.bf16.mxu0 0
      %996 = vmatpush1.bf16.msra.mxu0 %v975
      %997 = vmatprep.subr.bf16.mxu0 0
      %998 = vmatpush1.bf16.msra.mxu0 %v976
      %999 = vmatprep.subr.bf16.mxu0 0
      %1000 = vmatpush1.bf16.msra.mxu0 %v977
      %1001 = vmatprep.subr.bf16.mxu0 0
      %1002 = vmatpush1.bf16.msra.mxu0 %v978
      %1003 = vmatprep.subr.bf16.mxu0 0
      %1004 = vmatpush1.bf16.msra.mxu0 0
      %1005 = vmatprep.subr.bf16.mxu0 0
      %1006 = vmatpush1.bf16.msra.mxu0 0
      %1007 = vmatprep.subr.bf16.mxu0 0
      %1008 = vmatpush1.bf16.msra.mxu0 0
      %1009 = vmatprep.subr.bf16.mxu0 0
      %1010 = vmatpush1.bf16.msra.mxu0 0
      %1011 = vmatprep.subr.bf16.mxu0 0
      %1012 = vmatpush1.bf16.msra.mxu0 0
      %1013 = vmatprep.subr.bf16.mxu0 0
      %1014 = vmatpush1.bf16.msra.mxu0 0
      %1015 = vmatprep.subr.bf16.mxu0 0
      %1016 = vmatpush1.bf16.msra.mxu0 0
      %1017 = vmatprep.subr.bf16.mxu0 0
      %1018 = vmatpush1.bf16.msra.mxu0 0
      %1019 = vmatprep.mubr.bf16.mxu0 0
      %1020 = vmatmul.mubr.bf16.gmra.mrb[0].mxu0 %v922
      %v1021 = vpop.f32.mrb[0].mxu0
      %v1022 = vadd.f32 0.0, %v1021
      %v1023 = vpop.f32.mrb[0].mxu0
      %v1024 = vpop.f32.mrb[0].mxu0
      %v1025 = vpop.f32.mrb[0].mxu0
      %1026 = vdwg.mxu0
      %v1027 = vadd.f32 %v272, %v1022
      %1028 = vst [vmem:[%s270] sm:$0xff] %v1027
      %p1029 = scmp.lt.s32.totalorder %s24, 1
      %s1030 = scalar_select %p1029, %s24, 1
      %s1031 = smul.addr %s1030, 8
      %s1032 = scalar_lea.vmem %s7, %s1031
      // Predicated region
      $region45: #{transformer_forward.16} parent=43 // pred_check
        %p1033 = pneg %p178
      $region46: #{transformer_forward.16} parent=43 // pred_check_branch
        %1035 = sbr.rel (%p1033) target = $region48
      $region47: #{transformer_forward.16} parent=43 // pred_region
        _
      $region48: #{transformer_forward.16} parent=43 // pred_fallthru
        _
    $region44: #{transformer_forward.16} parent=5 // pred_fallthru
      _
    %p1036 = scmp.le.s32.totalorder 2, %s19
    // Predicated region
    $region49: #{transformer_forward.16} parent=5 // pred_check
      %p1037 = pneg %p1036
    $region50: #{transformer_forward.16} parent=5 // pred_check_branch
      %1039 = sbr.rel (%p1037) target = $region52
    $region51: #{transformer_forward.16} parent=5 // pred_region
      %s1040 = ssub.s32 %s19, 2
      // Predicated region
      $region53: #{transformer_forward.16} parent=51 // pred_check
        %p1041 = pneg %p184
      $region54: #{transformer_forward.16} parent=51 // pred_check_branch
        %1043 = sbr.rel (%p1041) target = $region56
      $region55: #{transformer_forward.16} parent=51 // pred_region
        %p1044 = scmp.lt.s32.totalorder %s25, 1
        %s1045 = scalar_select %p1044, %s25, 1
        %s1046 = smul.addr %s1045, 8
        %s1047 = scalar_lea.vmem %s7, %s1046
      $region56: #{transformer_forward.16} parent=51 // pred_fallthru
        _
    $region52: #{transformer_forward.16} parent=5 // pred_fallthru
      _
  $region6: #{transformer_forward.16} parent=0 // loop_footer
    %s23 = sadd.s32 1, %s19
  $region7: #{transformer_forward.16} parent=0 // loop_footer_branch
    %18 = sbr.rel target = $region3
  $region8: #{transformer_forward.16} parent=0 // loop_exit
    _

</llo_original>
